<compile_context>
chip_gen: v5e
topology: v5e:2x2
jax: 0.10.0
libtpu: 0.0.40
codegen_flags: <defaults>
</compile_context>

<pallas_src>
import functools

import jax
import jax.numpy as jnp
from jax.experimental import pallas as pl
from jax.experimental.pallas import tpu as pltpu


# ---------------------------------------------------------------------------
# Packed-operand layout constants.
# ---------------------------------------------------------------------------
# Rows of the (32, 128) f32 "vector slab" (payload lives in lanes [0:D]).
_V_CONV_B, _V_E_BQ, _V_E_BK, _V_E_BV, _V_E_BO = 0, 1, 2, 3, 4
_V_E_LN1_G, _V_E_LN1_B, _V_E_FF_B2, _V_E_LN2_G, _V_E_LN2_B = 5, 6, 7, 8, 9
_V_CAP_B, _V_DSA_BV, _V_DSA_BO, _V_D_LN1_G, _V_D_LN1_B = 10, 11, 12, 13, 14
_V_DCA_BQ, _V_DCA_BK, _V_DCA_BV, _V_DCA_BO = 15, 16, 17, 18
_V_D_LN2_G, _V_D_LN2_B, _V_D_FF_B2, _V_D_LN3_G, _V_D_LN3_B = 19, 20, 21, 22, 23
_V_FIN_W, _V_FIN_B = 24, 25
_N_VEC_ROWS = 32

# Slices of the (5, D, D) full-matrix slab.
_W_E_WO, _W_DSA_WV, _W_DSA_WO, _W_DCA_WO, _W_CAP = 0, 1, 2, 3, 4

_PACKED_ORDER = ("conv_w", "w_heads", "w_dd", "ffn_w1", "ffn_w2", "ffn_b1", "vecs")


# ---------------------------------------------------------------------------
# In-kernel building blocks.
# ---------------------------------------------------------------------------
def _add_layernorm(x, res, g, b):
    """LayerNorm(x + residual); eps matches the PyTorch default 1e-5."""
    y = x + res
    mu = jnp.mean(y, axis=-1, keepdims=True)
    var = jnp.mean((y - mu) ** 2, axis=-1, keepdims=True)
    return (y - mu) * jax.lax.rsqrt(var + 1e-5) * g + b


def _ffn(x, w1, b1, w2, b2):
    """Transformer FFN: linear -> ReLU -> linear (bf16 matmuls, f32 acc)."""
    h = jnp.dot(x.astype(jnp.bfloat16), w1, preferred_element_type=jnp.float32) + b1
    h = jnp.maximum(h, 0.0)
    return jnp.dot(h.astype(jnp.bfloat16), w2, preferred_element_type=jnp.float32) + b2


def _mha(q_in, kv_in, bb, sq, skv, nh, heads_ref, base, bq, bk, bv, wo, bo):
    """Multi-head attention, eval mode, no mask.

    q_in: (bb*sq, D) f32, kv_in: (bb*skv, D) f32.  Per-head Q/K/V weights are
    pre-split in the wrapper and leading-indexed from `heads_ref` as (D, hd)
    slices, so the kernel never lane-slices / stacks / transposes projected
    values — only leading-dim reshapes and single-batch-dim einsums remain.
    """
    f32, bf16 = jnp.float32, jnp.bfloat16
    hd = heads_ref.shape[-1]
    scale = 1.0 / float(hd) ** 0.5
    q_bf = q_in.astype(bf16)
    kv_bf = kv_in.astype(bf16)

    ctx_heads = []
    for h in range(nh):
        wq_h = heads_ref[base + 0 * nh + h]            # (D, hd) bf16
        wk_h = heads_ref[base + 1 * nh + h]
        wv_h = heads_ref[base + 2 * nh + h]
        qh = (jnp.dot(q_bf, wq_h, preferred_element_type=f32)
              + bq[:, h * hd:(h + 1) * hd]).reshape(bb, sq, hd)
        kh = (jnp.dot(kv_bf, wk_h, preferred_element_type=f32)
              + bk[:, h * hd:(h + 1) * hd]).reshape(bb, skv, hd)
        vh = (jnp.dot(kv_bf, wv_h, preferred_element_type=f32)
              + bv[:, h * hd:(h + 1) * hd]).reshape(bb, skv, hd)
        s = jnp.einsum("bqd,bkd->bqk", qh.astype(bf16), kh.astype(bf16),
                       preferred_element_type=f32) * scale
        s = s - jnp.max(s, axis=-1, keepdims=True)
        p = jnp.exp(s)
        p = p * (1.0 / jnp.sum(p, axis=-1, keepdims=True))     # exact reciprocal
        ctx = jnp.einsum("bqk,bkd->bqd", p.astype(bf16), vh.astype(bf16),
                         preferred_element_type=f32)
        ctx_heads.append(ctx.reshape(bb * sq, hd))
    ctx_all = jnp.concatenate(ctx_heads, axis=-1)              # (bb*sq, D)
    return jnp.dot(ctx_all.astype(bf16), wo, preferred_element_type=f32) + bo


# ---------------------------------------------------------------------------
# Fused kernel: one batch block (bb elements) per grid step.
# ---------------------------------------------------------------------------
def _narx_kernel(patches_ref, cap_ref, conv_w_ref, w_heads_ref, w_dd_ref,
                 ffn_w1_ref, ffn_w2_ref, ffn_b1_ref, vecs_ref, o_ref,
                 *, num_heads, seq_len):
    f32, bf16 = jnp.float32, jnp.bfloat16
    nh = num_heads
    S = seq_len
    bb = cap_ref.shape[0]
    D = conv_w_ref.shape[-1]

    vec = vecs_ref[...]                                 # (32, 128) f32

    def vrow(i):
        return vec[i:i + 1, :D]                         # (1, D)

    fb1 = ffn_b1_ref[...]                               # (2, dff) f32

    # ---- conv_layer ∘ conv_layer2 (pre-composed): one im2col matmul ----
    emb = jnp.dot(patches_ref[...], conv_w_ref[...],
                  preferred_element_type=f32) + vrow(_V_CONV_B)       # (bb*S, D)

    # ---- Transformer encoder layer (post-norm, ReLU, dropout == identity) ----
    sa = _mha(emb, emb, bb, S, S, nh, w_heads_ref, 0,
              vrow(_V_E_BQ), vrow(_V_E_BK), vrow(_V_E_BV),
              w_dd_ref[_W_E_WO], vrow(_V_E_BO))
    x1 = _add_layernorm(sa, emb, vrow(_V_E_LN1_G), vrow(_V_E_LN1_B))
    ff = _ffn(x1, ffn_w1_ref[0], fb1[0:1], ffn_w2_ref[0], vrow(_V_E_FF_B2))
    memory = _add_layernorm(ff, x1, vrow(_V_E_LN2_G), vrow(_V_E_LN2_B))  # (bb*S, D)

    # ---- tgt = cap_linear(capacity).unsqueeze(1)  (length-1 target) ----
    cap = cap_ref[...].reshape(bb, D)                   # zero-padded features, bf16
    tgt = jnp.dot(cap, w_dd_ref[_W_CAP],
                  preferred_element_type=f32) + vrow(_V_CAP_B)        # (bb, D)

    # ---- decoder self-attention over a length-1 target: softmax(1 key) == 1,
    #      so the block reduces exactly to Wo(Wv(tgt) + bv) + bo. ----
    v_sa = jnp.dot(tgt.astype(bf16), w_dd_ref[_W_DSA_WV],
                   preferred_element_type=f32) + vrow(_V_DSA_BV)
    sa_d = jnp.dot(v_sa.astype(bf16), w_dd_ref[_W_DSA_WO],
                   preferred_element_type=f32) + vrow(_V_DSA_BO)
    t1 = _add_layernorm(sa_d, tgt, vrow(_V_D_LN1_G), vrow(_V_D_LN1_B))

    # ---- decoder cross-attention (queries: bb length-1 targets) ----
    ca = _mha(t1, memory, bb, 1, S, nh, w_heads_ref, 3 * nh,
              vrow(_V_DCA_BQ), vrow(_V_DCA_BK), vrow(_V_DCA_BV),
              w_dd_ref[_W_DCA_WO], vrow(_V_DCA_BO))
    t2 = _add_layernorm(ca, t1, vrow(_V_D_LN2_G), vrow(_V_D_LN2_B))
    ff_d = _ffn(t2, ffn_w1_ref[1], fb1[1:2], ffn_w2_ref[1], vrow(_V_D_FF_B2))
    t3 = _add_layernorm(ff_d, t2, vrow(_V_D_LN3_G), vrow(_V_D_LN3_B))   # (bb, D)

    # ---- final linear (D -> 1), lane-broadcast into the (bb, 1, 128) block ----
    val = (jnp.sum(t3 * vrow(_V_FIN_W), axis=-1, keepdims=True)
           + vec[_V_FIN_B:_V_FIN_B + 1, 0:1])                           # (bb, 1)
    o_ref[...] = jnp.broadcast_to(val.reshape(bb, 1, 1), o_ref.shape)


# ---------------------------------------------------------------------------
# Forward wrapper (mirrors NARX_Transformer.forward, eval mode).
# ---------------------------------------------------------------------------
@functools.partial(jax.jit, static_argnames=("num_heads", "batch_block"))
def narx_forward(packed, my_data, capacity, *, num_heads, batch_block=None):
    """my_data: (B, num_cycles, H, W) NCHW; capacity: (B, num_cycles-1) -> (B, 1)."""
    B, C, H, W = my_data.shape
    assert W == 3, "conv_layer2 (k=3, valid) must reduce width to 1 (spec: squeeze(-1))"
    S = H - 2                                   # conv2 output height == seq length
    D = packed["conv_w"].shape[-1]
    kp = packed["conv_w"].shape[0]
    dff = packed["ffn_w1"].shape[-1]
    nh = num_heads
    hd = D // nh

    # im2col for the pre-composed conv1∘conv2 (layout glue; stays outside kernel).
    x = jnp.transpose(my_data, (0, 2, 3, 1)).astype(jnp.float32)        # NHWC
    xp = jnp.pad(x, ((0, 0), (1, 1), (1, 1), (0, 0)))                   # conv1 pad=1
    k_raw = 5 * (W + 2) * C
    patches = jnp.stack(
        [xp[:, i:i + 5, :, :].reshape(B, k_raw) for i in range(S)], axis=1)
    patches = jnp.pad(patches, ((0, 0), (0, 0), (0, kp - k_raw)))       # lane-pad to 128
    patches = patches.astype(jnp.bfloat16)                              # (B, S, kp)

    # Capacity, zero-padded to D input features (extra cap_w rows are zero).
    caplen = capacity.shape[-1]
    cap = jnp.pad(capacity.astype(jnp.float32), ((0, 0), (0, D - caplen)))
    cap = cap.reshape(B, 1, D).astype(jnp.bfloat16)

    # Batch blocking: bb elements per grid step (tune: larger on v5e/v6e, keep
    # >= 2 grid steps on v7x so both TensorCores are fed).
    bb = batch_block if batch_block is not None else max(1, min(B, 8))
    nblk = -(-B // bb)
    Bp = nblk * bb
    if Bp != B:
        patches = jnp.pad(patches, ((0, Bp - B), (0, 0), (0, 0)))
        cap = jnp.pad(cap, ((0, Bp - B), (0, 0), (0, 0)))
    patches2d = patches.reshape(Bp * S, kp)          # fold batch into the M dim

    weights = [packed[k] for k in _PACKED_ORDER]
    kernel = functools.partial(_narx_kernel, num_heads=nh, seq_len=S)

    flops = 2 * Bp * (S * kp * D + 4 * S * D * D + 2 * nh * S * S * hd
                      + 2 * S * D * dff + 4 * D * D + S * D * D
                      + 2 * nh * S * hd + 2 * D * dff + 2 * D)
    bytes_accessed = (sum(int(w.size) * w.dtype.itemsize for w in weights)
                      + int(patches2d.size) * 2 + int(cap.size) * 2 + Bp * 128 * 4)
    cost = pl.CostEstimate(flops=int(flops),
                           transcendentals=int(Bp * nh * S * (S + 1)),
                           bytes_accessed=int(bytes_accessed))

    out = pl.pallas_call(
        kernel,
        out_shape=jax.ShapeDtypeStruct((Bp, 1, 128), jnp.float32),
        grid=(nblk,),
        in_specs=(
            [pl.BlockSpec((bb * S, kp), lambda i: (i, 0)),
             pl.BlockSpec((bb, 1, D), lambda i: (i, 0, 0))]
            # Weights: whole-array, single-buffered, VMEM-resident for the
            # entire call (grid-invariant -> no per-step DMA).
            + [pl.BlockSpec(memory_space=pltpu.MemorySpace.VMEM)] * len(weights)),
        out_specs=pl.BlockSpec((bb, 1, 128), lambda i: (i, 0, 0)),
        compiler_params=pltpu.CompilerParams(
            dimension_semantics=("parallel",)),          # v7x: blocks across TCs
        cost_estimate=cost,
    )(patches2d, cap, *weights)
    return out[:B, 0, :1]                                               # (B, 1)


# ---------------------------------------------------------------------------
# Parameter init (synthetic, PyTorch-equivalent shapes) + packing.
# ---------------------------------------------------------------------------
def init_raw_params(key, feature_dim1, feature_dim2, num_cycles, dff):
    D = feature_dim2
    keys = iter(jax.random.split(key, 32))

    def w(shape, scale=0.05):
        return scale * jax.random.normal(next(keys), shape, jnp.float32)

    def zeros(shape):
        return jnp.zeros(shape, jnp.float32)

    def ones(shape):
        return jnp.ones(shape, jnp.float32)

    return {
        "conv1_w": w((3, 3, num_cycles, feature_dim1)), "conv1_b": zeros((feature_dim1,)),
        "conv2_w": w((3, 3, feature_dim1, D)), "conv2_b": zeros((D,)),
        "e_wq": w((D, D)), "e_bq": zeros((D,)),
        "e_wk": w((D, D)), "e_bk": zeros((D,)),
        "e_wv": w((D, D)), "e_bv": zeros((D,)),
        "e_wo": w((D, D)), "e_bo": zeros((D,)),
        "e_ln1_g": ones((D,)), "e_ln1_b": zeros((D,)),
        "e_ff_w1": w((D, dff)), "e_ff_b1": zeros((dff,)),
        "e_ff_w2": w((dff, D)), "e_ff_b2": zeros((D,)),
        "e_ln2_g": ones((D,)), "e_ln2_b": zeros((D,)),
        "cap_w": w((num_cycles - 1, D)), "cap_b": zeros((D,)),
        "d_sa_wv": w((D, D)), "d_sa_bv": zeros((D,)),
        "d_sa_wo": w((D, D)), "d_sa_bo": zeros((D,)),
        "d_ln1_g": ones((D,)), "d_ln1_b": zeros((D,)),
        "d_ca_wq": w((D, D)), "d_ca_bq": zeros((D,)),
        "d_ca_wk": w((D, D)), "d_ca_bk": zeros((D,)),
        "d_ca_wv": w((D, D)), "d_ca_bv": zeros((D,)),
        "d_ca_wo": w((D, D)), "d_ca_bo": zeros((D,)),
        "d_ln2_g": ones((D,)), "d_ln2_b": zeros((D,)),
        "d_ff_w1": w((D, dff)), "d_ff_b1": zeros((dff,)),
        "d_ff_w2": w((dff, D)), "d_ff_b2": zeros((D,)),
        "d_ln3_g": ones((D,)), "d_ln3_b": zeros((D,)),
        "fin_w": w((D,)), "fin_b": zeros(()),
    }


def pack_params(raw, *, img_w, num_heads):
    """Pack per-layer weights into the 7 kernel operands (conv composition,
    head-major Q/K/V slices, DxD slab, FFN stacks, bias/LN vector slab)."""
    bf16 = jnp.bfloat16
    D = raw["e_wq"].shape[0]
    hd = D // num_heads
    assert D % num_heads == 0
    assert img_w == 3

    # conv_layer ∘ conv_layer2 (no activation between them in the reference)
    # composed into one effective (5, W+2, Cin, D) linear map over padded rows.
    w1, b1 = raw["conv1_w"], raw["conv1_b"]
    w2, b2 = raw["conv2_w"], raw["conv2_b"]
    cin = w1.shape[2]
    wp2 = img_w + 2
    w_eff = jnp.zeros((5, wp2, cin, D), jnp.float32)
    for dy1 in range(3):
        for dx1 in range(3):
            for dy2 in range(3):
                for dx2 in range(3):
                    w_eff = w_eff.at[dy1 + dy2, dx1 + dx2].add(
                        jnp.einsum("cf,fd->cd", w1[dy1, dx1], w2[dy2, dx2]))
    b_eff = jnp.einsum("yxfd,f->d", w2, b1) + b2
    k_raw = 5 * wp2 * cin
    kp = ((k_raw + 127) // 128) * 128
    conv_w = jnp.zeros((kp, D), jnp.float32).at[:k_raw].set(
        w_eff.reshape(k_raw, D)).astype(bf16)

    # Head-major Q/K/V weight slices: encoder self-attn then decoder cross-attn.
    def head_slices(w):
        return [w[:, h * hd:(h + 1) * hd] for h in range(num_heads)]

    w_heads = jnp.stack(
        head_slices(raw["e_wq"]) + head_slices(raw["e_wk"]) + head_slices(raw["e_wv"])
        + head_slices(raw["d_ca_wq"]) + head_slices(raw["d_ca_wk"])
        + head_slices(raw["d_ca_wv"]), axis=0).astype(bf16)           # (6*nh, D, hd)

    cap_w = jnp.zeros((D, D), jnp.float32).at[:raw["cap_w"].shape[0]].set(raw["cap_w"])
    w_dd = jnp.stack([raw["e_wo"], raw["d_sa_wv"], raw["d_sa_wo"],
                      raw["d_ca_wo"], cap_w], axis=0).astype(bf16)    # (5, D, D)

    ffn_w1 = jnp.stack([raw["e_ff_w1"], raw["d_ff_w1"]], 0).astype(bf16)  # (2, D, dff)
    ffn_w2 = jnp.stack([raw["e_ff_w2"], raw["d_ff_w2"]], 0).astype(bf16)  # (2, dff, D)
    ffn_b1 = jnp.stack([raw["e_ff_b1"], raw["d_ff_b1"]], 0)               # (2, dff)

    vecs = jnp.zeros((_N_VEC_ROWS, 128), jnp.float32)

    def put(vs, row, v):
        return vs.at[row, :v.shape[0]].set(v)

    vecs = put(vecs, _V_CONV_B, b_eff)
    vecs = put(vecs, _V_E_BQ, raw["e_bq"]); vecs = put(vecs, _V_E_BK, raw["e_bk"])
    vecs = put(vecs, _V_E_BV, raw["e_bv"]); vecs = put(vecs, _V_E_BO, raw["e_bo"])
    vecs = put(vecs, _V_E_LN1_G, raw["e_ln1_g"]); vecs = put(vecs, _V_E_LN1_B, raw["e_ln1_b"])
    vecs = put(vecs, _V_E_FF_B2, raw["e_ff_b2"])
    vecs = put(vecs, _V_E_LN2_G, raw["e_ln2_g"]); vecs = put(vecs, _V_E_LN2_B, raw["e_ln2_b"])
    vecs = put(vecs, _V_CAP_B, raw["cap_b"])
    vecs = put(vecs, _V_DSA_BV, raw["d_sa_bv"]); vecs = put(vecs, _V_DSA_BO, raw["d_sa_bo"])
    vecs = put(vecs, _V_D_LN1_G, raw["d_ln1_g"]); vecs = put(vecs, _V_D_LN1_B, raw["d_ln1_b"])
    vecs = put(vecs, _V_DCA_BQ, raw["d_ca_bq"]); vecs = put(vecs, _V_DCA_BK, raw["d_ca_bk"])
    vecs = put(vecs, _V_DCA_BV, raw["d_ca_bv"]); vecs = put(vecs, _V_DCA_BO, raw["d_ca_bo"])
    vecs = put(vecs, _V_D_LN2_G, raw["d_ln2_g"]); vecs = put(vecs, _V_D_LN2_B, raw["d_ln2_b"])
    vecs = put(vecs, _V_D_FF_B2, raw["d_ff_b2"])
    vecs = put(vecs, _V_D_LN3_G, raw["d_ln3_g"]); vecs = put(vecs, _V_D_LN3_B, raw["d_ln3_b"])
    vecs = put(vecs, _V_FIN_W, raw["fin_w"])
    vecs = vecs.at[_V_FIN_B, 0].set(raw["fin_b"])

    return {"conv_w": conv_w, "w_heads": w_heads, "w_dd": w_dd,
            "ffn_w1": ffn_w1, "ffn_w2": ffn_w2, "ffn_b1": ffn_b1, "vecs": vecs}


# ---------------------------------------------------------------------------
# Main
# ---------------------------------------------------------------------------
if __name__ == "__main__":
    feature_dim1 = 8
    feature_dim2 = 32            # d_model; divisible by num_attention
    num_attention = 4
    num_cycles = 5
    dim_feedforward = 2048       # PyTorch TransformerEncoder/DecoderLayer default
    B, H, W = 2, 10, 3           # W=3 -> conv2 (k=3, valid) leaves width 1 -> squeeze

    key = jax.random.PRNGKey(0)
    k_par, k_x, k_cap = jax.random.split(key, 3)

    raw = init_raw_params(k_par, feature_dim1, feature_dim2, num_cycles,
                          dim_feedforward)
    packed = pack_params(raw, img_w=W, num_heads=num_attention)

    my_data = jax.random.normal(k_x, (B, num_cycles, H, W), jnp.float32)
    capacity = jax.random.normal(k_cap, (B, num_cycles - 1), jnp.float32)

    out = narx_forward(packed, my_data, capacity, num_heads=num_attention)
    out = jax.block_until_ready(out)

    assert out.shape == (B, 1), out.shape
    assert bool(jnp.all(jnp.isfinite(out)))
    print("KERNEL_OK")
</pallas_src>

<mosaic_0001>
module attributes {stable_mosaic.version = 11 : i64} {
  func.func @_narx_kernel(%arg0: i32, %arg1: memref<16x128xbf16, #tpu.memory_space<vmem>>, %arg2: memref<2x1x32xbf16, #tpu.memory_space<vmem>>, %arg3: memref<128x32xbf16, #tpu.memory_space<vmem>>, %arg4: memref<24x32x8xbf16, #tpu.memory_space<vmem>>, %arg5: memref<5x32x32xbf16, #tpu.memory_space<vmem>>, %arg6: memref<2x32x2048xbf16, #tpu.memory_space<vmem>>, %arg7: memref<2x2048x32xbf16, #tpu.memory_space<vmem>>, %arg8: memref<2x2048xf32, #tpu.memory_space<vmem>>, %arg9: memref<32x128xf32, #tpu.memory_space<vmem>>, %arg10: memref<2x1x128xf32, #tpu.memory_space<vmem>>) attributes {dimension_semantics = [#tpu.dimension_semantics<parallel>], iteration_bounds = array<i64: 1>, scalar_prefetch = 0 : i64, scratch_operands = 0 : i64, tpu.core_type = #tpu.core_type<tc>, window_params = [{transform_indices = @transform_0, window_bounds = array<i64: 16, 128>}, {transform_indices = @transform_1, window_bounds = array<i64: 2, 1, 32>}, {pipeline_mode = #tpu.pipeline_mode<synchronous>, transform_indices = @transform_2, window_bounds = array<i64: 128, 32>}, {pipeline_mode = #tpu.pipeline_mode<synchronous>, transform_indices = @transform_3, window_bounds = array<i64: 24, 32, 8>}, {pipeline_mode = #tpu.pipeline_mode<synchronous>, transform_indices = @transform_4, window_bounds = array<i64: 5, 32, 32>}, {pipeline_mode = #tpu.pipeline_mode<synchronous>, transform_indices = @transform_5, window_bounds = array<i64: 2, 32, 2048>}, {pipeline_mode = #tpu.pipeline_mode<synchronous>, transform_indices = @transform_6, window_bounds = array<i64: 2, 2048, 32>}, {pipeline_mode = #tpu.pipeline_mode<synchronous>, transform_indices = @transform_7, window_bounds = array<i64: 2, 2048>}, {pipeline_mode = #tpu.pipeline_mode<synchronous>, transform_indices = @transform_8, window_bounds = array<i64: 32, 128>}, {transform_indices = @transform_9, window_bounds = array<i64: 2, 1, 128>}]} {
    %c0 = arith.constant 0 : index
    %c0_0 = arith.constant 0 : index
    %0 = vector.load %arg9[%c0, %c0_0] : memref<32x128xf32, #tpu.memory_space<vmem>>, vector<32x128xf32>
    %c0_1 = arith.constant 0 : index
    %c0_2 = arith.constant 0 : index
    %1 = vector.load %arg8[%c0_1, %c0_2] : memref<2x2048xf32, #tpu.memory_space<vmem>>, vector<2x2048xf32>
    %c0_3 = arith.constant 0 : index
    %c0_4 = arith.constant 0 : index
    %2 = vector.load %arg1[%c0_3, %c0_4] : memref<16x128xbf16, #tpu.memory_space<vmem>>, vector<16x128xbf16>
    %c0_5 = arith.constant 0 : index
    %c0_6 = arith.constant 0 : index
    %3 = vector.load %arg3[%c0_5, %c0_6] : memref<128x32xbf16, #tpu.memory_space<vmem>>, vector<128x32xbf16>
    %cst = arith.constant dense<0.000000e+00> : vector<16x32xf32>
    %4 = tpu.matmul %2, %3, %cst {dimension_numbers = #tpu.dot_dimension_numbers<[1], [0], [0], [1], [0, 0, 1, 1], [], []>} : vector<16x128xbf16>, vector<128x32xbf16>, vector<16x32xf32> -> vector<16x32xf32>
    %5 = vector.extract_strided_slice %0 {offsets = [0, 0], sizes = [1, 32], strides = [1, 1]} : vector<32x128xf32> to vector<1x32xf32>
    %6 = vector.broadcast %5 : vector<1x32xf32> to vector<16x32xf32>
    %7 = arith.addf %4, %6 : vector<16x32xf32>
    %8 = vector.extract_strided_slice %0 {offsets = [1, 0], sizes = [1, 32], strides = [1, 1]} : vector<32x128xf32> to vector<1x32xf32>
    %9 = vector.extract_strided_slice %0 {offsets = [2, 0], sizes = [1, 32], strides = [1, 1]} : vector<32x128xf32> to vector<1x32xf32>
    %10 = vector.extract_strided_slice %0 {offsets = [3, 0], sizes = [1, 32], strides = [1, 1]} : vector<32x128xf32> to vector<1x32xf32>
    %c0_7 = arith.constant 0 : index
    %c0_8 = arith.constant 0 : index
    %c0_9 = arith.constant 0 : index
    %11 = vector.load %arg5[%c0_7, %c0_8, %c0_9] : memref<5x32x32xbf16, #tpu.memory_space<vmem>>, vector<1x32x32xbf16>
    %12 = vector.shape_cast %11 : vector<1x32x32xbf16> to vector<32x32xbf16>
    %13 = vector.extract_strided_slice %0 {offsets = [4, 0], sizes = [1, 32], strides = [1, 1]} : vector<32x128xf32> to vector<1x32xf32>
    %14 = arith.truncf %7 : vector<16x32xf32> to vector<16x32xbf16>
    %15 = arith.truncf %7 : vector<16x32xf32> to vector<16x32xbf16>
    %c0_10 = arith.constant 0 : index
    %c0_11 = arith.constant 0 : index
    %c0_12 = arith.constant 0 : index
    %16 = vector.load %arg4[%c0_10, %c0_11, %c0_12] : memref<24x32x8xbf16, #tpu.memory_space<vmem>>, vector<1x32x8xbf16>
    %17 = vector.shape_cast %16 : vector<1x32x8xbf16> to vector<32x8xbf16>
    %c4 = arith.constant 4 : index
    %c0_13 = arith.constant 0 : index
    %c0_14 = arith.constant 0 : index
    %18 = vector.load %arg4[%c4, %c0_13, %c0_14] : memref<24x32x8xbf16, #tpu.memory_space<vmem>>, vector<1x32x8xbf16>
    %19 = vector.shape_cast %18 : vector<1x32x8xbf16> to vector<32x8xbf16>
    %c8 = arith.constant 8 : index
    %c0_15 = arith.constant 0 : index
    %c0_16 = arith.constant 0 : index
    %20 = vector.load %arg4[%c8, %c0_15, %c0_16] : memref<24x32x8xbf16, #tpu.memory_space<vmem>>, vector<1x32x8xbf16>
    %21 = vector.shape_cast %20 : vector<1x32x8xbf16> to vector<32x8xbf16>
    %cst_17 = arith.constant dense<0.000000e+00> : vector<16x8xf32>
    %22 = tpu.matmul %14, %17, %cst_17 {dimension_numbers = #tpu.dot_dimension_numbers<[1], [0], [0], [1], [0, 0, 1, 1], [], []>} : vector<16x32xbf16>, vector<32x8xbf16>, vector<16x8xf32> -> vector<16x8xf32>
    %23 = vector.extract_strided_slice %8 {offsets = [0, 0], sizes = [1, 8], strides = [1, 1]} : vector<1x32xf32> to vector<1x8xf32>
    %24 = vector.broadcast %23 : vector<1x8xf32> to vector<16x8xf32>
    %25 = arith.addf %22, %24 : vector<16x8xf32>
    %26 = vector.shape_cast %25 : vector<16x8xf32> to vector<2x8x8xf32>
    %cst_18 = arith.constant dense<0.000000e+00> : vector<16x8xf32>
    %27 = tpu.matmul %15, %19, %cst_18 {dimension_numbers = #tpu.dot_dimension_numbers<[1], [0], [0], [1], [0, 0, 1, 1], [], []>} : vector<16x32xbf16>, vector<32x8xbf16>, vector<16x8xf32> -> vector<16x8xf32>
    %28 = vector.extract_strided_slice %9 {offsets = [0, 0], sizes = [1, 8], strides = [1, 1]} : vector<1x32xf32> to vector<1x8xf32>
    %29 = vector.broadcast %28 : vector<1x8xf32> to vector<16x8xf32>
    %30 = arith.addf %27, %29 : vector<16x8xf32>
    %31 = vector.shape_cast %30 : vector<16x8xf32> to vector<2x8x8xf32>
    %cst_19 = arith.constant dense<0.000000e+00> : vector<16x8xf32>
    %32 = tpu.matmul %15, %21, %cst_19 {dimension_numbers = #tpu.dot_dimension_numbers<[1], [0], [0], [1], [0, 0, 1, 1], [], []>} : vector<16x32xbf16>, vector<32x8xbf16>, vector<16x8xf32> -> vector<16x8xf32>
    %33 = vector.extract_strided_slice %10 {offsets = [0, 0], sizes = [1, 8], strides = [1, 1]} : vector<1x32xf32> to vector<1x8xf32>
    %34 = vector.broadcast %33 : vector<1x8xf32> to vector<16x8xf32>
    %35 = arith.addf %32, %34 : vector<16x8xf32>
    %36 = vector.shape_cast %35 : vector<16x8xf32> to vector<2x8x8xf32>
    %37 = arith.truncf %26 : vector<2x8x8xf32> to vector<2x8x8xbf16>
    %38 = arith.truncf %31 : vector<2x8x8xf32> to vector<2x8x8xbf16>
    "tpu.trace_start"() <{level = 10 : i32, message = "bqd,bkd->bqk"}> : () -> ()
    %cst_20 = arith.constant dense<0.000000e+00> : vector<2x8x8xf32>
    %39 = tpu.matmul %37, %38, %cst_20 {dimension_numbers = #tpu.dot_dimension_numbers<[2], [2], [1], [1], [0, 0, 0, 1, 1, 1], [0], [0]>} : vector<2x8x8xbf16>, vector<2x8x8xbf16>, vector<2x8x8xf32> -> vector<2x8x8xf32>
    "tpu.trace_stop"() : () -> ()
    %cst_21 = arith.constant 0.353553385 : f32
    %40 = vector.broadcast %cst_21 : f32 to vector<2x8x8xf32>
    %41 = arith.mulf %39, %40 : vector<2x8x8xf32>
    %cst_22 = arith.constant dense<0xFF800000> : vector<2x8xf32>
    %42 = vector.multi_reduction <maximumf>, %41, %cst_22 [2] : vector<2x8x8xf32> to vector<2x8xf32>
    %43 = vector.shape_cast %42 : vector<2x8xf32> to vector<2x8x1xf32>
    %44 = vector.broadcast %43 : vector<2x8x1xf32> to vector<2x8x8xf32>
    %45 = arith.subf %41, %44 : vector<2x8x8xf32>
    %46 = math.exp %45 : vector<2x8x8xf32>
    %cst_23 = arith.constant dense<0.000000e+00> : vector<2x8xf32>
    %47 = vector.multi_reduction <add>, %46, %cst_23 [2] : vector<2x8x8xf32> to vector<2x8xf32>
    %48 = vector.shape_cast %47 : vector<2x8xf32> to vector<2x8x1xf32>
    %cst_24 = arith.constant 1.000000e+00 : f32
    %49 = vector.broadcast %cst_24 : f32 to vector<2x8x1xf32>
    %50 = arith.divf %49, %48 : vector<2x8x1xf32>
    %51 = vector.broadcast %50 : vector<2x8x1xf32> to vector<2x8x8xf32>
    %52 = arith.mulf %46, %51 : vector<2x8x8xf32>
    %53 = arith.truncf %52 : vector<2x8x8xf32> to vector<2x8x8xbf16>
    %54 = arith.truncf %36 : vector<2x8x8xf32> to vector<2x8x8xbf16>
    "tpu.trace_start"() <{level = 10 : i32, message = "bqk,bkd->bqd"}> : () -> ()
    %cst_25 = arith.constant dense<0.000000e+00> : vector<2x8x8xf32>
    %55 = tpu.matmul %53, %54, %cst_25 {dimension_numbers = #tpu.dot_dimension_numbers<[2], [1], [1], [2], [0, 0, 0, 1, 1, 2], [0], [0]>} : vector<2x8x8xbf16>, vector<2x8x8xbf16>, vector<2x8x8xf32> -> vector<2x8x8xf32>
    "tpu.trace_stop"() : () -> ()
    %56 = vector.shape_cast %55 : vector<2x8x8xf32> to vector<16x8xf32>
    %c1 = arith.constant 1 : index
    %c0_26 = arith.constant 0 : index
    %c0_27 = arith.constant 0 : index
    %57 = vector.load %arg4[%c1, %c0_26, %c0_27] : memref<24x32x8xbf16, #tpu.memory_space<vmem>>, vector<1x32x8xbf16>
    %58 = vector.shape_cast %57 : vector<1x32x8xbf16> to vector<32x8xbf16>
    %c5 = arith.constant 5 : index
    %c0_28 = arith.constant 0 : index
    %c0_29 = arith.constant 0 : index
    %59 = vector.load %arg4[%c5, %c0_28, %c0_29] : memref<24x32x8xbf16, #tpu.memory_space<vmem>>, vector<1x32x8xbf16>
    %60 = vector.shape_cast %59 : vector<1x32x8xbf16> to vector<32x8xbf16>
    %c9 = arith.constant 9 : index
    %c0_30 = arith.constant 0 : index
    %c0_31 = arith.constant 0 : index
    %61 = vector.load %arg4[%c9, %c0_30, %c0_31] : memref<24x32x8xbf16, #tpu.memory_space<vmem>>, vector<1x32x8xbf16>
    %62 = vector.shape_cast %61 : vector<1x32x8xbf16> to vector<32x8xbf16>
    %cst_32 = arith.constant dense<0.000000e+00> : vector<16x8xf32>
    %63 = tpu.matmul %14, %58, %cst_32 {dimension_numbers = #tpu.dot_dimension_numbers<[1], [0], [0], [1], [0, 0, 1, 1], [], []>} : vector<16x32xbf16>, vector<32x8xbf16>, vector<16x8xf32> -> vector<16x8xf32>
    %64 = vector.extract_strided_slice %8 {offsets = [0, 8], sizes = [1, 8], strides = [1, 1]} : vector<1x32xf32> to vector<1x8xf32>
    %65 = vector.broadcast %64 : vector<1x8xf32> to vector<16x8xf32>
    %66 = arith.addf %63, %65 : vector<16x8xf32>
    %67 = vector.shape_cast %66 : vector<16x8xf32> to vector<2x8x8xf32>
    %cst_33 = arith.constant dense<0.000000e+00> : vector<16x8xf32>
    %68 = tpu.matmul %15, %60, %cst_33 {dimension_numbers = #tpu.dot_dimension_numbers<[1], [0], [0], [1], [0, 0, 1, 1], [], []>} : vector<16x32xbf16>, vector<32x8xbf16>, vector<16x8xf32> -> vector<16x8xf32>
    %69 = vector.extract_strided_slice %9 {offsets = [0, 8], sizes = [1, 8], strides = [1, 1]} : vector<1x32xf32> to vector<1x8xf32>
    %70 = vector.broadcast %69 : vector<1x8xf32> to vector<16x8xf32>
    %71 = arith.addf %68, %70 : vector<16x8xf32>
    %72 = vector.shape_cast %71 : vector<16x8xf32> to vector<2x8x8xf32>
    %cst_34 = arith.constant dense<0.000000e+00> : vector<16x8xf32>
    %73 = tpu.matmul %15, %62, %cst_34 {dimension_numbers = #tpu.dot_dimension_numbers<[1], [0], [0], [1], [0, 0, 1, 1], [], []>} : vector<16x32xbf16>, vector<32x8xbf16>, vector<16x8xf32> -> vector<16x8xf32>
    %74 = vector.extract_strided_slice %10 {offsets = [0, 8], sizes = [1, 8], strides = [1, 1]} : vector<1x32xf32> to vector<1x8xf32>
    %75 = vector.broadcast %74 : vector<1x8xf32> to vector<16x8xf32>
    %76 = arith.addf %73, %75 : vector<16x8xf32>
    %77 = vector.shape_cast %76 : vector<16x8xf32> to vector<2x8x8xf32>
    %78 = arith.truncf %67 : vector<2x8x8xf32> to vector<2x8x8xbf16>
    %79 = arith.truncf %72 : vector<2x8x8xf32> to vector<2x8x8xbf16>
    "tpu.trace_start"() <{level = 10 : i32, message = "bqd,bkd->bqk"}> : () -> ()
    %cst_35 = arith.constant dense<0.000000e+00> : vector<2x8x8xf32>
    %80 = tpu.matmul %78, %79, %cst_35 {dimension_numbers = #tpu.dot_dimension_numbers<[2], [2], [1], [1], [0, 0, 0, 1, 1, 1], [0], [0]>} : vector<2x8x8xbf16>, vector<2x8x8xbf16>, vector<2x8x8xf32> -> vector<2x8x8xf32>
    "tpu.trace_stop"() : () -> ()
    %cst_36 = arith.constant 0.353553385 : f32
    %81 = vector.broadcast %cst_36 : f32 to vector<2x8x8xf32>
    %82 = arith.mulf %80, %81 : vector<2x8x8xf32>
    %cst_37 = arith.constant dense<0xFF800000> : vector<2x8xf32>
    %83 = vector.multi_reduction <maximumf>, %82, %cst_37 [2] : vector<2x8x8xf32> to vector<2x8xf32>
    %84 = vector.shape_cast %83 : vector<2x8xf32> to vector<2x8x1xf32>
    %85 = vector.broadcast %84 : vector<2x8x1xf32> to vector<2x8x8xf32>
    %86 = arith.subf %82, %85 : vector<2x8x8xf32>
    %87 = math.exp %86 : vector<2x8x8xf32>
    %cst_38 = arith.constant dense<0.000000e+00> : vector<2x8xf32>
    %88 = vector.multi_reduction <add>, %87, %cst_38 [2] : vector<2x8x8xf32> to vector<2x8xf32>
    %89 = vector.shape_cast %88 : vector<2x8xf32> to vector<2x8x1xf32>
    %cst_39 = arith.constant 1.000000e+00 : f32
    %90 = vector.broadcast %cst_39 : f32 to vector<2x8x1xf32>
    %91 = arith.divf %90, %89 : vector<2x8x1xf32>
    %92 = vector.broadcast %91 : vector<2x8x1xf32> to vector<2x8x8xf32>
    %93 = arith.mulf %87, %92 : vector<2x8x8xf32>
    %94 = arith.truncf %93 : vector<2x8x8xf32> to vector<2x8x8xbf16>
    %95 = arith.truncf %77 : vector<2x8x8xf32> to vector<2x8x8xbf16>
    "tpu.trace_start"() <{level = 10 : i32, message = "bqk,bkd->bqd"}> : () -> ()
    %cst_40 = arith.constant dense<0.000000e+00> : vector<2x8x8xf32>
    %96 = tpu.matmul %94, %95, %cst_40 {dimension_numbers = #tpu.dot_dimension_numbers<[2], [1], [1], [2], [0, 0, 0, 1, 1, 2], [0], [0]>} : vector<2x8x8xbf16>, vector<2x8x8xbf16>, vector<2x8x8xf32> -> vector<2x8x8xf32>
    "tpu.trace_stop"() : () -> ()
    %97 = vector.shape_cast %96 : vector<2x8x8xf32> to vector<16x8xf32>
    %c2 = arith.constant 2 : index
    %c0_41 = arith.constant 0 : index
    %c0_42 = arith.constant 0 : index
    %98 = vector.load %arg4[%c2, %c0_41, %c0_42] : memref<24x32x8xbf16, #tpu.memory_space<vmem>>, vector<1x32x8xbf16>
    %99 = vector.shape_cast %98 : vector<1x32x8xbf16> to vector<32x8xbf16>
    %c6 = arith.constant 6 : index
    %c0_43 = arith.constant 0 : index
    %c0_44 = arith.constant 0 : index
    %100 = vector.load %arg4[%c6, %c0_43, %c0_44] : memref<24x32x8xbf16, #tpu.memory_space<vmem>>, vector<1x32x8xbf16>
    %101 = vector.shape_cast %100 : vector<1x32x8xbf16> to vector<32x8xbf16>
    %c10 = arith.constant 10 : index
    %c0_45 = arith.constant 0 : index
    %c0_46 = arith.constant 0 : index
    %102 = vector.load %arg4[%c10, %c0_45, %c0_46] : memref<24x32x8xbf16, #tpu.memory_space<vmem>>, vector<1x32x8xbf16>
    %103 = vector.shape_cast %102 : vector<1x32x8xbf16> to vector<32x8xbf16>
    %cst_47 = arith.constant dense<0.000000e+00> : vector<16x8xf32>
    %104 = tpu.matmul %14, %99, %cst_47 {dimension_numbers = #tpu.dot_dimension_numbers<[1], [0], [0], [1], [0, 0, 1, 1], [], []>} : vector<16x32xbf16>, vector<32x8xbf16>, vector<16x8xf32> -> vector<16x8xf32>
    %105 = vector.extract_strided_slice %8 {offsets = [0, 16], sizes = [1, 8], strides = [1, 1]} : vector<1x32xf32> to vector<1x8xf32>
    %106 = vector.broadcast %105 : vector<1x8xf32> to vector<16x8xf32>
    %107 = arith.addf %104, %106 : vector<16x8xf32>
    %108 = vector.shape_cast %107 : vector<16x8xf32> to vector<2x8x8xf32>
    %cst_48 = arith.constant dense<0.000000e+00> : vector<16x8xf32>
    %109 = tpu.matmul %15, %101, %cst_48 {dimension_numbers = #tpu.dot_dimension_numbers<[1], [0], [0], [1], [0, 0, 1, 1], [], []>} : vector<16x32xbf16>, vector<32x8xbf16>, vector<16x8xf32> -> vector<16x8xf32>
    %110 = vector.extract_strided_slice %9 {offsets = [0, 16], sizes = [1, 8], strides = [1, 1]} : vector<1x32xf32> to vector<1x8xf32>
    %111 = vector.broadcast %110 : vector<1x8xf32> to vector<16x8xf32>
    %112 = arith.addf %109, %111 : vector<16x8xf32>
    %113 = vector.shape_cast %112 : vector<16x8xf32> to vector<2x8x8xf32>
    %cst_49 = arith.constant dense<0.000000e+00> : vector<16x8xf32>
    %114 = tpu.matmul %15, %103, %cst_49 {dimension_numbers = #tpu.dot_dimension_numbers<[1], [0], [0], [1], [0, 0, 1, 1], [], []>} : vector<16x32xbf16>, vector<32x8xbf16>, vector<16x8xf32> -> vector<16x8xf32>
    %115 = vector.extract_strided_slice %10 {offsets = [0, 16], sizes = [1, 8], strides = [1, 1]} : vector<1x32xf32> to vector<1x8xf32>
    %116 = vector.broadcast %115 : vector<1x8xf32> to vector<16x8xf32>
    %117 = arith.addf %114, %116 : vector<16x8xf32>
    %118 = vector.shape_cast %117 : vector<16x8xf32> to vector<2x8x8xf32>
    %119 = arith.truncf %108 : vector<2x8x8xf32> to vector<2x8x8xbf16>
    %120 = arith.truncf %113 : vector<2x8x8xf32> to vector<2x8x8xbf16>
    "tpu.trace_start"() <{level = 10 : i32, message = "bqd,bkd->bqk"}> : () -> ()
    %cst_50 = arith.constant dense<0.000000e+00> : vector<2x8x8xf32>
    %121 = tpu.matmul %119, %120, %cst_50 {dimension_numbers = #tpu.dot_dimension_numbers<[2], [2], [1], [1], [0, 0, 0, 1, 1, 1], [0], [0]>} : vector<2x8x8xbf16>, vector<2x8x8xbf16>, vector<2x8x8xf32> -> vector<2x8x8xf32>
    "tpu.trace_stop"() : () -> ()
    %cst_51 = arith.constant 0.353553385 : f32
    %122 = vector.broadcast %cst_51 : f32 to vector<2x8x8xf32>
    %123 = arith.mulf %121, %122 : vector<2x8x8xf32>
    %cst_52 = arith.constant dense<0xFF800000> : vector<2x8xf32>
    %124 = vector.multi_reduction <maximumf>, %123, %cst_52 [2] : vector<2x8x8xf32> to vector<2x8xf32>
    %125 = vector.shape_cast %124 : vector<2x8xf32> to vector<2x8x1xf32>
    %126 = vector.broadcast %125 : vector<2x8x1xf32> to vector<2x8x8xf32>
    %127 = arith.subf %123, %126 : vector<2x8x8xf32>
    %128 = math.exp %127 : vector<2x8x8xf32>
    %cst_53 = arith.constant dense<0.000000e+00> : vector<2x8xf32>
    %129 = vector.multi_reduction <add>, %128, %cst_53 [2] : vector<2x8x8xf32> to vector<2x8xf32>
    %130 = vector.shape_cast %129 : vector<2x8xf32> to vector<2x8x1xf32>
    %cst_54 = arith.constant 1.000000e+00 : f32
    %131 = vector.broadcast %cst_54 : f32 to vector<2x8x1xf32>
    %132 = arith.divf %131, %130 : vector<2x8x1xf32>
    %133 = vector.broadcast %132 : vector<2x8x1xf32> to vector<2x8x8xf32>
    %134 = arith.mulf %128, %133 : vector<2x8x8xf32>
    %135 = arith.truncf %134 : vector<2x8x8xf32> to vector<2x8x8xbf16>
    %136 = arith.truncf %118 : vector<2x8x8xf32> to vector<2x8x8xbf16>
    "tpu.trace_start"() <{level = 10 : i32, message = "bqk,bkd->bqd"}> : () -> ()
    %cst_55 = arith.constant dense<0.000000e+00> : vector<2x8x8xf32>
    %137 = tpu.matmul %135, %136, %cst_55 {dimension_numbers = #tpu.dot_dimension_numbers<[2], [1], [1], [2], [0, 0, 0, 1, 1, 2], [0], [0]>} : vector<2x8x8xbf16>, vector<2x8x8xbf16>, vector<2x8x8xf32> -> vector<2x8x8xf32>
    "tpu.trace_stop"() : () -> ()
    %138 = vector.shape_cast %137 : vector<2x8x8xf32> to vector<16x8xf32>
    %c3 = arith.constant 3 : index
    %c0_56 = arith.constant 0 : index
    %c0_57 = arith.constant 0 : index
    %139 = vector.load %arg4[%c3, %c0_56, %c0_57] : memref<24x32x8xbf16, #tpu.memory_space<vmem>>, vector<1x32x8xbf16>
    %140 = vector.shape_cast %139 : vector<1x32x8xbf16> to vector<32x8xbf16>
    %c7 = arith.constant 7 : index
    %c0_58 = arith.constant 0 : index
    %c0_59 = arith.constant 0 : index
    %141 = vector.load %arg4[%c7, %c0_58, %c0_59] : memref<24x32x8xbf16, #tpu.memory_space<vmem>>, vector<1x32x8xbf16>
    %142 = vector.shape_cast %141 : vector<1x32x8xbf16> to vector<32x8xbf16>
    %c11 = arith.constant 11 : index
    %c0_60 = arith.constant 0 : index
    %c0_61 = arith.constant 0 : index
    %143 = vector.load %arg4[%c11, %c0_60, %c0_61] : memref<24x32x8xbf16, #tpu.memory_space<vmem>>, vector<1x32x8xbf16>
    %144 = vector.shape_cast %143 : vector<1x32x8xbf16> to vector<32x8xbf16>
    %cst_62 = arith.constant dense<0.000000e+00> : vector<16x8xf32>
    %145 = tpu.matmul %14, %140, %cst_62 {dimension_numbers = #tpu.dot_dimension_numbers<[1], [0], [0], [1], [0, 0, 1, 1], [], []>} : vector<16x32xbf16>, vector<32x8xbf16>, vector<16x8xf32> -> vector<16x8xf32>
    %146 = vector.extract_strided_slice %8 {offsets = [0, 24], sizes = [1, 8], strides = [1, 1]} : vector<1x32xf32> to vector<1x8xf32>
    %147 = vector.broadcast %146 : vector<1x8xf32> to vector<16x8xf32>
    %148 = arith.addf %145, %147 : vector<16x8xf32>
    %149 = vector.shape_cast %148 : vector<16x8xf32> to vector<2x8x8xf32>
    %cst_63 = arith.constant dense<0.000000e+00> : vector<16x8xf32>
    %150 = tpu.matmul %15, %142, %cst_63 {dimension_numbers = #tpu.dot_dimension_numbers<[1], [0], [0], [1], [0, 0, 1, 1], [], []>} : vector<16x32xbf16>, vector<32x8xbf16>, vector<16x8xf32> -> vector<16x8xf32>
    %151 = vector.extract_strided_slice %9 {offsets = [0, 24], sizes = [1, 8], strides = [1, 1]} : vector<1x32xf32> to vector<1x8xf32>
    %152 = vector.broadcast %151 : vector<1x8xf32> to vector<16x8xf32>
    %153 = arith.addf %150, %152 : vector<16x8xf32>
    %154 = vector.shape_cast %153 : vector<16x8xf32> to vector<2x8x8xf32>
    %cst_64 = arith.constant dense<0.000000e+00> : vector<16x8xf32>
    %155 = tpu.matmul %15, %144, %cst_64 {dimension_numbers = #tpu.dot_dimension_numbers<[1], [0], [0], [1], [0, 0, 1, 1], [], []>} : vector<16x32xbf16>, vector<32x8xbf16>, vector<16x8xf32> -> vector<16x8xf32>
    %156 = vector.extract_strided_slice %10 {offsets = [0, 24], sizes = [1, 8], strides = [1, 1]} : vector<1x32xf32> to vector<1x8xf32>
    %157 = vector.broadcast %156 : vector<1x8xf32> to vector<16x8xf32>
    %158 = arith.addf %155, %157 : vector<16x8xf32>
    %159 = vector.shape_cast %158 : vector<16x8xf32> to vector<2x8x8xf32>
    %160 = arith.truncf %149 : vector<2x8x8xf32> to vector<2x8x8xbf16>
    %161 = arith.truncf %154 : vector<2x8x8xf32> to vector<2x8x8xbf16>
    "tpu.trace_start"() <{level = 10 : i32, message = "bqd,bkd->bqk"}> : () -> ()
    %cst_65 = arith.constant dense<0.000000e+00> : vector<2x8x8xf32>
    %162 = tpu.matmul %160, %161, %cst_65 {dimension_numbers = #tpu.dot_dimension_numbers<[2], [2], [1], [1], [0, 0, 0, 1, 1, 1], [0], [0]>} : vector<2x8x8xbf16>, vector<2x8x8xbf16>, vector<2x8x8xf32> -> vector<2x8x8xf32>
    "tpu.trace_stop"() : () -> ()
    %cst_66 = arith.constant 0.353553385 : f32
    %163 = vector.broadcast %cst_66 : f32 to vector<2x8x8xf32>
    %164 = arith.mulf %162, %163 : vector<2x8x8xf32>
    %cst_67 = arith.constant dense<0xFF800000> : vector<2x8xf32>
    %165 = vector.multi_reduction <maximumf>, %164, %cst_67 [2] : vector<2x8x8xf32> to vector<2x8xf32>
    %166 = vector.shape_cast %165 : vector<2x8xf32> to vector<2x8x1xf32>
    %167 = vector.broadcast %166 : vector<2x8x1xf32> to vector<2x8x8xf32>
    %168 = arith.subf %164, %167 : vector<2x8x8xf32>
    %169 = math.exp %168 : vector<2x8x8xf32>
    %cst_68 = arith.constant dense<0.000000e+00> : vector<2x8xf32>
    %170 = vector.multi_reduction <add>, %169, %cst_68 [2] : vector<2x8x8xf32> to vector<2x8xf32>
    %171 = vector.shape_cast %170 : vector<2x8xf32> to vector<2x8x1xf32>
    %cst_69 = arith.constant 1.000000e+00 : f32
    %172 = vector.broadcast %cst_69 : f32 to vector<2x8x1xf32>
    %173 = arith.divf %172, %171 : vector<2x8x1xf32>
    %174 = vector.broadcast %173 : vector<2x8x1xf32> to vector<2x8x8xf32>
    %175 = arith.mulf %169, %174 : vector<2x8x8xf32>
    %176 = arith.truncf %175 : vector<2x8x8xf32> to vector<2x8x8xbf16>
    %177 = arith.truncf %159 : vector<2x8x8xf32> to vector<2x8x8xbf16>
    "tpu.trace_start"() <{level = 10 : i32, message = "bqk,bkd->bqd"}> : () -> ()
    %cst_70 = arith.constant dense<0.000000e+00> : vector<2x8x8xf32>
    %178 = tpu.matmul %176, %177, %cst_70 {dimension_numbers = #tpu.dot_dimension_numbers<[2], [1], [1], [2], [0, 0, 0, 1, 1, 2], [0], [0]>} : vector<2x8x8xbf16>, vector<2x8x8xbf16>, vector<2x8x8xf32> -> vector<2x8x8xf32>
    "tpu.trace_stop"() : () -> ()
    %179 = vector.shape_cast %178 : vector<2x8x8xf32> to vector<16x8xf32>
    %180 = tpu.concatenate %56, %97, %138, %179 in 1 : vector<16x8xf32>, vector<16x8xf32>, vector<16x8xf32>, vector<16x8xf32> -> vector<16x32xf32>
    %181 = arith.truncf %180 : vector<16x32xf32> to vector<16x32xbf16>
    %cst_71 = arith.constant dense<0.000000e+00> : vector<16x32xf32>
    %182 = tpu.matmul %181, %12, %cst_71 {dimension_numbers = #tpu.dot_dimension_numbers<[1], [0], [0], [1], [0, 0, 1, 1], [], []>} : vector<16x32xbf16>, vector<32x32xbf16>, vector<16x32xf32> -> vector<16x32xf32>
    %183 = vector.broadcast %13 : vector<1x32xf32> to vector<16x32xf32>
    %184 = arith.addf %182, %183 : vector<16x32xf32>
    %185 = vector.extract_strided_slice %0 {offsets = [5, 0], sizes = [1, 32], strides = [1, 1]} : vector<32x128xf32> to vector<1x32xf32>
    %186 = vector.extract_strided_slice %0 {offsets = [6, 0], sizes = [1, 32], strides = [1, 1]} : vector<32x128xf32> to vector<1x32xf32>
    %187 = arith.addf %184, %7 : vector<16x32xf32>
    %cst_72 = arith.constant dense<0.000000e+00> : vector<16xf32>
    %188 = vector.multi_reduction <add>, %187, %cst_72 [1] : vector<16x32xf32> to vector<16xf32>
    %189 = vector.shape_cast %188 : vector<16xf32> to vector<16x1xf32>
    %cst_73 = arith.constant 3.200000e+01 : f32
    %190 = vector.broadcast %cst_73 : f32 to vector<16x1xf32>
    %191 = arith.divf %189, %190 : vector<16x1xf32>
    %192 = vector.broadcast %191 : vector<16x1xf32> to vector<16x32xf32>
    %193 = arith.subf %187, %192 : vector<16x32xf32>
    %194 = arith.mulf %193, %193 : vector<16x32xf32>
    %cst_74 = arith.constant dense<0.000000e+00> : vector<16xf32>
    %195 = vector.multi_reduction <add>, %194, %cst_74 [1] : vector<16x32xf32> to vector<16xf32>
    %196 = vector.shape_cast %195 : vector<16xf32> to vector<16x1xf32>
    %cst_75 = arith.constant 3.200000e+01 : f32
    %197 = vector.broadcast %cst_75 : f32 to vector<16x1xf32>
    %198 = arith.divf %196, %197 : vector<16x1xf32>
    %199 = vector.broadcast %191 : vector<16x1xf32> to vector<16x32xf32>
    %200 = arith.subf %187, %199 : vector<16x32xf32>
    %cst_76 = arith.constant 9.99999974E-6 : f32
    %201 = vector.broadcast %cst_76 : f32 to vector<16x1xf32>
    %202 = arith.addf %198, %201 : vector<16x1xf32>
    %203 = math.rsqrt %202 : vector<16x1xf32>
    %204 = vector.broadcast %203 : vector<16x1xf32> to vector<16x32xf32>
    %205 = arith.mulf %200, %204 : vector<16x32xf32>
    %206 = vector.broadcast %185 : vector<1x32xf32> to vector<16x32xf32>
    %207 = arith.mulf %205, %206 : vector<16x32xf32>
    %208 = vector.broadcast %186 : vector<1x32xf32> to vector<16x32xf32>
    %209 = arith.addf %207, %208 : vector<16x32xf32>
    %c0_77 = arith.constant 0 : index
    %c0_78 = arith.constant 0 : index
    %c0_79 = arith.constant 0 : index
    %210 = vector.load %arg6[%c0_77, %c0_78, %c0_79] : memref<2x32x2048xbf16, #tpu.memory_space<vmem>>, vector<1x32x2048xbf16>
    %211 = vector.shape_cast %210 : vector<1x32x2048xbf16> to vector<32x2048xbf16>
    %212 = vector.extract_strided_slice %1 {offsets = [0, 0], sizes = [1, 2048], strides = [1, 1]} : vector<2x2048xf32> to vector<1x2048xf32>
    %c0_80 = arith.constant 0 : index
    %c0_81 = arith.constant 0 : index
    %c0_82 = arith.constant 0 : index
    %213 = vector.load %arg7[%c0_80, %c0_81, %c0_82] : memref<2x2048x32xbf16, #tpu.memory_space<vmem>>, vector<1x2048x32xbf16>
    %214 = vector.shape_cast %213 : vector<1x2048x32xbf16> to vector<2048x32xbf16>
    %215 = vector.extract_strided_slice %0 {offsets = [7, 0], sizes = [1, 32], strides = [1, 1]} : vector<32x128xf32> to vector<1x32xf32>
    %216 = arith.truncf %209 : vector<16x32xf32> to vector<16x32xbf16>
    %cst_83 = arith.constant dense<0.000000e+00> : vector<16x2048xf32>
    %217 = tpu.matmul %216, %211, %cst_83 {dimension_numbers = #tpu.dot_dimension_numbers<[1], [0], [0], [1], [0, 0, 1, 1], [], []>} : vector<16x32xbf16>, vector<32x2048xbf16>, vector<16x2048xf32> -> vector<16x2048xf32>
    %218 = vector.broadcast %212 : vector<1x2048xf32> to vector<16x2048xf32>
    %219 = arith.addf %217, %218 : vector<16x2048xf32>
    %cst_84 = arith.constant 0.000000e+00 : f32
    %220 = vector.broadcast %cst_84 : f32 to vector<16x2048xf32>
    %221 = arith.maximumf %219, %220 : vector<16x2048xf32>
    %222 = arith.truncf %221 : vector<16x2048xf32> to vector<16x2048xbf16>
    %cst_85 = arith.constant dense<0.000000e+00> : vector<16x32xf32>
    %223 = tpu.matmul %222, %214, %cst_85 {dimension_numbers = #tpu.dot_dimension_numbers<[1], [0], [0], [1], [0, 0, 1, 1], [], []>} : vector<16x2048xbf16>, vector<2048x32xbf16>, vector<16x32xf32> -> vector<16x32xf32>
    %224 = vector.broadcast %215 : vector<1x32xf32> to vector<16x32xf32>
    %225 = arith.addf %223, %224 : vector<16x32xf32>
    %226 = vector.extract_strided_slice %0 {offsets = [8, 0], sizes = [1, 32], strides = [1, 1]} : vector<32x128xf32> to vector<1x32xf32>
    %227 = vector.extract_strided_slice %0 {offsets = [9, 0], sizes = [1, 32], strides = [1, 1]} : vector<32x128xf32> to vector<1x32xf32>
    %228 = arith.addf %225, %209 : vector<16x32xf32>
    %cst_86 = arith.constant dense<0.000000e+00> : vector<16xf32>
    %229 = vector.multi_reduction <add>, %228, %cst_86 [1] : vector<16x32xf32> to vector<16xf32>
    %230 = vector.shape_cast %229 : vector<16xf32> to vector<16x1xf32>
    %cst_87 = arith.constant 3.200000e+01 : f32
    %231 = vector.broadcast %cst_87 : f32 to vector<16x1xf32>
    %232 = arith.divf %230, %231 : vector<16x1xf32>
    %233 = vector.broadcast %232 : vector<16x1xf32> to vector<16x32xf32>
    %234 = arith.subf %228, %233 : vector<16x32xf32>
    %235 = arith.mulf %234, %234 : vector<16x32xf32>
    %cst_88 = arith.constant dense<0.000000e+00> : vector<16xf32>
    %236 = vector.multi_reduction <add>, %235, %cst_88 [1] : vector<16x32xf32> to vector<16xf32>
    %237 = vector.shape_cast %236 : vector<16xf32> to vector<16x1xf32>
    %cst_89 = arith.constant 3.200000e+01 : f32
    %238 = vector.broadcast %cst_89 : f32 to vector<16x1xf32>
    %239 = arith.divf %237, %238 : vector<16x1xf32>
    %240 = vector.broadcast %232 : vector<16x1xf32> to vector<16x32xf32>
    %241 = arith.subf %228, %240 : vector<16x32xf32>
    %cst_90 = arith.constant 9.99999974E-6 : f32
    %242 = vector.broadcast %cst_90 : f32 to vector<16x1xf32>
    %243 = arith.addf %239, %242 : vector<16x1xf32>
    %244 = math.rsqrt %243 : vector<16x1xf32>
    %245 = vector.broadcast %244 : vector<16x1xf32> to vector<16x32xf32>
    %246 = arith.mulf %241, %245 : vector<16x32xf32>
    %247 = vector.broadcast %226 : vector<1x32xf32> to vector<16x32xf32>
    %248 = arith.mulf %246, %247 : vector<16x32xf32>
    %249 = vector.broadcast %227 : vector<1x32xf32> to vector<16x32xf32>
    %250 = arith.addf %248, %249 : vector<16x32xf32>
    %c0_91 = arith.constant 0 : index
    %c0_92 = arith.constant 0 : index
    %c0_93 = arith.constant 0 : index
    %251 = vector.load %arg2[%c0_91, %c0_92, %c0_93] : memref<2x1x32xbf16, #tpu.memory_space<vmem>>, vector<2x1x32xbf16>
    %252 = vector.shape_cast %251 : vector<2x1x32xbf16> to vector<2x32xbf16>
    %c4_94 = arith.constant 4 : index
    %c0_95 = arith.constant 0 : index
    %c0_96 = arith.constant 0 : index
    %253 = vector.load %arg5[%c4_94, %c0_95, %c0_96] : memref<5x32x32xbf16, #tpu.memory_space<vmem>>, vector<1x32x32xbf16>
    %254 = vector.shape_cast %253 : vector<1x32x32xbf16> to vector<32x32xbf16>
    %cst_97 = arith.constant dense<0.000000e+00> : vector<2x32xf32>
    %255 = tpu.matmul %252, %254, %cst_97 {dimension_numbers = #tpu.dot_dimension_numbers<[1], [0], [0], [1], [0, 0, 1, 1], [], []>} : vector<2x32xbf16>, vector<32x32xbf16>, vector<2x32xf32> -> vector<2x32xf32>
    %256 = vector.extract_strided_slice %0 {offsets = [10, 0], sizes = [1, 32], strides = [1, 1]} : vector<32x128xf32> to vector<1x32xf32>
    %257 = vector.broadcast %256 : vector<1x32xf32> to vector<2x32xf32>
    %258 = arith.addf %255, %257 : vector<2x32xf32>
    %259 = arith.truncf %258 : vector<2x32xf32> to vector<2x32xbf16>
    %c1_98 = arith.constant 1 : index
    %c0_99 = arith.constant 0 : index
    %c0_100 = arith.constant 0 : index
    %260 = vector.load %arg5[%c1_98, %c0_99, %c0_100] : memref<5x32x32xbf16, #tpu.memory_space<vmem>>, vector<1x32x32xbf16>
    %261 = vector.shape_cast %260 : vector<1x32x32xbf16> to vector<32x32xbf16>
    %cst_101 = arith.constant dense<0.000000e+00> : vector<2x32xf32>
    %262 = tpu.matmul %259, %261, %cst_101 {dimension_numbers = #tpu.dot_dimension_numbers<[1], [0], [0], [1], [0, 0, 1, 1], [], []>} : vector<2x32xbf16>, vector<32x32xbf16>, vector<2x32xf32> -> vector<2x32xf32>
    %263 = vector.extract_strided_slice %0 {offsets = [11, 0], sizes = [1, 32], strides = [1, 1]} : vector<32x128xf32> to vector<1x32xf32>
    %264 = vector.broadcast %263 : vector<1x32xf32> to vector<2x32xf32>
    %265 = arith.addf %262, %264 : vector<2x32xf32>
    %266 = arith.truncf %265 : vector<2x32xf32> to vector<2x32xbf16>
    %c2_102 = arith.constant 2 : index
    %c0_103 = arith.constant 0 : index
    %c0_104 = arith.constant 0 : index
    %267 = vector.load %arg5[%c2_102, %c0_103, %c0_104] : memref<5x32x32xbf16, #tpu.memory_space<vmem>>, vector<1x32x32xbf16>
    %268 = vector.shape_cast %267 : vector<1x32x32xbf16> to vector<32x32xbf16>
    %cst_105 = arith.constant dense<0.000000e+00> : vector<2x32xf32>
    %269 = tpu.matmul %266, %268, %cst_105 {dimension_numbers = #tpu.dot_dimension_numbers<[1], [0], [0], [1], [0, 0, 1, 1], [], []>} : vector<2x32xbf16>, vector<32x32xbf16>, vector<2x32xf32> -> vector<2x32xf32>
    %270 = vector.extract_strided_slice %0 {offsets = [12, 0], sizes = [1, 32], strides = [1, 1]} : vector<32x128xf32> to vector<1x32xf32>
    %271 = vector.broadcast %270 : vector<1x32xf32> to vector<2x32xf32>
    %272 = arith.addf %269, %271 : vector<2x32xf32>
    %273 = vector.extract_strided_slice %0 {offsets = [13, 0], sizes = [1, 32], strides = [1, 1]} : vector<32x128xf32> to vector<1x32xf32>
    %274 = vector.extract_strided_slice %0 {offsets = [14, 0], sizes = [1, 32], strides = [1, 1]} : vector<32x128xf32> to vector<1x32xf32>
    %275 = arith.addf %272, %258 : vector<2x32xf32>
    %cst_106 = arith.constant dense<0.000000e+00> : vector<2xf32>
    %276 = vector.multi_reduction <add>, %275, %cst_106 [1] : vector<2x32xf32> to vector<2xf32>
    %277 = vector.shape_cast %276 : vector<2xf32> to vector<2x1xf32>
    %cst_107 = arith.constant 3.200000e+01 : f32
    %278 = vector.broadcast %cst_107 : f32 to vector<2x1xf32>
    %279 = arith.divf %277, %278 : vector<2x1xf32>
    %280 = vector.broadcast %279 : vector<2x1xf32> to vector<2x32xf32>
    %281 = arith.subf %275, %280 : vector<2x32xf32>
    %282 = arith.mulf %281, %281 : vector<2x32xf32>
    %cst_108 = arith.constant dense<0.000000e+00> : vector<2xf32>
    %283 = vector.multi_reduction <add>, %282, %cst_108 [1] : vector<2x32xf32> to vector<2xf32>
    %284 = vector.shape_cast %283 : vector<2xf32> to vector<2x1xf32>
    %cst_109 = arith.constant 3.200000e+01 : f32
    %285 = vector.broadcast %cst_109 : f32 to vector<2x1xf32>
    %286 = arith.divf %284, %285 : vector<2x1xf32>
    %287 = vector.broadcast %279 : vector<2x1xf32> to vector<2x32xf32>
    %288 = arith.subf %275, %287 : vector<2x32xf32>
    %cst_110 = arith.constant 9.99999974E-6 : f32
    %289 = vector.broadcast %cst_110 : f32 to vector<2x1xf32>
    %290 = arith.addf %286, %289 : vector<2x1xf32>
    %291 = math.rsqrt %290 : vector<2x1xf32>
    %292 = vector.broadcast %291 : vector<2x1xf32> to vector<2x32xf32>
    %293 = arith.mulf %288, %292 : vector<2x32xf32>
    %294 = vector.broadcast %273 : vector<1x32xf32> to vector<2x32xf32>
    %295 = arith.mulf %293, %294 : vector<2x32xf32>
    %296 = vector.broadcast %274 : vector<1x32xf32> to vector<2x32xf32>
    %297 = arith.addf %295, %296 : vector<2x32xf32>
    %298 = vector.extract_strided_slice %0 {offsets = [15, 0], sizes = [1, 32], strides = [1, 1]} : vector<32x128xf32> to vector<1x32xf32>
    %299 = vector.extract_strided_slice %0 {offsets = [16, 0], sizes = [1, 32], strides = [1, 1]} : vector<32x128xf32> to vector<1x32xf32>
    %300 = vector.extract_strided_slice %0 {offsets = [17, 0], sizes = [1, 32], strides = [1, 1]} : vector<32x128xf32> to vector<1x32xf32>
    %c3_111 = arith.constant 3 : index
    %c0_112 = arith.constant 0 : index
    %c0_113 = arith.constant 0 : index
    %301 = vector.load %arg5[%c3_111, %c0_112, %c0_113] : memref<5x32x32xbf16, #tpu.memory_space<vmem>>, vector<1x32x32xbf16>
    %302 = vector.shape_cast %301 : vector<1x32x32xbf16> to vector<32x32xbf16>
    %303 = vector.extract_strided_slice %0 {offsets = [18, 0], sizes = [1, 32], strides = [1, 1]} : vector<32x128xf32> to vector<1x32xf32>
    %304 = arith.truncf %297 : vector<2x32xf32> to vector<2x32xbf16>
    %305 = arith.truncf %250 : vector<16x32xf32> to vector<16x32xbf16>
    %c12 = arith.constant 12 : index
    %c0_114 = arith.constant 0 : index
    %c0_115 = arith.constant 0 : index
    %306 = vector.load %arg4[%c12, %c0_114, %c0_115] : memref<24x32x8xbf16, #tpu.memory_space<vmem>>, vector<1x32x8xbf16>
    %307 = vector.shape_cast %306 : vector<1x32x8xbf16> to vector<32x8xbf16>
    %c16 = arith.constant 16 : index
    %c0_116 = arith.constant 0 : index
    %c0_117 = arith.constant 0 : index
    %308 = vector.load %arg4[%c16, %c0_116, %c0_117] : memref<24x32x8xbf16, #tpu.memory_space<vmem>>, vector<1x32x8xbf16>
    %309 = vector.shape_cast %308 : vector<1x32x8xbf16> to vector<32x8xbf16>
    %c20 = arith.constant 20 : index
    %c0_118 = arith.constant 0 : index
    %c0_119 = arith.constant 0 : index
    %310 = vector.load %arg4[%c20, %c0_118, %c0_119] : memref<24x32x8xbf16, #tpu.memory_space<vmem>>, vector<1x32x8xbf16>
    %311 = vector.shape_cast %310 : vector<1x32x8xbf16> to vector<32x8xbf16>
    %cst_120 = arith.constant dense<0.000000e+00> : vector<2x8xf32>
    %312 = tpu.matmul %304, %307, %cst_120 {dimension_numbers = #tpu.dot_dimension_numbers<[1], [0], [0], [1], [0, 0, 1, 1], [], []>} : vector<2x32xbf16>, vector<32x8xbf16>, vector<2x8xf32> -> vector<2x8xf32>
    %313 = vector.extract_strided_slice %298 {offsets = [0, 0], sizes = [1, 8], strides = [1, 1]} : vector<1x32xf32> to vector<1x8xf32>
    %314 = vector.broadcast %313 : vector<1x8xf32> to vector<2x8xf32>
    %315 = arith.addf %312, %314 : vector<2x8xf32>
    %316 = vector.shape_cast %315 : vector<2x8xf32> to vector<2x1x8xf32>
    %cst_121 = arith.constant dense<0.000000e+00> : vector<16x8xf32>
    %317 = tpu.matmul %305, %309, %cst_121 {dimension_numbers = #tpu.dot_dimension_numbers<[1], [0], [0], [1], [0, 0, 1, 1], [], []>} : vector<16x32xbf16>, vector<32x8xbf16>, vector<16x8xf32> -> vector<16x8xf32>
    %318 = vector.extract_strided_slice %299 {offsets = [0, 0], sizes = [1, 8], strides = [1, 1]} : vector<1x32xf32> to vector<1x8xf32>
    %319 = vector.broadcast %318 : vector<1x8xf32> to vector<16x8xf32>
    %320 = arith.addf %317, %319 : vector<16x8xf32>
    %321 = vector.shape_cast %320 : vector<16x8xf32> to vector<2x8x8xf32>
    %cst_122 = arith.constant dense<0.000000e+00> : vector<16x8xf32>
    %322 = tpu.matmul %305, %311, %cst_122 {dimension_numbers = #tpu.dot_dimension_numbers<[1], [0], [0], [1], [0, 0, 1, 1], [], []>} : vector<16x32xbf16>, vector<32x8xbf16>, vector<16x8xf32> -> vector<16x8xf32>
    %323 = vector.extract_strided_slice %300 {offsets = [0, 0], sizes = [1, 8], strides = [1, 1]} : vector<1x32xf32> to vector<1x8xf32>
    %324 = vector.broadcast %323 : vector<1x8xf32> to vector<16x8xf32>
    %325 = arith.addf %322, %324 : vector<16x8xf32>
    %326 = vector.shape_cast %325 : vector<16x8xf32> to vector<2x8x8xf32>
    %327 = arith.truncf %316 : vector<2x1x8xf32> to vector<2x1x8xbf16>
    %328 = arith.truncf %321 : vector<2x8x8xf32> to vector<2x8x8xbf16>
    "tpu.trace_start"() <{level = 10 : i32, message = "bqd,bkd->bqk"}> : () -> ()
    %cst_123 = arith.constant dense<0.000000e+00> : vector<2x1x8xf32>
    %329 = tpu.matmul %327, %328, %cst_123 {dimension_numbers = #tpu.dot_dimension_numbers<[2], [2], [1], [1], [0, 0, 0, 1, 1, 1], [0], [0]>} : vector<2x1x8xbf16>, vector<2x8x8xbf16>, vector<2x1x8xf32> -> vector<2x1x8xf32>
    "tpu.trace_stop"() : () -> ()
    %cst_124 = arith.constant 0.353553385 : f32
    %330 = vector.broadcast %cst_124 : f32 to vector<2x1x8xf32>
    %331 = arith.mulf %329, %330 : vector<2x1x8xf32>
    %cst_125 = arith.constant dense<0xFF800000> : vector<2x1xf32>
    %332 = vector.multi_reduction <maximumf>, %331, %cst_125 [2] : vector<2x1x8xf32> to vector<2x1xf32>
    %333 = vector.shape_cast %332 : vector<2x1xf32> to vector<2x1x1xf32>
    %334 = vector.broadcast %333 : vector<2x1x1xf32> to vector<2x1x8xf32>
    %335 = arith.subf %331, %334 : vector<2x1x8xf32>
    %336 = math.exp %335 : vector<2x1x8xf32>
    %cst_126 = arith.constant dense<0.000000e+00> : vector<2x1xf32>
    %337 = vector.multi_reduction <add>, %336, %cst_126 [2] : vector<2x1x8xf32> to vector<2x1xf32>
    %338 = vector.shape_cast %337 : vector<2x1xf32> to vector<2x1x1xf32>
    %cst_127 = arith.constant 1.000000e+00 : f32
    %339 = vector.broadcast %cst_127 : f32 to vector<2x1x1xf32>
    %340 = arith.divf %339, %338 : vector<2x1x1xf32>
    %341 = vector.broadcast %340 : vector<2x1x1xf32> to vector<2x1x8xf32>
    %342 = arith.mulf %336, %341 : vector<2x1x8xf32>
    %343 = arith.truncf %342 : vector<2x1x8xf32> to vector<2x1x8xbf16>
    %344 = arith.truncf %326 : vector<2x8x8xf32> to vector<2x8x8xbf16>
    "tpu.trace_start"() <{level = 10 : i32, message = "bqk,bkd->bqd"}> : () -> ()
    %cst_128 = arith.constant dense<0.000000e+00> : vector<2x1x8xf32>
    %345 = tpu.matmul %343, %344, %cst_128 {dimension_numbers = #tpu.dot_dimension_numbers<[2], [1], [1], [2], [0, 0, 0, 1, 1, 2], [0], [0]>} : vector<2x1x8xbf16>, vector<2x8x8xbf16>, vector<2x1x8xf32> -> vector<2x1x8xf32>
    "tpu.trace_stop"() : () -> ()
    %346 = vector.shape_cast %345 : vector<2x1x8xf32> to vector<2x8xf32>
    %c13 = arith.constant 13 : index
    %c0_129 = arith.constant 0 : index
    %c0_130 = arith.constant 0 : index
    %347 = vector.load %arg4[%c13, %c0_129, %c0_130] : memref<24x32x8xbf16, #tpu.memory_space<vmem>>, vector<1x32x8xbf16>
    %348 = vector.shape_cast %347 : vector<1x32x8xbf16> to vector<32x8xbf16>
    %c17 = arith.constant 17 : index
    %c0_131 = arith.constant 0 : index
    %c0_132 = arith.constant 0 : index
    %349 = vector.load %arg4[%c17, %c0_131, %c0_132] : memref<24x32x8xbf16, #tpu.memory_space<vmem>>, vector<1x32x8xbf16>
    %350 = vector.shape_cast %349 : vector<1x32x8xbf16> to vector<32x8xbf16>
    %c21 = arith.constant 21 : index
    %c0_133 = arith.constant 0 : index
    %c0_134 = arith.constant 0 : index
    %351 = vector.load %arg4[%c21, %c0_133, %c0_134] : memref<24x32x8xbf16, #tpu.memory_space<vmem>>, vector<1x32x8xbf16>
    %352 = vector.shape_cast %351 : vector<1x32x8xbf16> to vector<32x8xbf16>
    %cst_135 = arith.constant dense<0.000000e+00> : vector<2x8xf32>
    %353 = tpu.matmul %304, %348, %cst_135 {dimension_numbers = #tpu.dot_dimension_numbers<[1], [0], [0], [1], [0, 0, 1, 1], [], []>} : vector<2x32xbf16>, vector<32x8xbf16>, vector<2x8xf32> -> vector<2x8xf32>
    %354 = vector.extract_strided_slice %298 {offsets = [0, 8], sizes = [1, 8], strides = [1, 1]} : vector<1x32xf32> to vector<1x8xf32>
    %355 = vector.broadcast %354 : vector<1x8xf32> to vector<2x8xf32>
    %356 = arith.addf %353, %355 : vector<2x8xf32>
    %357 = vector.shape_cast %356 : vector<2x8xf32> to vector<2x1x8xf32>
    %cst_136 = arith.constant dense<0.000000e+00> : vector<16x8xf32>
    %358 = tpu.matmul %305, %350, %cst_136 {dimension_numbers = #tpu.dot_dimension_numbers<[1], [0], [0], [1], [0, 0, 1, 1], [], []>} : vector<16x32xbf16>, vector<32x8xbf16>, vector<16x8xf32> -> vector<16x8xf32>
    %359 = vector.extract_strided_slice %299 {offsets = [0, 8], sizes = [1, 8], strides = [1, 1]} : vector<1x32xf32> to vector<1x8xf32>
    %360 = vector.broadcast %359 : vector<1x8xf32> to vector<16x8xf32>
    %361 = arith.addf %358, %360 : vector<16x8xf32>
    %362 = vector.shape_cast %361 : vector<16x8xf32> to vector<2x8x8xf32>
    %cst_137 = arith.constant dense<0.000000e+00> : vector<16x8xf32>
    %363 = tpu.matmul %305, %352, %cst_137 {dimension_numbers = #tpu.dot_dimension_numbers<[1], [0], [0], [1], [0, 0, 1, 1], [], []>} : vector<16x32xbf16>, vector<32x8xbf16>, vector<16x8xf32> -> vector<16x8xf32>
    %364 = vector.extract_strided_slice %300 {offsets = [0, 8], sizes = [1, 8], strides = [1, 1]} : vector<1x32xf32> to vector<1x8xf32>
    %365 = vector.broadcast %364 : vector<1x8xf32> to vector<16x8xf32>
    %366 = arith.addf %363, %365 : vector<16x8xf32>
    %367 = vector.shape_cast %366 : vector<16x8xf32> to vector<2x8x8xf32>
    %368 = arith.truncf %357 : vector<2x1x8xf32> to vector<2x1x8xbf16>
    %369 = arith.truncf %362 : vector<2x8x8xf32> to vector<2x8x8xbf16>
    "tpu.trace_start"() <{level = 10 : i32, message = "bqd,bkd->bqk"}> : () -> ()
    %cst_138 = arith.constant dense<0.000000e+00> : vector<2x1x8xf32>
    %370 = tpu.matmul %368, %369, %cst_138 {dimension_numbers = #tpu.dot_dimension_numbers<[2], [2], [1], [1], [0, 0, 0, 1, 1, 1], [0], [0]>} : vector<2x1x8xbf16>, vector<2x8x8xbf16>, vector<2x1x8xf32> -> vector<2x1x8xf32>
    "tpu.trace_stop"() : () -> ()
    %cst_139 = arith.constant 0.353553385 : f32
    %371 = vector.broadcast %cst_139 : f32 to vector<2x1x8xf32>
    %372 = arith.mulf %370, %371 : vector<2x1x8xf32>
    %cst_140 = arith.constant dense<0xFF800000> : vector<2x1xf32>
    %373 = vector.multi_reduction <maximumf>, %372, %cst_140 [2] : vector<2x1x8xf32> to vector<2x1xf32>
    %374 = vector.shape_cast %373 : vector<2x1xf32> to vector<2x1x1xf32>
    %375 = vector.broadcast %374 : vector<2x1x1xf32> to vector<2x1x8xf32>
    %376 = arith.subf %372, %375 : vector<2x1x8xf32>
    %377 = math.exp %376 : vector<2x1x8xf32>
    %cst_141 = arith.constant dense<0.000000e+00> : vector<2x1xf32>
    %378 = vector.multi_reduction <add>, %377, %cst_141 [2] : vector<2x1x8xf32> to vector<2x1xf32>
    %379 = vector.shape_cast %378 : vector<2x1xf32> to vector<2x1x1xf32>
    %cst_142 = arith.constant 1.000000e+00 : f32
    %380 = vector.broadcast %cst_142 : f32 to vector<2x1x1xf32>
    %381 = arith.divf %380, %379 : vector<2x1x1xf32>
    %382 = vector.broadcast %381 : vector<2x1x1xf32> to vector<2x1x8xf32>
    %383 = arith.mulf %377, %382 : vector<2x1x8xf32>
    %384 = arith.truncf %383 : vector<2x1x8xf32> to vector<2x1x8xbf16>
    %385 = arith.truncf %367 : vector<2x8x8xf32> to vector<2x8x8xbf16>
    "tpu.trace_start"() <{level = 10 : i32, message = "bqk,bkd->bqd"}> : () -> ()
    %cst_143 = arith.constant dense<0.000000e+00> : vector<2x1x8xf32>
    %386 = tpu.matmul %384, %385, %cst_143 {dimension_numbers = #tpu.dot_dimension_numbers<[2], [1], [1], [2], [0, 0, 0, 1, 1, 2], [0], [0]>} : vector<2x1x8xbf16>, vector<2x8x8xbf16>, vector<2x1x8xf32> -> vector<2x1x8xf32>
    "tpu.trace_stop"() : () -> ()
    %387 = vector.shape_cast %386 : vector<2x1x8xf32> to vector<2x8xf32>
    %c14 = arith.constant 14 : index
    %c0_144 = arith.constant 0 : index
    %c0_145 = arith.constant 0 : index
    %388 = vector.load %arg4[%c14, %c0_144, %c0_145] : memref<24x32x8xbf16, #tpu.memory_space<vmem>>, vector<1x32x8xbf16>
    %389 = vector.shape_cast %388 : vector<1x32x8xbf16> to vector<32x8xbf16>
    %c18 = arith.constant 18 : index
    %c0_146 = arith.constant 0 : index
    %c0_147 = arith.constant 0 : index
    %390 = vector.load %arg4[%c18, %c0_146, %c0_147] : memref<24x32x8xbf16, #tpu.memory_space<vmem>>, vector<1x32x8xbf16>
    %391 = vector.shape_cast %390 : vector<1x32x8xbf16> to vector<32x8xbf16>
    %c22 = arith.constant 22 : index
    %c0_148 = arith.constant 0 : index
    %c0_149 = arith.constant 0 : index
    %392 = vector.load %arg4[%c22, %c0_148, %c0_149] : memref<24x32x8xbf16, #tpu.memory_space<vmem>>, vector<1x32x8xbf16>
    %393 = vector.shape_cast %392 : vector<1x32x8xbf16> to vector<32x8xbf16>
    %cst_150 = arith.constant dense<0.000000e+00> : vector<2x8xf32>
    %394 = tpu.matmul %304, %389, %cst_150 {dimension_numbers = #tpu.dot_dimension_numbers<[1], [0], [0], [1], [0, 0, 1, 1], [], []>} : vector<2x32xbf16>, vector<32x8xbf16>, vector<2x8xf32> -> vector<2x8xf32>
    %395 = vector.extract_strided_slice %298 {offsets = [0, 16], sizes = [1, 8], strides = [1, 1]} : vector<1x32xf32> to vector<1x8xf32>
    %396 = vector.broadcast %395 : vector<1x8xf32> to vector<2x8xf32>
    %397 = arith.addf %394, %396 : vector<2x8xf32>
    %398 = vector.shape_cast %397 : vector<2x8xf32> to vector<2x1x8xf32>
    %cst_151 = arith.constant dense<0.000000e+00> : vector<16x8xf32>
    %399 = tpu.matmul %305, %391, %cst_151 {dimension_numbers = #tpu.dot_dimension_numbers<[1], [0], [0], [1], [0, 0, 1, 1], [], []>} : vector<16x32xbf16>, vector<32x8xbf16>, vector<16x8xf32> -> vector<16x8xf32>
    %400 = vector.extract_strided_slice %299 {offsets = [0, 16], sizes = [1, 8], strides = [1, 1]} : vector<1x32xf32> to vector<1x8xf32>
    %401 = vector.broadcast %400 : vector<1x8xf32> to vector<16x8xf32>
    %402 = arith.addf %399, %401 : vector<16x8xf32>
    %403 = vector.shape_cast %402 : vector<16x8xf32> to vector<2x8x8xf32>
    %cst_152 = arith.constant dense<0.000000e+00> : vector<16x8xf32>
    %404 = tpu.matmul %305, %393, %cst_152 {dimension_numbers = #tpu.dot_dimension_numbers<[1], [0], [0], [1], [0, 0, 1, 1], [], []>} : vector<16x32xbf16>, vector<32x8xbf16>, vector<16x8xf32> -> vector<16x8xf32>
    %405 = vector.extract_strided_slice %300 {offsets = [0, 16], sizes = [1, 8], strides = [1, 1]} : vector<1x32xf32> to vector<1x8xf32>
    %406 = vector.broadcast %405 : vector<1x8xf32> to vector<16x8xf32>
    %407 = arith.addf %404, %406 : vector<16x8xf32>
    %408 = vector.shape_cast %407 : vector<16x8xf32> to vector<2x8x8xf32>
    %409 = arith.truncf %398 : vector<2x1x8xf32> to vector<2x1x8xbf16>
    %410 = arith.truncf %403 : vector<2x8x8xf32> to vector<2x8x8xbf16>
    "tpu.trace_start"() <{level = 10 : i32, message = "bqd,bkd->bqk"}> : () -> ()
    %cst_153 = arith.constant dense<0.000000e+00> : vector<2x1x8xf32>
    %411 = tpu.matmul %409, %410, %cst_153 {dimension_numbers = #tpu.dot_dimension_numbers<[2], [2], [1], [1], [0, 0, 0, 1, 1, 1], [0], [0]>} : vector<2x1x8xbf16>, vector<2x8x8xbf16>, vector<2x1x8xf32> -> vector<2x1x8xf32>
    "tpu.trace_stop"() : () -> ()
    %cst_154 = arith.constant 0.353553385 : f32
    %412 = vector.broadcast %cst_154 : f32 to vector<2x1x8xf32>
    %413 = arith.mulf %411, %412 : vector<2x1x8xf32>
    %cst_155 = arith.constant dense<0xFF800000> : vector<2x1xf32>
    %414 = vector.multi_reduction <maximumf>, %413, %cst_155 [2] : vector<2x1x8xf32> to vector<2x1xf32>
    %415 = vector.shape_cast %414 : vector<2x1xf32> to vector<2x1x1xf32>
    %416 = vector.broadcast %415 : vector<2x1x1xf32> to vector<2x1x8xf32>
    %417 = arith.subf %413, %416 : vector<2x1x8xf32>
    %418 = math.exp %417 : vector<2x1x8xf32>
    %cst_156 = arith.constant dense<0.000000e+00> : vector<2x1xf32>
    %419 = vector.multi_reduction <add>, %418, %cst_156 [2] : vector<2x1x8xf32> to vector<2x1xf32>
    %420 = vector.shape_cast %419 : vector<2x1xf32> to vector<2x1x1xf32>
    %cst_157 = arith.constant 1.000000e+00 : f32
    %421 = vector.broadcast %cst_157 : f32 to vector<2x1x1xf32>
    %422 = arith.divf %421, %420 : vector<2x1x1xf32>
    %423 = vector.broadcast %422 : vector<2x1x1xf32> to vector<2x1x8xf32>
    %424 = arith.mulf %418, %423 : vector<2x1x8xf32>
    %425 = arith.truncf %424 : vector<2x1x8xf32> to vector<2x1x8xbf16>
    %426 = arith.truncf %408 : vector<2x8x8xf32> to vector<2x8x8xbf16>
    "tpu.trace_start"() <{level = 10 : i32, message = "bqk,bkd->bqd"}> : () -> ()
    %cst_158 = arith.constant dense<0.000000e+00> : vector<2x1x8xf32>
    %427 = tpu.matmul %425, %426, %cst_158 {dimension_numbers = #tpu.dot_dimension_numbers<[2], [1], [1], [2], [0, 0, 0, 1, 1, 2], [0], [0]>} : vector<2x1x8xbf16>, vector<2x8x8xbf16>, vector<2x1x8xf32> -> vector<2x1x8xf32>
    "tpu.trace_stop"() : () -> ()
    %428 = vector.shape_cast %427 : vector<2x1x8xf32> to vector<2x8xf32>
    %c15 = arith.constant 15 : index
    %c0_159 = arith.constant 0 : index
    %c0_160 = arith.constant 0 : index
    %429 = vector.load %arg4[%c15, %c0_159, %c0_160] : memref<24x32x8xbf16, #tpu.memory_space<vmem>>, vector<1x32x8xbf16>
    %430 = vector.shape_cast %429 : vector<1x32x8xbf16> to vector<32x8xbf16>
    %c19 = arith.constant 19 : index
    %c0_161 = arith.constant 0 : index
    %c0_162 = arith.constant 0 : index
    %431 = vector.load %arg4[%c19, %c0_161, %c0_162] : memref<24x32x8xbf16, #tpu.memory_space<vmem>>, vector<1x32x8xbf16>
    %432 = vector.shape_cast %431 : vector<1x32x8xbf16> to vector<32x8xbf16>
    %c23 = arith.constant 23 : index
    %c0_163 = arith.constant 0 : index
    %c0_164 = arith.constant 0 : index
    %433 = vector.load %arg4[%c23, %c0_163, %c0_164] : memref<24x32x8xbf16, #tpu.memory_space<vmem>>, vector<1x32x8xbf16>
    %434 = vector.shape_cast %433 : vector<1x32x8xbf16> to vector<32x8xbf16>
    %cst_165 = arith.constant dense<0.000000e+00> : vector<2x8xf32>
    %435 = tpu.matmul %304, %430, %cst_165 {dimension_numbers = #tpu.dot_dimension_numbers<[1], [0], [0], [1], [0, 0, 1, 1], [], []>} : vector<2x32xbf16>, vector<32x8xbf16>, vector<2x8xf32> -> vector<2x8xf32>
    %436 = vector.extract_strided_slice %298 {offsets = [0, 24], sizes = [1, 8], strides = [1, 1]} : vector<1x32xf32> to vector<1x8xf32>
    %437 = vector.broadcast %436 : vector<1x8xf32> to vector<2x8xf32>
    %438 = arith.addf %435, %437 : vector<2x8xf32>
    %439 = vector.shape_cast %438 : vector<2x8xf32> to vector<2x1x8xf32>
    %cst_166 = arith.constant dense<0.000000e+00> : vector<16x8xf32>
    %440 = tpu.matmul %305, %432, %cst_166 {dimension_numbers = #tpu.dot_dimension_numbers<[1], [0], [0], [1], [0, 0, 1, 1], [], []>} : vector<16x32xbf16>, vector<32x8xbf16>, vector<16x8xf32> -> vector<16x8xf32>
    %441 = vector.extract_strided_slice %299 {offsets = [0, 24], sizes = [1, 8], strides = [1, 1]} : vector<1x32xf32> to vector<1x8xf32>
    %442 = vector.broadcast %441 : vector<1x8xf32> to vector<16x8xf32>
    %443 = arith.addf %440, %442 : vector<16x8xf32>
    %444 = vector.shape_cast %443 : vector<16x8xf32> to vector<2x8x8xf32>
    %cst_167 = arith.constant dense<0.000000e+00> : vector<16x8xf32>
    %445 = tpu.matmul %305, %434, %cst_167 {dimension_numbers = #tpu.dot_dimension_numbers<[1], [0], [0], [1], [0, 0, 1, 1], [], []>} : vector<16x32xbf16>, vector<32x8xbf16>, vector<16x8xf32> -> vector<16x8xf32>
    %446 = vector.extract_strided_slice %300 {offsets = [0, 24], sizes = [1, 8], strides = [1, 1]} : vector<1x32xf32> to vector<1x8xf32>
    %447 = vector.broadcast %446 : vector<1x8xf32> to vector<16x8xf32>
    %448 = arith.addf %445, %447 : vector<16x8xf32>
    %449 = vector.shape_cast %448 : vector<16x8xf32> to vector<2x8x8xf32>
    %450 = arith.truncf %439 : vector<2x1x8xf32> to vector<2x1x8xbf16>
    %451 = arith.truncf %444 : vector<2x8x8xf32> to vector<2x8x8xbf16>
    "tpu.trace_start"() <{level = 10 : i32, message = "bqd,bkd->bqk"}> : () -> ()
    %cst_168 = arith.constant dense<0.000000e+00> : vector<2x1x8xf32>
    %452 = tpu.matmul %450, %451, %cst_168 {dimension_numbers = #tpu.dot_dimension_numbers<[2], [2], [1], [1], [0, 0, 0, 1, 1, 1], [0], [0]>} : vector<2x1x8xbf16>, vector<2x8x8xbf16>, vector<2x1x8xf32> -> vector<2x1x8xf32>
    "tpu.trace_stop"() : () -> ()
    %cst_169 = arith.constant 0.353553385 : f32
    %453 = vector.broadcast %cst_169 : f32 to vector<2x1x8xf32>
    %454 = arith.mulf %452, %453 : vector<2x1x8xf32>
    %cst_170 = arith.constant dense<0xFF800000> : vector<2x1xf32>
    %455 = vector.multi_reduction <maximumf>, %454, %cst_170 [2] : vector<2x1x8xf32> to vector<2x1xf32>
    %456 = vector.shape_cast %455 : vector<2x1xf32> to vector<2x1x1xf32>
    %457 = vector.broadcast %456 : vector<2x1x1xf32> to vector<2x1x8xf32>
    %458 = arith.subf %454, %457 : vector<2x1x8xf32>
    %459 = math.exp %458 : vector<2x1x8xf32>
    %cst_171 = arith.constant dense<0.000000e+00> : vector<2x1xf32>
    %460 = vector.multi_reduction <add>, %459, %cst_171 [2] : vector<2x1x8xf32> to vector<2x1xf32>
    %461 = vector.shape_cast %460 : vector<2x1xf32> to vector<2x1x1xf32>
    %cst_172 = arith.constant 1.000000e+00 : f32
    %462 = vector.broadcast %cst_172 : f32 to vector<2x1x1xf32>
    %463 = arith.divf %462, %461 : vector<2x1x1xf32>
    %464 = vector.broadcast %463 : vector<2x1x1xf32> to vector<2x1x8xf32>
    %465 = arith.mulf %459, %464 : vector<2x1x8xf32>
    %466 = arith.truncf %465 : vector<2x1x8xf32> to vector<2x1x8xbf16>
    %467 = arith.truncf %449 : vector<2x8x8xf32> to vector<2x8x8xbf16>
    "tpu.trace_start"() <{level = 10 : i32, message = "bqk,bkd->bqd"}> : () -> ()
    %cst_173 = arith.constant dense<0.000000e+00> : vector<2x1x8xf32>
    %468 = tpu.matmul %466, %467, %cst_173 {dimension_numbers = #tpu.dot_dimension_numbers<[2], [1], [1], [2], [0, 0, 0, 1, 1, 2], [0], [0]>} : vector<2x1x8xbf16>, vector<2x8x8xbf16>, vector<2x1x8xf32> -> vector<2x1x8xf32>
    "tpu.trace_stop"() : () -> ()
    %469 = vector.shape_cast %468 : vector<2x1x8xf32> to vector<2x8xf32>
    %470 = tpu.concatenate %346, %387, %428, %469 in 1 : vector<2x8xf32>, vector<2x8xf32>, vector<2x8xf32>, vector<2x8xf32> -> vector<2x32xf32>
    %471 = arith.truncf %470 : vector<2x32xf32> to vector<2x32xbf16>
    %cst_174 = arith.constant dense<0.000000e+00> : vector<2x32xf32>
    %472 = tpu.matmul %471, %302, %cst_174 {dimension_numbers = #tpu.dot_dimension_numbers<[1], [0], [0], [1], [0, 0, 1, 1], [], []>} : vector<2x32xbf16>, vector<32x32xbf16>, vector<2x32xf32> -> vector<2x32xf32>
    %473 = vector.broadcast %303 : vector<1x32xf32> to vector<2x32xf32>
    %474 = arith.addf %472, %473 : vector<2x32xf32>
    %475 = vector.extract_strided_slice %0 {offsets = [19, 0], sizes = [1, 32], strides = [1, 1]} : vector<32x128xf32> to vector<1x32xf32>
    %476 = vector.extract_strided_slice %0 {offsets = [20, 0], sizes = [1, 32], strides = [1, 1]} : vector<32x128xf32> to vector<1x32xf32>
    %477 = arith.addf %474, %297 : vector<2x32xf32>
    %cst_175 = arith.constant dense<0.000000e+00> : vector<2xf32>
    %478 = vector.multi_reduction <add>, %477, %cst_175 [1] : vector<2x32xf32> to vector<2xf32>
    %479 = vector.shape_cast %478 : vector<2xf32> to vector<2x1xf32>
    %cst_176 = arith.constant 3.200000e+01 : f32
    %480 = vector.broadcast %cst_176 : f32 to vector<2x1xf32>
    %481 = arith.divf %479, %480 : vector<2x1xf32>
    %482 = vector.broadcast %481 : vector<2x1xf32> to vector<2x32xf32>
    %483 = arith.subf %477, %482 : vector<2x32xf32>
    %484 = arith.mulf %483, %483 : vector<2x32xf32>
    %cst_177 = arith.constant dense<0.000000e+00> : vector<2xf32>
    %485 = vector.multi_reduction <add>, %484, %cst_177 [1] : vector<2x32xf32> to vector<2xf32>
    %486 = vector.shape_cast %485 : vector<2xf32> to vector<2x1xf32>
    %cst_178 = arith.constant 3.200000e+01 : f32
    %487 = vector.broadcast %cst_178 : f32 to vector<2x1xf32>
    %488 = arith.divf %486, %487 : vector<2x1xf32>
    %489 = vector.broadcast %481 : vector<2x1xf32> to vector<2x32xf32>
    %490 = arith.subf %477, %489 : vector<2x32xf32>
    %cst_179 = arith.constant 9.99999974E-6 : f32
    %491 = vector.broadcast %cst_179 : f32 to vector<2x1xf32>
    %492 = arith.addf %488, %491 : vector<2x1xf32>
    %493 = math.rsqrt %492 : vector<2x1xf32>
    %494 = vector.broadcast %493 : vector<2x1xf32> to vector<2x32xf32>
    %495 = arith.mulf %490, %494 : vector<2x32xf32>
    %496 = vector.broadcast %475 : vector<1x32xf32> to vector<2x32xf32>
    %497 = arith.mulf %495, %496 : vector<2x32xf32>
    %498 = vector.broadcast %476 : vector<1x32xf32> to vector<2x32xf32>
    %499 = arith.addf %497, %498 : vector<2x32xf32>
    %c1_180 = arith.constant 1 : index
    %c0_181 = arith.constant 0 : index
    %c0_182 = arith.constant 0 : index
    %500 = vector.load %arg6[%c1_180, %c0_181, %c0_182] : memref<2x32x2048xbf16, #tpu.memory_space<vmem>>, vector<1x32x2048xbf16>
    %501 = vector.shape_cast %500 : vector<1x32x2048xbf16> to vector<32x2048xbf16>
    %502 = vector.extract_strided_slice %1 {offsets = [1, 0], sizes = [1, 2048], strides = [1, 1]} : vector<2x2048xf32> to vector<1x2048xf32>
    %c1_183 = arith.constant 1 : index
    %c0_184 = arith.constant 0 : index
    %c0_185 = arith.constant 0 : index
    %503 = vector.load %arg7[%c1_183, %c0_184, %c0_185] : memref<2x2048x32xbf16, #tpu.memory_space<vmem>>, vector<1x2048x32xbf16>
    %504 = vector.shape_cast %503 : vector<1x2048x32xbf16> to vector<2048x32xbf16>
    %505 = vector.extract_strided_slice %0 {offsets = [21, 0], sizes = [1, 32], strides = [1, 1]} : vector<32x128xf32> to vector<1x32xf32>
    %506 = arith.truncf %499 : vector<2x32xf32> to vector<2x32xbf16>
    %cst_186 = arith.constant dense<0.000000e+00> : vector<2x2048xf32>
    %507 = tpu.matmul %506, %501, %cst_186 {dimension_numbers = #tpu.dot_dimension_numbers<[1], [0], [0], [1], [0, 0, 1, 1], [], []>} : vector<2x32xbf16>, vector<32x2048xbf16>, vector<2x2048xf32> -> vector<2x2048xf32>
    %508 = vector.broadcast %502 : vector<1x2048xf32> to vector<2x2048xf32>
    %509 = arith.addf %507, %508 : vector<2x2048xf32>
    %cst_187 = arith.constant 0.000000e+00 : f32
    %510 = vector.broadcast %cst_187 : f32 to vector<2x2048xf32>
    %511 = arith.maximumf %509, %510 : vector<2x2048xf32>
    %512 = arith.truncf %511 : vector<2x2048xf32> to vector<2x2048xbf16>
    %cst_188 = arith.constant dense<0.000000e+00> : vector<2x32xf32>
    %513 = tpu.matmul %512, %504, %cst_188 {dimension_numbers = #tpu.dot_dimension_numbers<[1], [0], [0], [1], [0, 0, 1, 1], [], []>} : vector<2x2048xbf16>, vector<2048x32xbf16>, vector<2x32xf32> -> vector<2x32xf32>
    %514 = vector.broadcast %505 : vector<1x32xf32> to vector<2x32xf32>
    %515 = arith.addf %513, %514 : vector<2x32xf32>
    %516 = vector.extract_strided_slice %0 {offsets = [22, 0], sizes = [1, 32], strides = [1, 1]} : vector<32x128xf32> to vector<1x32xf32>
    %517 = vector.extract_strided_slice %0 {offsets = [23, 0], sizes = [1, 32], strides = [1, 1]} : vector<32x128xf32> to vector<1x32xf32>
    %518 = arith.addf %515, %499 : vector<2x32xf32>
    %cst_189 = arith.constant dense<0.000000e+00> : vector<2xf32>
    %519 = vector.multi_reduction <add>, %518, %cst_189 [1] : vector<2x32xf32> to vector<2xf32>
    %520 = vector.shape_cast %519 : vector<2xf32> to vector<2x1xf32>
    %cst_190 = arith.constant 3.200000e+01 : f32
    %521 = vector.broadcast %cst_190 : f32 to vector<2x1xf32>
    %522 = arith.divf %520, %521 : vector<2x1xf32>
    %523 = vector.broadcast %522 : vector<2x1xf32> to vector<2x32xf32>
    %524 = arith.subf %518, %523 : vector<2x32xf32>
    %525 = arith.mulf %524, %524 : vector<2x32xf32>
    %cst_191 = arith.constant dense<0.000000e+00> : vector<2xf32>
    %526 = vector.multi_reduction <add>, %525, %cst_191 [1] : vector<2x32xf32> to vector<2xf32>
    %527 = vector.shape_cast %526 : vector<2xf32> to vector<2x1xf32>
    %cst_192 = arith.constant 3.200000e+01 : f32
    %528 = vector.broadcast %cst_192 : f32 to vector<2x1xf32>
    %529 = arith.divf %527, %528 : vector<2x1xf32>
    %530 = vector.broadcast %522 : vector<2x1xf32> to vector<2x32xf32>
    %531 = arith.subf %518, %530 : vector<2x32xf32>
    %cst_193 = arith.constant 9.99999974E-6 : f32
    %532 = vector.broadcast %cst_193 : f32 to vector<2x1xf32>
    %533 = arith.addf %529, %532 : vector<2x1xf32>
    %534 = math.rsqrt %533 : vector<2x1xf32>
    %535 = vector.broadcast %534 : vector<2x1xf32> to vector<2x32xf32>
    %536 = arith.mulf %531, %535 : vector<2x32xf32>
    %537 = vector.broadcast %516 : vector<1x32xf32> to vector<2x32xf32>
    %538 = arith.mulf %536, %537 : vector<2x32xf32>
    %539 = vector.broadcast %517 : vector<1x32xf32> to vector<2x32xf32>
    %540 = arith.addf %538, %539 : vector<2x32xf32>
    %541 = vector.extract_strided_slice %0 {offsets = [24, 0], sizes = [1, 32], strides = [1, 1]} : vector<32x128xf32> to vector<1x32xf32>
    %542 = vector.broadcast %541 : vector<1x32xf32> to vector<2x32xf32>
    %543 = arith.mulf %540, %542 : vector<2x32xf32>
    %cst_194 = arith.constant dense<0.000000e+00> : vector<2xf32>
    %544 = vector.multi_reduction <add>, %543, %cst_194 [1] : vector<2x32xf32> to vector<2xf32>
    %545 = vector.shape_cast %544 : vector<2xf32> to vector<2x1xf32>
    %546 = vector.extract_strided_slice %0 {offsets = [25, 0], sizes = [1, 1], strides = [1, 1]} : vector<32x128xf32> to vector<1x1xf32>
    %547 = vector.broadcast %546 : vector<1x1xf32> to vector<2x1xf32>
    %548 = arith.addf %545, %547 : vector<2x1xf32>
    %549 = vector.shape_cast %548 : vector<2x1xf32> to vector<2x1x1xf32>
    %550 = vector.shape_cast %549 : vector<2x1x1xf32> to vector<2x1x1xf32>
    %551 = vector.broadcast %550 : vector<2x1x1xf32> to vector<2x1x128xf32>
    %c0_195 = arith.constant 0 : index
    %c0_196 = arith.constant 0 : index
    %c0_197 = arith.constant 0 : index
    %552 = vector.load %arg10[%c0_195, %c0_196, %c0_197] : memref<2x1x128xf32, #tpu.memory_space<vmem>>, vector<2x1x128xf32>
    tpu.vector_store %arg10[%c0_195, %c0_196, %c0_197], %551 {strides = array<i32>} : memref<2x1x128xf32, #tpu.memory_space<vmem>>, vector<2x1x128xf32>,
    return
  }
  func.func @transform_0(%arg0: i32) -> (i32, i32) {
    %c0_i32 = arith.constant 0 : i32
    %c0_i32_0 = arith.constant 0 : i32
    return %arg0, %c0_i32 : i32, i32
  }
  func.func @transform_1(%arg0: i32) -> (i32, i32, i32) {
    %c0_i32 = arith.constant 0 : i32
    %c0_i32_0 = arith.constant 0 : i32
    %c0_i32_1 = arith.constant 0 : i32
    return %arg0, %c0_i32, %c0_i32_0 : i32, i32, i32
  }
  func.func @transform_2(%arg0: i32) -> (i32, i32) {
    %c0_i32 = arith.constant 0 : i32
    %c0_i32_0 = arith.constant 0 : i32
    %c0_i32_1 = arith.constant 0 : i32
    return %c0_i32, %c0_i32_0 : i32, i32
  }
  func.func @transform_3(%arg0: i32) -> (i32, i32, i32) {
    %c0_i32 = arith.constant 0 : i32
    %c0_i32_0 = arith.constant 0 : i32
    %c0_i32_1 = arith.constant 0 : i32
    %c0_i32_2 = arith.constant 0 : i32
    return %c0_i32, %c0_i32_0, %c0_i32_1 : i32, i32, i32
  }
  func.func @transform_4(%arg0: i32) -> (i32, i32, i32) {
    %c0_i32 = arith.constant 0 : i32
    %c0_i32_0 = arith.constant 0 : i32
    %c0_i32_1 = arith.constant 0 : i32
    %c0_i32_2 = arith.constant 0 : i32
    return %c0_i32, %c0_i32_0, %c0_i32_1 : i32, i32, i32
  }
  func.func @transform_5(%arg0: i32) -> (i32, i32, i32) {
    %c0_i32 = arith.constant 0 : i32
    %c0_i32_0 = arith.constant 0 : i32
    %c0_i32_1 = arith.constant 0 : i32
    %c0_i32_2 = arith.constant 0 : i32
    return %c0_i32, %c0_i32_0, %c0_i32_1 : i32, i32, i32
  }
  func.func @transform_6(%arg0: i32) -> (i32, i32, i32) {
    %c0_i32 = arith.constant 0 : i32
    %c0_i32_0 = arith.constant 0 : i32
    %c0_i32_1 = arith.constant 0 : i32
    %c0_i32_2 = arith.constant 0 : i32
    return %c0_i32, %c0_i32_0, %c0_i32_1 : i32, i32, i32
  }
  func.func @transform_7(%arg0: i32) -> (i32, i32) {
    %c0_i32 = arith.constant 0 : i32
    %c0_i32_0 = arith.constant 0 : i32
    %c0_i32_1 = arith.constant 0 : i32
    return %c0_i32, %c0_i32_0 : i32, i32
  }
  func.func @transform_8(%arg0: i32) -> (i32, i32) {
    %c0_i32 = arith.constant 0 : i32
    %c0_i32_0 = arith.constant 0 : i32
    %c0_i32_1 = arith.constant 0 : i32
    return %c0_i32, %c0_i32_0 : i32, i32
  }
  func.func @transform_9(%arg0: i32) -> (i32, i32, i32) {
    %c0_i32 = arith.constant 0 : i32
    %c0_i32_0 = arith.constant 0 : i32
    %c0_i32_1 = arith.constant 0 : i32
    return %arg0, %c0_i32, %c0_i32_0 : i32, i32, i32
  }
}

</mosaic_0001>

<llo_original>
// kernel: narx_forward.1
$region0: #{narx_forward.1}
  #allocation0 [shape = 'u32[]', space=smem, size = 0x4, offset = 0x4, fixed_abs, tag = 'smem constant byte address 0x4 - core index']
  #allocation1 [shape = 'u32[72,128]{1,0:T(1,128)}', space=vmem, size = 0x9000, scoped, tag = 'internal scratch']
  %s0 = inlined_call_operand.vmem [shape: bf16[16,128], index: 0, kind: input, shape index: {}]
  %s1 = inlined_call_operand.vmem [shape: bf16[2,1,32], index: 1, kind: input, shape index: {}]
  %s2 = inlined_call_operand.vmem [shape: bf16[128,32], index: 2, kind: input, shape index: {}]
  %s3 = inlined_call_operand.vmem [shape: bf16[24,32,8], index: 3, kind: input, shape index: {}]
  %s4 = inlined_call_operand.vmem [shape: bf16[5,32,32], index: 4, kind: input, shape index: {}]
  %s5 = inlined_call_operand.vmem [shape: bf16[2,32,2048], index: 5, kind: input, shape index: {}]
  %s6 = inlined_call_operand.vmem [shape: bf16[2,2048,32], index: 6, kind: input, shape index: {}]
  %s7 = inlined_call_operand.vmem [shape: f32[2,2048], index: 7, kind: input, shape index: {}]
  %s8 = inlined_call_operand.vmem [shape: f32[32,128], index: 8, kind: input, shape index: {}]
  %s9 = inlined_call_operand.vmem [shape: f32[2,1,128], index: 9, kind: output, shape index: {}]
  %s10 = sld [smem:[#allocation0]]
  $region46: #{narx_forward.1} parent=0
    _
  %s12 = ssub.s32 1, %s10
  %s13 = scalar_select 0, %s12, %s10
  // Predicated region
  $region2: #{narx_forward.1} parent=0 // pred_check
    _
  $region3: #{narx_forward.1} parent=0 // pred_check_branch
    %15 = sbr.rel (0) target = $region5
  $region4: #{narx_forward.1} parent=0 // pred_region
    _
  $region5: #{narx_forward.1} parent=0 // pred_fallthru
    _
  // Predicated region
  $region6: #{narx_forward.1} parent=0 // pred_check
    _
  $region7: #{narx_forward.1} parent=0 // pred_check_branch
    %17 = sbr.rel (0) target = $region9
  $region8: #{narx_forward.1} parent=0 // pred_region
    _
  $region9: #{narx_forward.1} parent=0 // pred_fallthru
    _
  // Predicated region
  $region10: #{narx_forward.1} parent=0 // pred_check
    _
  $region11: #{narx_forward.1} parent=0 // pred_check_branch
    %19 = sbr.rel (0) target = $region13
  $region12: #{narx_forward.1} parent=0 // pred_region
    _
  $region13: #{narx_forward.1} parent=0 // pred_fallthru
    _
  // Predicated region
  $region14: #{narx_forward.1} parent=0 // pred_check
    _
  $region15: #{narx_forward.1} parent=0 // pred_check_branch
    %21 = sbr.rel (0) target = $region17
  $region16: #{narx_forward.1} parent=0 // pred_region
    _
  $region17: #{narx_forward.1} parent=0 // pred_fallthru
    _
  // Predicated region
  $region18: #{narx_forward.1} parent=0 // pred_check
    _
  $region19: #{narx_forward.1} parent=0 // pred_check_branch
    %23 = sbr.rel (0) target = $region21
  $region20: #{narx_forward.1} parent=0 // pred_region
    _
  $region21: #{narx_forward.1} parent=0 // pred_fallthru
    _
  // Predicated region
  $region22: #{narx_forward.1} parent=0 // pred_check
    _
  $region23: #{narx_forward.1} parent=0 // pred_check_branch
    %25 = sbr.rel (0) target = $region25
  $region24: #{narx_forward.1} parent=0 // pred_region
    _
  $region25: #{narx_forward.1} parent=0 // pred_fallthru
    _
  // Predicated region
  $region26: #{narx_forward.1} parent=0 // pred_check
    _
  $region27: #{narx_forward.1} parent=0 // pred_check_branch
    %27 = sbr.rel (0) target = $region29
  $region28: #{narx_forward.1} parent=0 // pred_region
    _
  $region29: #{narx_forward.1} parent=0 // pred_fallthru
    _
  // Predicated region
  $region30: #{narx_forward.1} parent=0 // pred_check
    _
  $region31: #{narx_forward.1} parent=0 // pred_check_branch
    %29 = sbr.rel (0) target = $region33
  $region32: #{narx_forward.1} parent=0 // pred_region
    _
  $region33: #{narx_forward.1} parent=0 // pred_fallthru
    _
  // Predicated region
  $region34: #{narx_forward.1} parent=0 // pred_check
    _
  $region35: #{narx_forward.1} parent=0 // pred_check_branch
    %31 = sbr.rel (0) target = $region37
  $region36: #{narx_forward.1} parent=0 // pred_region
    _
  $region37: #{narx_forward.1} parent=0 // pred_fallthru
    _
  %v33 = vld [vmem:[%s8] sm:$0xff]
  %v34 = vld [vmem:[%s8 + $0x8] sm:$0xff]
  %v35 = vld [vmem:[%s8 + $0x10] sm:$0xff]
  %v36 = vld [vmem:[%s8 + $0x18] sm:$0xff]
  %v37 = vld [vmem:[%s7] sm:$0xff]
  %v38 = vld [vmem:[%s7 + $0x8] sm:$0xff]
  %v39 = vld [vmem:[%s7 + $0x10] sm:$0xff]
  %v40 = vld [vmem:[%s7 + $0x18] sm:$0xff]
  %v41 = vld [vmem:[%s0] sm:$0xf]
  %v42 = vld [vmem:[%s0 + $0x4] sm:$0xf]
  %v43 = vld [vmem:[%s2] sm:$0xf]
  %v44 = vld [vmem:[%s2 + $0x4] sm:$0xf]
  %v45 = vld [vmem:[%s2 + $0x8] sm:$0xf]
  %v46 = vld [vmem:[%s2 + $0xc] sm:$0xf]
  %v47 = vld [vmem:[%s2 + $0x10] sm:$0xf]
  %v48 = vld [vmem:[%s2 + $0x14] sm:$0xf]
  %v49 = vld [vmem:[%s2 + $0x18] sm:$0xf]
  %v50 = vld [vmem:[%s2 + $0x1c] sm:$0xf]
  %v51 = vld [vmem:[%s2 + $0x20] sm:$0xf]
  %v52 = vld [vmem:[%s2 + $0x24] sm:$0xf]
  %v53 = vld [vmem:[%s2 + $0x28] sm:$0xf]
  %v54 = vld [vmem:[%s2 + $0x2c] sm:$0xf]
  %v55 = vld [vmem:[%s2 + $0x30] sm:$0xf]
  %v56 = vld [vmem:[%s2 + $0x34] sm:$0xf]
  %v57 = vld [vmem:[%s2 + $0x38] sm:$0xf]
  %v58 = vld [vmem:[%s2 + $0x3c] sm:$0xf]
  %v59 = vperm.slane %v33, 0
  %v62 = vunpack.c.l.b16 %v41
  %v63 = vunpack.c.l.b16 %v42
  %v64 = vpack.c.b16 %v63, %v62
  %v82 = vunpack.c.l.b16 %v43
  %v83 = vunpack.c.l.b16 %v44
  %v84 = vunpack.c.l.b16 %v45
  %v85 = vunpack.c.l.b16 %v46
  %v86 = vunpack.c.l.b16 %v47
  %v87 = vunpack.c.l.b16 %v48
  %v88 = vunpack.c.l.b16 %v49
  %v89 = vunpack.c.l.b16 %v50
  %v90 = vunpack.c.l.b16 %v51
  %v91 = vunpack.c.l.b16 %v52
  %v92 = vunpack.c.l.b16 %v53
  %v93 = vunpack.c.l.b16 %v54
  %v94 = vunpack.c.l.b16 %v55
  %v95 = vunpack.c.l.b16 %v56
  %v96 = vunpack.c.l.b16 %v57
  %v97 = vunpack.c.l.b16 %v58
  %v98 = vpack.c.b16 %v83, %v82
  %v99 = vpack.c.b16 %v85, %v84
  %v100 = vpack.c.b16 %v87, %v86
  %v101 = vpack.c.b16 %v89, %v88
  %v102 = vpack.c.b16 %v91, %v90
  %v103 = vpack.c.b16 %v93, %v92
  %v104 = vpack.c.b16 %v95, %v94
  %v105 = vpack.c.b16 %v97, %v96
  %114 = vmatpush.bf16.msra.mxu0 %v105
  %115 = vmatpush.bf16.msra.mxu0 %v104
  %116 = vmatpush.bf16.msra.mxu0 %v103
  %117 = vmatpush.bf16.msra.mxu0 %v102
  %118 = vmatpush.bf16.msra.mxu0 %v101
  %119 = vmatpush.bf16.msra.mxu0 %v100
  %120 = vmatpush.bf16.msra.mxu0 %v99
  %121 = vmatpush.bf16.msra.mxu0 %v98
  %122 = vmatmul.bf16.gmra.mxu0 %v64
  %v123 = vpop.f32.mrf.mxu0
  %v124 = vadd.f32 %v59, %v123
  %v125 = vpop.f32.mrf.mxu0
  %v126 = vadd.f32 %v59, %v125
  %127 = vdwg.mxu0
  %v128 = vld [vmem:[%s4] sm:$0xf]
  %v129 = vld [vmem:[%s4 + $0x4] sm:$0xf]
  %v130 = vld [vmem:[%s4 + $0x8] sm:$0xf]
  %v131 = vld [vmem:[%s4 + $0xc] sm:$0xf]
  %v132 = vpack.c.bf16 %v126, %v124
  %v133 = vld [vmem:[%s3] sm:$0xf]
  %v134 = vld [vmem:[%s3 + $0x4] sm:$0xf]
  %v135 = vld [vmem:[%s3 + $0x8] sm:$0xf]
  %v136 = vld [vmem:[%s3 + $0xc] sm:$0xf]
  %s137 = scalar_lea.vmem %s3, 64
  %v138 = vld [vmem:[%s137] sm:$0xf]
  %v139 = vld [vmem:[%s137 + $0x4] sm:$0xf]
  %v140 = vld [vmem:[%s137 + $0x8] sm:$0xf]
  %v141 = vld [vmem:[%s137 + $0xc] sm:$0xf]
  %s142 = scalar_lea.vmem %s3, 128
  %v143 = vld [vmem:[%s142] sm:$0xf]
  %v144 = vld [vmem:[%s142 + $0x4] sm:$0xf]
  %v145 = vld [vmem:[%s142 + $0x8] sm:$0xf]
  %v146 = vld [vmem:[%s142 + $0xc] sm:$0xf]
  %v147 = vperm.slane %v33, 1
  %v152 = vunpack.c.l.b16 %v133
  %v153 = vunpack.c.l.b16 %v134
  %v154 = vunpack.c.l.b16 %v135
  %v155 = vunpack.c.l.b16 %v136
  %v156 = vpack.c.b16 %v153, %v152
  %v157 = vpack.c.b16 %v155, %v154
  %vm160 = vcmask 261120
  %v162 = vsel %vm160, %v132, 0
  %164 = vmatpush.bf16.msra.mxu0 0
  %165 = vmatpush.bf16.msra.mxu0 0
  %166 = vmatpush.bf16.msra.mxu0 0
  %167 = vmatpush.bf16.msra.mxu0 0
  %168 = vmatpush.bf16.msra.mxu0 0
  %169 = vmatpush.bf16.msra.mxu0 0
  %170 = vmatpush.bf16.msra.mxu0 %v157
  %171 = vmatpush.bf16.msra.mxu0 %v156
  %172 = vmatmul.bf16.gmra.mxu0 %v162
  %v173 = vpop.f32.mrf.mxu0
  %v174 = vadd.f32 %v147, %v173
  %v175 = vpop.f32.mrf.mxu0
  %v176 = vadd.f32 %v147, %v175
  %177 = vdwg.mxu0
  %v178 = vperm.slane %v33, 2
  %v183 = vunpack.c.l.b16 %v138
  %v184 = vunpack.c.l.b16 %v139
  %v185 = vunpack.c.l.b16 %v140
  %v186 = vunpack.c.l.b16 %v141
  %v187 = vpack.c.b16 %v184, %v183
  %v188 = vpack.c.b16 %v186, %v185
  %191 = vmatpush.bf16.msra.mxu0 0
  %192 = vmatpush.bf16.msra.mxu0 0
  %193 = vmatpush.bf16.msra.mxu0 0
  %194 = vmatpush.bf16.msra.mxu0 0
  %195 = vmatpush.bf16.msra.mxu0 0
  %196 = vmatpush.bf16.msra.mxu0 0
  %197 = vmatpush.bf16.msra.mxu0 %v188
  %198 = vmatpush.bf16.msra.mxu0 %v187
  %199 = vmatmul.bf16.gmra.mxu0 %v162
  %v200 = vpop.f32.mrf.mxu0
  %v201 = vadd.f32 %v178, %v200
  %v202 = vpop.f32.mrf.mxu0
  %v203 = vadd.f32 %v178, %v202
  %204 = vdwg.mxu0
  %v205 = vperm.slane %v33, 3
  %v210 = vunpack.c.l.b16 %v143
  %v211 = vunpack.c.l.b16 %v144
  %v212 = vunpack.c.l.b16 %v145
  %v213 = vunpack.c.l.b16 %v146
  %v214 = vpack.c.b16 %v211, %v210
  %v215 = vpack.c.b16 %v213, %v212
  %218 = vmatpush.bf16.msra.mxu0 0
  %219 = vmatpush.bf16.msra.mxu0 0
  %220 = vmatpush.bf16.msra.mxu0 0
  %221 = vmatpush.bf16.msra.mxu0 0
  %222 = vmatpush.bf16.msra.mxu0 0
  %223 = vmatpush.bf16.msra.mxu0 0
  %224 = vmatpush.bf16.msra.mxu0 %v215
  %225 = vmatpush.bf16.msra.mxu0 %v214
  %226 = vmatmul.bf16.gmra.mxu0 %v162
  %v227 = vpop.f32.mrf.mxu0
  %v228 = vadd.f32 %v205, %v227
  %v229 = vpop.f32.mrf.mxu0
  %v230 = vadd.f32 %v205, %v229
  %231 = vdwg.mxu0
  %v232 = vpack.c.bf16 %v174, %v174
  %v233 = vpack.c.bf16 %v176, %v176
  %v234 = vpack.c.bf16 %v201, %v201
  %v235 = vpack.c.bf16 %v203, %v203
  %vm236 = vcmask 64512
  %v238 = vsel %vm236, %v232, 0
  %v241 = vsel %vm236, %v234, 0
  %243 = vmatpush.bf16.xpose.msra.mxu0 0
  %244 = vmatpush.bf16.xpose.msra.mxu0 0
  %245 = vmatpush.bf16.xpose.msra.mxu0 0
  %246 = vmatpush.bf16.xpose.msra.mxu0 0
  %247 = vmatpush.bf16.xpose.msra.mxu0 0
  %248 = vmatpush.bf16.xpose.msra.mxu0 0
  %249 = vmatpush.bf16.xpose.msra.mxu0 0
  %250 = vmatpush.bf16.xpose.msra.mxu0 %v241
  %251 = vmatmul.bf16.gmra.mxu0 %v238
  %v252 = vpop.f32.mrf.mxu0
  %v253 = vadd.f32 0.0, %v252
  %v254 = vpop.f32.mrf.mxu0
  %255 = vdwg.mxu0
  %v257 = vsel %vm236, %v233, 0
  %v260 = vsel %vm236, %v235, 0
  %262 = vmatpush.bf16.xpose.msra.mxu0 0
  %263 = vmatpush.bf16.xpose.msra.mxu0 0
  %264 = vmatpush.bf16.xpose.msra.mxu0 0
  %265 = vmatpush.bf16.xpose.msra.mxu0 0
  %266 = vmatpush.bf16.xpose.msra.mxu0 0
  %267 = vmatpush.bf16.xpose.msra.mxu0 0
  %268 = vmatpush.bf16.xpose.msra.mxu0 0
  %269 = vmatpush.bf16.xpose.msra.mxu0 %v260
  %270 = vmatmul.bf16.gmra.mxu0 %v257
  %v271 = vpop.f32.mrf.mxu0
  %v272 = vadd.f32 0.0, %v271
  %v273 = vpop.f32.mrf.mxu0
  %274 = vdwg.mxu0
  %v275 = vmul.f32 %v253, 0.35355338
  %v276 = vmul.f32 %v272, 0.35355338
  %v277 = vsel %vm236, %v275, -inf
  %278 = vmax.xlane.f32.xlu0 %v277
  %v279 = vpop.xlane.xlu0 %278
  %v280 = vsel %vm236, %v276, -inf
  %281 = vmax.xlane.f32.xlu0 %v280
  %v282 = vpop.xlane.xlu0 %281
  %v283 = vsub.f32 %v275, %v279
  %v284 = vsub.f32 %v276, %v282
  %v285 = vmul.f32 %v283, 1.442695
  %v286 = vpow.pop %v285
  %v287 = vmul.f32 %v284, 1.442695
  %v288 = vpow.pop %v287
  %v289 = vsel %vm236, %v286, 0.0
  %290 = vadd.xlane.f32.xlu0 %v289
  %v291 = vpop.xlane.xlu0 %290
  %v292 = vsel %vm236, %v288, 0.0
  %293 = vadd.xlane.f32.xlu0 %v292
  %v294 = vpop.xlane.xlu0 %293
  %v295 = vrcp.pop %v291
  %v296 = vmul.f32 %v291, %v295
  %v297 = vsub.f32 1.0, %v296
  %v298 = vmul.f32 %v295, %v297
  %v299 = vadd.f32 %v295, %v298
  %vm300 = vweird.f32 %v291
  %vm301 = vweird.f32 %v295
  %vm302 = vmor %vm300, %vm301
  %v303 = vsel %vm302, %v295, %v299
  %v304 = vand.u32 2147483647, %v291
  %vm305 = vcmp.eq.f32.partialorder %v304, 8.507059e+37
  %v306 = vand.u32 %v291, 2147483648
  %v307 = vor.u32 1.1754944e-38, %v306
  %v308 = vsel %vm305, %v307, %v303
  %v309 = vmul.f32 1.0, %v308
  %v310 = vrcp.pop %v294
  %v311 = vmul.f32 %v294, %v310
  %v312 = vsub.f32 1.0, %v311
  %v313 = vmul.f32 %v310, %v312
  %v314 = vadd.f32 %v310, %v313
  %vm315 = vweird.f32 %v294
  %vm316 = vweird.f32 %v310
  %vm317 = vmor %vm315, %vm316
  %v318 = vsel %vm317, %v310, %v314
  %v319 = vand.u32 2147483647, %v294
  %vm320 = vcmp.eq.f32.partialorder %v319, 8.507059e+37
  %v321 = vand.u32 %v294, 2147483648
  %v322 = vor.u32 1.1754944e-38, %v321
  %v323 = vsel %vm320, %v322, %v318
  %v324 = vmul.f32 1.0, %v323
  %v325 = vmul.f32 %v286, %v309
  %v326 = vmul.f32 %v288, %v324
  %v327 = vpack.c.bf16 %v325, %v325
  %v328 = vpack.c.bf16 %v326, %v326
  %v329 = vpack.c.bf16 %v228, %v228
  %v330 = vpack.c.bf16 %v230, %v230
  %v332 = vsel %vm236, %v327, 0
  %vm334 = vcmask 1043456
  %v336 = vsel %vm334, %v329, 0
  %338 = vmatpush.bf16.msra.mxu0 0
  %339 = vmatpush.bf16.msra.mxu0 0
  %340 = vmatpush.bf16.msra.mxu0 0
  %341 = vmatpush.bf16.msra.mxu0 0
  %342 = vmatpush.bf16.msra.mxu0 0
  %343 = vmatpush.bf16.msra.mxu0 0
  %344 = vmatpush.bf16.msra.mxu0 0
  %345 = vmatpush.bf16.msra.mxu0 %v336
  %346 = vmatmul.bf16.gmra.mxu0 %v332
  %v347 = vpop.f32.mrf.mxu0
  %v348 = vadd.f32 0.0, %v347
  %v349 = vpop.f32.mrf.mxu0
  %350 = vdwg.mxu0
  %v352 = vsel %vm236, %v328, 0
  %v355 = vsel %vm334, %v330, 0
  %357 = vmatpush.bf16.msra.mxu0 0
  %358 = vmatpush.bf16.msra.mxu0 0
  %359 = vmatpush.bf16.msra.mxu0 0
  %360 = vmatpush.bf16.msra.mxu0 0
  %361 = vmatpush.bf16.msra.mxu0 0
  %362 = vmatpush.bf16.msra.mxu0 0
  %363 = vmatpush.bf16.msra.mxu0 0
  %364 = vmatpush.bf16.msra.mxu0 %v355
  %365 = vmatmul.bf16.gmra.mxu0 %v352
  %v366 = vpop.f32.mrf.mxu0
  %v367 = vadd.f32 0.0, %v366
  %v368 = vpop.f32.mrf.mxu0
  %369 = vdwg.mxu0
  %s370 = scalar_lea.vmem %s3, 16
  %v371 = vld [vmem:[%s370] sm:$0xf]
  %v372 = vld [vmem:[%s370 + $0x4] sm:$0xf]
  %v373 = vld [vmem:[%s370 + $0x8] sm:$0xf]
  %v374 = vld [vmem:[%s370 + $0xc] sm:$0xf]
  %s375 = scalar_lea.vmem %s3, 80
  %v376 = vld [vmem:[%s375] sm:$0xf]
  %v377 = vld [vmem:[%s375 + $0x4] sm:$0xf]
  %v378 = vld [vmem:[%s375 + $0x8] sm:$0xf]
  %v379 = vld [vmem:[%s375 + $0xc] sm:$0xf]
  %s380 = scalar_lea.vmem %s3, 144
  %v381 = vld [vmem:[%s380] sm:$0xf]
  %v382 = vld [vmem:[%s380 + $0x4] sm:$0xf]
  %v383 = vld [vmem:[%s380 + $0x8] sm:$0xf]
  %v384 = vld [vmem:[%s380 + $0xc] sm:$0xf]
  %v389 = vunpack.c.l.b16 %v371
  %v390 = vunpack.c.l.b16 %v372
  %v391 = vunpack.c.l.b16 %v373
  %v392 = vunpack.c.l.b16 %v374
  %v393 = vpack.c.b16 %v390, %v389
  %v394 = vpack.c.b16 %v392, %v391
  %398 = vrot.lane.b32.xlu0 %v147, 120
  %v399 = vpop.permute.xlu0 %398
  %401 = vmatpush.bf16.msra.mxu0 0
  %402 = vmatpush.bf16.msra.mxu0 0
  %403 = vmatpush.bf16.msra.mxu0 0
  %404 = vmatpush.bf16.msra.mxu0 0
  %405 = vmatpush.bf16.msra.mxu0 0
  %406 = vmatpush.bf16.msra.mxu0 0
  %407 = vmatpush.bf16.msra.mxu0 %v394
  %408 = vmatpush.bf16.msra.mxu0 %v393
  %409 = vmatmul.bf16.gmra.mxu0 %v162
  %v410 = vpop.f32.mrf.mxu0
  %v411 = vadd.f32 %v399, %v410
  %v412 = vpop.f32.mrf.mxu0
  %v413 = vadd.f32 %v399, %v412
  %414 = vdwg.mxu0
  %v419 = vunpack.c.l.b16 %v376
  %v420 = vunpack.c.l.b16 %v377
  %v421 = vunpack.c.l.b16 %v378
  %v422 = vunpack.c.l.b16 %v379
  %v423 = vpack.c.b16 %v420, %v419
  %v424 = vpack.c.b16 %v422, %v421
  %428 = vrot.lane.b32.xlu0 %v178, 120
  %v429 = vpop.permute.xlu0 %428
  %431 = vmatpush.bf16.msra.mxu0 0
  %432 = vmatpush.bf16.msra.mxu0 0
  %433 = vmatpush.bf16.msra.mxu0 0
  %434 = vmatpush.bf16.msra.mxu0 0
  %435 = vmatpush.bf16.msra.mxu0 0
  %436 = vmatpush.bf16.msra.mxu0 0
  %437 = vmatpush.bf16.msra.mxu0 %v424
  %438 = vmatpush.bf16.msra.mxu0 %v423
  %439 = vmatmul.bf16.gmra.mxu0 %v162
  %v440 = vpop.f32.mrf.mxu0
  %v441 = vadd.f32 %v429, %v440
  %v442 = vpop.f32.mrf.mxu0
  %v443 = vadd.f32 %v429, %v442
  %444 = vdwg.mxu0
  %v449 = vunpack.c.l.b16 %v381
  %v450 = vunpack.c.l.b16 %v382
  %v451 = vunpack.c.l.b16 %v383
  %v452 = vunpack.c.l.b16 %v384
  %v453 = vpack.c.b16 %v450, %v449
  %v454 = vpack.c.b16 %v452, %v451
  %458 = vrot.lane.b32.xlu0 %v205, 120
  %v459 = vpop.permute.xlu0 %458
  %461 = vmatpush.bf16.msra.mxu0 0
  %462 = vmatpush.bf16.msra.mxu0 0
  %463 = vmatpush.bf16.msra.mxu0 0
  %464 = vmatpush.bf16.msra.mxu0 0
  %465 = vmatpush.bf16.msra.mxu0 0
  %466 = vmatpush.bf16.msra.mxu0 0
  %467 = vmatpush.bf16.msra.mxu0 %v454
  %468 = vmatpush.bf16.msra.mxu0 %v453
  %469 = vmatmul.bf16.gmra.mxu0 %v162
  %v470 = vpop.f32.mrf.mxu0
  %v471 = vadd.f32 %v459, %v470
  %v472 = vpop.f32.mrf.mxu0
  %v473 = vadd.f32 %v459, %v472
  %474 = vdwg.mxu0
  %v475 = vpack.c.bf16 %v411, %v411
  %v476 = vpack.c.bf16 %v413, %v413
  %v477 = vpack.c.bf16 %v441, %v441
  %v478 = vpack.c.bf16 %v443, %v443
  %v480 = vsel %vm236, %v475, 0
  %v483 = vsel %vm236, %v477, 0
  %485 = vmatpush.bf16.xpose.msra.mxu0 0
  %486 = vmatpush.bf16.xpose.msra.mxu0 0
  %487 = vmatpush.bf16.xpose.msra.mxu0 0
  %488 = vmatpush.bf16.xpose.msra.mxu0 0
  %489 = vmatpush.bf16.xpose.msra.mxu0 0
  %490 = vmatpush.bf16.xpose.msra.mxu0 0
  %491 = vmatpush.bf16.xpose.msra.mxu0 0
  %492 = vmatpush.bf16.xpose.msra.mxu0 %v483
  %493 = vmatmul.bf16.gmra.mxu0 %v480
  %v494 = vpop.f32.mrf.mxu0
  %v495 = vadd.f32 0.0, %v494
  %v496 = vpop.f32.mrf.mxu0
  %497 = vdwg.mxu0
  %v499 = vsel %vm236, %v476, 0
  %v502 = vsel %vm236, %v478, 0
  %504 = vmatpush.bf16.xpose.msra.mxu0 0
  %505 = vmatpush.bf16.xpose.msra.mxu0 0
  %506 = vmatpush.bf16.xpose.msra.mxu0 0
  %507 = vmatpush.bf16.xpose.msra.mxu0 0
  %508 = vmatpush.bf16.xpose.msra.mxu0 0
  %509 = vmatpush.bf16.xpose.msra.mxu0 0
  %510 = vmatpush.bf16.xpose.msra.mxu0 0
  %511 = vmatpush.bf16.xpose.msra.mxu0 %v502
  %512 = vmatmul.bf16.gmra.mxu0 %v499
  %v513 = vpop.f32.mrf.mxu0
  %v514 = vadd.f32 0.0, %v513
  %v515 = vpop.f32.mrf.mxu0
  %516 = vdwg.mxu0
  %v517 = vmul.f32 %v495, 0.35355338
  %v518 = vmul.f32 %v514, 0.35355338
  %v519 = vsel %vm236, %v517, -inf
  %520 = vmax.xlane.f32.xlu0 %v519
  %v521 = vpop.xlane.xlu0 %520
  %v522 = vsel %vm236, %v518, -inf
  %523 = vmax.xlane.f32.xlu0 %v522
  %v524 = vpop.xlane.xlu0 %523
  %v525 = vsub.f32 %v517, %v521
  %v526 = vsub.f32 %v518, %v524
  %v527 = vmul.f32 %v525, 1.442695
  %v528 = vpow.pop %v527
  %v529 = vmul.f32 %v526, 1.442695
  %v530 = vpow.pop %v529
  %v531 = vsel %vm236, %v528, 0.0
  %532 = vadd.xlane.f32.xlu0 %v531
  %v533 = vpop.xlane.xlu0 %532
  %v534 = vsel %vm236, %v530, 0.0
  %535 = vadd.xlane.f32.xlu0 %v534
  %v536 = vpop.xlane.xlu0 %535
  %v537 = vrcp.pop %v533
  %v538 = vmul.f32 %v533, %v537
  %v539 = vsub.f32 1.0, %v538
  %v540 = vmul.f32 %v537, %v539
  %v541 = vadd.f32 %v537, %v540
  %vm542 = vweird.f32 %v533
  %vm543 = vweird.f32 %v537
  %vm544 = vmor %vm542, %vm543
  %v545 = vsel %vm544, %v537, %v541
  %v546 = vand.u32 2147483647, %v533
  %vm547 = vcmp.eq.f32.partialorder %v546, 8.507059e+37
  %v548 = vand.u32 %v533, 2147483648
  %v549 = vor.u32 1.1754944e-38, %v548
  %v550 = vsel %vm547, %v549, %v545
  %v551 = vmul.f32 1.0, %v550
  %v552 = vrcp.pop %v536
  %v553 = vmul.f32 %v536, %v552
  %v554 = vsub.f32 1.0, %v553
  %v555 = vmul.f32 %v552, %v554
  %v556 = vadd.f32 %v552, %v555
  %vm557 = vweird.f32 %v536
  %vm558 = vweird.f32 %v552
  %vm559 = vmor %vm557, %vm558
  %v560 = vsel %vm559, %v552, %v556
  %v561 = vand.u32 2147483647, %v536
  %vm562 = vcmp.eq.f32.partialorder %v561, 8.507059e+37
  %v563 = vand.u32 %v536, 2147483648
  %v564 = vor.u32 1.1754944e-38, %v563
  %v565 = vsel %vm562, %v564, %v560
  %v566 = vmul.f32 1.0, %v565
  %v567 = vmul.f32 %v528, %v551
  %v568 = vmul.f32 %v530, %v566
  %v569 = vpack.c.bf16 %v567, %v567
  %v570 = vpack.c.bf16 %v568, %v568
  %v571 = vpack.c.bf16 %v471, %v471
  %v572 = vpack.c.bf16 %v473, %v473
  %v574 = vsel %vm236, %v569, 0
  %v577 = vsel %vm334, %v571, 0
  %579 = vmatpush.bf16.msra.mxu0 0
  %580 = vmatpush.bf16.msra.mxu0 0
  %581 = vmatpush.bf16.msra.mxu0 0
  %582 = vmatpush.bf16.msra.mxu0 0
  %583 = vmatpush.bf16.msra.mxu0 0
  %584 = vmatpush.bf16.msra.mxu0 0
  %585 = vmatpush.bf16.msra.mxu0 0
  %586 = vmatpush.bf16.msra.mxu0 %v577
  %587 = vmatmul.bf16.gmra.mxu0 %v574
  %v588 = vpop.f32.mrf.mxu0
  %v589 = vadd.f32 0.0, %v588
  %v590 = vpop.f32.mrf.mxu0
  %591 = vdwg.mxu0
  %v593 = vsel %vm236, %v570, 0
  %v596 = vsel %vm334, %v572, 0
  %598 = vmatpush.bf16.msra.mxu0 0
  %599 = vmatpush.bf16.msra.mxu0 0
  %600 = vmatpush.bf16.msra.mxu0 0
  %601 = vmatpush.bf16.msra.mxu0 0
  %602 = vmatpush.bf16.msra.mxu0 0
  %603 = vmatpush.bf16.msra.mxu0 0
  %604 = vmatpush.bf16.msra.mxu0 0
  %605 = vmatpush.bf16.msra.mxu0 %v596
  %606 = vmatmul.bf16.gmra.mxu0 %v593
  %v607 = vpop.f32.mrf.mxu0
  %v608 = vadd.f32 0.0, %v607
  %v609 = vpop.f32.mrf.mxu0
  %610 = vdwg.mxu0
  %s611 = scalar_lea.vmem %s3, 32
  %v612 = vld [vmem:[%s611] sm:$0xf]
  %v613 = vld [vmem:[%s611 + $0x4] sm:$0xf]
  %v614 = vld [vmem:[%s611 + $0x8] sm:$0xf]
  %v615 = vld [vmem:[%s611 + $0xc] sm:$0xf]
  %s616 = scalar_lea.vmem %s3, 96
  %v617 = vld [vmem:[%s616] sm:$0xf]
  %v618 = vld [vmem:[%s616 + $0x4] sm:$0xf]
  %v619 = vld [vmem:[%s616 + $0x8] sm:$0xf]
  %v620 = vld [vmem:[%s616 + $0xc] sm:$0xf]
  %s621 = scalar_lea.vmem %s3, 160
  %v622 = vld [vmem:[%s621] sm:$0xf]
  %v623 = vld [vmem:[%s621 + $0x4] sm:$0xf]
  %v624 = vld [vmem:[%s621 + $0x8] sm:$0xf]
  %v625 = vld [vmem:[%s621 + $0xc] sm:$0xf]
  %v630 = vunpack.c.l.b16 %v612
  %v631 = vunpack.c.l.b16 %v613
  %v632 = vunpack.c.l.b16 %v614
  %v633 = vunpack.c.l.b16 %v615
  %v634 = vpack.c.b16 %v631, %v630
  %v635 = vpack.c.b16 %v633, %v632
  %638 = vrot.lane.b32.xlu0 %v147, 112
  %v639 = vpop.permute.xlu0 %638
  %641 = vmatpush.bf16.msra.mxu0 0
  %642 = vmatpush.bf16.msra.mxu0 0
  %643 = vmatpush.bf16.msra.mxu0 0
  %644 = vmatpush.bf16.msra.mxu0 0
  %645 = vmatpush.bf16.msra.mxu0 0
  %646 = vmatpush.bf16.msra.mxu0 0
  %647 = vmatpush.bf16.msra.mxu0 %v635
  %648 = vmatpush.bf16.msra.mxu0 %v634
  %649 = vmatmul.bf16.gmra.mxu0 %v162
  %v650 = vpop.f32.mrf.mxu0
  %v651 = vadd.f32 %v639, %v650
  %v652 = vpop.f32.mrf.mxu0
  %v653 = vadd.f32 %v639, %v652
  %654 = vdwg.mxu0
  %v659 = vunpack.c.l.b16 %v617
  %v660 = vunpack.c.l.b16 %v618
  %v661 = vunpack.c.l.b16 %v619
  %v662 = vunpack.c.l.b16 %v620
  %v663 = vpack.c.b16 %v660, %v659
  %v664 = vpack.c.b16 %v662, %v661
  %667 = vrot.lane.b32.xlu0 %v178, 112
  %v668 = vpop.permute.xlu0 %667
  %670 = vmatpush.bf16.msra.mxu0 0
  %671 = vmatpush.bf16.msra.mxu0 0
  %672 = vmatpush.bf16.msra.mxu0 0
  %673 = vmatpush.bf16.msra.mxu0 0
  %674 = vmatpush.bf16.msra.mxu0 0
  %675 = vmatpush.bf16.msra.mxu0 0
  %676 = vmatpush.bf16.msra.mxu0 %v664
  %677 = vmatpush.bf16.msra.mxu0 %v663
  %678 = vmatmul.bf16.gmra.mxu0 %v162
  %v679 = vpop.f32.mrf.mxu0
  %v680 = vadd.f32 %v668, %v679
  %v681 = vpop.f32.mrf.mxu0
  %v682 = vadd.f32 %v668, %v681
  %683 = vdwg.mxu0
  %v688 = vunpack.c.l.b16 %v622
  %v689 = vunpack.c.l.b16 %v623
  %v690 = vunpack.c.l.b16 %v624
  %v691 = vunpack.c.l.b16 %v625
  %v692 = vpack.c.b16 %v689, %v688
  %v693 = vpack.c.b16 %v691, %v690
  %696 = vrot.lane.b32.xlu0 %v205, 112
  %v697 = vpop.permute.xlu0 %696
  %699 = vmatpush.bf16.msra.mxu0 0
  %700 = vmatpush.bf16.msra.mxu0 0
  %701 = vmatpush.bf16.msra.mxu0 0
  %702 = vmatpush.bf16.msra.mxu0 0
  %703 = vmatpush.bf16.msra.mxu0 0
  %704 = vmatpush.bf16.msra.mxu0 0
  %705 = vmatpush.bf16.msra.mxu0 %v693
  %706 = vmatpush.bf16.msra.mxu0 %v692
  %707 = vmatmul.bf16.gmra.mxu0 %v162
  %v708 = vpop.f32.mrf.mxu0
  %v709 = vadd.f32 %v697, %v708
  %v710 = vpop.f32.mrf.mxu0
  %v711 = vadd.f32 %v697, %v710
  %712 = vdwg.mxu0
  %v713 = vpack.c.bf16 %v651, %v651
  %v714 = vpack.c.bf16 %v653, %v653
  %v715 = vpack.c.bf16 %v680, %v680
  %v716 = vpack.c.bf16 %v682, %v682
  %v718 = vsel %vm236, %v713, 0
  %v721 = vsel %vm236, %v715, 0
  %723 = vmatpush.bf16.xpose.msra.mxu0 0
  %724 = vmatpush.bf16.xpose.msra.mxu0 0
  %725 = vmatpush.bf16.xpose.msra.mxu0 0
  %726 = vmatpush.bf16.xpose.msra.mxu0 0
  %727 = vmatpush.bf16.xpose.msra.mxu0 0
  %728 = vmatpush.bf16.xpose.msra.mxu0 0
  %729 = vmatpush.bf16.xpose.msra.mxu0 0
  %730 = vmatpush.bf16.xpose.msra.mxu0 %v721
  %731 = vmatmul.bf16.gmra.mxu0 %v718
  %v732 = vpop.f32.mrf.mxu0
  %v733 = vadd.f32 0.0, %v732
  %v734 = vpop.f32.mrf.mxu0
  %735 = vdwg.mxu0
  %v737 = vsel %vm236, %v714, 0
  %v740 = vsel %vm236, %v716, 0
  %742 = vmatpush.bf16.xpose.msra.mxu0 0
  %743 = vmatpush.bf16.xpose.msra.mxu0 0
  %744 = vmatpush.bf16.xpose.msra.mxu0 0
  %745 = vmatpush.bf16.xpose.msra.mxu0 0
  %746 = vmatpush.bf16.xpose.msra.mxu0 0
  %747 = vmatpush.bf16.xpose.msra.mxu0 0
  %748 = vmatpush.bf16.xpose.msra.mxu0 0
  %749 = vmatpush.bf16.xpose.msra.mxu0 %v740
  %750 = vmatmul.bf16.gmra.mxu0 %v737
  %v751 = vpop.f32.mrf.mxu0
  %v752 = vadd.f32 0.0, %v751
  %v753 = vpop.f32.mrf.mxu0
  %754 = vdwg.mxu0
  %v755 = vmul.f32 %v733, 0.35355338
  %v756 = vmul.f32 %v752, 0.35355338
  %v757 = vsel %vm236, %v755, -inf
  %758 = vmax.xlane.f32.xlu0 %v757
  %v759 = vpop.xlane.xlu0 %758
  %v760 = vsel %vm236, %v756, -inf
  %761 = vmax.xlane.f32.xlu0 %v760
  %v762 = vpop.xlane.xlu0 %761
  %v763 = vsub.f32 %v755, %v759
  %v764 = vsub.f32 %v756, %v762
  %v765 = vmul.f32 %v763, 1.442695
  %v766 = vpow.pop %v765
  %v767 = vmul.f32 %v764, 1.442695
  %v768 = vpow.pop %v767
  %v769 = vsel %vm236, %v766, 0.0
  %770 = vadd.xlane.f32.xlu0 %v769
  %v771 = vpop.xlane.xlu0 %770
  %v772 = vsel %vm236, %v768, 0.0
  %773 = vadd.xlane.f32.xlu0 %v772
  %v774 = vpop.xlane.xlu0 %773
  %v775 = vrcp.pop %v771
  %v776 = vmul.f32 %v771, %v775
  %v777 = vsub.f32 1.0, %v776
  %v778 = vmul.f32 %v775, %v777
  %v779 = vadd.f32 %v775, %v778
  %vm780 = vweird.f32 %v771
  %vm781 = vweird.f32 %v775
  %vm782 = vmor %vm780, %vm781
  %v783 = vsel %vm782, %v775, %v779
  %v784 = vand.u32 2147483647, %v771
  %vm785 = vcmp.eq.f32.partialorder %v784, 8.507059e+37
  %v786 = vand.u32 %v771, 2147483648
  %v787 = vor.u32 1.1754944e-38, %v786
  %v788 = vsel %vm785, %v787, %v783
  %v789 = vmul.f32 1.0, %v788
  %v790 = vrcp.pop %v774
  %v791 = vmul.f32 %v774, %v790
  %v792 = vsub.f32 1.0, %v791
  %v793 = vmul.f32 %v790, %v792
  %v794 = vadd.f32 %v790, %v793
  %vm795 = vweird.f32 %v774
  %vm796 = vweird.f32 %v790
  %vm797 = vmor %vm795, %vm796
  %v798 = vsel %vm797, %v790, %v794
  %v799 = vand.u32 2147483647, %v774
  %vm800 = vcmp.eq.f32.partialorder %v799, 8.507059e+37
  %v801 = vand.u32 %v774, 2147483648
  %v802 = vor.u32 1.1754944e-38, %v801
  %v803 = vsel %vm800, %v802, %v798
  %v804 = vmul.f32 1.0, %v803
  %v805 = vmul.f32 %v766, %v789
  %v806 = vmul.f32 %v768, %v804
  %v807 = vpack.c.bf16 %v805, %v805
  %v808 = vpack.c.bf16 %v806, %v806
  %v809 = vpack.c.bf16 %v709, %v709
  %v810 = vpack.c.bf16 %v711, %v711
  %v812 = vsel %vm236, %v807, 0
  %v815 = vsel %vm334, %v809, 0
  %817 = vmatpush.bf16.msra.mxu0 0
  %818 = vmatpush.bf16.msra.mxu0 0
  %819 = vmatpush.bf16.msra.mxu0 0
  %820 = vmatpush.bf16.msra.mxu0 0
  %821 = vmatpush.bf16.msra.mxu0 0
  %822 = vmatpush.bf16.msra.mxu0 0
  %823 = vmatpush.bf16.msra.mxu0 0
  %824 = vmatpush.bf16.msra.mxu0 %v815
  %825 = vmatmul.bf16.gmra.mxu0 %v812
  %v826 = vpop.f32.mrf.mxu0
  %v827 = vadd.f32 0.0, %v826
  %v828 = vpop.f32.mrf.mxu0
  %829 = vdwg.mxu0
  %v831 = vsel %vm236, %v808, 0
  %v834 = vsel %vm334, %v810, 0
  %836 = vmatpush.bf16.msra.mxu0 0
  %837 = vmatpush.bf16.msra.mxu0 0
  %838 = vmatpush.bf16.msra.mxu0 0
  %839 = vmatpush.bf16.msra.mxu0 0
  %840 = vmatpush.bf16.msra.mxu0 0
  %841 = vmatpush.bf16.msra.mxu0 0
  %842 = vmatpush.bf16.msra.mxu0 0
  %843 = vmatpush.bf16.msra.mxu0 %v834
  %844 = vmatmul.bf16.gmra.mxu0 %v831
  %v845 = vpop.f32.mrf.mxu0
  %v846 = vadd.f32 0.0, %v845
  %v847 = vpop.f32.mrf.mxu0
  %848 = vdwg.mxu0
  %s849 = scalar_lea.vmem %s3, 48
  %v850 = vld [vmem:[%s849] sm:$0xf]
  %v851 = vld [vmem:[%s849 + $0x4] sm:$0xf]
  %v852 = vld [vmem:[%s849 + $0x8] sm:$0xf]
  %v853 = vld [vmem:[%s849 + $0xc] sm:$0xf]
  %s854 = scalar_lea.vmem %s3, 112
  %v855 = vld [vmem:[%s854] sm:$0xf]
  %v856 = vld [vmem:[%s854 + $0x4] sm:$0xf]
  %v857 = vld [vmem:[%s854 + $0x8] sm:$0xf]
  %v858 = vld [vmem:[%s854 + $0xc] sm:$0xf]
  %s859 = scalar_lea.vmem %s3, 176
  %v860 = vld [vmem:[%s859] sm:$0xf]
  %v861 = vld [vmem:[%s859 + $0x4] sm:$0xf]
  %v862 = vld [vmem:[%s859 + $0x8] sm:$0xf]
  %v863 = vld [vmem:[%s859 + $0xc] sm:$0xf]
  %v868 = vunpack.c.l.b16 %v850
  %v869 = vunpack.c.l.b16 %v851
  %v870 = vunpack.c.l.b16 %v852
  %v871 = vunpack.c.l.b16 %v853
  %v872 = vpack.c.b16 %v869, %v868
  %v873 = vpack.c.b16 %v871, %v870
  %876 = vrot.lane.b32.xlu0 %v147, 104
  %v877 = vpop.permute.xlu0 %876
  %879 = vmatpush.bf16.msra.mxu0 0
  %880 = vmatpush.bf16.msra.mxu0 0
  %881 = vmatpush.bf16.msra.mxu0 0
  %882 = vmatpush.bf16.msra.mxu0 0
  %883 = vmatpush.bf16.msra.mxu0 0
  %884 = vmatpush.bf16.msra.mxu0 0
  %885 = vmatpush.bf16.msra.mxu0 %v873
  %886 = vmatpush.bf16.msra.mxu0 %v872
  %887 = vmatmul.bf16.gmra.mxu0 %v162
  %v888 = vpop.f32.mrf.mxu0
  %v889 = vadd.f32 %v877, %v888
  %v890 = vpop.f32.mrf.mxu0
  %v891 = vadd.f32 %v877, %v890
  %892 = vdwg.mxu0
  %v897 = vunpack.c.l.b16 %v855
  %v898 = vunpack.c.l.b16 %v856
  %v899 = vunpack.c.l.b16 %v857
  %v900 = vunpack.c.l.b16 %v858
  %v901 = vpack.c.b16 %v898, %v897
  %v902 = vpack.c.b16 %v900, %v899
  %905 = vrot.lane.b32.xlu0 %v178, 104
  %v906 = vpop.permute.xlu0 %905
  %908 = vmatpush.bf16.msra.mxu0 0
  %909 = vmatpush.bf16.msra.mxu0 0
  %910 = vmatpush.bf16.msra.mxu0 0
  %911 = vmatpush.bf16.msra.mxu0 0
  %912 = vmatpush.bf16.msra.mxu0 0
  %913 = vmatpush.bf16.msra.mxu0 0
  %914 = vmatpush.bf16.msra.mxu0 %v902
  %915 = vmatpush.bf16.msra.mxu0 %v901
  %916 = vmatmul.bf16.gmra.mxu0 %v162
  %v917 = vpop.f32.mrf.mxu0
  %v918 = vadd.f32 %v906, %v917
  %v919 = vpop.f32.mrf.mxu0
  %v920 = vadd.f32 %v906, %v919
  %921 = vdwg.mxu0
  %v926 = vunpack.c.l.b16 %v860
  %v927 = vunpack.c.l.b16 %v861
  %v928 = vunpack.c.l.b16 %v862
  %v929 = vunpack.c.l.b16 %v863
  %v930 = vpack.c.b16 %v927, %v926
  %v931 = vpack.c.b16 %v929, %v928
  %934 = vrot.lane.b32.xlu0 %v205, 104
  %v935 = vpop.permute.xlu0 %934
  %937 = vmatpush.bf16.msra.mxu0 0
  %938 = vmatpush.bf16.msra.mxu0 0
  %939 = vmatpush.bf16.msra.mxu0 0
  %940 = vmatpush.bf16.msra.mxu0 0
  %941 = vmatpush.bf16.msra.mxu0 0
  %942 = vmatpush.bf16.msra.mxu0 0
  %943 = vmatpush.bf16.msra.mxu0 %v931
  %944 = vmatpush.bf16.msra.mxu0 %v930
  %945 = vmatmul.bf16.gmra.mxu0 %v162
  %v946 = vpop.f32.mrf.mxu0
  %v947 = vadd.f32 %v935, %v946
  %v948 = vpop.f32.mrf.mxu0
  %v949 = vadd.f32 %v935, %v948
  %950 = vdwg.mxu0
  %v951 = vpack.c.bf16 %v889, %v889
  %v952 = vpack.c.bf16 %v891, %v891
  %v953 = vpack.c.bf16 %v918, %v918
  %v954 = vpack.c.bf16 %v920, %v920
  %v956 = vsel %vm236, %v951, 0
  %v959 = vsel %vm236, %v953, 0
  %961 = vmatpush.bf16.xpose.msra.mxu0 0
  %962 = vmatpush.bf16.xpose.msra.mxu0 0
  %963 = vmatpush.bf16.xpose.msra.mxu0 0
  %964 = vmatpush.bf16.xpose.msra.mxu0 0
  %965 = vmatpush.bf16.xpose.msra.mxu0 0
  %966 = vmatpush.bf16.xpose.msra.mxu0 0
  %967 = vmatpush.bf16.xpose.msra.mxu0 0
  %968 = vmatpush.bf16.xpose.msra.mxu0 %v959
  %969 = vmatmul.bf16.gmra.mxu0 %v956
  %v970 = vpop.f32.mrf.mxu0
  %v971 = vadd.f32 0.0, %v970
  %v972 = vpop.f32.mrf.mxu0
  %973 = vdwg.mxu0
  %v975 = vsel %vm236, %v952, 0
  %v978 = vsel %vm236, %v954, 0
  %980 = vmatpush.bf16.xpose.msra.mxu0 0
  %981 = vmatpush.bf16.xpose.msra.mxu0 0
  %982 = vmatpush.bf16.xpose.msra.mxu0 0
  %983 = vmatpush.bf16.xpose.msra.mxu0 0
  %984 = vmatpush.bf16.xpose.msra.mxu0 0
  %985 = vmatpush.bf16.xpose.msra.mxu0 0
  %986 = vmatpush.bf16.xpose.msra.mxu0 0
  %987 = vmatpush.bf16.xpose.msra.mxu0 %v978
  %988 = vmatmul.bf16.gmra.mxu0 %v975
  %v989 = vpop.f32.mrf.mxu0
  %v990 = vadd.f32 0.0, %v989
  %v991 = vpop.f32.mrf.mxu0
  %992 = vdwg.mxu0
  %v993 = vmul.f32 %v971, 0.35355338
  %v994 = vmul.f32 %v990, 0.35355338
  %v995 = vsel %vm236, %v993, -inf
  %996 = vmax.xlane.f32.xlu0 %v995
  %v997 = vpop.xlane.xlu0 %996
  %v998 = vsel %vm236, %v994, -inf
  %999 = vmax.xlane.f32.xlu0 %v998
  %v1000 = vpop.xlane.xlu0 %999
  %v1001 = vsub.f32 %v993, %v997
  %v1002 = vsub.f32 %v994, %v1000
  %v1003 = vmul.f32 %v1001, 1.442695
  %v1004 = vpow.pop %v1003
  %v1005 = vmul.f32 %v1002, 1.442695
  %v1006 = vpow.pop %v1005
  %v1007 = vsel %vm236, %v1004, 0.0
  %1008 = vadd.xlane.f32.xlu0 %v1007
  %v1009 = vpop.xlane.xlu0 %1008
  %v1010 = vsel %vm236, %v1006, 0.0
  %1011 = vadd.xlane.f32.xlu0 %v1010
  %v1012 = vpop.xlane.xlu0 %1011
  %v1013 = vrcp.pop %v1009
  %v1014 = vmul.f32 %v1009, %v1013
  %v1015 = vsub.f32 1.0, %v1014
  %v1016 = vmul.f32 %v1013, %v1015
  %v1017 = vadd.f32 %v1013, %v1016
  %vm1018 = vweird.f32 %v1009
  %vm1019 = vweird.f32 %v1013
  %vm1020 = vmor %vm1018, %vm1019
  %v1021 = vsel %vm1020, %v1013, %v1017
  %v1022 = vand.u32 2147483647, %v1009
  %vm1023 = vcmp.eq.f32.partialorder %v1022, 8.507059e+37
  %v1024 = vand.u32 %v1009, 2147483648
  %v1025 = vor.u32 1.1754944e-38, %v1024
  %v1026 = vsel %vm1023, %v1025, %v1021
  %v1027 = vmul.f32 1.0, %v1026
  %v1028 = vrcp.pop %v1012
  %v1029 = vmul.f32 %v1012, %v1028
  %v1030 = vsub.f32 1.0, %v1029
  %v1031 = vmul.f32 %v1028, %v1030
  %v1032 = vadd.f32 %v1028, %v1031
  %vm1033 = vweird.f32 %v1012
  %vm1034 = vweird.f32 %v1028
  %vm1035 = vmor %vm1033, %vm1034
  %v1036 = vsel %vm1035, %v1028, %v1032
  %v1037 = vand.u32 2147483647, %v1012
  %vm1038 = vcmp.eq.f32.partialorder %v1037, 8.507059e+37
  %v1039 = vand.u32 %v1012, 2147483648
  %v1040 = vor.u32 1.1754944e-38, %v1039
  %v1041 = vsel %vm1038, %v1040, %v1036
  %v1042 = vmul.f32 1.0, %v1041
  %v1043 = vmul.f32 %v1004, %v1027
  %v1044 = vmul.f32 %v1006, %v1042
  %v1045 = vpack.c.bf16 %v1043, %v1043
  %v1046 = vpack.c.bf16 %v1044, %v1044
  %v1047 = vpack.c.bf16 %v947, %v947
  %v1048 = vpack.c.bf16 %v949, %v949
  %v1050 = vsel %vm236, %v1045, 0
  %v1053 = vsel %vm334, %v1047, 0
  %1055 = vmatpush.bf16.msra.mxu0 0
  %1056 = vmatpush.bf16.msra.mxu0 0
  %1057 = vmatpush.bf16.msra.mxu0 0
  %1058 = vmatpush.bf16.msra.mxu0 0
  %1059 = vmatpush.bf16.msra.mxu0 0
  %1060 = vmatpush.bf16.msra.mxu0 0
  %1061 = vmatpush.bf16.msra.mxu0 0
  %1062 = vmatpush.bf16.msra.mxu0 %v1053
  %1063 = vmatmul.bf16.gmra.mxu0 %v1050
  %v1064 = vpop.f32.mrf.mxu0
  %v1065 = vadd.f32 0.0, %v1064
  %v1066 = vpop.f32.mrf.mxu0
  %1067 = vdwg.mxu0
  %v1069 = vsel %vm236, %v1046, 0
  %v1072 = vsel %vm334, %v1048, 0
  %1074 = vmatpush.bf16.msra.mxu0 0
  %1075 = vmatpush.bf16.msra.mxu0 0
  %1076 = vmatpush.bf16.msra.mxu0 0
  %1077 = vmatpush.bf16.msra.mxu0 0
  %1078 = vmatpush.bf16.msra.mxu0 0
  %1079 = vmatpush.bf16.msra.mxu0 0
  %1080 = vmatpush.bf16.msra.mxu0 0
  %1081 = vmatpush.bf16.msra.mxu0 %v1072
  %1082 = vmatmul.bf16.gmra.mxu0 %v1069
  %v1083 = vpop.f32.mrf.mxu0
  %v1084 = vadd.f32 0.0, %v1083
  %v1085 = vpop.f32.mrf.mxu0
  %1086 = vdwg.mxu0
  %1089 = vrot.lane.b32.xlu0 %v589, 8
  %v1090 = vpop.permute.xlu0 %1089
  %1091 = vrot.lane.b32.xlu0 %v608, 8
  %v1092 = vpop.permute.xlu0 %1091
  %1097 = vrot.lane.b32.xlu0 %v827, 16
  %v1098 = vpop.permute.xlu0 %1097
  %1099 = vrot.lane.b32.xlu0 %v846, 16
  %v1100 = vpop.permute.xlu0 %1099
  %1105 = vrot.lane.b32.xlu0 %v1065, 24
  %v1106 = vpop.permute.xlu0 %1105
  %1107 = vrot.lane.b32.xlu0 %v1084, 24
  %v1108 = vpop.permute.xlu0 %1107
  %v1111 = vsel %vm236, %v348, %v1090
  %v1112 = vsel %vm236, %v367, %v1092
  %vm1113 = vcmask 130048
  %v1114 = vsel %vm1113, %v1111, %v1098
  %v1115 = vsel %vm1113, %v1112, %v1100
  %vm1116 = vcmask 195584
  %v1117 = vsel %vm1116, %v1114, %v1106
  %v1118 = vsel %vm1116, %v1115, %v1108
  %v1119 = vpack.c.bf16 %v1118, %v1117
  %v1120 = vperm.slane %v33, 4
  %v1125 = vunpack.c.l.b16 %v128
  %v1126 = vunpack.c.l.b16 %v129
  %v1127 = vunpack.c.l.b16 %v130
  %v1128 = vunpack.c.l.b16 %v131
  %v1129 = vpack.c.b16 %v1126, %v1125
  %v1130 = vpack.c.b16 %v1128, %v1127
  %v1134 = vsel %vm160, %v1119, 0
  %1136 = vmatpush.bf16.msra.mxu0 0
  %1137 = vmatpush.bf16.msra.mxu0 0
  %1138 = vmatpush.bf16.msra.mxu0 0
  %1139 = vmatpush.bf16.msra.mxu0 0
  %1140 = vmatpush.bf16.msra.mxu0 0
  %1141 = vmatpush.bf16.msra.mxu0 0
  %1142 = vmatpush.bf16.msra.mxu0 %v1130
  %1143 = vmatpush.bf16.msra.mxu0 %v1129
  %1144 = vmatmul.bf16.gmra.mxu0 %v1134
  %v1145 = vpop.f32.mrf.mxu0
  %v1146 = vadd.f32 %v1120, %v1145
  %v1147 = vpop.f32.mrf.mxu0
  %v1148 = vadd.f32 %v1120, %v1147
  %1149 = vdwg.mxu0
  %v1150 = vadd.f32 %v1146, %v124
  %v1151 = vadd.f32 %v1148, %v126
  %v1152 = vsel %vm160, %v1150, 0.0
  %1153 = vadd.xlane.f32.xlu0 %v1152
  %v1154 = vpop.xlane.xlu0 %1153
  %v1155 = vsel %vm160, %v1151, 0.0
  %1156 = vadd.xlane.f32.xlu0 %v1155
  %v1157 = vpop.xlane.xlu0 %1156
  %v1158 = vrcp.pop 32.0
  %v1159 = vmul.f32 32.0, %v1158
  %v1160 = vsub.f32 1.0, %v1159
  %v1161 = vmul.f32 %v1158, %v1160
  %v1162 = vadd.f32 %v1158, %v1161
  %vm1163 = vweird.f32 %v1158
  %v1164 = vsel %vm1163, %v1158, %v1162
  %v1165 = vmul.f32 %v1154, %v1164
  %v1166 = vmul.f32 %v1157, %v1164
  %v1167 = vsub.f32 %v1150, %v1165
  %v1168 = vsub.f32 %v1151, %v1166
  %v1169 = vmul.f32 %v1167, %v1167
  %v1170 = vmul.f32 %v1168, %v1168
  %v1171 = vsel %vm160, %v1169, 0.0
  %1172 = vadd.xlane.f32.xlu0 %v1171
  %v1173 = vpop.xlane.xlu0 %1172
  %v1174 = vsel %vm160, %v1170, 0.0
  %1175 = vadd.xlane.f32.xlu0 %v1174
  %v1176 = vpop.xlane.xlu0 %1175
  %v1177 = vmul.f32 %v1173, %v1164
  %v1178 = vmul.f32 %v1176, %v1164
  %v1179 = vadd.f32 %v1177, 1e-05
  %v1180 = vadd.f32 %v1178, 1e-05
  %v1181 = vrsqrt.pop %v1179
  %v1182 = vmul.f32 %v1181, %v1179
  %v1183 = vmul.f32 %v1182, %v1181
  %v1184 = vmul.f32 0.5, %v1183
  %v1185 = vsub.f32 1.5, %v1184
  %v1186 = vmul.f32 %v1181, %v1185
  %vm1187 = vweird.f32 %v1179
  %vm1188 = vweird.f32 %v1181
  %vm1189 = vmor %vm1187, %vm1188
  %v1190 = vsel %vm1189, %v1181, %v1186
  %v1191 = vrsqrt.pop %v1180
  %v1192 = vmul.f32 %v1191, %v1180
  %v1193 = vmul.f32 %v1192, %v1191
  %v1194 = vmul.f32 0.5, %v1193
  %v1195 = vsub.f32 1.5, %v1194
  %v1196 = vmul.f32 %v1191, %v1195
  %vm1197 = vweird.f32 %v1180
  %vm1198 = vweird.f32 %v1191
  %vm1199 = vmor %vm1197, %vm1198
  %v1200 = vsel %vm1199, %v1191, %v1196
  %v1201 = vmul.f32 %v1167, %v1190
  %v1202 = vmul.f32 %v1168, %v1200
  %v1203 = vperm.slane %v33, 5
  %v1204 = vmul.f32 %v1201, %v1203
  %v1205 = vmul.f32 %v1202, %v1203
  %v1206 = vperm.slane %v33, 6
  %v1207 = vadd.f32 %v1204, %v1206
  %v1208 = vadd.f32 %v1205, %v1206
  %v1209 = vld [vmem:[%s5] sm:$0xff]
  %v1210 = vld [vmem:[%s5 + $0x8] sm:$0xff]
  %v1211 = vld [vmem:[%s5 + $0x10] sm:$0xff]
  %v1212 = vld [vmem:[%s5 + $0x18] sm:$0xff]
  %v1213 = vld [vmem:[%s5 + $0x20] sm:$0xff]
  %v1214 = vld [vmem:[%s5 + $0x28] sm:$0xff]
  %v1215 = vld [vmem:[%s5 + $0x30] sm:$0xff]
  %v1216 = vld [vmem:[%s5 + $0x38] sm:$0xff]
  %v1217 = vld [vmem:[%s5 + $0x40] sm:$0xff]
  %v1218 = vld [vmem:[%s5 + $0x48] sm:$0xff]
  %v1219 = vld [vmem:[%s5 + $0x50] sm:$0xff]
  %v1220 = vld [vmem:[%s5 + $0x58] sm:$0xff]
  %v1221 = vld [vmem:[%s5 + $0x60] sm:$0xff]
  %v1222 = vld [vmem:[%s5 + $0x68] sm:$0xff]
  %v1223 = vld [vmem:[%s5 + $0x70] sm:$0xff]
  %v1224 = vld [vmem:[%s5 + $0x78] sm:$0xff]
  %v1225 = vld [vmem:[%s5 + $0x80] sm:$0xff]
  %v1226 = vld [vmem:[%s5 + $0x88] sm:$0xff]
  %v1227 = vld [vmem:[%s5 + $0x90] sm:$0xff]
  %v1228 = vld [vmem:[%s5 + $0x98] sm:$0xff]
  %v1229 = vld [vmem:[%s5 + $0xa0] sm:$0xff]
  %v1230 = vld [vmem:[%s5 + $0xa8] sm:$0xff]
  %v1231 = vld [vmem:[%s5 + $0xb0] sm:$0xff]
  %v1232 = vld [vmem:[%s5 + $0xb8] sm:$0xff]
  %v1233 = vld [vmem:[%s5 + $0xc0] sm:$0xff]
  %v1234 = vld [vmem:[%s5 + $0xc8] sm:$0xff]
  %v1235 = vld [vmem:[%s5 + $0xd0] sm:$0xff]
  %v1236 = vld [vmem:[%s5 + $0xd8] sm:$0xff]
  %v1237 = vld [vmem:[%s5 + $0xe0] sm:$0xff]
  %v1238 = vld [vmem:[%s5 + $0xe8] sm:$0xff]
  %v1239 = vld [vmem:[%s5 + $0xf0] sm:$0xff]
  %v1240 = vld [vmem:[%s5 + $0xf8] sm:$0xff]
  %v1241 = vld [vmem:[%s6] sm:$0xf]
  %v1242 = vld [vmem:[%s6 + $0x4] sm:$0xf]
  %v1243 = vld [vmem:[%s6 + $0x8] sm:$0xf]
  %v1244 = vld [vmem:[%s6 + $0xc] sm:$0xf]
  %v1245 = vld [vmem:[%s6 + $0x10] sm:$0xf]
  %v1246 = vld [vmem:[%s6 + $0x14] sm:$0xf]
  %v1247 = vld [vmem:[%s6 + $0x18] sm:$0xf]
  %v1248 = vld [vmem:[%s6 + $0x1c] sm:$0xf]
  %v1249 = vld [vmem:[%s6 + $0x20] sm:$0xf]
  %v1250 = vld [vmem:[%s6 + $0x24] sm:$0xf]
  %v1251 = vld [vmem:[%s6 + $0x28] sm:$0xf]
  %v1252 = vld [vmem:[%s6 + $0x2c] sm:$0xf]
  %v1253 = vld [vmem:[%s6 + $0x30] sm:$0xf]
  %v1254 = vld [vmem:[%s6 + $0x34] sm:$0xf]
  %v1255 = vld [vmem:[%s6 + $0x38] sm:$0xf]
  %v1256 = vld [vmem:[%s6 + $0x3c] sm:$0xf]
  %v1257 = vld [vmem:[%s6 + $0x40] sm:$0xf]
  %v1258 = vld [vmem:[%s6 + $0x44] sm:$0xf]
  %v1259 = vld [vmem:[%s6 + $0x48] sm:$0xf]
  %v1260 = vld [vmem:[%s6 + $0x4c] sm:$0xf]
  %v1261 = vld [vmem:[%s6 + $0x50] sm:$0xf]
  %v1262 = vld [vmem:[%s6 + $0x54] sm:$0xf]
  %v1263 = vld [vmem:[%s6 + $0x58] sm:$0xf]
  %v1264 = vld [vmem:[%s6 + $0x5c] sm:$0xf]
  %v1265 = vld [vmem:[%s6 + $0x60] sm:$0xf]
  %v1266 = vld [vmem:[%s6 + $0x64] sm:$0xf]
  %v1267 = vld [vmem:[%s6 + $0x68] sm:$0xf]
  %v1268 = vld [vmem:[%s6 + $0x6c] sm:$0xf]
  %v1269 = vld [vmem:[%s6 + $0x70] sm:$0xf]
  %v1270 = vld [vmem:[%s6 + $0x74] sm:$0xf]
  %v1271 = vld [vmem:[%s6 + $0x78] sm:$0xf]
  %v1272 = vld [vmem:[%s6 + $0x7c] sm:$0xf]
  %v1273 = vld [vmem:[%s6 + $0x80] sm:$0xf]
  %v1274 = vld [vmem:[%s6 + $0x84] sm:$0xf]
  %v1275 = vld [vmem:[%s6 + $0x88] sm:$0xf]
  %v1276 = vld [vmem:[%s6 + $0x8c] sm:$0xf]
  %v1277 = vld [vmem:[%s6 + $0x90] sm:$0xf]
  %v1278 = vld [vmem:[%s6 + $0x94] sm:$0xf]
  %v1279 = vld [vmem:[%s6 + $0x98] sm:$0xf]
  %v1280 = vld [vmem:[%s6 + $0x9c] sm:$0xf]
  %v1281 = vld [vmem:[%s6 + $0xa0] sm:$0xf]
  %v1282 = vld [vmem:[%s6 + $0xa4] sm:$0xf]
  %v1283 = vld [vmem:[%s6 + $0xa8] sm:$0xf]
  %v1284 = vld [vmem:[%s6 + $0xac] sm:$0xf]
  %v1285 = vld [vmem:[%s6 + $0xb0] sm:$0xf]
  %v1286 = vld [vmem:[%s6 + $0xb4] sm:$0xf]
  %v1287 = vld [vmem:[%s6 + $0xb8] sm:$0xf]
  %v1288 = vld [vmem:[%s6 + $0xbc] sm:$0xf]
  %v1289 = vld [vmem:[%s6 + $0xc0] sm:$0xf]
  %v1290 = vld [vmem:[%s6 + $0xc4] sm:$0xf]
  %v1291 = vld [vmem:[%s6 + $0xc8] sm:$0xf]
  %v1292 = vld [vmem:[%s6 + $0xcc] sm:$0xf]
  %v1293 = vld [vmem:[%s6 + $0xd0] sm:$0xf]
  %v1294 = vld [vmem:[%s6 + $0xd4] sm:$0xf]
  %v1295 = vld [vmem:[%s6 + $0xd8] sm:$0xf]
  %v1296 = vld [vmem:[%s6 + $0xdc] sm:$0xf]
  %v1297 = vld [vmem:[%s6 + $0xe0] sm:$0xf]
  %v1298 = vld [vmem:[%s6 + $0xe4] sm:$0xf]
  %v1299 = vld [vmem:[%s6 + $0xe8] sm:$0xf]
  %v1300 = vld [vmem:[%s6 + $0xec] sm:$0xf]
  %v1301 = vld [vmem:[%s6 + $0xf0] sm:$0xf]
  %v1302 = vld [vmem:[%s6 + $0xf4] sm:$0xf]
  %v1303 = vld [vmem:[%s6 + $0xf8] sm:$0xf]
  %v1304 = vld [vmem:[%s6 + $0xfc] sm:$0xf]
  %v1305 = vld [vmem:[%s6 + $0x100] sm:$0xf]
  %v1306 = vld [vmem:[%s6 + $0x104] sm:$0xf]
  %v1307 = vld [vmem:[%s6 + $0x108] sm:$0xf]
  %v1308 = vld [vmem:[%s6 + $0x10c] sm:$0xf]
  %v1309 = vld [vmem:[%s6 + $0x110] sm:$0xf]
  %v1310 = vld [vmem:[%s6 + $0x114] sm:$0xf]
  %v1311 = vld [vmem:[%s6 + $0x118] sm:$0xf]
  %v1312 = vld [vmem:[%s6 + $0x11c] sm:$0xf]
  %v1313 = vld [vmem:[%s6 + $0x120] sm:$0xf]
  %v1314 = vld [vmem:[%s6 + $0x124] sm:$0xf]
  %v1315 = vld [vmem:[%s6 + $0x128] sm:$0xf]
  %v1316 = vld [vmem:[%s6 + $0x12c] sm:$0xf]
  %v1317 = vld [vmem:[%s6 + $0x130] sm:$0xf]
  %v1318 = vld [vmem:[%s6 + $0x134] sm:$0xf]
  %v1319 = vld [vmem:[%s6 + $0x138] sm:$0xf]
  %v1320 = vld [vmem:[%s6 + $0x13c] sm:$0xf]
  %v1321 = vld [vmem:[%s6 + $0x140] sm:$0xf]
  %v1322 = vld [vmem:[%s6 + $0x144] sm:$0xf]
  %v1323 = vld [vmem:[%s6 + $0x148] sm:$0xf]
  %v1324 = vld [vmem:[%s6 + $0x14c] sm:$0xf]
  %v1325 = vld [vmem:[%s6 + $0x150] sm:$0xf]
  %v1326 = vld [vmem:[%s6 + $0x154] sm:$0xf]
  %v1327 = vld [vmem:[%s6 + $0x158] sm:$0xf]
  %v1328 = vld [vmem:[%s6 + $0x15c] sm:$0xf]
  %v1329 = vld [vmem:[%s6 + $0x160] sm:$0xf]
  %v1330 = vld [vmem:[%s6 + $0x164] sm:$0xf]
  %v1331 = vld [vmem:[%s6 + $0x168] sm:$0xf]
  %v1332 = vld [vmem:[%s6 + $0x16c] sm:$0xf]
  %v1333 = vld [vmem:[%s6 + $0x170] sm:$0xf]
  %v1334 = vld [vmem:[%s6 + $0x174] sm:$0xf]
  %v1335 = vld [vmem:[%s6 + $0x178] sm:$0xf]
  %v1336 = vld [vmem:[%s6 + $0x17c] sm:$0xf]
  %v1337 = vld [vmem:[%s6 + $0x180] sm:$0xf]
  %v1338 = vld [vmem:[%s6 + $0x184] sm:$0xf]
  %v1339 = vld [vmem:[%s6 + $0x188] sm:$0xf]
  %v1340 = vld [vmem:[%s6 + $0x18c] sm:$0xf]
  %v1341 = vld [vmem:[%s6 + $0x190] sm:$0xf]
  %v1342 = vld [vmem:[%s6 + $0x194] sm:$0xf]
  %v1343 = vld [vmem:[%s6 + $0x198] sm:$0xf]
  %v1344 = vld [vmem:[%s6 + $0x19c] sm:$0xf]
  %v1345 = vld [vmem:[%s6 + $0x1a0] sm:$0xf]
  %v1346 = vld [vmem:[%s6 + $0x1a4] sm:$0xf]
  %v1347 = vld [vmem:[%s6 + $0x1a8] sm:$0xf]
  %v1348 = vld [vmem:[%s6 + $0x1ac] sm:$0xf]
  %v1349 = vld [vmem:[%s6 + $0x1b0] sm:$0xf]
  %v1350 = vld [vmem:[%s6 + $0x1b4] sm:$0xf]
  %v1351 = vld [vmem:[%s6 + $0x1b8] sm:$0xf]
  %v1352 = vld [vmem:[%s6 + $0x1bc] sm:$0xf]
  %v1353 = vld [vmem:[%s6 + $0x1c0] sm:$0xf]
  %v1354 = vld [vmem:[%s6 + $0x1c4] sm:$0xf]
  %v1355 = vld [vmem:[%s6 + $0x1c8] sm:$0xf]
  %v1356 = vld [vmem:[%s6 + $0x1cc] sm:$0xf]
  %v1357 = vld [vmem:[%s6 + $0x1d0] sm:$0xf]
  %v1358 = vld [vmem:[%s6 + $0x1d4] sm:$0xf]
  %v1359 = vld [vmem:[%s6 + $0x1d8] sm:$0xf]
  %v1360 = vld [vmem:[%s6 + $0x1dc] sm:$0xf]
  %v1361 = vld [vmem:[%s6 + $0x1e0] sm:$0xf]
  %v1362 = vld [vmem:[%s6 + $0x1e4] sm:$0xf]
  %v1363 = vld [vmem:[%s6 + $0x1e8] sm:$0xf]
  %v1364 = vld [vmem:[%s6 + $0x1ec] sm:$0xf]
  %v1365 = vld [vmem:[%s6 + $0x1f0] sm:$0xf]
  %v1366 = vld [vmem:[%s6 + $0x1f4] sm:$0xf]
  %v1367 = vld [vmem:[%s6 + $0x1f8] sm:$0xf]
  %v1368 = vld [vmem:[%s6 + $0x1fc] sm:$0xf]
  %v1369 = vld [vmem:[%s6 + $0x200] sm:$0xf]
  %v1370 = vld [vmem:[%s6 + $0x204] sm:$0xf]
  %v1371 = vld [vmem:[%s6 + $0x208] sm:$0xf]
  %v1372 = vld [vmem:[%s6 + $0x20c] sm:$0xf]
  %v1373 = vld [vmem:[%s6 + $0x210] sm:$0xf]
  %v1374 = vld [vmem:[%s6 + $0x214] sm:$0xf]
  %v1375 = vld [vmem:[%s6 + $0x218] sm:$0xf]
  %v1376 = vld [vmem:[%s6 + $0x21c] sm:$0xf]
  %v1377 = vld [vmem:[%s6 + $0x220] sm:$0xf]
  %v1378 = vld [vmem:[%s6 + $0x224] sm:$0xf]
  %v1379 = vld [vmem:[%s6 + $0x228] sm:$0xf]
  %v1380 = vld [vmem:[%s6 + $0x22c] sm:$0xf]
  %v1381 = vld [vmem:[%s6 + $0x230] sm:$0xf]
  %v1382 = vld [vmem:[%s6 + $0x234] sm:$0xf]
  %v1383 = vld [vmem:[%s6 + $0x238] sm:$0xf]
  %v1384 = vld [vmem:[%s6 + $0x23c] sm:$0xf]
  %v1385 = vld [vmem:[%s6 + $0x240] sm:$0xf]
  %v1386 = vld [vmem:[%s6 + $0x244] sm:$0xf]
  %v1387 = vld [vmem:[%s6 + $0x248] sm:$0xf]
  %v1388 = vld [vmem:[%s6 + $0x24c] sm:$0xf]
  %v1389 = vld [vmem:[%s6 + $0x250] sm:$0xf]
  %v1390 = vld [vmem:[%s6 + $0x254] sm:$0xf]
  %v1391 = vld [vmem:[%s6 + $0x258] sm:$0xf]
  %v1392 = vld [vmem:[%s6 + $0x25c] sm:$0xf]
  %v1393 = vld [vmem:[%s6 + $0x260] sm:$0xf]
  %v1394 = vld [vmem:[%s6 + $0x264] sm:$0xf]
  %v1395 = vld [vmem:[%s6 + $0x268] sm:$0xf]
  %v1396 = vld [vmem:[%s6 + $0x26c] sm:$0xf]
  %v1397 = vld [vmem:[%s6 + $0x270] sm:$0xf]
  %v1398 = vld [vmem:[%s6 + $0x274] sm:$0xf]
  %v1399 = vld [vmem:[%s6 + $0x278] sm:$0xf]
  %v1400 = vld [vmem:[%s6 + $0x27c] sm:$0xf]
  %v1401 = vld [vmem:[%s6 + $0x280] sm:$0xf]
  %v1402 = vld [vmem:[%s6 + $0x284] sm:$0xf]
  %v1403 = vld [vmem:[%s6 + $0x288] sm:$0xf]
  %v1404 = vld [vmem:[%s6 + $0x28c] sm:$0xf]
  %v1405 = vld [vmem:[%s6 + $0x290] sm:$0xf]
  %v1406 = vld [vmem:[%s6 + $0x294] sm:$0xf]
  %v1407 = vld [vmem:[%s6 + $0x298] sm:$0xf]
  %v1408 = vld [vmem:[%s6 + $0x29c] sm:$0xf]
  %v1409 = vld [vmem:[%s6 + $0x2a0] sm:$0xf]
  %v1410 = vld [vmem:[%s6 + $0x2a4] sm:$0xf]
  %v1411 = vld [vmem:[%s6 + $0x2a8] sm:$0xf]
  %v1412 = vld [vmem:[%s6 + $0x2ac] sm:$0xf]
  %v1413 = vld [vmem:[%s6 + $0x2b0] sm:$0xf]
  %v1414 = vld [vmem:[%s6 + $0x2b4] sm:$0xf]
  %v1415 = vld [vmem:[%s6 + $0x2b8] sm:$0xf]
  %v1416 = vld [vmem:[%s6 + $0x2bc] sm:$0xf]
  %v1417 = vld [vmem:[%s6 + $0x2c0] sm:$0xf]
  %v1418 = vld [vmem:[%s6 + $0x2c4] sm:$0xf]
  %v1419 = vld [vmem:[%s6 + $0x2c8] sm:$0xf]
  %v1420 = vld [vmem:[%s6 + $0x2cc] sm:$0xf]
  %v1421 = vld [vmem:[%s6 + $0x2d0] sm:$0xf]
  %v1422 = vld [vmem:[%s6 + $0x2d4] sm:$0xf]
  %v1423 = vld [vmem:[%s6 + $0x2d8] sm:$0xf]
  %v1424 = vld [vmem:[%s6 + $0x2dc] sm:$0xf]
  %v1425 = vld [vmem:[%s6 + $0x2e0] sm:$0xf]
  %v1426 = vld [vmem:[%s6 + $0x2e4] sm:$0xf]
  %v1427 = vld [vmem:[%s6 + $0x2e8] sm:$0xf]
  %v1428 = vld [vmem:[%s6 + $0x2ec] sm:$0xf]
  %v1429 = vld [vmem:[%s6 + $0x2f0] sm:$0xf]
  %v1430 = vld [vmem:[%s6 + $0x2f4] sm:$0xf]
  %v1431 = vld [vmem:[%s6 + $0x2f8] sm:$0xf]
  %v1432 = vld [vmem:[%s6 + $0x2fc] sm:$0xf]
  %v1433 = vld [vmem:[%s6 + $0x300] sm:$0xf]
  %v1434 = vld [vmem:[%s6 + $0x304] sm:$0xf]
  %v1435 = vld [vmem:[%s6 + $0x308] sm:$0xf]
  %v1436 = vld [vmem:[%s6 + $0x30c] sm:$0xf]
  %v1437 = vld [vmem:[%s6 + $0x310] sm:$0xf]
  %v1438 = vld [vmem:[%s6 + $0x314] sm:$0xf]
  %v1439 = vld [vmem:[%s6 + $0x318] sm:$0xf]
  %v1440 = vld [vmem:[%s6 + $0x31c] sm:$0xf]
  %v1441 = vld [vmem:[%s6 + $0x320] sm:$0xf]
  %v1442 = vld [vmem:[%s6 + $0x324] sm:$0xf]
  %v1443 = vld [vmem:[%s6 + $0x328] sm:$0xf]
  %v1444 = vld [vmem:[%s6 + $0x32c] sm:$0xf]
  %v1445 = vld [vmem:[%s6 + $0x330] sm:$0xf]
  %v1446 = vld [vmem:[%s6 + $0x334] sm:$0xf]
  %v1447 = vld [vmem:[%s6 + $0x338] sm:$0xf]
  %v1448 = vld [vmem:[%s6 + $0x33c] sm:$0xf]
  %v1449 = vld [vmem:[%s6 + $0x340] sm:$0xf]
  %v1450 = vld [vmem:[%s6 + $0x344] sm:$0xf]
  %v1451 = vld [vmem:[%s6 + $0x348] sm:$0xf]
  %v1452 = vld [vmem:[%s6 + $0x34c] sm:$0xf]
  %v1453 = vld [vmem:[%s6 + $0x350] sm:$0xf]
  %v1454 = vld [vmem:[%s6 + $0x354] sm:$0xf]
  %v1455 = vld [vmem:[%s6 + $0x358] sm:$0xf]
  %v1456 = vld [vmem:[%s6 + $0x35c] sm:$0xf]
  %v1457 = vld [vmem:[%s6 + $0x360] sm:$0xf]
  %v1458 = vld [vmem:[%s6 + $0x364] sm:$0xf]
  %v1459 = vld [vmem:[%s6 + $0x368] sm:$0xf]
  %v1460 = vld [vmem:[%s6 + $0x36c] sm:$0xf]
  %v1461 = vld [vmem:[%s6 + $0x370] sm:$0xf]
  %v1462 = vld [vmem:[%s6 + $0x374] sm:$0xf]
  %v1463 = vld [vmem:[%s6 + $0x378] sm:$0xf]
  %v1464 = vld [vmem:[%s6 + $0x37c] sm:$0xf]
  %v1465 = vld [vmem:[%s6 + $0x380] sm:$0xf]
  %v1466 = vld [vmem:[%s6 + $0x384] sm:$0xf]
  %v1467 = vld [vmem:[%s6 + $0x388] sm:$0xf]
  %v1468 = vld [vmem:[%s6 + $0x38c] sm:$0xf]
  %v1469 = vld [vmem:[%s6 + $0x390] sm:$0xf]
  %v1470 = vld [vmem:[%s6 + $0x394] sm:$0xf]
  %v1471 = vld [vmem:[%s6 + $0x398] sm:$0xf]
  %v1472 = vld [vmem:[%s6 + $0x39c] sm:$0xf]
  %v1473 = vld [vmem:[%s6 + $0x3a0] sm:$0xf]
  %v1474 = vld [vmem:[%s6 + $0x3a4] sm:$0xf]
  %v1475 = vld [vmem:[%s6 + $0x3a8] sm:$0xf]
  %v1476 = vld [vmem:[%s6 + $0x3ac] sm:$0xf]
  %v1477 = vld [vmem:[%s6 + $0x3b0] sm:$0xf]
  %v1478 = vld [vmem:[%s6 + $0x3b4] sm:$0xf]
  %v1479 = vld [vmem:[%s6 + $0x3b8] sm:$0xf]
  %v1480 = vld [vmem:[%s6 + $0x3bc] sm:$0xf]
  %v1481 = vld [vmem:[%s6 + $0x3c0] sm:$0xf]
  %v1482 = vld [vmem:[%s6 + $0x3c4] sm:$0xf]
  %v1483 = vld [vmem:[%s6 + $0x3c8] sm:$0xf]
  %v1484 = vld [vmem:[%s6 + $0x3cc] sm:$0xf]
  %v1485 = vld [vmem:[%s6 + $0x3d0] sm:$0xf]
  %v1486 = vld [vmem:[%s6 + $0x3d4] sm:$0xf]
  %v1487 = vld [vmem:[%s6 + $0x3d8] sm:$0xf]
  %v1488 = vld [vmem:[%s6 + $0x3dc] sm:$0xf]
  %v1489 = vld [vmem:[%s6 + $0x3e0] sm:$0xf]
  %v1490 = vld [vmem:[%s6 + $0x3e4] sm:$0xf]
  %v1491 = vld [vmem:[%s6 + $0x3e8] sm:$0xf]
  %v1492 = vld [vmem:[%s6 + $0x3ec] sm:$0xf]
  %v1493 = vld [vmem:[%s6 + $0x3f0] sm:$0xf]
  %v1494 = vld [vmem:[%s6 + $0x3f4] sm:$0xf]
  %v1495 = vld [vmem:[%s6 + $0x3f8] sm:$0xf]
  %v1496 = vld [vmem:[%s6 + $0x3fc] sm:$0xf]
  %v1497 = vpack.c.bf16 %v1208, %v1207
  %v1502 = vperm.slane %v37, 0
  %v1503 = vperm.slane %v37, 2
  %v1504 = vperm.slane %v37, 4
  %v1505 = vperm.slane %v37, 6
  %v1506 = vperm.slane %v38, 0
  %v1507 = vperm.slane %v38, 2
  %v1508 = vperm.slane %v38, 4
  %v1509 = vperm.slane %v38, 6
  %v1510 = vperm.slane %v39, 0
  %v1511 = vperm.slane %v39, 2
  %v1512 = vperm.slane %v39, 4
  %v1513 = vperm.slane %v39, 6
  %v1514 = vperm.slane %v40, 0
  %v1515 = vperm.slane %v40, 2
  %v1516 = vperm.slane %v40, 4
  %v1517 = vperm.slane %v40, 6
  %v1534 = vperm.slane %v1502, 0
  %v1535 = vperm.slane %v1503, 0
  %v1536 = vperm.slane %v1504, 0
  %v1537 = vperm.slane %v1505, 0
  %v1538 = vperm.slane %v1506, 0
  %v1539 = vperm.slane %v1507, 0
  %v1540 = vperm.slane %v1508, 0
  %v1541 = vperm.slane %v1509, 0
  %v1542 = vperm.slane %v1510, 0
  %v1543 = vperm.slane %v1511, 0
  %v1544 = vperm.slane %v1512, 0
  %v1545 = vperm.slane %v1513, 0
  %v1546 = vperm.slane %v1514, 0
  %v1547 = vperm.slane %v1515, 0
  %v1548 = vperm.slane %v1516, 0
  %v1549 = vperm.slane %v1517, 0
  %v1582 = vunpack.c.l.b16 %v1209
  %v1583 = vunpack.c.h.b16 %v1209
  %v1584 = vunpack.c.l.b16 %v1210
  %v1585 = vunpack.c.h.b16 %v1210
  %v1586 = vunpack.c.l.b16 %v1211
  %v1587 = vunpack.c.h.b16 %v1211
  %v1588 = vunpack.c.l.b16 %v1212
  %v1589 = vunpack.c.h.b16 %v1212
  %v1590 = vunpack.c.l.b16 %v1213
  %v1591 = vunpack.c.h.b16 %v1213
  %v1592 = vunpack.c.l.b16 %v1214
  %v1593 = vunpack.c.h.b16 %v1214
  %v1594 = vunpack.c.l.b16 %v1215
  %v1595 = vunpack.c.h.b16 %v1215
  %v1596 = vunpack.c.l.b16 %v1216
  %v1597 = vunpack.c.h.b16 %v1216
  %v1598 = vunpack.c.l.b16 %v1217
  %v1599 = vunpack.c.h.b16 %v1217
  %v1600 = vunpack.c.l.b16 %v1218
  %v1601 = vunpack.c.h.b16 %v1218
  %v1602 = vunpack.c.l.b16 %v1219
  %v1603 = vunpack.c.h.b16 %v1219
  %v1604 = vunpack.c.l.b16 %v1220
  %v1605 = vunpack.c.h.b16 %v1220
  %v1606 = vunpack.c.l.b16 %v1221
  %v1607 = vunpack.c.h.b16 %v1221
  %v1608 = vunpack.c.l.b16 %v1222
  %v1609 = vunpack.c.h.b16 %v1222
  %v1610 = vunpack.c.l.b16 %v1223
  %v1611 = vunpack.c.h.b16 %v1223
  %v1612 = vunpack.c.l.b16 %v1224
  %v1613 = vunpack.c.h.b16 %v1224
  %v1614 = vunpack.c.l.b16 %v1225
  %v1615 = vunpack.c.h.b16 %v1225
  %v1616 = vunpack.c.l.b16 %v1226
  %v1617 = vunpack.c.h.b16 %v1226
  %v1618 = vunpack.c.l.b16 %v1227
  %v1619 = vunpack.c.h.b16 %v1227
  %v1620 = vunpack.c.l.b16 %v1228
  %v1621 = vunpack.c.h.b16 %v1228
  %v1622 = vunpack.c.l.b16 %v1229
  %v1623 = vunpack.c.h.b16 %v1229
  %v1624 = vunpack.c.l.b16 %v1230
  %v1625 = vunpack.c.h.b16 %v1230
  %v1626 = vunpack.c.l.b16 %v1231
  %v1627 = vunpack.c.h.b16 %v1231
  %v1628 = vunpack.c.l.b16 %v1232
  %v1629 = vunpack.c.h.b16 %v1232
  %v1630 = vunpack.c.l.b16 %v1233
  %v1631 = vunpack.c.h.b16 %v1233
  %v1632 = vunpack.c.l.b16 %v1234
  %v1633 = vunpack.c.h.b16 %v1234
  %v1634 = vunpack.c.l.b16 %v1235
  %v1635 = vunpack.c.h.b16 %v1235
  %v1636 = vunpack.c.l.b16 %v1236
  %v1637 = vunpack.c.h.b16 %v1236
  %v1638 = vunpack.c.l.b16 %v1237
  %v1639 = vunpack.c.h.b16 %v1237
  %v1640 = vunpack.c.l.b16 %v1238
  %v1641 = vunpack.c.h.b16 %v1238
  %v1642 = vunpack.c.l.b16 %v1239
  %v1643 = vunpack.c.h.b16 %v1239
  %v1644 = vunpack.c.l.b16 %v1240
  %v1645 = vunpack.c.h.b16 %v1240
  %v1646 = vpack.c.b16 %v1598, %v1582
  %v1647 = vpack.c.b16 %v1599, %v1583
  %v1648 = vpack.c.b16 %v1600, %v1584
  %v1649 = vpack.c.b16 %v1601, %v1585
  %v1650 = vpack.c.b16 %v1602, %v1586
  %v1651 = vpack.c.b16 %v1603, %v1587
  %v1652 = vpack.c.b16 %v1604, %v1588
  %v1653 = vpack.c.b16 %v1605, %v1589
  %v1654 = vpack.c.b16 %v1606, %v1590
  %v1655 = vpack.c.b16 %v1607, %v1591
  %v1656 = vpack.c.b16 %v1608, %v1592
  %v1657 = vpack.c.b16 %v1609, %v1593
  %v1658 = vpack.c.b16 %v1610, %v1594
  %v1659 = vpack.c.b16 %v1611, %v1595
  %v1660 = vpack.c.b16 %v1612, %v1596
  %v1661 = vpack.c.b16 %v1613, %v1597
  %v1662 = vpack.c.b16 %v1630, %v1614
  %v1663 = vpack.c.b16 %v1631, %v1615
  %v1664 = vpack.c.b16 %v1632, %v1616
  %v1665 = vpack.c.b16 %v1633, %v1617
  %v1666 = vpack.c.b16 %v1634, %v1618
  %v1667 = vpack.c.b16 %v1635, %v1619
  %v1668 = vpack.c.b16 %v1636, %v1620
  %v1669 = vpack.c.b16 %v1637, %v1621
  %v1670 = vpack.c.b16 %v1638, %v1622
  %v1671 = vpack.c.b16 %v1639, %v1623
  %v1672 = vpack.c.b16 %v1640, %v1624
  %v1673 = vpack.c.b16 %v1641, %v1625
  %v1674 = vpack.c.b16 %v1642, %v1626
  %v1675 = vpack.c.b16 %v1643, %v1627
  %v1676 = vpack.c.b16 %v1644, %v1628
  %v1677 = vpack.c.b16 %v1645, %v1629
  %v1711 = vsel %vm160, %v1497, 0
  %1713 = vmatpush.bf16.msra.mxu0 0
  %1714 = vmatpush.bf16.msra.mxu0 0
  %1715 = vmatpush.bf16.msra.mxu0 0
  %1716 = vmatpush.bf16.msra.mxu0 0
  %1717 = vmatpush.bf16.msra.mxu0 0
  %1718 = vmatpush.bf16.msra.mxu0 0
  %1719 = vmatpush.bf16.msra.mxu0 %v1662
  %1720 = vmatpush.bf16.msra.mxu0 %v1646
  %1721 = vmatmul.bf16.gmra.mxu0 %v1711
  %v1722 = vpop.f32.mrf.mxu0
  %v1723 = vadd.f32 %v1534, %v1722
  %v1724 = vpop.f32.mrf.mxu0
  %v1725 = vadd.f32 %v1534, %v1724
  %1726 = vdwg.mxu0
  %1727 = vmatpush.bf16.msra.mxu0 0
  %1728 = vmatpush.bf16.msra.mxu0 0
  %1729 = vmatpush.bf16.msra.mxu0 0
  %1730 = vmatpush.bf16.msra.mxu0 0
  %1731 = vmatpush.bf16.msra.mxu0 0
  %1732 = vmatpush.bf16.msra.mxu0 0
  %1733 = vmatpush.bf16.msra.mxu0 %v1663
  %1734 = vmatpush.bf16.msra.mxu0 %v1647
  %1735 = vmatmul.bf16.gmra.mxu0 %v1711
  %v1736 = vpop.f32.mrf.mxu0
  %v1737 = vadd.f32 %v1535, %v1736
  %v1738 = vpop.f32.mrf.mxu0
  %v1739 = vadd.f32 %v1535, %v1738
  %1740 = vdwg.mxu0
  %1741 = vmatpush.bf16.msra.mxu0 0
  %1742 = vmatpush.bf16.msra.mxu0 0
  %1743 = vmatpush.bf16.msra.mxu0 0
  %1744 = vmatpush.bf16.msra.mxu0 0
  %1745 = vmatpush.bf16.msra.mxu0 0
  %1746 = vmatpush.bf16.msra.mxu0 0
  %1747 = vmatpush.bf16.msra.mxu0 %v1664
  %1748 = vmatpush.bf16.msra.mxu0 %v1648
  %1749 = vmatmul.bf16.gmra.mxu0 %v1711
  %v1750 = vpop.f32.mrf.mxu0
  %v1751 = vadd.f32 %v1536, %v1750
  %v1752 = vpop.f32.mrf.mxu0
  %v1753 = vadd.f32 %v1536, %v1752
  %1754 = vdwg.mxu0
  %1755 = vmatpush.bf16.msra.mxu0 0
  %1756 = vmatpush.bf16.msra.mxu0 0
  %1757 = vmatpush.bf16.msra.mxu0 0
  %1758 = vmatpush.bf16.msra.mxu0 0
  %1759 = vmatpush.bf16.msra.mxu0 0
  %1760 = vmatpush.bf16.msra.mxu0 0
  %1761 = vmatpush.bf16.msra.mxu0 %v1665
  %1762 = vmatpush.bf16.msra.mxu0 %v1649
  %1763 = vmatmul.bf16.gmra.mxu0 %v1711
  %v1764 = vpop.f32.mrf.mxu0
  %v1765 = vadd.f32 %v1537, %v1764
  %v1766 = vpop.f32.mrf.mxu0
  %v1767 = vadd.f32 %v1537, %v1766
  %1768 = vdwg.mxu0
  %1769 = vmatpush.bf16.msra.mxu0 0
  %1770 = vmatpush.bf16.msra.mxu0 0
  %1771 = vmatpush.bf16.msra.mxu0 0
  %1772 = vmatpush.bf16.msra.mxu0 0
  %1773 = vmatpush.bf16.msra.mxu0 0
  %1774 = vmatpush.bf16.msra.mxu0 0
  %1775 = vmatpush.bf16.msra.mxu0 %v1666
  %1776 = vmatpush.bf16.msra.mxu0 %v1650
  %1777 = vmatmul.bf16.gmra.mxu0 %v1711
  %v1778 = vpop.f32.mrf.mxu0
  %v1779 = vadd.f32 %v1538, %v1778
  %v1780 = vpop.f32.mrf.mxu0
  %v1781 = vadd.f32 %v1538, %v1780
  %1782 = vdwg.mxu0
  %1783 = vmatpush.bf16.msra.mxu0 0
  %1784 = vmatpush.bf16.msra.mxu0 0
  %1785 = vmatpush.bf16.msra.mxu0 0
  %1786 = vmatpush.bf16.msra.mxu0 0
  %1787 = vmatpush.bf16.msra.mxu0 0
  %1788 = vmatpush.bf16.msra.mxu0 0
  %1789 = vmatpush.bf16.msra.mxu0 %v1667
  %1790 = vmatpush.bf16.msra.mxu0 %v1651
  %1791 = vmatmul.bf16.gmra.mxu0 %v1711
  %v1792 = vpop.f32.mrf.mxu0
  %v1793 = vadd.f32 %v1539, %v1792
  %v1794 = vpop.f32.mrf.mxu0
  %v1795 = vadd.f32 %v1539, %v1794
  %1796 = vdwg.mxu0
  %1797 = vmatpush.bf16.msra.mxu0 0
  %1798 = vmatpush.bf16.msra.mxu0 0
  %1799 = vmatpush.bf16.msra.mxu0 0
  %1800 = vmatpush.bf16.msra.mxu0 0
  %1801 = vmatpush.bf16.msra.mxu0 0
  %1802 = vmatpush.bf16.msra.mxu0 0
  %1803 = vmatpush.bf16.msra.mxu0 %v1668
  %1804 = vmatpush.bf16.msra.mxu0 %v1652
  %1805 = vmatmul.bf16.gmra.mxu0 %v1711
  %v1806 = vpop.f32.mrf.mxu0
  %v1807 = vadd.f32 %v1540, %v1806
  %v1808 = vpop.f32.mrf.mxu0
  %v1809 = vadd.f32 %v1540, %v1808
  %1810 = vdwg.mxu0
  %1811 = vmatpush.bf16.msra.mxu0 0
  %1812 = vmatpush.bf16.msra.mxu0 0
  %1813 = vmatpush.bf16.msra.mxu0 0
  %1814 = vmatpush.bf16.msra.mxu0 0
  %1815 = vmatpush.bf16.msra.mxu0 0
  %1816 = vmatpush.bf16.msra.mxu0 0
  %1817 = vmatpush.bf16.msra.mxu0 %v1669
  %1818 = vmatpush.bf16.msra.mxu0 %v1653
  %1819 = vmatmul.bf16.gmra.mxu0 %v1711
  %v1820 = vpop.f32.mrf.mxu0
  %v1821 = vadd.f32 %v1541, %v1820
  %v1822 = vpop.f32.mrf.mxu0
  %v1823 = vadd.f32 %v1541, %v1822
  %1824 = vdwg.mxu0
  %1825 = vmatpush.bf16.msra.mxu0 0
  %1826 = vmatpush.bf16.msra.mxu0 0
  %1827 = vmatpush.bf16.msra.mxu0 0
  %1828 = vmatpush.bf16.msra.mxu0 0
  %1829 = vmatpush.bf16.msra.mxu0 0
  %1830 = vmatpush.bf16.msra.mxu0 0
  %1831 = vmatpush.bf16.msra.mxu0 %v1670
  %1832 = vmatpush.bf16.msra.mxu0 %v1654
  %1833 = vmatmul.bf16.gmra.mxu0 %v1711
  %v1834 = vpop.f32.mrf.mxu0
  %v1835 = vadd.f32 %v1542, %v1834
  %v1836 = vpop.f32.mrf.mxu0
  %v1837 = vadd.f32 %v1542, %v1836
  %1838 = vdwg.mxu0
  %1839 = vmatpush.bf16.msra.mxu0 0
  %1840 = vmatpush.bf16.msra.mxu0 0
  %1841 = vmatpush.bf16.msra.mxu0 0
  %1842 = vmatpush.bf16.msra.mxu0 0
  %1843 = vmatpush.bf16.msra.mxu0 0
  %1844 = vmatpush.bf16.msra.mxu0 0
  %1845 = vmatpush.bf16.msra.mxu0 %v1671
  %1846 = vmatpush.bf16.msra.mxu0 %v1655
  %1847 = vmatmul.bf16.gmra.mxu0 %v1711
  %v1848 = vpop.f32.mrf.mxu0
  %v1849 = vadd.f32 %v1543, %v1848
  %v1850 = vpop.f32.mrf.mxu0
  %v1851 = vadd.f32 %v1543, %v1850
  %1852 = vdwg.mxu0
  %1853 = vmatpush.bf16.msra.mxu0 0
  %1854 = vmatpush.bf16.msra.mxu0 0
  %1855 = vmatpush.bf16.msra.mxu0 0
  %1856 = vmatpush.bf16.msra.mxu0 0
  %1857 = vmatpush.bf16.msra.mxu0 0
  %1858 = vmatpush.bf16.msra.mxu0 0
  %1859 = vmatpush.bf16.msra.mxu0 %v1672
  %1860 = vmatpush.bf16.msra.mxu0 %v1656
  %1861 = vmatmul.bf16.gmra.mxu0 %v1711
  %v1862 = vpop.f32.mrf.mxu0
  %v1863 = vadd.f32 %v1544, %v1862
  %v1864 = vpop.f32.mrf.mxu0
  %v1865 = vadd.f32 %v1544, %v1864
  %1866 = vdwg.mxu0
  %1867 = vmatpush.bf16.msra.mxu0 0
  %1868 = vmatpush.bf16.msra.mxu0 0
  %1869 = vmatpush.bf16.msra.mxu0 0
  %1870 = vmatpush.bf16.msra.mxu0 0
  %1871 = vmatpush.bf16.msra.mxu0 0
  %1872 = vmatpush.bf16.msra.mxu0 0
  %1873 = vmatpush.bf16.msra.mxu0 %v1673
  %1874 = vmatpush.bf16.msra.mxu0 %v1657
  %1875 = vmatmul.bf16.gmra.mxu0 %v1711
  %v1876 = vpop.f32.mrf.mxu0
  %v1877 = vadd.f32 %v1545, %v1876
  %v1878 = vpop.f32.mrf.mxu0
  %v1879 = vadd.f32 %v1545, %v1878
  %1880 = vdwg.mxu0
  %1881 = vmatpush.bf16.msra.mxu0 0
  %1882 = vmatpush.bf16.msra.mxu0 0
  %1883 = vmatpush.bf16.msra.mxu0 0
  %1884 = vmatpush.bf16.msra.mxu0 0
  %1885 = vmatpush.bf16.msra.mxu0 0
  %1886 = vmatpush.bf16.msra.mxu0 0
  %1887 = vmatpush.bf16.msra.mxu0 %v1674
  %1888 = vmatpush.bf16.msra.mxu0 %v1658
  %1889 = vmatmul.bf16.gmra.mxu0 %v1711
  %v1890 = vpop.f32.mrf.mxu0
  %v1891 = vadd.f32 %v1546, %v1890
  %v1892 = vpop.f32.mrf.mxu0
  %v1893 = vadd.f32 %v1546, %v1892
  %1894 = vdwg.mxu0
  %1895 = vmatpush.bf16.msra.mxu0 0
  %1896 = vmatpush.bf16.msra.mxu0 0
  %1897 = vmatpush.bf16.msra.mxu0 0
  %1898 = vmatpush.bf16.msra.mxu0 0
  %1899 = vmatpush.bf16.msra.mxu0 0
  %1900 = vmatpush.bf16.msra.mxu0 0
  %1901 = vmatpush.bf16.msra.mxu0 %v1675
  %1902 = vmatpush.bf16.msra.mxu0 %v1659
  %1903 = vmatmul.bf16.gmra.mxu0 %v1711
  %v1904 = vpop.f32.mrf.mxu0
  %v1905 = vadd.f32 %v1547, %v1904
  %v1906 = vpop.f32.mrf.mxu0
  %v1907 = vadd.f32 %v1547, %v1906
  %1908 = vdwg.mxu0
  %1909 = vmatpush.bf16.msra.mxu0 0
  %1910 = vmatpush.bf16.msra.mxu0 0
  %1911 = vmatpush.bf16.msra.mxu0 0
  %1912 = vmatpush.bf16.msra.mxu0 0
  %1913 = vmatpush.bf16.msra.mxu0 0
  %1914 = vmatpush.bf16.msra.mxu0 0
  %1915 = vmatpush.bf16.msra.mxu0 %v1676
  %1916 = vmatpush.bf16.msra.mxu0 %v1660
  %1917 = vmatmul.bf16.gmra.mxu0 %v1711
  %v1918 = vpop.f32.mrf.mxu0
  %v1919 = vadd.f32 %v1548, %v1918
  %v1920 = vpop.f32.mrf.mxu0
  %v1921 = vadd.f32 %v1548, %v1920
  %1922 = vdwg.mxu0
  %1923 = vmatpush.bf16.msra.mxu0 0
  %1924 = vmatpush.bf16.msra.mxu0 0
  %1925 = vmatpush.bf16.msra.mxu0 0
  %1926 = vmatpush.bf16.msra.mxu0 0
  %1927 = vmatpush.bf16.msra.mxu0 0
  %1928 = vmatpush.bf16.msra.mxu0 0
  %1929 = vmatpush.bf16.msra.mxu0 %v1677
  %1930 = vmatpush.bf16.msra.mxu0 %v1661
  %1931 = vmatmul.bf16.gmra.mxu0 %v1711
  %v1932 = vpop.f32.mrf.mxu0
  %v1933 = vadd.f32 %v1549, %v1932
  %v1934 = vpop.f32.mrf.mxu0
  %v1935 = vadd.f32 %v1549, %v1934
  %1936 = vdwg.mxu0
  %v1937 = vmax.f32 %v1723, 0.0
  %v1938 = vmax.f32 %v1737, 0.0
  %v1939 = vmax.f32 %v1751, 0.0
  %v1940 = vmax.f32 %v1765, 0.0
  %v1941 = vmax.f32 %v1779, 0.0
  %v1942 = vmax.f32 %v1793, 0.0
  %v1943 = vmax.f32 %v1807, 0.0
  %v1944 = vmax.f32 %v1821, 0.0
  %v1945 = vmax.f32 %v1835, 0.0
  %v1946 = vmax.f32 %v1849, 0.0
  %v1947 = vmax.f32 %v1863, 0.0
  %v1948 = vmax.f32 %v1877, 0.0
  %v1949 = vmax.f32 %v1891, 0.0
  %v1950 = vmax.f32 %v1905, 0.0
  %v1951 = vmax.f32 %v1919, 0.0
  %v1952 = vmax.f32 %v1933, 0.0
  %v1953 = vmax.f32 %v1725, 0.0
  %v1954 = vmax.f32 %v1739, 0.0
  %v1955 = vmax.f32 %v1753, 0.0
  %v1956 = vmax.f32 %v1767, 0.0
  %v1957 = vmax.f32 %v1781, 0.0
  %v1958 = vmax.f32 %v1795, 0.0
  %v1959 = vmax.f32 %v1809, 0.0
  %v1960 = vmax.f32 %v1823, 0.0
  %v1961 = vmax.f32 %v1837, 0.0
  %v1962 = vmax.f32 %v1851, 0.0
  %v1963 = vmax.f32 %v1865, 0.0
  %v1964 = vmax.f32 %v1879, 0.0
  %v1965 = vmax.f32 %v1893, 0.0
  %v1966 = vmax.f32 %v1907, 0.0
  %v1967 = vmax.f32 %v1921, 0.0
  %v1968 = vmax.f32 %v1935, 0.0
  %v1969 = vpack.c.bf16 %v1953, %v1937
  %v1970 = vpack.c.bf16 %v1954, %v1938
  %v1971 = vpack.c.bf16 %v1955, %v1939
  %v1972 = vpack.c.bf16 %v1956, %v1940
  %v1973 = vpack.c.bf16 %v1957, %v1941
  %v1974 = vpack.c.bf16 %v1958, %v1942
  %v1975 = vpack.c.bf16 %v1959, %v1943
  %v1976 = vpack.c.bf16 %v1960, %v1944
  %v1977 = vpack.c.bf16 %v1961, %v1945
  %v1978 = vpack.c.bf16 %v1962, %v1946
  %v1979 = vpack.c.bf16 %v1963, %v1947
  %v1980 = vpack.c.bf16 %v1964, %v1948
  %v1981 = vpack.c.bf16 %v1965, %v1949
  %v1982 = vpack.c.bf16 %v1966, %v1950
  %v1983 = vpack.c.bf16 %v1967, %v1951
  %v1984 = vpack.c.bf16 %v1968, %v1952
  %v1985 = vperm.slane %v33, 7
  %v2242 = vunpack.c.l.b16 %v1241
  %v2243 = vunpack.c.l.b16 %v1242
  %v2244 = vunpack.c.l.b16 %v1243
  %v2245 = vunpack.c.l.b16 %v1244
  %v2246 = vunpack.c.l.b16 %v1245
  %v2247 = vunpack.c.l.b16 %v1246
  %v2248 = vunpack.c.l.b16 %v1247
  %v2249 = vunpack.c.l.b16 %v1248
  %v2250 = vunpack.c.l.b16 %v1249
  %v2251 = vunpack.c.l.b16 %v1250
  %v2252 = vunpack.c.l.b16 %v1251
  %v2253 = vunpack.c.l.b16 %v1252
  %v2254 = vunpack.c.l.b16 %v1253
  %v2255 = vunpack.c.l.b16 %v1254
  %v2256 = vunpack.c.l.b16 %v1255
  %v2257 = vunpack.c.l.b16 %v1256
  %v2258 = vunpack.c.l.b16 %v1257
  %v2259 = vunpack.c.l.b16 %v1258
  %v2260 = vunpack.c.l.b16 %v1259
  %v2261 = vunpack.c.l.b16 %v1260
  %v2262 = vunpack.c.l.b16 %v1261
  %v2263 = vunpack.c.l.b16 %v1262
  %v2264 = vunpack.c.l.b16 %v1263
  %v2265 = vunpack.c.l.b16 %v1264
  %v2266 = vunpack.c.l.b16 %v1265
  %v2267 = vunpack.c.l.b16 %v1266
  %v2268 = vunpack.c.l.b16 %v1267
  %v2269 = vunpack.c.l.b16 %v1268
  %v2270 = vunpack.c.l.b16 %v1269
  %v2271 = vunpack.c.l.b16 %v1270
  %v2272 = vunpack.c.l.b16 %v1271
  %v2273 = vunpack.c.l.b16 %v1272
  %v2274 = vunpack.c.l.b16 %v1273
  %v2275 = vunpack.c.l.b16 %v1274
  %v2276 = vunpack.c.l.b16 %v1275
  %v2277 = vunpack.c.l.b16 %v1276
  %v2278 = vunpack.c.l.b16 %v1277
  %v2279 = vunpack.c.l.b16 %v1278
  %v2280 = vunpack.c.l.b16 %v1279
  %v2281 = vunpack.c.l.b16 %v1280
  %v2282 = vunpack.c.l.b16 %v1281
  %v2283 = vunpack.c.l.b16 %v1282
  %v2284 = vunpack.c.l.b16 %v1283
  %v2285 = vunpack.c.l.b16 %v1284
  %v2286 = vunpack.c.l.b16 %v1285
  %v2287 = vunpack.c.l.b16 %v1286
  %v2288 = vunpack.c.l.b16 %v1287
  %v2289 = vunpack.c.l.b16 %v1288
  %v2290 = vunpack.c.l.b16 %v1289
  %v2291 = vunpack.c.l.b16 %v1290
  %v2292 = vunpack.c.l.b16 %v1291
  %v2293 = vunpack.c.l.b16 %v1292
  %v2294 = vunpack.c.l.b16 %v1293
  %v2295 = vunpack.c.l.b16 %v1294
  %v2296 = vunpack.c.l.b16 %v1295
  %v2297 = vunpack.c.l.b16 %v1296
  %v2298 = vunpack.c.l.b16 %v1297
  %v2299 = vunpack.c.l.b16 %v1298
  %v2300 = vunpack.c.l.b16 %v1299
  %v2301 = vunpack.c.l.b16 %v1300
  %v2302 = vunpack.c.l.b16 %v1301
  %v2303 = vunpack.c.l.b16 %v1302
  %v2304 = vunpack.c.l.b16 %v1303
  %v2305 = vunpack.c.l.b16 %v1304
  %v2306 = vunpack.c.l.b16 %v1305
  %v2307 = vunpack.c.l.b16 %v1306
  %v2308 = vunpack.c.l.b16 %v1307
  %v2309 = vunpack.c.l.b16 %v1308
  %v2310 = vunpack.c.l.b16 %v1309
  %v2311 = vunpack.c.l.b16 %v1310
  %v2312 = vunpack.c.l.b16 %v1311
  %v2313 = vunpack.c.l.b16 %v1312
  %v2314 = vunpack.c.l.b16 %v1313
  %v2315 = vunpack.c.l.b16 %v1314
  %v2316 = vunpack.c.l.b16 %v1315
  %v2317 = vunpack.c.l.b16 %v1316
  %v2318 = vunpack.c.l.b16 %v1317
  %v2319 = vunpack.c.l.b16 %v1318
  %v2320 = vunpack.c.l.b16 %v1319
  %v2321 = vunpack.c.l.b16 %v1320
  %v2322 = vunpack.c.l.b16 %v1321
  %v2323 = vunpack.c.l.b16 %v1322
  %v2324 = vunpack.c.l.b16 %v1323
  %v2325 = vunpack.c.l.b16 %v1324
  %v2326 = vunpack.c.l.b16 %v1325
  %v2327 = vunpack.c.l.b16 %v1326
  %v2328 = vunpack.c.l.b16 %v1327
  %v2329 = vunpack.c.l.b16 %v1328
  %v2330 = vunpack.c.l.b16 %v1329
  %v2331 = vunpack.c.l.b16 %v1330
  %v2332 = vunpack.c.l.b16 %v1331
  %v2333 = vunpack.c.l.b16 %v1332
  %v2334 = vunpack.c.l.b16 %v1333
  %v2335 = vunpack.c.l.b16 %v1334
  %v2336 = vunpack.c.l.b16 %v1335
  %v2337 = vunpack.c.l.b16 %v1336
  %v2338 = vunpack.c.l.b16 %v1337
  %v2339 = vunpack.c.l.b16 %v1338
  %v2340 = vunpack.c.l.b16 %v1339
  %v2341 = vunpack.c.l.b16 %v1340
  %v2342 = vunpack.c.l.b16 %v1341
  %v2343 = vunpack.c.l.b16 %v1342
  %v2344 = vunpack.c.l.b16 %v1343
  %v2345 = vunpack.c.l.b16 %v1344
  %v2346 = vunpack.c.l.b16 %v1345
  %v2347 = vunpack.c.l.b16 %v1346
  %v2348 = vunpack.c.l.b16 %v1347
  %v2349 = vunpack.c.l.b16 %v1348
  %v2350 = vunpack.c.l.b16 %v1349
  %v2351 = vunpack.c.l.b16 %v1350
  %v2352 = vunpack.c.l.b16 %v1351
  %v2353 = vunpack.c.l.b16 %v1352
  %v2354 = vunpack.c.l.b16 %v1353
  %v2355 = vunpack.c.l.b16 %v1354
  %v2356 = vunpack.c.l.b16 %v1355
  %v2357 = vunpack.c.l.b16 %v1356
  %v2358 = vunpack.c.l.b16 %v1357
  %v2359 = vunpack.c.l.b16 %v1358
  %v2360 = vunpack.c.l.b16 %v1359
  %v2361 = vunpack.c.l.b16 %v1360
  %v2362 = vunpack.c.l.b16 %v1361
  %v2363 = vunpack.c.l.b16 %v1362
  %v2364 = vunpack.c.l.b16 %v1363
  %v2365 = vunpack.c.l.b16 %v1364
  %v2366 = vunpack.c.l.b16 %v1365
  %v2367 = vunpack.c.l.b16 %v1366
  %v2368 = vunpack.c.l.b16 %v1367
  %v2369 = vunpack.c.l.b16 %v1368
  %v2370 = vunpack.c.l.b16 %v1369
  %v2371 = vunpack.c.l.b16 %v1370
  %v2372 = vunpack.c.l.b16 %v1371
  %v2373 = vunpack.c.l.b16 %v1372
  %v2374 = vunpack.c.l.b16 %v1373
  %v2375 = vunpack.c.l.b16 %v1374
  %v2376 = vunpack.c.l.b16 %v1375
  %v2377 = vunpack.c.l.b16 %v1376
  %v2378 = vunpack.c.l.b16 %v1377
  %v2379 = vunpack.c.l.b16 %v1378
  %v2380 = vunpack.c.l.b16 %v1379
  %v2381 = vunpack.c.l.b16 %v1380
  %v2382 = vunpack.c.l.b16 %v1381
  %v2383 = vunpack.c.l.b16 %v1382
  %v2384 = vunpack.c.l.b16 %v1383
  %v2385 = vunpack.c.l.b16 %v1384
  %v2386 = vunpack.c.l.b16 %v1385
  %v2387 = vunpack.c.l.b16 %v1386
  %v2388 = vunpack.c.l.b16 %v1387
  %v2389 = vunpack.c.l.b16 %v1388
  %v2390 = vunpack.c.l.b16 %v1389
  %v2391 = vunpack.c.l.b16 %v1390
  %v2392 = vunpack.c.l.b16 %v1391
  %v2393 = vunpack.c.l.b16 %v1392
  %v2394 = vunpack.c.l.b16 %v1393
  %v2395 = vunpack.c.l.b16 %v1394
  %v2396 = vunpack.c.l.b16 %v1395
  %v2397 = vunpack.c.l.b16 %v1396
  %v2398 = vunpack.c.l.b16 %v1397
  %v2399 = vunpack.c.l.b16 %v1398
  %v2400 = vunpack.c.l.b16 %v1399
  %v2401 = vunpack.c.l.b16 %v1400
  %v2402 = vunpack.c.l.b16 %v1401
  %v2403 = vunpack.c.l.b16 %v1402
  %v2404 = vunpack.c.l.b16 %v1403
  %v2405 = vunpack.c.l.b16 %v1404
  %v2406 = vunpack.c.l.b16 %v1405
  %v2407 = vunpack.c.l.b16 %v1406
  %v2408 = vunpack.c.l.b16 %v1407
  %v2409 = vunpack.c.l.b16 %v1408
  %v2410 = vunpack.c.l.b16 %v1409
  %v2411 = vunpack.c.l.b16 %v1410
  %v2412 = vunpack.c.l.b16 %v1411
  %v2413 = vunpack.c.l.b16 %v1412
  %v2414 = vunpack.c.l.b16 %v1413
  %v2415 = vunpack.c.l.b16 %v1414
  %v2416 = vunpack.c.l.b16 %v1415
  %v2417 = vunpack.c.l.b16 %v1416
  %v2418 = vunpack.c.l.b16 %v1417
  %v2419 = vunpack.c.l.b16 %v1418
  %v2420 = vunpack.c.l.b16 %v1419
  %v2421 = vunpack.c.l.b16 %v1420
  %v2422 = vunpack.c.l.b16 %v1421
  %v2423 = vunpack.c.l.b16 %v1422
  %v2424 = vunpack.c.l.b16 %v1423
  %v2425 = vunpack.c.l.b16 %v1424
  %v2426 = vunpack.c.l.b16 %v1425
  %v2427 = vunpack.c.l.b16 %v1426
  %v2428 = vunpack.c.l.b16 %v1427
  %v2429 = vunpack.c.l.b16 %v1428
  %v2430 = vunpack.c.l.b16 %v1429
  %v2431 = vunpack.c.l.b16 %v1430
  %v2432 = vunpack.c.l.b16 %v1431
  %v2433 = vunpack.c.l.b16 %v1432
  %v2434 = vunpack.c.l.b16 %v1433
  %v2435 = vunpack.c.l.b16 %v1434
  %v2436 = vunpack.c.l.b16 %v1435
  %v2437 = vunpack.c.l.b16 %v1436
  %v2438 = vunpack.c.l.b16 %v1437
  %v2439 = vunpack.c.l.b16 %v1438
  %v2440 = vunpack.c.l.b16 %v1439
  %v2441 = vunpack.c.l.b16 %v1440
  %v2442 = vunpack.c.l.b16 %v1441
  %v2443 = vunpack.c.l.b16 %v1442
  %v2444 = vunpack.c.l.b16 %v1443
  %v2445 = vunpack.c.l.b16 %v1444
  %v2446 = vunpack.c.l.b16 %v1445
  %v2447 = vunpack.c.l.b16 %v1446
  %v2448 = vunpack.c.l.b16 %v1447
  %v2449 = vunpack.c.l.b16 %v1448
  %v2450 = vunpack.c.l.b16 %v1449
  %v2451 = vunpack.c.l.b16 %v1450
  %v2452 = vunpack.c.l.b16 %v1451
  %v2453 = vunpack.c.l.b16 %v1452
  %v2454 = vunpack.c.l.b16 %v1453
  %v2455 = vunpack.c.l.b16 %v1454
  %v2456 = vunpack.c.l.b16 %v1455
  %v2457 = vunpack.c.l.b16 %v1456
  %v2458 = vunpack.c.l.b16 %v1457
  %v2459 = vunpack.c.l.b16 %v1458
  %v2460 = vunpack.c.l.b16 %v1459
  %v2461 = vunpack.c.l.b16 %v1460
  %v2462 = vunpack.c.l.b16 %v1461
  %v2463 = vunpack.c.l.b16 %v1462
  %v2464 = vunpack.c.l.b16 %v1463
  %v2465 = vunpack.c.l.b16 %v1464
  %v2466 = vunpack.c.l.b16 %v1465
  %v2467 = vunpack.c.l.b16 %v1466
  %v2468 = vunpack.c.l.b16 %v1467
  %v2469 = vunpack.c.l.b16 %v1468
  %v2470 = vunpack.c.l.b16 %v1469
  %v2471 = vunpack.c.l.b16 %v1470
  %v2472 = vunpack.c.l.b16 %v1471
  %v2473 = vunpack.c.l.b16 %v1472
  %v2474 = vunpack.c.l.b16 %v1473
  %v2475 = vunpack.c.l.b16 %v1474
  %v2476 = vunpack.c.l.b16 %v1475
  %v2477 = vunpack.c.l.b16 %v1476
  %v2478 = vunpack.c.l.b16 %v1477
  %v2479 = vunpack.c.l.b16 %v1478
  %v2480 = vunpack.c.l.b16 %v1479
  %v2481 = vunpack.c.l.b16 %v1480
  %v2482 = vunpack.c.l.b16 %v1481
  %v2483 = vunpack.c.l.b16 %v1482
  %v2484 = vunpack.c.l.b16 %v1483
  %v2485 = vunpack.c.l.b16 %v1484
  %v2486 = vunpack.c.l.b16 %v1485
  %v2487 = vunpack.c.l.b16 %v1486
  %v2488 = vunpack.c.l.b16 %v1487
  %v2489 = vunpack.c.l.b16 %v1488
  %v2490 = vunpack.c.l.b16 %v1489
  %v2491 = vunpack.c.l.b16 %v1490
  %v2492 = vunpack.c.l.b16 %v1491
  %v2493 = vunpack.c.l.b16 %v1492
  %v2494 = vunpack.c.l.b16 %v1493
  %v2495 = vunpack.c.l.b16 %v1494
  %v2496 = vunpack.c.l.b16 %v1495
  %v2497 = vunpack.c.l.b16 %v1496
  %v2498 = vpack.c.b16 %v2243, %v2242
  %v2499 = vpack.c.b16 %v2245, %v2244
  %v2500 = vpack.c.b16 %v2247, %v2246
  %v2501 = vpack.c.b16 %v2249, %v2248
  %v2502 = vpack.c.b16 %v2251, %v2250
  %v2503 = vpack.c.b16 %v2253, %v2252
  %v2504 = vpack.c.b16 %v2255, %v2254
  %v2505 = vpack.c.b16 %v2257, %v2256
  %v2506 = vpack.c.b16 %v2259, %v2258
  %v2507 = vpack.c.b16 %v2261, %v2260
  %v2508 = vpack.c.b16 %v2263, %v2262
  %v2509 = vpack.c.b16 %v2265, %v2264
  %v2510 = vpack.c.b16 %v2267, %v2266
  %v2511 = vpack.c.b16 %v2269, %v2268
  %v2512 = vpack.c.b16 %v2271, %v2270
  %v2513 = vpack.c.b16 %v2273, %v2272
  %v2514 = vpack.c.b16 %v2275, %v2274
  %v2515 = vpack.c.b16 %v2277, %v2276
  %v2516 = vpack.c.b16 %v2279, %v2278
  %v2517 = vpack.c.b16 %v2281, %v2280
  %v2518 = vpack.c.b16 %v2283, %v2282
  %v2519 = vpack.c.b16 %v2285, %v2284
  %v2520 = vpack.c.b16 %v2287, %v2286
  %v2521 = vpack.c.b16 %v2289, %v2288
  %v2522 = vpack.c.b16 %v2291, %v2290
  %v2523 = vpack.c.b16 %v2293, %v2292
  %v2524 = vpack.c.b16 %v2295, %v2294
  %v2525 = vpack.c.b16 %v2297, %v2296
  %v2526 = vpack.c.b16 %v2299, %v2298
  %v2527 = vpack.c.b16 %v2301, %v2300
  %v2528 = vpack.c.b16 %v2303, %v2302
  %v2529 = vpack.c.b16 %v2305, %v2304
  %v2530 = vpack.c.b16 %v2307, %v2306
  %v2531 = vpack.c.b16 %v2309, %v2308
  %v2532 = vpack.c.b16 %v2311, %v2310
  %v2533 = vpack.c.b16 %v2313, %v2312
  %v2534 = vpack.c.b16 %v2315, %v2314
  %v2535 = vpack.c.b16 %v2317, %v2316
  %v2536 = vpack.c.b16 %v2319, %v2318
  %v2537 = vpack.c.b16 %v2321, %v2320
  %v2538 = vpack.c.b16 %v2323, %v2322
  %v2539 = vpack.c.b16 %v2325, %v2324
  %v2540 = vpack.c.b16 %v2327, %v2326
  %v2541 = vpack.c.b16 %v2329, %v2328
  %v2542 = vpack.c.b16 %v2331, %v2330
  %v2543 = vpack.c.b16 %v2333, %v2332
  %v2544 = vpack.c.b16 %v2335, %v2334
  %v2545 = vpack.c.b16 %v2337, %v2336
  %v2546 = vpack.c.b16 %v2339, %v2338
  %v2547 = vpack.c.b16 %v2341, %v2340
  %v2548 = vpack.c.b16 %v2343, %v2342
  %v2549 = vpack.c.b16 %v2345, %v2344
  %v2550 = vpack.c.b16 %v2347, %v2346
  %v2551 = vpack.c.b16 %v2349, %v2348
  %v2552 = vpack.c.b16 %v2351, %v2350
  %v2553 = vpack.c.b16 %v2353, %v2352
  %v2554 = vpack.c.b16 %v2355, %v2354
  %v2555 = vpack.c.b16 %v2357, %v2356
  %v2556 = vpack.c.b16 %v2359, %v2358
  %v2557 = vpack.c.b16 %v2361, %v2360
  %v2558 = vpack.c.b16 %v2363, %v2362
  %v2559 = vpack.c.b16 %v2365, %v2364
  %v2560 = vpack.c.b16 %v2367, %v2366
  %v2561 = vpack.c.b16 %v2369, %v2368
  %v2562 = vpack.c.b16 %v2371, %v2370
  %v2563 = vpack.c.b16 %v2373, %v2372
  %v2564 = vpack.c.b16 %v2375, %v2374
  %v2565 = vpack.c.b16 %v2377, %v2376
  %v2566 = vpack.c.b16 %v2379, %v2378
  %v2567 = vpack.c.b16 %v2381, %v2380
  %v2568 = vpack.c.b16 %v2383, %v2382
  %v2569 = vpack.c.b16 %v2385, %v2384
  %v2570 = vpack.c.b16 %v2387, %v2386
  %v2571 = vpack.c.b16 %v2389, %v2388
  %v2572 = vpack.c.b16 %v2391, %v2390
  %v2573 = vpack.c.b16 %v2393, %v2392
  %v2574 = vpack.c.b16 %v2395, %v2394
  %v2575 = vpack.c.b16 %v2397, %v2396
  %v2576 = vpack.c.b16 %v2399, %v2398
  %v2577 = vpack.c.b16 %v2401, %v2400
  %v2578 = vpack.c.b16 %v2403, %v2402
  %v2579 = vpack.c.b16 %v2405, %v2404
  %v2580 = vpack.c.b16 %v2407, %v2406
  %v2581 = vpack.c.b16 %v2409, %v2408
  %v2582 = vpack.c.b16 %v2411, %v2410
  %v2583 = vpack.c.b16 %v2413, %v2412
  %v2584 = vpack.c.b16 %v2415, %v2414
  %v2585 = vpack.c.b16 %v2417, %v2416
  %v2586 = vpack.c.b16 %v2419, %v2418
  %v2587 = vpack.c.b16 %v2421, %v2420
  %v2588 = vpack.c.b16 %v2423, %v2422
  %v2589 = vpack.c.b16 %v2425, %v2424
  %v2590 = vpack.c.b16 %v2427, %v2426
  %v2591 = vpack.c.b16 %v2429, %v2428
  %v2592 = vpack.c.b16 %v2431, %v2430
  %v2593 = vpack.c.b16 %v2433, %v2432
  %v2594 = vpack.c.b16 %v2435, %v2434
  %v2595 = vpack.c.b16 %v2437, %v2436
  %v2596 = vpack.c.b16 %v2439, %v2438
  %v2597 = vpack.c.b16 %v2441, %v2440
  %v2598 = vpack.c.b16 %v2443, %v2442
  %v2599 = vpack.c.b16 %v2445, %v2444
  %v2600 = vpack.c.b16 %v2447, %v2446
  %v2601 = vpack.c.b16 %v2449, %v2448
  %v2602 = vpack.c.b16 %v2451, %v2450
  %v2603 = vpack.c.b16 %v2453, %v2452
  %v2604 = vpack.c.b16 %v2455, %v2454
  %v2605 = vpack.c.b16 %v2457, %v2456
  %v2606 = vpack.c.b16 %v2459, %v2458
  %v2607 = vpack.c.b16 %v2461, %v2460
  %v2608 = vpack.c.b16 %v2463, %v2462
  %v2609 = vpack.c.b16 %v2465, %v2464
  %v2610 = vpack.c.b16 %v2467, %v2466
  %v2611 = vpack.c.b16 %v2469, %v2468
  %v2612 = vpack.c.b16 %v2471, %v2470
  %v2613 = vpack.c.b16 %v2473, %v2472
  %v2614 = vpack.c.b16 %v2475, %v2474
  %v2615 = vpack.c.b16 %v2477, %v2476
  %v2616 = vpack.c.b16 %v2479, %v2478
  %v2617 = vpack.c.b16 %v2481, %v2480
  %v2618 = vpack.c.b16 %v2483, %v2482
  %v2619 = vpack.c.b16 %v2485, %v2484
  %v2620 = vpack.c.b16 %v2487, %v2486
  %v2621 = vpack.c.b16 %v2489, %v2488
  %v2622 = vpack.c.b16 %v2491, %v2490
  %v2623 = vpack.c.b16 %v2493, %v2492
  %v2624 = vpack.c.b16 %v2495, %v2494
  %v2625 = vpack.c.b16 %v2497, %v2496
  %2754 = vmatpush.bf16.msra.mxu0 %v2505
  %2755 = vmatpush.bf16.msra.mxu0 %v2504
  %2756 = vmatpush.bf16.msra.mxu0 %v2503
  %2757 = vmatpush.bf16.msra.mxu0 %v2502
  %2758 = vmatpush.bf16.msra.mxu0 %v2501
  %2759 = vmatpush.bf16.msra.mxu0 %v2500
  %2760 = vmatpush.bf16.msra.mxu0 %v2499
  %2761 = vmatpush.bf16.msra.mxu0 %v2498
  %2762 = vmatmul.bf16.gmra.mxu0 %v1969
  %v2763 = vpop.f32.mrf.mxu0
  %v2764 = vadd.f32 %v1985, %v2763
  %v2765 = vpop.f32.mrf.mxu0
  %v2766 = vadd.f32 %v1985, %v2765
  %2767 = vdwg.mxu0
  %2768 = vmatpush.bf16.msra.mxu0 %v2513
  %2769 = vmatpush.bf16.msra.mxu0 %v2512
  %2770 = vmatpush.bf16.msra.mxu0 %v2511
  %2771 = vmatpush.bf16.msra.mxu0 %v2510
  %2772 = vmatpush.bf16.msra.mxu0 %v2509
  %2773 = vmatpush.bf16.msra.mxu0 %v2508
  %2774 = vmatpush.bf16.msra.mxu0 %v2507
  %2775 = vmatpush.bf16.msra.mxu0 %v2506
  %2776 = vmatmul.bf16.gmra.mxu0 %v1970
  %v2777 = vpop.f32.mrf.mxu0
  %v2778 = vadd.f32 %v2764, %v2777
  %v2779 = vpop.f32.mrf.mxu0
  %v2780 = vadd.f32 %v2766, %v2779
  %2781 = vdwg.mxu0
  %2782 = vmatpush.bf16.msra.mxu0 %v2521
  %2783 = vmatpush.bf16.msra.mxu0 %v2520
  %2784 = vmatpush.bf16.msra.mxu0 %v2519
  %2785 = vmatpush.bf16.msra.mxu0 %v2518
  %2786 = vmatpush.bf16.msra.mxu0 %v2517
  %2787 = vmatpush.bf16.msra.mxu0 %v2516
  %2788 = vmatpush.bf16.msra.mxu0 %v2515
  %2789 = vmatpush.bf16.msra.mxu0 %v2514
  %2790 = vmatmul.bf16.gmra.mxu0 %v1971
  %v2791 = vpop.f32.mrf.mxu0
  %v2792 = vadd.f32 %v2778, %v2791
  %v2793 = vpop.f32.mrf.mxu0
  %v2794 = vadd.f32 %v2780, %v2793
  %2795 = vdwg.mxu0
  %2796 = vmatpush.bf16.msra.mxu0 %v2529
  %2797 = vmatpush.bf16.msra.mxu0 %v2528
  %2798 = vmatpush.bf16.msra.mxu0 %v2527
  %2799 = vmatpush.bf16.msra.mxu0 %v2526
  %2800 = vmatpush.bf16.msra.mxu0 %v2525
  %2801 = vmatpush.bf16.msra.mxu0 %v2524
  %2802 = vmatpush.bf16.msra.mxu0 %v2523
  %2803 = vmatpush.bf16.msra.mxu0 %v2522
  %2804 = vmatmul.bf16.gmra.mxu0 %v1972
  %v2805 = vpop.f32.mrf.mxu0
  %v2806 = vadd.f32 %v2792, %v2805
  %v2807 = vpop.f32.mrf.mxu0
  %v2808 = vadd.f32 %v2794, %v2807
  %2809 = vdwg.mxu0
  %2810 = vmatpush.bf16.msra.mxu0 %v2537
  %2811 = vmatpush.bf16.msra.mxu0 %v2536
  %2812 = vmatpush.bf16.msra.mxu0 %v2535
  %2813 = vmatpush.bf16.msra.mxu0 %v2534
  %2814 = vmatpush.bf16.msra.mxu0 %v2533
  %2815 = vmatpush.bf16.msra.mxu0 %v2532
  %2816 = vmatpush.bf16.msra.mxu0 %v2531
  %2817 = vmatpush.bf16.msra.mxu0 %v2530
  %2818 = vmatmul.bf16.gmra.mxu0 %v1973
  %v2819 = vpop.f32.mrf.mxu0
  %v2820 = vadd.f32 %v2806, %v2819
  %v2821 = vpop.f32.mrf.mxu0
  %v2822 = vadd.f32 %v2808, %v2821
  %2823 = vdwg.mxu0
  %2824 = vmatpush.bf16.msra.mxu0 %v2545
  %2825 = vmatpush.bf16.msra.mxu0 %v2544
  %2826 = vmatpush.bf16.msra.mxu0 %v2543
  %2827 = vmatpush.bf16.msra.mxu0 %v2542
  %2828 = vmatpush.bf16.msra.mxu0 %v2541
  %2829 = vmatpush.bf16.msra.mxu0 %v2540
  %2830 = vmatpush.bf16.msra.mxu0 %v2539
  %2831 = vmatpush.bf16.msra.mxu0 %v2538
  %2832 = vmatmul.bf16.gmra.mxu0 %v1974
  %v2833 = vpop.f32.mrf.mxu0
  %v2834 = vadd.f32 %v2820, %v2833
  %v2835 = vpop.f32.mrf.mxu0
  %v2836 = vadd.f32 %v2822, %v2835
  %2837 = vdwg.mxu0
  %2838 = vmatpush.bf16.msra.mxu0 %v2553
  %2839 = vmatpush.bf16.msra.mxu0 %v2552
  %2840 = vmatpush.bf16.msra.mxu0 %v2551
  %2841 = vmatpush.bf16.msra.mxu0 %v2550
  %2842 = vmatpush.bf16.msra.mxu0 %v2549
  %2843 = vmatpush.bf16.msra.mxu0 %v2548
  %2844 = vmatpush.bf16.msra.mxu0 %v2547
  %2845 = vmatpush.bf16.msra.mxu0 %v2546
  %2846 = vmatmul.bf16.gmra.mxu0 %v1975
  %v2847 = vpop.f32.mrf.mxu0
  %v2848 = vadd.f32 %v2834, %v2847
  %v2849 = vpop.f32.mrf.mxu0
  %v2850 = vadd.f32 %v2836, %v2849
  %2851 = vdwg.mxu0
  %2852 = vmatpush.bf16.msra.mxu0 %v2561
  %2853 = vmatpush.bf16.msra.mxu0 %v2560
  %2854 = vmatpush.bf16.msra.mxu0 %v2559
  %2855 = vmatpush.bf16.msra.mxu0 %v2558
  %2856 = vmatpush.bf16.msra.mxu0 %v2557
  %2857 = vmatpush.bf16.msra.mxu0 %v2556
  %2858 = vmatpush.bf16.msra.mxu0 %v2555
  %2859 = vmatpush.bf16.msra.mxu0 %v2554
  %2860 = vmatmul.bf16.gmra.mxu0 %v1976
  %v2861 = vpop.f32.mrf.mxu0
  %v2862 = vadd.f32 %v2848, %v2861
  %v2863 = vpop.f32.mrf.mxu0
  %v2864 = vadd.f32 %v2850, %v2863
  %2865 = vdwg.mxu0
  %2866 = vmatpush.bf16.msra.mxu0 %v2569
  %2867 = vmatpush.bf16.msra.mxu0 %v2568
  %2868 = vmatpush.bf16.msra.mxu0 %v2567
  %2869 = vmatpush.bf16.msra.mxu0 %v2566
  %2870 = vmatpush.bf16.msra.mxu0 %v2565
  %2871 = vmatpush.bf16.msra.mxu0 %v2564
  %2872 = vmatpush.bf16.msra.mxu0 %v2563
  %2873 = vmatpush.bf16.msra.mxu0 %v2562
  %2874 = vmatmul.bf16.gmra.mxu0 %v1977
  %v2875 = vpop.f32.mrf.mxu0
  %v2876 = vadd.f32 %v2862, %v2875
  %v2877 = vpop.f32.mrf.mxu0
  %v2878 = vadd.f32 %v2864, %v2877
  %2879 = vdwg.mxu0
  %2880 = vmatpush.bf16.msra.mxu0 %v2577
  %2881 = vmatpush.bf16.msra.mxu0 %v2576
  %2882 = vmatpush.bf16.msra.mxu0 %v2575
  %2883 = vmatpush.bf16.msra.mxu0 %v2574
  %2884 = vmatpush.bf16.msra.mxu0 %v2573
  %2885 = vmatpush.bf16.msra.mxu0 %v2572
  %2886 = vmatpush.bf16.msra.mxu0 %v2571
  %2887 = vmatpush.bf16.msra.mxu0 %v2570
  %2888 = vmatmul.bf16.gmra.mxu0 %v1978
  %v2889 = vpop.f32.mrf.mxu0
  %v2890 = vadd.f32 %v2876, %v2889
  %v2891 = vpop.f32.mrf.mxu0
  %v2892 = vadd.f32 %v2878, %v2891
  %2893 = vdwg.mxu0
  %2894 = vmatpush.bf16.msra.mxu0 %v2585
  %2895 = vmatpush.bf16.msra.mxu0 %v2584
  %2896 = vmatpush.bf16.msra.mxu0 %v2583
  %2897 = vmatpush.bf16.msra.mxu0 %v2582
  %2898 = vmatpush.bf16.msra.mxu0 %v2581
  %2899 = vmatpush.bf16.msra.mxu0 %v2580
  %2900 = vmatpush.bf16.msra.mxu0 %v2579
  %2901 = vmatpush.bf16.msra.mxu0 %v2578
  %2902 = vmatmul.bf16.gmra.mxu0 %v1979
  %v2903 = vpop.f32.mrf.mxu0
  %v2904 = vadd.f32 %v2890, %v2903
  %v2905 = vpop.f32.mrf.mxu0
  %v2906 = vadd.f32 %v2892, %v2905
  %2907 = vdwg.mxu0
  %2908 = vmatpush.bf16.msra.mxu0 %v2593
  %2909 = vmatpush.bf16.msra.mxu0 %v2592
  %2910 = vmatpush.bf16.msra.mxu0 %v2591
  %2911 = vmatpush.bf16.msra.mxu0 %v2590
  %2912 = vmatpush.bf16.msra.mxu0 %v2589
  %2913 = vmatpush.bf16.msra.mxu0 %v2588
  %2914 = vmatpush.bf16.msra.mxu0 %v2587
  %2915 = vmatpush.bf16.msra.mxu0 %v2586
  %2916 = vmatmul.bf16.gmra.mxu0 %v1980
  %v2917 = vpop.f32.mrf.mxu0
  %v2918 = vadd.f32 %v2904, %v2917
  %v2919 = vpop.f32.mrf.mxu0
  %v2920 = vadd.f32 %v2906, %v2919
  %2921 = vdwg.mxu0
  %2922 = vmatpush.bf16.msra.mxu0 %v2601
  %2923 = vmatpush.bf16.msra.mxu0 %v2600
  %2924 = vmatpush.bf16.msra.mxu0 %v2599
  %2925 = vmatpush.bf16.msra.mxu0 %v2598
  %2926 = vmatpush.bf16.msra.mxu0 %v2597
  %2927 = vmatpush.bf16.msra.mxu0 %v2596
  %2928 = vmatpush.bf16.msra.mxu0 %v2595
  %2929 = vmatpush.bf16.msra.mxu0 %v2594
  %2930 = vmatmul.bf16.gmra.mxu0 %v1981
  %v2931 = vpop.f32.mrf.mxu0
  %v2932 = vadd.f32 %v2918, %v2931
  %v2933 = vpop.f32.mrf.mxu0
  %v2934 = vadd.f32 %v2920, %v2933
  %2935 = vdwg.mxu0
  %2936 = vmatpush.bf16.msra.mxu0 %v2609
  %2937 = vmatpush.bf16.msra.mxu0 %v2608
  %2938 = vmatpush.bf16.msra.mxu0 %v2607
  %2939 = vmatpush.bf16.msra.mxu0 %v2606
  %2940 = vmatpush.bf16.msra.mxu0 %v2605
  %2941 = vmatpush.bf16.msra.mxu0 %v2604
  %2942 = vmatpush.bf16.msra.mxu0 %v2603
  %2943 = vmatpush.bf16.msra.mxu0 %v2602
  %2944 = vmatmul.bf16.gmra.mxu0 %v1982
  %v2945 = vpop.f32.mrf.mxu0
  %v2946 = vadd.f32 %v2932, %v2945
  %v2947 = vpop.f32.mrf.mxu0
  %v2948 = vadd.f32 %v2934, %v2947
  %2949 = vdwg.mxu0
  %2950 = vmatpush.bf16.msra.mxu0 %v2617
  %2951 = vmatpush.bf16.msra.mxu0 %v2616
  %2952 = vmatpush.bf16.msra.mxu0 %v2615
  %2953 = vmatpush.bf16.msra.mxu0 %v2614
  %2954 = vmatpush.bf16.msra.mxu0 %v2613
  %2955 = vmatpush.bf16.msra.mxu0 %v2612
  %2956 = vmatpush.bf16.msra.mxu0 %v2611
  %2957 = vmatpush.bf16.msra.mxu0 %v2610
  %2958 = vmatmul.bf16.gmra.mxu0 %v1983
  %v2959 = vpop.f32.mrf.mxu0
  %v2960 = vadd.f32 %v2946, %v2959
  %v2961 = vpop.f32.mrf.mxu0
  %v2962 = vadd.f32 %v2948, %v2961
  %2963 = vdwg.mxu0
  %2964 = vmatpush.bf16.msra.mxu0 %v2625
  %2965 = vmatpush.bf16.msra.mxu0 %v2624
  %2966 = vmatpush.bf16.msra.mxu0 %v2623
  %2967 = vmatpush.bf16.msra.mxu0 %v2622
  %2968 = vmatpush.bf16.msra.mxu0 %v2621
  %2969 = vmatpush.bf16.msra.mxu0 %v2620
  %2970 = vmatpush.bf16.msra.mxu0 %v2619
  %2971 = vmatpush.bf16.msra.mxu0 %v2618
  %2972 = vmatmul.bf16.gmra.mxu0 %v1984
  %v2973 = vpop.f32.mrf.mxu0
  %v2974 = vadd.f32 %v2960, %v2973
  %v2975 = vpop.f32.mrf.mxu0
  %v2976 = vadd.f32 %v2962, %v2975
  %2977 = vdwg.mxu0
  %v2978 = vadd.f32 %v2974, %v1207
  %v2979 = vadd.f32 %v2976, %v1208
  %v2980 = vsel %vm160, %v2978, 0.0
  %2981 = vadd.xlane.f32.xlu0 %v2980
  %v2982 = vpop.xlane.xlu0 %2981
  %v2983 = vsel %vm160, %v2979, 0.0
  %2984 = vadd.xlane.f32.xlu0 %v2983
  %v2985 = vpop.xlane.xlu0 %2984
  %v2986 = vmul.f32 %v2982, %v1164
  %v2987 = vmul.f32 %v2985, %v1164
  %v2988 = vsub.f32 %v2978, %v2986
  %v2989 = vsub.f32 %v2979, %v2987
  %v2990 = vmul.f32 %v2988, %v2988
  %v2991 = vmul.f32 %v2989, %v2989
  %v2992 = vsel %vm160, %v2990, 0.0
  %2993 = vadd.xlane.f32.xlu0 %v2992
  %v2994 = vpop.xlane.xlu0 %2993
  %v2995 = vsel %vm160, %v2991, 0.0
  %2996 = vadd.xlane.f32.xlu0 %v2995
  %v2997 = vpop.xlane.xlu0 %2996
  %v2998 = vmul.f32 %v2994, %v1164
  %v2999 = vmul.f32 %v2997, %v1164
  %v3000 = vadd.f32 %v2998, 1e-05
  %v3001 = vadd.f32 %v2999, 1e-05
  %v3002 = vrsqrt.pop %v3000
  %v3003 = vmul.f32 %v3002, %v3000
  %v3004 = vmul.f32 %v3003, %v3002
  %v3005 = vmul.f32 0.5, %v3004
  %v3006 = vsub.f32 1.5, %v3005
  %v3007 = vmul.f32 %v3002, %v3006
  %vm3008 = vweird.f32 %v3000
  %vm3009 = vweird.f32 %v3002
  %vm3010 = vmor %vm3008, %vm3009
  %v3011 = vsel %vm3010, %v3002, %v3007
  %v3012 = vrsqrt.pop %v3001
  %v3013 = vmul.f32 %v3012, %v3001
  %v3014 = vmul.f32 %v3013, %v3012
  %v3015 = vmul.f32 0.5, %v3014
  %v3016 = vsub.f32 1.5, %v3015
  %v3017 = vmul.f32 %v3012, %v3016
  %vm3018 = vweird.f32 %v3001
  %vm3019 = vweird.f32 %v3012
  %vm3020 = vmor %vm3018, %vm3019
  %v3021 = vsel %vm3020, %v3012, %v3017
  %v3022 = vmul.f32 %v2988, %v3011
  %v3023 = vmul.f32 %v2989, %v3021
  %v3024 = vperm.slane %v34, 0
  %v3025 = vmul.f32 %v3022, %v3024
  %v3026 = vmul.f32 %v3023, %v3024
  %v3027 = vperm.slane %v34, 1
  %v3028 = vadd.f32 %v3025, %v3027
  %v3029 = vadd.f32 %v3026, %v3027
  %v3030 = vld [vmem:[%s1] sm:$0x1]
  %v3031 = vld [vmem:[%s1 + $0x1] sm:$0x1]
  %s3032 = scalar_lea.vmem %s4, 64
  %v3033 = vld [vmem:[%s3032] sm:$0xf]
  %v3034 = vld [vmem:[%s3032 + $0x4] sm:$0xf]
  %v3035 = vld [vmem:[%s3032 + $0x8] sm:$0xf]
  %v3036 = vld [vmem:[%s3032 + $0xc] sm:$0xf]
  %v3037 = vperm.slane %v34, 2
  %3039 = vst [vmem:[#allocation1] ss:$9 sm:$0xff] %v3030
  %v3040 = vld [vmem:[#allocation1] sm:$0xff]
  %3043 = vst [vmem:[#allocation1] ss:$9 sm:$0xff] %v3031
  %v3044 = vld [vmem:[#allocation1] sm:$0xff]
  %v3046 = vunpack.c.l.b16 %v3040
  %v3047 = vunpack.c.l.b16 %v3044
  %v3048 = vrot.slane %v3047, 7
  %vm3049 = vcmask 1041409
  %v3050 = vsel %vm3049, %v3048, %v3046
  %v3051 = vpack.c.b16 %v3050, %v3050
  %v3056 = vunpack.c.l.b16 %v3033
  %v3057 = vunpack.c.l.b16 %v3034
  %v3058 = vunpack.c.l.b16 %v3035
  %v3059 = vunpack.c.l.b16 %v3036
  %v3060 = vpack.c.b16 %v3057, %v3056
  %v3061 = vpack.c.b16 %v3059, %v3058
  %v3065 = vsel %vm160, %v3051, 0
  %3067 = vmatpush.bf16.msra.mxu0 0
  %3068 = vmatpush.bf16.msra.mxu0 0
  %3069 = vmatpush.bf16.msra.mxu0 0
  %3070 = vmatpush.bf16.msra.mxu0 0
  %3071 = vmatpush.bf16.msra.mxu0 0
  %3072 = vmatpush.bf16.msra.mxu0 0
  %3073 = vmatpush.bf16.msra.mxu0 %v3061
  %3074 = vmatpush.bf16.msra.mxu0 %v3060
  %3075 = vmatmul.bf16.gmra.mxu0 %v3065
  %v3076 = vpop.f32.mrf.mxu0
  %v3077 = vadd.f32 %v3037, %v3076
  %v3078 = vpop.f32.mrf.mxu0
  %3079 = vdwg.mxu0
  %v3080 = vpack.c.bf16 %v3077, %v3077
  %s3081 = scalar_lea.vmem %s4, 16
  %v3082 = vld [vmem:[%s3081] sm:$0xf]
  %v3083 = vld [vmem:[%s3081 + $0x4] sm:$0xf]
  %v3084 = vld [vmem:[%s3081 + $0x8] sm:$0xf]
  %v3085 = vld [vmem:[%s3081 + $0xc] sm:$0xf]
  %v3086 = vperm.slane %v34, 3
  %v3091 = vunpack.c.l.b16 %v3082
  %v3092 = vunpack.c.l.b16 %v3083
  %v3093 = vunpack.c.l.b16 %v3084
  %v3094 = vunpack.c.l.b16 %v3085
  %v3095 = vpack.c.b16 %v3092, %v3091
  %v3096 = vpack.c.b16 %v3094, %v3093
  %v3100 = vsel %vm160, %v3080, 0
  %3102 = vmatpush.bf16.msra.mxu0 0
  %3103 = vmatpush.bf16.msra.mxu0 0
  %3104 = vmatpush.bf16.msra.mxu0 0
  %3105 = vmatpush.bf16.msra.mxu0 0
  %3106 = vmatpush.bf16.msra.mxu0 0
  %3107 = vmatpush.bf16.msra.mxu0 0
  %3108 = vmatpush.bf16.msra.mxu0 %v3096
  %3109 = vmatpush.bf16.msra.mxu0 %v3095
  %3110 = vmatmul.bf16.gmra.mxu0 %v3100
  %v3111 = vpop.f32.mrf.mxu0
  %v3112 = vadd.f32 %v3086, %v3111
  %v3113 = vpop.f32.mrf.mxu0
  %3114 = vdwg.mxu0
  %v3115 = vpack.c.bf16 %v3112, %v3112
  %s3116 = scalar_lea.vmem %s4, 32
  %v3117 = vld [vmem:[%s3116] sm:$0xf]
  %v3118 = vld [vmem:[%s3116 + $0x4] sm:$0xf]
  %v3119 = vld [vmem:[%s3116 + $0x8] sm:$0xf]
  %v3120 = vld [vmem:[%s3116 + $0xc] sm:$0xf]
  %v3121 = vperm.slane %v34, 4
  %v3126 = vunpack.c.l.b16 %v3117
  %v3127 = vunpack.c.l.b16 %v3118
  %v3128 = vunpack.c.l.b16 %v3119
  %v3129 = vunpack.c.l.b16 %v3120
  %v3130 = vpack.c.b16 %v3127, %v3126
  %v3131 = vpack.c.b16 %v3129, %v3128
  %v3135 = vsel %vm160, %v3115, 0
  %3137 = vmatpush.bf16.msra.mxu0 0
  %3138 = vmatpush.bf16.msra.mxu0 0
  %3139 = vmatpush.bf16.msra.mxu0 0
  %3140 = vmatpush.bf16.msra.mxu0 0
  %3141 = vmatpush.bf16.msra.mxu0 0
  %3142 = vmatpush.bf16.msra.mxu0 0
  %3143 = vmatpush.bf16.msra.mxu0 %v3131
  %3144 = vmatpush.bf16.msra.mxu0 %v3130
  %3145 = vmatmul.bf16.gmra.mxu0 %v3135
  %v3146 = vpop.f32.mrf.mxu0
  %v3147 = vadd.f32 %v3121, %v3146
  %v3148 = vpop.f32.mrf.mxu0
  %3149 = vdwg.mxu0
  %v3150 = vadd.f32 %v3147, %v3077
  %vm3151 = vcmask 254976
  %v3152 = vsel %vm3151, %v3150, 0.0
  %3153 = vadd.xlane.f32.xlu0 %v3152
  %v3154 = vpop.xlane.xlu0 %3153
  %v3155 = vmul.f32 %v3154, %v1164
  %v3156 = vsub.f32 %v3150, %v3155
  %v3157 = vmul.f32 %v3156, %v3156
  %v3158 = vsel %vm3151, %v3157, 0.0
  %3159 = vadd.xlane.f32.xlu0 %v3158
  %v3160 = vpop.xlane.xlu0 %3159
  %v3161 = vmul.f32 %v3160, %v1164
  %v3162 = vadd.f32 %v3161, 1e-05
  %v3163 = vrsqrt.pop %v3162
  %v3164 = vmul.f32 %v3163, %v3162
  %v3165 = vmul.f32 %v3164, %v3163
  %v3166 = vmul.f32 0.5, %v3165
  %v3167 = vsub.f32 1.5, %v3166
  %v3168 = vmul.f32 %v3163, %v3167
  %vm3169 = vweird.f32 %v3162
  %vm3170 = vweird.f32 %v3163
  %vm3171 = vmor %vm3169, %vm3170
  %v3172 = vsel %vm3171, %v3163, %v3168
  %v3173 = vmul.f32 %v3156, %v3172
  %v3174 = vperm.slane %v34, 5
  %v3175 = vmul.f32 %v3173, %v3174
  %v3176 = vperm.slane %v34, 6
  %v3177 = vadd.f32 %v3175, %v3176
  %s3178 = scalar_lea.vmem %s4, 48
  %v3179 = vld [vmem:[%s3178] sm:$0xf]
  %v3180 = vld [vmem:[%s3178 + $0x4] sm:$0xf]
  %v3181 = vld [vmem:[%s3178 + $0x8] sm:$0xf]
  %v3182 = vld [vmem:[%s3178 + $0xc] sm:$0xf]
  %v3183 = vpack.c.bf16 %v3177, %v3177
  %v3184 = vpack.c.bf16 %v3029, %v3028
  %s3185 = scalar_lea.vmem %s3, 192
  %v3186 = vld [vmem:[%s3185] sm:$0xf]
  %v3187 = vld [vmem:[%s3185 + $0x4] sm:$0xf]
  %v3188 = vld [vmem:[%s3185 + $0x8] sm:$0xf]
  %v3189 = vld [vmem:[%s3185 + $0xc] sm:$0xf]
  %s3190 = scalar_lea.vmem %s3, 256
  %v3191 = vld [vmem:[%s3190] sm:$0xf]
  %v3192 = vld [vmem:[%s3190 + $0x4] sm:$0xf]
  %v3193 = vld [vmem:[%s3190 + $0x8] sm:$0xf]
  %v3194 = vld [vmem:[%s3190 + $0xc] sm:$0xf]
  %s3195 = scalar_lea.vmem %s3, 320
  %v3196 = vld [vmem:[%s3195] sm:$0xf]
  %v3197 = vld [vmem:[%s3195 + $0x4] sm:$0xf]
  %v3198 = vld [vmem:[%s3195 + $0x8] sm:$0xf]
  %v3199 = vld [vmem:[%s3195 + $0xc] sm:$0xf]
  %v3200 = vperm.slane %v34, 7
  %v3205 = vunpack.c.l.b16 %v3186
  %v3206 = vunpack.c.l.b16 %v3187
  %v3207 = vunpack.c.l.b16 %v3188
  %v3208 = vunpack.c.l.b16 %v3189
  %v3209 = vpack.c.b16 %v3206, %v3205
  %v3210 = vpack.c.b16 %v3208, %v3207
  %v3214 = vsel %vm160, %v3183, 0
  %3216 = vmatpush.bf16.msra.mxu0 0
  %3217 = vmatpush.bf16.msra.mxu0 0
  %3218 = vmatpush.bf16.msra.mxu0 0
  %3219 = vmatpush.bf16.msra.mxu0 0
  %3220 = vmatpush.bf16.msra.mxu0 0
  %3221 = vmatpush.bf16.msra.mxu0 0
  %3222 = vmatpush.bf16.msra.mxu0 %v3210
  %3223 = vmatpush.bf16.msra.mxu0 %v3209
  %3224 = vmatmul.bf16.gmra.mxu0 %v3214
  %v3225 = vpop.f32.mrf.mxu0
  %v3226 = vadd.f32 %v3200, %v3225
  %v3227 = vpop.f32.mrf.mxu0
  %3228 = vdwg.mxu0
  %v3230 = vrot.slane %v3226, 1
  %v3232 = vperm.slane %v35, 0
  %v3237 = vunpack.c.l.b16 %v3191
  %v3238 = vunpack.c.l.b16 %v3192
  %v3239 = vunpack.c.l.b16 %v3193
  %v3240 = vunpack.c.l.b16 %v3194
  %v3241 = vpack.c.b16 %v3238, %v3237
  %v3242 = vpack.c.b16 %v3240, %v3239
  %v3246 = vsel %vm160, %v3184, 0
  %3248 = vmatpush.bf16.msra.mxu0 0
  %3249 = vmatpush.bf16.msra.mxu0 0
  %3250 = vmatpush.bf16.msra.mxu0 0
  %3251 = vmatpush.bf16.msra.mxu0 0
  %3252 = vmatpush.bf16.msra.mxu0 0
  %3253 = vmatpush.bf16.msra.mxu0 0
  %3254 = vmatpush.bf16.msra.mxu0 %v3242
  %3255 = vmatpush.bf16.msra.mxu0 %v3241
  %3256 = vmatmul.bf16.gmra.mxu0 %v3246
  %v3257 = vpop.f32.mrf.mxu0
  %v3258 = vadd.f32 %v3232, %v3257
  %v3259 = vpop.f32.mrf.mxu0
  %v3260 = vadd.f32 %v3232, %v3259
  %3261 = vdwg.mxu0
  %v3262 = vperm.slane %v35, 1
  %v3267 = vunpack.c.l.b16 %v3196
  %v3268 = vunpack.c.l.b16 %v3197
  %v3269 = vunpack.c.l.b16 %v3198
  %v3270 = vunpack.c.l.b16 %v3199
  %v3271 = vpack.c.b16 %v3268, %v3267
  %v3272 = vpack.c.b16 %v3270, %v3269
  %3275 = vmatpush.bf16.msra.mxu0 0
  %3276 = vmatpush.bf16.msra.mxu0 0
  %3277 = vmatpush.bf16.msra.mxu0 0
  %3278 = vmatpush.bf16.msra.mxu0 0
  %3279 = vmatpush.bf16.msra.mxu0 0
  %3280 = vmatpush.bf16.msra.mxu0 0
  %3281 = vmatpush.bf16.msra.mxu0 %v3272
  %3282 = vmatpush.bf16.msra.mxu0 %v3271
  %3283 = vmatmul.bf16.gmra.mxu0 %v3246
  %v3284 = vpop.f32.mrf.mxu0
  %v3285 = vadd.f32 %v3262, %v3284
  %v3286 = vpop.f32.mrf.mxu0
  %v3287 = vadd.f32 %v3262, %v3286
  %3288 = vdwg.mxu0
  %v3289 = vpack.c.bf16 %v3226, %v3226
  %v3290 = vpack.c.bf16 %v3230, %v3230
  %v3291 = vpack.c.bf16 %v3258, %v3258
  %v3292 = vpack.c.bf16 %v3260, %v3260
  %v3294 = vsel %vm236, %v3289, 0
  %v3297 = vsel %vm236, %v3291, 0
  %3299 = vmatpush.bf16.xpose.msra.mxu0 0
  %3300 = vmatpush.bf16.xpose.msra.mxu0 0
  %3301 = vmatpush.bf16.xpose.msra.mxu0 0
  %3302 = vmatpush.bf16.xpose.msra.mxu0 0
  %3303 = vmatpush.bf16.xpose.msra.mxu0 0
  %3304 = vmatpush.bf16.xpose.msra.mxu0 0
  %3305 = vmatpush.bf16.xpose.msra.mxu0 0
  %3306 = vmatpush.bf16.xpose.msra.mxu0 %v3297
  %3307 = vmatmul.bf16.gmra.mxu0 %v3294
  %v3308 = vpop.f32.mrf.mxu0
  %v3309 = vadd.f32 0.0, %v3308
  %v3310 = vpop.f32.mrf.mxu0
  %3311 = vdwg.mxu0
  %v3313 = vsel %vm236, %v3290, 0
  %v3316 = vsel %vm236, %v3292, 0
  %3318 = vmatpush.bf16.xpose.msra.mxu0 0
  %3319 = vmatpush.bf16.xpose.msra.mxu0 0
  %3320 = vmatpush.bf16.xpose.msra.mxu0 0
  %3321 = vmatpush.bf16.xpose.msra.mxu0 0
  %3322 = vmatpush.bf16.xpose.msra.mxu0 0
  %3323 = vmatpush.bf16.xpose.msra.mxu0 0
  %3324 = vmatpush.bf16.xpose.msra.mxu0 0
  %3325 = vmatpush.bf16.xpose.msra.mxu0 %v3316
  %3326 = vmatmul.bf16.gmra.mxu0 %v3313
  %v3327 = vpop.f32.mrf.mxu0
  %v3328 = vadd.f32 0.0, %v3327
  %v3329 = vpop.f32.mrf.mxu0
  %3330 = vdwg.mxu0
  %v3331 = vmul.f32 %v3309, 0.35355338
  %v3332 = vmul.f32 %v3328, 0.35355338
  %vm3333 = vcmask 57344
  %v3334 = vsel %vm3333, %v3331, -inf
  %3335 = vmax.xlane.f32.xlu0 %v3334
  %v3336 = vpop.xlane.xlu0 %3335
  %v3337 = vsel %vm3333, %v3332, -inf
  %3338 = vmax.xlane.f32.xlu0 %v3337
  %v3339 = vpop.xlane.xlu0 %3338
  %v3340 = vsub.f32 %v3331, %v3336
  %v3341 = vsub.f32 %v3332, %v3339
  %v3342 = vmul.f32 %v3340, 1.442695
  %v3343 = vpow.pop %v3342
  %v3344 = vmul.f32 %v3341, 1.442695
  %v3345 = vpow.pop %v3344
  %v3346 = vsel %vm3333, %v3343, 0.0
  %3347 = vadd.xlane.f32.xlu0 %v3346
  %v3348 = vpop.xlane.xlu0 %3347
  %v3349 = vsel %vm3333, %v3345, 0.0
  %3350 = vadd.xlane.f32.xlu0 %v3349
  %v3351 = vpop.xlane.xlu0 %3350
  %v3352 = vrcp.pop %v3348
  %v3353 = vmul.f32 %v3348, %v3352
  %v3354 = vsub.f32 1.0, %v3353
  %v3355 = vmul.f32 %v3352, %v3354
  %v3356 = vadd.f32 %v3352, %v3355
  %vm3357 = vweird.f32 %v3348
  %vm3358 = vweird.f32 %v3352
  %vm3359 = vmor %vm3357, %vm3358
  %v3360 = vsel %vm3359, %v3352, %v3356
  %v3361 = vand.u32 2147483647, %v3348
  %vm3362 = vcmp.eq.f32.partialorder %v3361, 8.507059e+37
  %v3363 = vand.u32 %v3348, 2147483648
  %v3364 = vor.u32 1.1754944e-38, %v3363
  %v3365 = vsel %vm3362, %v3364, %v3360
  %v3366 = vmul.f32 1.0, %v3365
  %v3367 = vrcp.pop %v3351
  %v3368 = vmul.f32 %v3351, %v3367
  %v3369 = vsub.f32 1.0, %v3368
  %v3370 = vmul.f32 %v3367, %v3369
  %v3371 = vadd.f32 %v3367, %v3370
  %vm3372 = vweird.f32 %v3351
  %vm3373 = vweird.f32 %v3367
  %vm3374 = vmor %vm3372, %vm3373
  %v3375 = vsel %vm3374, %v3367, %v3371
  %v3376 = vand.u32 2147483647, %v3351
  %vm3377 = vcmp.eq.f32.partialorder %v3376, 8.507059e+37
  %v3378 = vand.u32 %v3351, 2147483648
  %v3379 = vor.u32 1.1754944e-38, %v3378
  %v3380 = vsel %vm3377, %v3379, %v3375
  %v3381 = vmul.f32 1.0, %v3380
  %v3382 = vmul.f32 %v3343, %v3366
  %v3383 = vmul.f32 %v3345, %v3381
  %v3384 = vpack.c.bf16 %v3382, %v3382
  %v3385 = vpack.c.bf16 %v3383, %v3383
  %v3386 = vpack.c.bf16 %v3285, %v3285
  %v3387 = vpack.c.bf16 %v3287, %v3287
  %v3389 = vsel %vm236, %v3384, 0
  %v3392 = vsel %vm334, %v3386, 0
  %3394 = vmatpush.bf16.msra.mxu0 0
  %3395 = vmatpush.bf16.msra.mxu0 0
  %3396 = vmatpush.bf16.msra.mxu0 0
  %3397 = vmatpush.bf16.msra.mxu0 0
  %3398 = vmatpush.bf16.msra.mxu0 0
  %3399 = vmatpush.bf16.msra.mxu0 0
  %3400 = vmatpush.bf16.msra.mxu0 0
  %3401 = vmatpush.bf16.msra.mxu0 %v3392
  %3402 = vmatmul.bf16.gmra.mxu0 %v3389
  %v3403 = vpop.f32.mrf.mxu0
  %v3404 = vadd.f32 0.0, %v3403
  %v3405 = vpop.f32.mrf.mxu0
  %3406 = vdwg.mxu0
  %v3408 = vsel %vm236, %v3385, 0
  %v3411 = vsel %vm334, %v3387, 0
  %3413 = vmatpush.bf16.msra.mxu0 0
  %3414 = vmatpush.bf16.msra.mxu0 0
  %3415 = vmatpush.bf16.msra.mxu0 0
  %3416 = vmatpush.bf16.msra.mxu0 0
  %3417 = vmatpush.bf16.msra.mxu0 0
  %3418 = vmatpush.bf16.msra.mxu0 0
  %3419 = vmatpush.bf16.msra.mxu0 0
  %3420 = vmatpush.bf16.msra.mxu0 %v3411
  %3421 = vmatmul.bf16.gmra.mxu0 %v3408
  %v3422 = vpop.f32.mrf.mxu0
  %v3423 = vadd.f32 0.0, %v3422
  %v3424 = vpop.f32.mrf.mxu0
  %3425 = vdwg.mxu0
  %s3426 = scalar_lea.vmem %s3, 208
  %v3427 = vld [vmem:[%s3426] sm:$0xf]
  %v3428 = vld [vmem:[%s3426 + $0x4] sm:$0xf]
  %v3429 = vld [vmem:[%s3426 + $0x8] sm:$0xf]
  %v3430 = vld [vmem:[%s3426 + $0xc] sm:$0xf]
  %s3431 = scalar_lea.vmem %s3, 272
  %v3432 = vld [vmem:[%s3431] sm:$0xf]
  %v3433 = vld [vmem:[%s3431 + $0x4] sm:$0xf]
  %v3434 = vld [vmem:[%s3431 + $0x8] sm:$0xf]
  %v3435 = vld [vmem:[%s3431 + $0xc] sm:$0xf]
  %s3436 = scalar_lea.vmem %s3, 336
  %v3437 = vld [vmem:[%s3436] sm:$0xf]
  %v3438 = vld [vmem:[%s3436 + $0x4] sm:$0xf]
  %v3439 = vld [vmem:[%s3436 + $0x8] sm:$0xf]
  %v3440 = vld [vmem:[%s3436 + $0xc] sm:$0xf]
  %v3445 = vunpack.c.l.b16 %v3427
  %v3446 = vunpack.c.l.b16 %v3428
  %v3447 = vunpack.c.l.b16 %v3429
  %v3448 = vunpack.c.l.b16 %v3430
  %v3449 = vpack.c.b16 %v3446, %v3445
  %v3450 = vpack.c.b16 %v3448, %v3447
  %3454 = vrot.lane.b32.xlu0 %v3200, 120
  %v3455 = vpop.permute.xlu0 %3454
  %3457 = vmatpush.bf16.msra.mxu0 0
  %3458 = vmatpush.bf16.msra.mxu0 0
  %3459 = vmatpush.bf16.msra.mxu0 0
  %3460 = vmatpush.bf16.msra.mxu0 0
  %3461 = vmatpush.bf16.msra.mxu0 0
  %3462 = vmatpush.bf16.msra.mxu0 0
  %3463 = vmatpush.bf16.msra.mxu0 %v3450
  %3464 = vmatpush.bf16.msra.mxu0 %v3449
  %3465 = vmatmul.bf16.gmra.mxu0 %v3214
  %v3466 = vpop.f32.mrf.mxu0
  %v3467 = vadd.f32 %v3455, %v3466
  %v3468 = vpop.f32.mrf.mxu0
  %3469 = vdwg.mxu0
  %v3471 = vrot.slane %v3467, 1
  %v3477 = vunpack.c.l.b16 %v3432
  %v3478 = vunpack.c.l.b16 %v3433
  %v3479 = vunpack.c.l.b16 %v3434
  %v3480 = vunpack.c.l.b16 %v3435
  %v3481 = vpack.c.b16 %v3478, %v3477
  %v3482 = vpack.c.b16 %v3480, %v3479
  %3486 = vrot.lane.b32.xlu0 %v3232, 120
  %v3487 = vpop.permute.xlu0 %3486
  %3489 = vmatpush.bf16.msra.mxu0 0
  %3490 = vmatpush.bf16.msra.mxu0 0
  %3491 = vmatpush.bf16.msra.mxu0 0
  %3492 = vmatpush.bf16.msra.mxu0 0
  %3493 = vmatpush.bf16.msra.mxu0 0
  %3494 = vmatpush.bf16.msra.mxu0 0
  %3495 = vmatpush.bf16.msra.mxu0 %v3482
  %3496 = vmatpush.bf16.msra.mxu0 %v3481
  %3497 = vmatmul.bf16.gmra.mxu0 %v3246
  %v3498 = vpop.f32.mrf.mxu0
  %v3499 = vadd.f32 %v3487, %v3498
  %v3500 = vpop.f32.mrf.mxu0
  %v3501 = vadd.f32 %v3487, %v3500
  %3502 = vdwg.mxu0
  %v3507 = vunpack.c.l.b16 %v3437
  %v3508 = vunpack.c.l.b16 %v3438
  %v3509 = vunpack.c.l.b16 %v3439
  %v3510 = vunpack.c.l.b16 %v3440
  %v3511 = vpack.c.b16 %v3508, %v3507
  %v3512 = vpack.c.b16 %v3510, %v3509
  %3516 = vrot.lane.b32.xlu0 %v3262, 120
  %v3517 = vpop.permute.xlu0 %3516
  %3519 = vmatpush.bf16.msra.mxu0 0
  %3520 = vmatpush.bf16.msra.mxu0 0
  %3521 = vmatpush.bf16.msra.mxu0 0
  %3522 = vmatpush.bf16.msra.mxu0 0
  %3523 = vmatpush.bf16.msra.mxu0 0
  %3524 = vmatpush.bf16.msra.mxu0 0
  %3525 = vmatpush.bf16.msra.mxu0 %v3512
  %3526 = vmatpush.bf16.msra.mxu0 %v3511
  %3527 = vmatmul.bf16.gmra.mxu0 %v3246
  %v3528 = vpop.f32.mrf.mxu0
  %v3529 = vadd.f32 %v3517, %v3528
  %v3530 = vpop.f32.mrf.mxu0
  %v3531 = vadd.f32 %v3517, %v3530
  %3532 = vdwg.mxu0
  %v3533 = vpack.c.bf16 %v3467, %v3467
  %v3534 = vpack.c.bf16 %v3471, %v3471
  %v3535 = vpack.c.bf16 %v3499, %v3499
  %v3536 = vpack.c.bf16 %v3501, %v3501
  %v3538 = vsel %vm236, %v3533, 0
  %v3541 = vsel %vm236, %v3535, 0
  %3543 = vmatpush.bf16.xpose.msra.mxu0 0
  %3544 = vmatpush.bf16.xpose.msra.mxu0 0
  %3545 = vmatpush.bf16.xpose.msra.mxu0 0
  %3546 = vmatpush.bf16.xpose.msra.mxu0 0
  %3547 = vmatpush.bf16.xpose.msra.mxu0 0
  %3548 = vmatpush.bf16.xpose.msra.mxu0 0
  %3549 = vmatpush.bf16.xpose.msra.mxu0 0
  %3550 = vmatpush.bf16.xpose.msra.mxu0 %v3541
  %3551 = vmatmul.bf16.gmra.mxu0 %v3538
  %v3552 = vpop.f32.mrf.mxu0
  %v3553 = vadd.f32 0.0, %v3552
  %v3554 = vpop.f32.mrf.mxu0
  %3555 = vdwg.mxu0
  %v3557 = vsel %vm236, %v3534, 0
  %v3560 = vsel %vm236, %v3536, 0
  %3562 = vmatpush.bf16.xpose.msra.mxu0 0
  %3563 = vmatpush.bf16.xpose.msra.mxu0 0
  %3564 = vmatpush.bf16.xpose.msra.mxu0 0
  %3565 = vmatpush.bf16.xpose.msra.mxu0 0
  %3566 = vmatpush.bf16.xpose.msra.mxu0 0
  %3567 = vmatpush.bf16.xpose.msra.mxu0 0
  %3568 = vmatpush.bf16.xpose.msra.mxu0 0
  %3569 = vmatpush.bf16.xpose.msra.mxu0 %v3560
  %3570 = vmatmul.bf16.gmra.mxu0 %v3557
  %v3571 = vpop.f32.mrf.mxu0
  %v3572 = vadd.f32 0.0, %v3571
  %v3573 = vpop.f32.mrf.mxu0
  %3574 = vdwg.mxu0
  %v3575 = vmul.f32 %v3553, 0.35355338
  %v3576 = vmul.f32 %v3572, 0.35355338
  %v3577 = vsel %vm3333, %v3575, -inf
  %3578 = vmax.xlane.f32.xlu0 %v3577
  %v3579 = vpop.xlane.xlu0 %3578
  %v3580 = vsel %vm3333, %v3576, -inf
  %3581 = vmax.xlane.f32.xlu0 %v3580
  %v3582 = vpop.xlane.xlu0 %3581
  %v3583 = vsub.f32 %v3575, %v3579
  %v3584 = vsub.f32 %v3576, %v3582
  %v3585 = vmul.f32 %v3583, 1.442695
  %v3586 = vpow.pop %v3585
  %v3587 = vmul.f32 %v3584, 1.442695
  %v3588 = vpow.pop %v3587
  %v3589 = vsel %vm3333, %v3586, 0.0
  %3590 = vadd.xlane.f32.xlu0 %v3589
  %v3591 = vpop.xlane.xlu0 %3590
  %v3592 = vsel %vm3333, %v3588, 0.0
  %3593 = vadd.xlane.f32.xlu0 %v3592
  %v3594 = vpop.xlane.xlu0 %3593
  %v3595 = vrcp.pop %v3591
  %v3596 = vmul.f32 %v3591, %v3595
  %v3597 = vsub.f32 1.0, %v3596
  %v3598 = vmul.f32 %v3595, %v3597
  %v3599 = vadd.f32 %v3595, %v3598
  %vm3600 = vweird.f32 %v3591
  %vm3601 = vweird.f32 %v3595
  %vm3602 = vmor %vm3600, %vm3601
  %v3603 = vsel %vm3602, %v3595, %v3599
  %v3604 = vand.u32 2147483647, %v3591
  %vm3605 = vcmp.eq.f32.partialorder %v3604, 8.507059e+37
  %v3606 = vand.u32 %v3591, 2147483648
  %v3607 = vor.u32 1.1754944e-38, %v3606
  %v3608 = vsel %vm3605, %v3607, %v3603
  %v3609 = vmul.f32 1.0, %v3608
  %v3610 = vrcp.pop %v3594
  %v3611 = vmul.f32 %v3594, %v3610
  %v3612 = vsub.f32 1.0, %v3611
  %v3613 = vmul.f32 %v3610, %v3612
  %v3614 = vadd.f32 %v3610, %v3613
  %vm3615 = vweird.f32 %v3594
  %vm3616 = vweird.f32 %v3610
  %vm3617 = vmor %vm3615, %vm3616
  %v3618 = vsel %vm3617, %v3610, %v3614
  %v3619 = vand.u32 2147483647, %v3594
  %vm3620 = vcmp.eq.f32.partialorder %v3619, 8.507059e+37
  %v3621 = vand.u32 %v3594, 2147483648
  %v3622 = vor.u32 1.1754944e-38, %v3621
  %v3623 = vsel %vm3620, %v3622, %v3618
  %v3624 = vmul.f32 1.0, %v3623
  %v3625 = vmul.f32 %v3586, %v3609
  %v3626 = vmul.f32 %v3588, %v3624
  %v3627 = vpack.c.bf16 %v3625, %v3625
  %v3628 = vpack.c.bf16 %v3626, %v3626
  %v3629 = vpack.c.bf16 %v3529, %v3529
  %v3630 = vpack.c.bf16 %v3531, %v3531
  %v3632 = vsel %vm236, %v3627, 0
  %v3635 = vsel %vm334, %v3629, 0
  %3637 = vmatpush.bf16.msra.mxu0 0
  %3638 = vmatpush.bf16.msra.mxu0 0
  %3639 = vmatpush.bf16.msra.mxu0 0
  %3640 = vmatpush.bf16.msra.mxu0 0
  %3641 = vmatpush.bf16.msra.mxu0 0
  %3642 = vmatpush.bf16.msra.mxu0 0
  %3643 = vmatpush.bf16.msra.mxu0 0
  %3644 = vmatpush.bf16.msra.mxu0 %v3635
  %3645 = vmatmul.bf16.gmra.mxu0 %v3632
  %v3646 = vpop.f32.mrf.mxu0
  %v3647 = vadd.f32 0.0, %v3646
  %v3648 = vpop.f32.mrf.mxu0
  %3649 = vdwg.mxu0
  %v3651 = vsel %vm236, %v3628, 0
  %v3654 = vsel %vm334, %v3630, 0
  %3656 = vmatpush.bf16.msra.mxu0 0
  %3657 = vmatpush.bf16.msra.mxu0 0
  %3658 = vmatpush.bf16.msra.mxu0 0
  %3659 = vmatpush.bf16.msra.mxu0 0
  %3660 = vmatpush.bf16.msra.mxu0 0
  %3661 = vmatpush.bf16.msra.mxu0 0
  %3662 = vmatpush.bf16.msra.mxu0 0
  %3663 = vmatpush.bf16.msra.mxu0 %v3654
  %3664 = vmatmul.bf16.gmra.mxu0 %v3651
  %v3665 = vpop.f32.mrf.mxu0
  %v3666 = vadd.f32 0.0, %v3665
  %v3667 = vpop.f32.mrf.mxu0
  %3668 = vdwg.mxu0
  %s3669 = scalar_lea.vmem %s3, 224
  %v3670 = vld [vmem:[%s3669] sm:$0xf]
  %v3671 = vld [vmem:[%s3669 + $0x4] sm:$0xf]
  %v3672 = vld [vmem:[%s3669 + $0x8] sm:$0xf]
  %v3673 = vld [vmem:[%s3669 + $0xc] sm:$0xf]
  %s3674 = scalar_lea.vmem %s3, 288
  %v3675 = vld [vmem:[%s3674] sm:$0xf]
  %v3676 = vld [vmem:[%s3674 + $0x4] sm:$0xf]
  %v3677 = vld [vmem:[%s3674 + $0x8] sm:$0xf]
  %v3678 = vld [vmem:[%s3674 + $0xc] sm:$0xf]
  %s3679 = scalar_lea.vmem %s3, 352
  %v3680 = vld [vmem:[%s3679] sm:$0xf]
  %v3681 = vld [vmem:[%s3679 + $0x4] sm:$0xf]
  %v3682 = vld [vmem:[%s3679 + $0x8] sm:$0xf]
  %v3683 = vld [vmem:[%s3679 + $0xc] sm:$0xf]
  %v3688 = vunpack.c.l.b16 %v3670
  %v3689 = vunpack.c.l.b16 %v3671
  %v3690 = vunpack.c.l.b16 %v3672
  %v3691 = vunpack.c.l.b16 %v3673
  %v3692 = vpack.c.b16 %v3689, %v3688
  %v3693 = vpack.c.b16 %v3691, %v3690
  %3696 = vrot.lane.b32.xlu0 %v3200, 112
  %v3697 = vpop.permute.xlu0 %3696
  %3699 = vmatpush.bf16.msra.mxu0 0
  %3700 = vmatpush.bf16.msra.mxu0 0
  %3701 = vmatpush.bf16.msra.mxu0 0
  %3702 = vmatpush.bf16.msra.mxu0 0
  %3703 = vmatpush.bf16.msra.mxu0 0
  %3704 = vmatpush.bf16.msra.mxu0 0
  %3705 = vmatpush.bf16.msra.mxu0 %v3693
  %3706 = vmatpush.bf16.msra.mxu0 %v3692
  %3707 = vmatmul.bf16.gmra.mxu0 %v3214
  %v3708 = vpop.f32.mrf.mxu0
  %v3709 = vadd.f32 %v3697, %v3708
  %v3710 = vpop.f32.mrf.mxu0
  %3711 = vdwg.mxu0
  %v3713 = vrot.slane %v3709, 1
  %v3719 = vunpack.c.l.b16 %v3675
  %v3720 = vunpack.c.l.b16 %v3676
  %v3721 = vunpack.c.l.b16 %v3677
  %v3722 = vunpack.c.l.b16 %v3678
  %v3723 = vpack.c.b16 %v3720, %v3719
  %v3724 = vpack.c.b16 %v3722, %v3721
  %3727 = vrot.lane.b32.xlu0 %v3232, 112
  %v3728 = vpop.permute.xlu0 %3727
  %3730 = vmatpush.bf16.msra.mxu0 0
  %3731 = vmatpush.bf16.msra.mxu0 0
  %3732 = vmatpush.bf16.msra.mxu0 0
  %3733 = vmatpush.bf16.msra.mxu0 0
  %3734 = vmatpush.bf16.msra.mxu0 0
  %3735 = vmatpush.bf16.msra.mxu0 0
  %3736 = vmatpush.bf16.msra.mxu0 %v3724
  %3737 = vmatpush.bf16.msra.mxu0 %v3723
  %3738 = vmatmul.bf16.gmra.mxu0 %v3246
  %v3739 = vpop.f32.mrf.mxu0
  %v3740 = vadd.f32 %v3728, %v3739
  %v3741 = vpop.f32.mrf.mxu0
  %v3742 = vadd.f32 %v3728, %v3741
  %3743 = vdwg.mxu0
  %v3748 = vunpack.c.l.b16 %v3680
  %v3749 = vunpack.c.l.b16 %v3681
  %v3750 = vunpack.c.l.b16 %v3682
  %v3751 = vunpack.c.l.b16 %v3683
  %v3752 = vpack.c.b16 %v3749, %v3748
  %v3753 = vpack.c.b16 %v3751, %v3750
  %3756 = vrot.lane.b32.xlu0 %v3262, 112
  %v3757 = vpop.permute.xlu0 %3756
  %3759 = vmatpush.bf16.msra.mxu0 0
  %3760 = vmatpush.bf16.msra.mxu0 0
  %3761 = vmatpush.bf16.msra.mxu0 0
  %3762 = vmatpush.bf16.msra.mxu0 0
  %3763 = vmatpush.bf16.msra.mxu0 0
  %3764 = vmatpush.bf16.msra.mxu0 0
  %3765 = vmatpush.bf16.msra.mxu0 %v3753
  %3766 = vmatpush.bf16.msra.mxu0 %v3752
  %3767 = vmatmul.bf16.gmra.mxu0 %v3246
  %v3768 = vpop.f32.mrf.mxu0
  %v3769 = vadd.f32 %v3757, %v3768
  %v3770 = vpop.f32.mrf.mxu0
  %v3771 = vadd.f32 %v3757, %v3770
  %3772 = vdwg.mxu0
  %v3773 = vpack.c.bf16 %v3709, %v3709
  %v3774 = vpack.c.bf16 %v3713, %v3713
  %v3775 = vpack.c.bf16 %v3740, %v3740
  %v3776 = vpack.c.bf16 %v3742, %v3742
  %v3778 = vsel %vm236, %v3773, 0
  %v3781 = vsel %vm236, %v3775, 0
  %3783 = vmatpush.bf16.xpose.msra.mxu0 0
  %3784 = vmatpush.bf16.xpose.msra.mxu0 0
  %3785 = vmatpush.bf16.xpose.msra.mxu0 0
  %3786 = vmatpush.bf16.xpose.msra.mxu0 0
  %3787 = vmatpush.bf16.xpose.msra.mxu0 0
  %3788 = vmatpush.bf16.xpose.msra.mxu0 0
  %3789 = vmatpush.bf16.xpose.msra.mxu0 0
  %3790 = vmatpush.bf16.xpose.msra.mxu0 %v3781
  %3791 = vmatmul.bf16.gmra.mxu0 %v3778
  %v3792 = vpop.f32.mrf.mxu0
  %v3793 = vadd.f32 0.0, %v3792
  %v3794 = vpop.f32.mrf.mxu0
  %3795 = vdwg.mxu0
  %v3797 = vsel %vm236, %v3774, 0
  %v3800 = vsel %vm236, %v3776, 0
  %3802 = vmatpush.bf16.xpose.msra.mxu0 0
  %3803 = vmatpush.bf16.xpose.msra.mxu0 0
  %3804 = vmatpush.bf16.xpose.msra.mxu0 0
  %3805 = vmatpush.bf16.xpose.msra.mxu0 0
  %3806 = vmatpush.bf16.xpose.msra.mxu0 0
  %3807 = vmatpush.bf16.xpose.msra.mxu0 0
  %3808 = vmatpush.bf16.xpose.msra.mxu0 0
  %3809 = vmatpush.bf16.xpose.msra.mxu0 %v3800
  %3810 = vmatmul.bf16.gmra.mxu0 %v3797
  %v3811 = vpop.f32.mrf.mxu0
  %v3812 = vadd.f32 0.0, %v3811
  %v3813 = vpop.f32.mrf.mxu0
  %3814 = vdwg.mxu0
  %v3815 = vmul.f32 %v3793, 0.35355338
  %v3816 = vmul.f32 %v3812, 0.35355338
  %v3817 = vsel %vm3333, %v3815, -inf
  %3818 = vmax.xlane.f32.xlu0 %v3817
  %v3819 = vpop.xlane.xlu0 %3818
  %v3820 = vsel %vm3333, %v3816, -inf
  %3821 = vmax.xlane.f32.xlu0 %v3820
  %v3822 = vpop.xlane.xlu0 %3821
  %v3823 = vsub.f32 %v3815, %v3819
  %v3824 = vsub.f32 %v3816, %v3822
  %v3825 = vmul.f32 %v3823, 1.442695
  %v3826 = vpow.pop %v3825
  %v3827 = vmul.f32 %v3824, 1.442695
  %v3828 = vpow.pop %v3827
  %v3829 = vsel %vm3333, %v3826, 0.0
  %3830 = vadd.xlane.f32.xlu0 %v3829
  %v3831 = vpop.xlane.xlu0 %3830
  %v3832 = vsel %vm3333, %v3828, 0.0
  %3833 = vadd.xlane.f32.xlu0 %v3832
  %v3834 = vpop.xlane.xlu0 %3833
  %v3835 = vrcp.pop %v3831
  %v3836 = vmul.f32 %v3831, %v3835
  %v3837 = vsub.f32 1.0, %v3836
  %v3838 = vmul.f32 %v3835, %v3837
  %v3839 = vadd.f32 %v3835, %v3838
  %vm3840 = vweird.f32 %v3831
  %vm3841 = vweird.f32 %v3835
  %vm3842 = vmor %vm3840, %vm3841
  %v3843 = vsel %vm3842, %v3835, %v3839
  %v3844 = vand.u32 2147483647, %v3831
  %vm3845 = vcmp.eq.f32.partialorder %v3844, 8.507059e+37
  %v3846 = vand.u32 %v3831, 2147483648
  %v3847 = vor.u32 1.1754944e-38, %v3846
  %v3848 = vsel %vm3845, %v3847, %v3843
  %v3849 = vmul.f32 1.0, %v3848
  %v3850 = vrcp.pop %v3834
  %v3851 = vmul.f32 %v3834, %v3850
  %v3852 = vsub.f32 1.0, %v3851
  %v3853 = vmul.f32 %v3850, %v3852
  %v3854 = vadd.f32 %v3850, %v3853
  %vm3855 = vweird.f32 %v3834
  %vm3856 = vweird.f32 %v3850
  %vm3857 = vmor %vm3855, %vm3856
  %v3858 = vsel %vm3857, %v3850, %v3854
  %v3859 = vand.u32 2147483647, %v3834
  %vm3860 = vcmp.eq.f32.partialorder %v3859, 8.507059e+37
  %v3861 = vand.u32 %v3834, 2147483648
  %v3862 = vor.u32 1.1754944e-38, %v3861
  %v3863 = vsel %vm3860, %v3862, %v3858
  %v3864 = vmul.f32 1.0, %v3863
  %v3865 = vmul.f32 %v3826, %v3849
  %v3866 = vmul.f32 %v3828, %v3864
  %v3867 = vpack.c.bf16 %v3865, %v3865
  %v3868 = vpack.c.bf16 %v3866, %v3866
  %v3869 = vpack.c.bf16 %v3769, %v3769
  %v3870 = vpack.c.bf16 %v3771, %v3771
  %v3872 = vsel %vm236, %v3867, 0
  %v3875 = vsel %vm334, %v3869, 0
  %3877 = vmatpush.bf16.msra.mxu0 0
  %3878 = vmatpush.bf16.msra.mxu0 0
  %3879 = vmatpush.bf16.msra.mxu0 0
  %3880 = vmatpush.bf16.msra.mxu0 0
  %3881 = vmatpush.bf16.msra.mxu0 0
  %3882 = vmatpush.bf16.msra.mxu0 0
  %3883 = vmatpush.bf16.msra.mxu0 0
  %3884 = vmatpush.bf16.msra.mxu0 %v3875
  %3885 = vmatmul.bf16.gmra.mxu0 %v3872
  %v3886 = vpop.f32.mrf.mxu0
  %v3887 = vadd.f32 0.0, %v3886
  %v3888 = vpop.f32.mrf.mxu0
  %3889 = vdwg.mxu0
  %v3891 = vsel %vm236, %v3868, 0
  %v3894 = vsel %vm334, %v3870, 0
  %3896 = vmatpush.bf16.msra.mxu0 0
  %3897 = vmatpush.bf16.msra.mxu0 0
  %3898 = vmatpush.bf16.msra.mxu0 0
  %3899 = vmatpush.bf16.msra.mxu0 0
  %3900 = vmatpush.bf16.msra.mxu0 0
  %3901 = vmatpush.bf16.msra.mxu0 0
  %3902 = vmatpush.bf16.msra.mxu0 0
  %3903 = vmatpush.bf16.msra.mxu0 %v3894
  %3904 = vmatmul.bf16.gmra.mxu0 %v3891
  %v3905 = vpop.f32.mrf.mxu0
  %v3906 = vadd.f32 0.0, %v3905
  %v3907 = vpop.f32.mrf.mxu0
  %3908 = vdwg.mxu0
  %s3909 = scalar_lea.vmem %s3, 240
  %v3910 = vld [vmem:[%s3909] sm:$0xf]
  %v3911 = vld [vmem:[%s3909 + $0x4] sm:$0xf]
  %v3912 = vld [vmem:[%s3909 + $0x8] sm:$0xf]
  %v3913 = vld [vmem:[%s3909 + $0xc] sm:$0xf]
  %s3914 = scalar_lea.vmem %s3, 304
  %v3915 = vld [vmem:[%s3914] sm:$0xf]
  %v3916 = vld [vmem:[%s3914 + $0x4] sm:$0xf]
  %v3917 = vld [vmem:[%s3914 + $0x8] sm:$0xf]
  %v3918 = vld [vmem:[%s3914 + $0xc] sm:$0xf]
  %s3919 = scalar_lea.vmem %s3, 368
  %v3920 = vld [vmem:[%s3919] sm:$0xf]
  %v3921 = vld [vmem:[%s3919 + $0x4] sm:$0xf]
  %v3922 = vld [vmem:[%s3919 + $0x8] sm:$0xf]
  %v3923 = vld [vmem:[%s3919 + $0xc] sm:$0xf]
  %v3928 = vunpack.c.l.b16 %v3910
  %v3929 = vunpack.c.l.b16 %v3911
  %v3930 = vunpack.c.l.b16 %v3912
  %v3931 = vunpack.c.l.b16 %v3913
  %v3932 = vpack.c.b16 %v3929, %v3928
  %v3933 = vpack.c.b16 %v3931, %v3930
  %3936 = vrot.lane.b32.xlu0 %v3200, 104
  %v3937 = vpop.permute.xlu0 %3936
  %3939 = vmatpush.bf16.msra.mxu0 0
  %3940 = vmatpush.bf16.msra.mxu0 0
  %3941 = vmatpush.bf16.msra.mxu0 0
  %3942 = vmatpush.bf16.msra.mxu0 0
  %3943 = vmatpush.bf16.msra.mxu0 0
  %3944 = vmatpush.bf16.msra.mxu0 0
  %3945 = vmatpush.bf16.msra.mxu0 %v3933
  %3946 = vmatpush.bf16.msra.mxu0 %v3932
  %3947 = vmatmul.bf16.gmra.mxu0 %v3214
  %v3948 = vpop.f32.mrf.mxu0
  %v3949 = vadd.f32 %v3937, %v3948
  %v3950 = vpop.f32.mrf.mxu0
  %3951 = vdwg.mxu0
  %v3953 = vrot.slane %v3949, 1
  %v3959 = vunpack.c.l.b16 %v3915
  %v3960 = vunpack.c.l.b16 %v3916
  %v3961 = vunpack.c.l.b16 %v3917
  %v3962 = vunpack.c.l.b16 %v3918
  %v3963 = vpack.c.b16 %v3960, %v3959
  %v3964 = vpack.c.b16 %v3962, %v3961
  %3967 = vrot.lane.b32.xlu0 %v3232, 104
  %v3968 = vpop.permute.xlu0 %3967
  %3970 = vmatpush.bf16.msra.mxu0 0
  %3971 = vmatpush.bf16.msra.mxu0 0
  %3972 = vmatpush.bf16.msra.mxu0 0
  %3973 = vmatpush.bf16.msra.mxu0 0
  %3974 = vmatpush.bf16.msra.mxu0 0
  %3975 = vmatpush.bf16.msra.mxu0 0
  %3976 = vmatpush.bf16.msra.mxu0 %v3964
  %3977 = vmatpush.bf16.msra.mxu0 %v3963
  %3978 = vmatmul.bf16.gmra.mxu0 %v3246
  %v3979 = vpop.f32.mrf.mxu0
  %v3980 = vadd.f32 %v3968, %v3979
  %v3981 = vpop.f32.mrf.mxu0
  %v3982 = vadd.f32 %v3968, %v3981
  %3983 = vdwg.mxu0
  %v3988 = vunpack.c.l.b16 %v3920
  %v3989 = vunpack.c.l.b16 %v3921
  %v3990 = vunpack.c.l.b16 %v3922
  %v3991 = vunpack.c.l.b16 %v3923
  %v3992 = vpack.c.b16 %v3989, %v3988
  %v3993 = vpack.c.b16 %v3991, %v3990
  %3996 = vrot.lane.b32.xlu0 %v3262, 104
  %v3997 = vpop.permute.xlu0 %3996
  %3999 = vmatpush.bf16.msra.mxu0 0
  %4000 = vmatpush.bf16.msra.mxu0 0
  %4001 = vmatpush.bf16.msra.mxu0 0
  %4002 = vmatpush.bf16.msra.mxu0 0
  %4003 = vmatpush.bf16.msra.mxu0 0
  %4004 = vmatpush.bf16.msra.mxu0 0
  %4005 = vmatpush.bf16.msra.mxu0 %v3993
  %4006 = vmatpush.bf16.msra.mxu0 %v3992
  %4007 = vmatmul.bf16.gmra.mxu0 %v3246
  %v4008 = vpop.f32.mrf.mxu0
  %v4009 = vadd.f32 %v3997, %v4008
  %v4010 = vpop.f32.mrf.mxu0
  %v4011 = vadd.f32 %v3997, %v4010
  %4012 = vdwg.mxu0
  %v4013 = vpack.c.bf16 %v3949, %v3949
  %v4014 = vpack.c.bf16 %v3953, %v3953
  %v4015 = vpack.c.bf16 %v3980, %v3980
  %v4016 = vpack.c.bf16 %v3982, %v3982
  %v4018 = vsel %vm236, %v4013, 0
  %v4021 = vsel %vm236, %v4015, 0
  %4023 = vmatpush.bf16.xpose.msra.mxu0 0
  %4024 = vmatpush.bf16.xpose.msra.mxu0 0
  %4025 = vmatpush.bf16.xpose.msra.mxu0 0
  %4026 = vmatpush.bf16.xpose.msra.mxu0 0
  %4027 = vmatpush.bf16.xpose.msra.mxu0 0
  %4028 = vmatpush.bf16.xpose.msra.mxu0 0
  %4029 = vmatpush.bf16.xpose.msra.mxu0 0
  %4030 = vmatpush.bf16.xpose.msra.mxu0 %v4021
  %4031 = vmatmul.bf16.gmra.mxu0 %v4018
  %v4032 = vpop.f32.mrf.mxu0
  %v4033 = vadd.f32 0.0, %v4032
  %v4034 = vpop.f32.mrf.mxu0
  %4035 = vdwg.mxu0
  %v4037 = vsel %vm236, %v4014, 0
  %v4040 = vsel %vm236, %v4016, 0
  %4042 = vmatpush.bf16.xpose.msra.mxu0 0
  %4043 = vmatpush.bf16.xpose.msra.mxu0 0
  %4044 = vmatpush.bf16.xpose.msra.mxu0 0
  %4045 = vmatpush.bf16.xpose.msra.mxu0 0
  %4046 = vmatpush.bf16.xpose.msra.mxu0 0
  %4047 = vmatpush.bf16.xpose.msra.mxu0 0
  %4048 = vmatpush.bf16.xpose.msra.mxu0 0
  %4049 = vmatpush.bf16.xpose.msra.mxu0 %v4040
  %4050 = vmatmul.bf16.gmra.mxu0 %v4037
  %v4051 = vpop.f32.mrf.mxu0
  %v4052 = vadd.f32 0.0, %v4051
  %v4053 = vpop.f32.mrf.mxu0
  %4054 = vdwg.mxu0
  %v4055 = vmul.f32 %v4033, 0.35355338
  %v4056 = vmul.f32 %v4052, 0.35355338
  %v4057 = vsel %vm3333, %v4055, -inf
  %4058 = vmax.xlane.f32.xlu0 %v4057
  %v4059 = vpop.xlane.xlu0 %4058
  %v4060 = vsel %vm3333, %v4056, -inf
  %4061 = vmax.xlane.f32.xlu0 %v4060
  %v4062 = vpop.xlane.xlu0 %4061
  %v4063 = vsub.f32 %v4055, %v4059
  %v4064 = vsub.f32 %v4056, %v4062
  %v4065 = vmul.f32 %v4063, 1.442695
  %v4066 = vpow.pop %v4065
  %v4067 = vmul.f32 %v4064, 1.442695
  %v4068 = vpow.pop %v4067
  %v4069 = vsel %vm3333, %v4066, 0.0
  %4070 = vadd.xlane.f32.xlu0 %v4069
  %v4071 = vpop.xlane.xlu0 %4070
  %v4072 = vsel %vm3333, %v4068, 0.0
  %4073 = vadd.xlane.f32.xlu0 %v4072
  %v4074 = vpop.xlane.xlu0 %4073
  %v4075 = vrcp.pop %v4071
  %v4076 = vmul.f32 %v4071, %v4075
  %v4077 = vsub.f32 1.0, %v4076
  %v4078 = vmul.f32 %v4075, %v4077
  %v4079 = vadd.f32 %v4075, %v4078
  %vm4080 = vweird.f32 %v4071
  %vm4081 = vweird.f32 %v4075
  %vm4082 = vmor %vm4080, %vm4081
  %v4083 = vsel %vm4082, %v4075, %v4079
  %v4084 = vand.u32 2147483647, %v4071
  %vm4085 = vcmp.eq.f32.partialorder %v4084, 8.507059e+37
  %v4086 = vand.u32 %v4071, 2147483648
  %v4087 = vor.u32 1.1754944e-38, %v4086
  %v4088 = vsel %vm4085, %v4087, %v4083
  %v4089 = vmul.f32 1.0, %v4088
  %v4090 = vrcp.pop %v4074
  %v4091 = vmul.f32 %v4074, %v4090
  %v4092 = vsub.f32 1.0, %v4091
  %v4093 = vmul.f32 %v4090, %v4092
  %v4094 = vadd.f32 %v4090, %v4093
  %vm4095 = vweird.f32 %v4074
  %vm4096 = vweird.f32 %v4090
  %vm4097 = vmor %vm4095, %vm4096
  %v4098 = vsel %vm4097, %v4090, %v4094
  %v4099 = vand.u32 2147483647, %v4074
  %vm4100 = vcmp.eq.f32.partialorder %v4099, 8.507059e+37
  %v4101 = vand.u32 %v4074, 2147483648
  %v4102 = vor.u32 1.1754944e-38, %v4101
  %v4103 = vsel %vm4100, %v4102, %v4098
  %v4104 = vmul.f32 1.0, %v4103
  %v4105 = vmul.f32 %v4066, %v4089
  %v4106 = vmul.f32 %v4068, %v4104
  %v4107 = vpack.c.bf16 %v4105, %v4105
  %v4108 = vpack.c.bf16 %v4106, %v4106
  %v4109 = vpack.c.bf16 %v4009, %v4009
  %v4110 = vpack.c.bf16 %v4011, %v4011
  %v4112 = vsel %vm236, %v4107, 0
  %v4115 = vsel %vm334, %v4109, 0
  %4117 = vmatpush.bf16.msra.mxu0 0
  %4118 = vmatpush.bf16.msra.mxu0 0
  %4119 = vmatpush.bf16.msra.mxu0 0
  %4120 = vmatpush.bf16.msra.mxu0 0
  %4121 = vmatpush.bf16.msra.mxu0 0
  %4122 = vmatpush.bf16.msra.mxu0 0
  %4123 = vmatpush.bf16.msra.mxu0 0
  %4124 = vmatpush.bf16.msra.mxu0 %v4115
  %4125 = vmatmul.bf16.gmra.mxu0 %v4112
  %v4126 = vpop.f32.mrf.mxu0
  %v4127 = vadd.f32 0.0, %v4126
  %v4128 = vpop.f32.mrf.mxu0
  %4129 = vdwg.mxu0
  %v4131 = vsel %vm236, %v4108, 0
  %v4134 = vsel %vm334, %v4110, 0
  %4136 = vmatpush.bf16.msra.mxu0 0
  %4137 = vmatpush.bf16.msra.mxu0 0
  %4138 = vmatpush.bf16.msra.mxu0 0
  %4139 = vmatpush.bf16.msra.mxu0 0
  %4140 = vmatpush.bf16.msra.mxu0 0
  %4141 = vmatpush.bf16.msra.mxu0 0
  %4142 = vmatpush.bf16.msra.mxu0 0
  %4143 = vmatpush.bf16.msra.mxu0 %v4134
  %4144 = vmatmul.bf16.gmra.mxu0 %v4131
  %v4145 = vpop.f32.mrf.mxu0
  %v4146 = vadd.f32 0.0, %v4145
  %v4147 = vpop.f32.mrf.mxu0
  %4148 = vdwg.mxu0
  %v4151 = vrot.slane %v3423, 7
  %v4152 = vsel %vm3049, %v4151, %v3404
  %v4156 = vrot.slane %v3666, 7
  %v4157 = vsel %vm3049, %v4156, %v3647
  %4158 = vrot.lane.b32.xlu0 %v4157, 8
  %v4159 = vpop.permute.xlu0 %4158
  %v4163 = vrot.slane %v3906, 7
  %v4164 = vsel %vm3049, %v4163, %v3887
  %4165 = vrot.lane.b32.xlu0 %v4164, 16
  %v4166 = vpop.permute.xlu0 %4165
  %v4170 = vrot.slane %v4146, 7
  %v4171 = vsel %vm3049, %v4170, %v4127
  %4172 = vrot.lane.b32.xlu0 %v4171, 24
  %v4173 = vpop.permute.xlu0 %4172
  %v4175 = vsel %vm236, %v4152, %v4159
  %v4176 = vsel %vm1113, %v4175, %v4166
  %v4177 = vsel %vm1116, %v4176, %v4173
  %v4178 = vpack.c.bf16 %v4177, %v4177
  %v4179 = vperm.slane %v35, 2
  %v4184 = vunpack.c.l.b16 %v3179
  %v4185 = vunpack.c.l.b16 %v3180
  %v4186 = vunpack.c.l.b16 %v3181
  %v4187 = vunpack.c.l.b16 %v3182
  %v4188 = vpack.c.b16 %v4185, %v4184
  %v4189 = vpack.c.b16 %v4187, %v4186
  %v4193 = vsel %vm160, %v4178, 0
  %4195 = vmatpush.bf16.msra.mxu0 0
  %4196 = vmatpush.bf16.msra.mxu0 0
  %4197 = vmatpush.bf16.msra.mxu0 0
  %4198 = vmatpush.bf16.msra.mxu0 0
  %4199 = vmatpush.bf16.msra.mxu0 0
  %4200 = vmatpush.bf16.msra.mxu0 0
  %4201 = vmatpush.bf16.msra.mxu0 %v4189
  %4202 = vmatpush.bf16.msra.mxu0 %v4188
  %4203 = vmatmul.bf16.gmra.mxu0 %v4193
  %v4204 = vpop.f32.mrf.mxu0
  %v4205 = vadd.f32 %v4179, %v4204
  %v4206 = vpop.f32.mrf.mxu0
  %4207 = vdwg.mxu0
  %v4208 = vadd.f32 %v4205, %v3177
  %v4209 = vsel %vm3151, %v4208, 0.0
  %4210 = vadd.xlane.f32.xlu0 %v4209
  %v4211 = vpop.xlane.xlu0 %4210
  %v4212 = vmul.f32 %v4211, %v1164
  %v4213 = vsub.f32 %v4208, %v4212
  %v4214 = vmul.f32 %v4213, %v4213
  %v4215 = vsel %vm3151, %v4214, 0.0
  %4216 = vadd.xlane.f32.xlu0 %v4215
  %v4217 = vpop.xlane.xlu0 %4216
  %v4218 = vmul.f32 %v4217, %v1164
  %v4219 = vadd.f32 %v4218, 1e-05
  %v4220 = vrsqrt.pop %v4219
  %v4221 = vmul.f32 %v4220, %v4219
  %v4222 = vmul.f32 %v4221, %v4220
  %v4223 = vmul.f32 0.5, %v4222
  %v4224 = vsub.f32 1.5, %v4223
  %v4225 = vmul.f32 %v4220, %v4224
  %vm4226 = vweird.f32 %v4219
  %vm4227 = vweird.f32 %v4220
  %vm4228 = vmor %vm4226, %vm4227
  %v4229 = vsel %vm4228, %v4220, %v4225
  %v4230 = vmul.f32 %v4213, %v4229
  %v4231 = vperm.slane %v35, 3
  %v4232 = vmul.f32 %v4230, %v4231
  %v4233 = vperm.slane %v35, 4
  %v4234 = vadd.f32 %v4232, %v4233
  %s4235 = scalar_lea.vmem %s5, 256
  %v4236 = vld [vmem:[%s4235] sm:$0xff]
  %v4237 = vld [vmem:[%s4235 + $0x8] sm:$0xff]
  %v4238 = vld [vmem:[%s4235 + $0x10] sm:$0xff]
  %v4239 = vld [vmem:[%s4235 + $0x18] sm:$0xff]
  %v4240 = vld [vmem:[%s4235 + $0x20] sm:$0xff]
  %v4241 = vld [vmem:[%s4235 + $0x28] sm:$0xff]
  %v4242 = vld [vmem:[%s4235 + $0x30] sm:$0xff]
  %v4243 = vld [vmem:[%s4235 + $0x38] sm:$0xff]
  %v4244 = vld [vmem:[%s4235 + $0x40] sm:$0xff]
  %v4245 = vld [vmem:[%s4235 + $0x48] sm:$0xff]
  %v4246 = vld [vmem:[%s4235 + $0x50] sm:$0xff]
  %v4247 = vld [vmem:[%s4235 + $0x58] sm:$0xff]
  %v4248 = vld [vmem:[%s4235 + $0x60] sm:$0xff]
  %v4249 = vld [vmem:[%s4235 + $0x68] sm:$0xff]
  %v4250 = vld [vmem:[%s4235 + $0x70] sm:$0xff]
  %v4251 = vld [vmem:[%s4235 + $0x78] sm:$0xff]
  %v4252 = vld [vmem:[%s4235 + $0x80] sm:$0xff]
  %v4253 = vld [vmem:[%s4235 + $0x88] sm:$0xff]
  %v4254 = vld [vmem:[%s4235 + $0x90] sm:$0xff]
  %v4255 = vld [vmem:[%s4235 + $0x98] sm:$0xff]
  %v4256 = vld [vmem:[%s4235 + $0xa0] sm:$0xff]
  %v4257 = vld [vmem:[%s4235 + $0xa8] sm:$0xff]
  %v4258 = vld [vmem:[%s4235 + $0xb0] sm:$0xff]
  %v4259 = vld [vmem:[%s4235 + $0xb8] sm:$0xff]
  %v4260 = vld [vmem:[%s4235 + $0xc0] sm:$0xff]
  %v4261 = vld [vmem:[%s4235 + $0xc8] sm:$0xff]
  %v4262 = vld [vmem:[%s4235 + $0xd0] sm:$0xff]
  %v4263 = vld [vmem:[%s4235 + $0xd8] sm:$0xff]
  %v4264 = vld [vmem:[%s4235 + $0xe0] sm:$0xff]
  %v4265 = vld [vmem:[%s4235 + $0xe8] sm:$0xff]
  %v4266 = vld [vmem:[%s4235 + $0xf0] sm:$0xff]
  %v4267 = vld [vmem:[%s4235 + $0xf8] sm:$0xff]
  %s4268 = scalar_lea.vmem %s6, 1024
  %v4269 = vld [vmem:[%s4268] sm:$0xf]
  %v4270 = vld [vmem:[%s4268 + $0x4] sm:$0xf]
  %v4271 = vld [vmem:[%s4268 + $0x8] sm:$0xf]
  %v4272 = vld [vmem:[%s4268 + $0xc] sm:$0xf]
  %v4273 = vld [vmem:[%s4268 + $0x10] sm:$0xf]
  %v4274 = vld [vmem:[%s4268 + $0x14] sm:$0xf]
  %v4275 = vld [vmem:[%s4268 + $0x18] sm:$0xf]
  %v4276 = vld [vmem:[%s4268 + $0x1c] sm:$0xf]
  %v4277 = vld [vmem:[%s4268 + $0x20] sm:$0xf]
  %v4278 = vld [vmem:[%s4268 + $0x24] sm:$0xf]
  %v4279 = vld [vmem:[%s4268 + $0x28] sm:$0xf]
  %v4280 = vld [vmem:[%s4268 + $0x2c] sm:$0xf]
  %v4281 = vld [vmem:[%s4268 + $0x30] sm:$0xf]
  %v4282 = vld [vmem:[%s4268 + $0x34] sm:$0xf]
  %v4283 = vld [vmem:[%s4268 + $0x38] sm:$0xf]
  %v4284 = vld [vmem:[%s4268 + $0x3c] sm:$0xf]
  %v4285 = vld [vmem:[%s4268 + $0x40] sm:$0xf]
  %v4286 = vld [vmem:[%s4268 + $0x44] sm:$0xf]
  %v4287 = vld [vmem:[%s4268 + $0x48] sm:$0xf]
  %v4288 = vld [vmem:[%s4268 + $0x4c] sm:$0xf]
  %v4289 = vld [vmem:[%s4268 + $0x50] sm:$0xf]
  %v4290 = vld [vmem:[%s4268 + $0x54] sm:$0xf]
  %v4291 = vld [vmem:[%s4268 + $0x58] sm:$0xf]
  %v4292 = vld [vmem:[%s4268 + $0x5c] sm:$0xf]
  %v4293 = vld [vmem:[%s4268 + $0x60] sm:$0xf]
  %v4294 = vld [vmem:[%s4268 + $0x64] sm:$0xf]
  %v4295 = vld [vmem:[%s4268 + $0x68] sm:$0xf]
  %v4296 = vld [vmem:[%s4268 + $0x6c] sm:$0xf]
  %v4297 = vld [vmem:[%s4268 + $0x70] sm:$0xf]
  %v4298 = vld [vmem:[%s4268 + $0x74] sm:$0xf]
  %v4299 = vld [vmem:[%s4268 + $0x78] sm:$0xf]
  %v4300 = vld [vmem:[%s4268 + $0x7c] sm:$0xf]
  %v4301 = vld [vmem:[%s4268 + $0x80] sm:$0xf]
  %v4302 = vld [vmem:[%s4268 + $0x84] sm:$0xf]
  %v4303 = vld [vmem:[%s4268 + $0x88] sm:$0xf]
  %v4304 = vld [vmem:[%s4268 + $0x8c] sm:$0xf]
  %v4305 = vld [vmem:[%s4268 + $0x90] sm:$0xf]
  %v4306 = vld [vmem:[%s4268 + $0x94] sm:$0xf]
  %v4307 = vld [vmem:[%s4268 + $0x98] sm:$0xf]
  %v4308 = vld [vmem:[%s4268 + $0x9c] sm:$0xf]
  %v4309 = vld [vmem:[%s4268 + $0xa0] sm:$0xf]
  %v4310 = vld [vmem:[%s4268 + $0xa4] sm:$0xf]
  %v4311 = vld [vmem:[%s4268 + $0xa8] sm:$0xf]
  %v4312 = vld [vmem:[%s4268 + $0xac] sm:$0xf]
  %v4313 = vld [vmem:[%s4268 + $0xb0] sm:$0xf]
  %v4314 = vld [vmem:[%s4268 + $0xb4] sm:$0xf]
  %v4315 = vld [vmem:[%s4268 + $0xb8] sm:$0xf]
  %v4316 = vld [vmem:[%s4268 + $0xbc] sm:$0xf]
  %v4317 = vld [vmem:[%s4268 + $0xc0] sm:$0xf]
  %v4318 = vld [vmem:[%s4268 + $0xc4] sm:$0xf]
  %v4319 = vld [vmem:[%s4268 + $0xc8] sm:$0xf]
  %v4320 = vld [vmem:[%s4268 + $0xcc] sm:$0xf]
  %v4321 = vld [vmem:[%s4268 + $0xd0] sm:$0xf]
  %v4322 = vld [vmem:[%s4268 + $0xd4] sm:$0xf]
  %v4323 = vld [vmem:[%s4268 + $0xd8] sm:$0xf]
  %v4324 = vld [vmem:[%s4268 + $0xdc] sm:$0xf]
  %v4325 = vld [vmem:[%s4268 + $0xe0] sm:$0xf]
  %v4326 = vld [vmem:[%s4268 + $0xe4] sm:$0xf]
  %v4327 = vld [vmem:[%s4268 + $0xe8] sm:$0xf]
  %v4328 = vld [vmem:[%s4268 + $0xec] sm:$0xf]
  %v4329 = vld [vmem:[%s4268 + $0xf0] sm:$0xf]
  %v4330 = vld [vmem:[%s4268 + $0xf4] sm:$0xf]
  %v4331 = vld [vmem:[%s4268 + $0xf8] sm:$0xf]
  %v4332 = vld [vmem:[%s4268 + $0xfc] sm:$0xf]
  %v4333 = vld [vmem:[%s4268 + $0x100] sm:$0xf]
  %v4334 = vld [vmem:[%s4268 + $0x104] sm:$0xf]
  %v4335 = vld [vmem:[%s4268 + $0x108] sm:$0xf]
  %v4336 = vld [vmem:[%s4268 + $0x10c] sm:$0xf]
  %v4337 = vld [vmem:[%s4268 + $0x110] sm:$0xf]
  %v4338 = vld [vmem:[%s4268 + $0x114] sm:$0xf]
  %v4339 = vld [vmem:[%s4268 + $0x118] sm:$0xf]
  %v4340 = vld [vmem:[%s4268 + $0x11c] sm:$0xf]
  %v4341 = vld [vmem:[%s4268 + $0x120] sm:$0xf]
  %v4342 = vld [vmem:[%s4268 + $0x124] sm:$0xf]
  %v4343 = vld [vmem:[%s4268 + $0x128] sm:$0xf]
  %v4344 = vld [vmem:[%s4268 + $0x12c] sm:$0xf]
  %v4345 = vld [vmem:[%s4268 + $0x130] sm:$0xf]
  %v4346 = vld [vmem:[%s4268 + $0x134] sm:$0xf]
  %v4347 = vld [vmem:[%s4268 + $0x138] sm:$0xf]
  %v4348 = vld [vmem:[%s4268 + $0x13c] sm:$0xf]
  %v4349 = vld [vmem:[%s4268 + $0x140] sm:$0xf]
  %v4350 = vld [vmem:[%s4268 + $0x144] sm:$0xf]
  %v4351 = vld [vmem:[%s4268 + $0x148] sm:$0xf]
  %v4352 = vld [vmem:[%s4268 + $0x14c] sm:$0xf]
  %v4353 = vld [vmem:[%s4268 + $0x150] sm:$0xf]
  %v4354 = vld [vmem:[%s4268 + $0x154] sm:$0xf]
  %v4355 = vld [vmem:[%s4268 + $0x158] sm:$0xf]
  %v4356 = vld [vmem:[%s4268 + $0x15c] sm:$0xf]
  %v4357 = vld [vmem:[%s4268 + $0x160] sm:$0xf]
  %v4358 = vld [vmem:[%s4268 + $0x164] sm:$0xf]
  %v4359 = vld [vmem:[%s4268 + $0x168] sm:$0xf]
  %v4360 = vld [vmem:[%s4268 + $0x16c] sm:$0xf]
  %v4361 = vld [vmem:[%s4268 + $0x170] sm:$0xf]
  %v4362 = vld [vmem:[%s4268 + $0x174] sm:$0xf]
  %v4363 = vld [vmem:[%s4268 + $0x178] sm:$0xf]
  %v4364 = vld [vmem:[%s4268 + $0x17c] sm:$0xf]
  %v4365 = vld [vmem:[%s4268 + $0x180] sm:$0xf]
  %v4366 = vld [vmem:[%s4268 + $0x184] sm:$0xf]
  %v4367 = vld [vmem:[%s4268 + $0x188] sm:$0xf]
  %v4368 = vld [vmem:[%s4268 + $0x18c] sm:$0xf]
  %v4369 = vld [vmem:[%s4268 + $0x190] sm:$0xf]
  %v4370 = vld [vmem:[%s4268 + $0x194] sm:$0xf]
  %v4371 = vld [vmem:[%s4268 + $0x198] sm:$0xf]
  %v4372 = vld [vmem:[%s4268 + $0x19c] sm:$0xf]
  %v4373 = vld [vmem:[%s4268 + $0x1a0] sm:$0xf]
  %v4374 = vld [vmem:[%s4268 + $0x1a4] sm:$0xf]
  %v4375 = vld [vmem:[%s4268 + $0x1a8] sm:$0xf]
  %v4376 = vld [vmem:[%s4268 + $0x1ac] sm:$0xf]
  %v4377 = vld [vmem:[%s4268 + $0x1b0] sm:$0xf]
  %v4378 = vld [vmem:[%s4268 + $0x1b4] sm:$0xf]
  %v4379 = vld [vmem:[%s4268 + $0x1b8] sm:$0xf]
  %v4380 = vld [vmem:[%s4268 + $0x1bc] sm:$0xf]
  %v4381 = vld [vmem:[%s4268 + $0x1c0] sm:$0xf]
  %v4382 = vld [vmem:[%s4268 + $0x1c4] sm:$0xf]
  %v4383 = vld [vmem:[%s4268 + $0x1c8] sm:$0xf]
  %v4384 = vld [vmem:[%s4268 + $0x1cc] sm:$0xf]
  %v4385 = vld [vmem:[%s4268 + $0x1d0] sm:$0xf]
  %v4386 = vld [vmem:[%s4268 + $0x1d4] sm:$0xf]
  %v4387 = vld [vmem:[%s4268 + $0x1d8] sm:$0xf]
  %v4388 = vld [vmem:[%s4268 + $0x1dc] sm:$0xf]
  %v4389 = vld [vmem:[%s4268 + $0x1e0] sm:$0xf]
  %v4390 = vld [vmem:[%s4268 + $0x1e4] sm:$0xf]
  %v4391 = vld [vmem:[%s4268 + $0x1e8] sm:$0xf]
  %v4392 = vld [vmem:[%s4268 + $0x1ec] sm:$0xf]
  %v4393 = vld [vmem:[%s4268 + $0x1f0] sm:$0xf]
  %v4394 = vld [vmem:[%s4268 + $0x1f4] sm:$0xf]
  %v4395 = vld [vmem:[%s4268 + $0x1f8] sm:$0xf]
  %v4396 = vld [vmem:[%s4268 + $0x1fc] sm:$0xf]
  %v4397 = vld [vmem:[%s4268 + $0x200] sm:$0xf]
  %v4398 = vld [vmem:[%s4268 + $0x204] sm:$0xf]
  %v4399 = vld [vmem:[%s4268 + $0x208] sm:$0xf]
  %v4400 = vld [vmem:[%s4268 + $0x20c] sm:$0xf]
  %v4401 = vld [vmem:[%s4268 + $0x210] sm:$0xf]
  %v4402 = vld [vmem:[%s4268 + $0x214] sm:$0xf]
  %v4403 = vld [vmem:[%s4268 + $0x218] sm:$0xf]
  %v4404 = vld [vmem:[%s4268 + $0x21c] sm:$0xf]
  %v4405 = vld [vmem:[%s4268 + $0x220] sm:$0xf]
  %v4406 = vld [vmem:[%s4268 + $0x224] sm:$0xf]
  %v4407 = vld [vmem:[%s4268 + $0x228] sm:$0xf]
  %v4408 = vld [vmem:[%s4268 + $0x22c] sm:$0xf]
  %v4409 = vld [vmem:[%s4268 + $0x230] sm:$0xf]
  %v4410 = vld [vmem:[%s4268 + $0x234] sm:$0xf]
  %v4411 = vld [vmem:[%s4268 + $0x238] sm:$0xf]
  %v4412 = vld [vmem:[%s4268 + $0x23c] sm:$0xf]
  %v4413 = vld [vmem:[%s4268 + $0x240] sm:$0xf]
  %v4414 = vld [vmem:[%s4268 + $0x244] sm:$0xf]
  %v4415 = vld [vmem:[%s4268 + $0x248] sm:$0xf]
  %v4416 = vld [vmem:[%s4268 + $0x24c] sm:$0xf]
  %v4417 = vld [vmem:[%s4268 + $0x250] sm:$0xf]
  %v4418 = vld [vmem:[%s4268 + $0x254] sm:$0xf]
  %v4419 = vld [vmem:[%s4268 + $0x258] sm:$0xf]
  %v4420 = vld [vmem:[%s4268 + $0x25c] sm:$0xf]
  %v4421 = vld [vmem:[%s4268 + $0x260] sm:$0xf]
  %v4422 = vld [vmem:[%s4268 + $0x264] sm:$0xf]
  %v4423 = vld [vmem:[%s4268 + $0x268] sm:$0xf]
  %v4424 = vld [vmem:[%s4268 + $0x26c] sm:$0xf]
  %v4425 = vld [vmem:[%s4268 + $0x270] sm:$0xf]
  %v4426 = vld [vmem:[%s4268 + $0x274] sm:$0xf]
  %v4427 = vld [vmem:[%s4268 + $0x278] sm:$0xf]
  %v4428 = vld [vmem:[%s4268 + $0x27c] sm:$0xf]
  %v4429 = vld [vmem:[%s4268 + $0x280] sm:$0xf]
  %v4430 = vld [vmem:[%s4268 + $0x284] sm:$0xf]
  %v4431 = vld [vmem:[%s4268 + $0x288] sm:$0xf]
  %v4432 = vld [vmem:[%s4268 + $0x28c] sm:$0xf]
  %v4433 = vld [vmem:[%s4268 + $0x290] sm:$0xf]
  %v4434 = vld [vmem:[%s4268 + $0x294] sm:$0xf]
  %v4435 = vld [vmem:[%s4268 + $0x298] sm:$0xf]
  %v4436 = vld [vmem:[%s4268 + $0x29c] sm:$0xf]
  %v4437 = vld [vmem:[%s4268 + $0x2a0] sm:$0xf]
  %v4438 = vld [vmem:[%s4268 + $0x2a4] sm:$0xf]
  %v4439 = vld [vmem:[%s4268 + $0x2a8] sm:$0xf]
  %v4440 = vld [vmem:[%s4268 + $0x2ac] sm:$0xf]
  %v4441 = vld [vmem:[%s4268 + $0x2b0] sm:$0xf]
  %v4442 = vld [vmem:[%s4268 + $0x2b4] sm:$0xf]
  %v4443 = vld [vmem:[%s4268 + $0x2b8] sm:$0xf]
  %v4444 = vld [vmem:[%s4268 + $0x2bc] sm:$0xf]
  %v4445 = vld [vmem:[%s4268 + $0x2c0] sm:$0xf]
  %v4446 = vld [vmem:[%s4268 + $0x2c4] sm:$0xf]
  %v4447 = vld [vmem:[%s4268 + $0x2c8] sm:$0xf]
  %v4448 = vld [vmem:[%s4268 + $0x2cc] sm:$0xf]
  %v4449 = vld [vmem:[%s4268 + $0x2d0] sm:$0xf]
  %v4450 = vld [vmem:[%s4268 + $0x2d4] sm:$0xf]
  %v4451 = vld [vmem:[%s4268 + $0x2d8] sm:$0xf]
  %v4452 = vld [vmem:[%s4268 + $0x2dc] sm:$0xf]
  %v4453 = vld [vmem:[%s4268 + $0x2e0] sm:$0xf]
  %v4454 = vld [vmem:[%s4268 + $0x2e4] sm:$0xf]
  %v4455 = vld [vmem:[%s4268 + $0x2e8] sm:$0xf]
  %v4456 = vld [vmem:[%s4268 + $0x2ec] sm:$0xf]
  %v4457 = vld [vmem:[%s4268 + $0x2f0] sm:$0xf]
  %v4458 = vld [vmem:[%s4268 + $0x2f4] sm:$0xf]
  %v4459 = vld [vmem:[%s4268 + $0x2f8] sm:$0xf]
  %v4460 = vld [vmem:[%s4268 + $0x2fc] sm:$0xf]
  %v4461 = vld [vmem:[%s4268 + $0x300] sm:$0xf]
  %v4462 = vld [vmem:[%s4268 + $0x304] sm:$0xf]
  %v4463 = vld [vmem:[%s4268 + $0x308] sm:$0xf]
  %v4464 = vld [vmem:[%s4268 + $0x30c] sm:$0xf]
  %v4465 = vld [vmem:[%s4268 + $0x310] sm:$0xf]
  %v4466 = vld [vmem:[%s4268 + $0x314] sm:$0xf]
  %v4467 = vld [vmem:[%s4268 + $0x318] sm:$0xf]
  %v4468 = vld [vmem:[%s4268 + $0x31c] sm:$0xf]
  %v4469 = vld [vmem:[%s4268 + $0x320] sm:$0xf]
  %v4470 = vld [vmem:[%s4268 + $0x324] sm:$0xf]
  %v4471 = vld [vmem:[%s4268 + $0x328] sm:$0xf]
  %v4472 = vld [vmem:[%s4268 + $0x32c] sm:$0xf]
  %v4473 = vld [vmem:[%s4268 + $0x330] sm:$0xf]
  %v4474 = vld [vmem:[%s4268 + $0x334] sm:$0xf]
  %v4475 = vld [vmem:[%s4268 + $0x338] sm:$0xf]
  %v4476 = vld [vmem:[%s4268 + $0x33c] sm:$0xf]
  %v4477 = vld [vmem:[%s4268 + $0x340] sm:$0xf]
  %v4478 = vld [vmem:[%s4268 + $0x344] sm:$0xf]
  %v4479 = vld [vmem:[%s4268 + $0x348] sm:$0xf]
  %v4480 = vld [vmem:[%s4268 + $0x34c] sm:$0xf]
  %v4481 = vld [vmem:[%s4268 + $0x350] sm:$0xf]
  %v4482 = vld [vmem:[%s4268 + $0x354] sm:$0xf]
  %v4483 = vld [vmem:[%s4268 + $0x358] sm:$0xf]
  %v4484 = vld [vmem:[%s4268 + $0x35c] sm:$0xf]
  %v4485 = vld [vmem:[%s4268 + $0x360] sm:$0xf]
  %v4486 = vld [vmem:[%s4268 + $0x364] sm:$0xf]
  %v4487 = vld [vmem:[%s4268 + $0x368] sm:$0xf]
  %v4488 = vld [vmem:[%s4268 + $0x36c] sm:$0xf]
  %v4489 = vld [vmem:[%s4268 + $0x370] sm:$0xf]
  %v4490 = vld [vmem:[%s4268 + $0x374] sm:$0xf]
  %v4491 = vld [vmem:[%s4268 + $0x378] sm:$0xf]
  %v4492 = vld [vmem:[%s4268 + $0x37c] sm:$0xf]
  %v4493 = vld [vmem:[%s4268 + $0x380] sm:$0xf]
  %v4494 = vld [vmem:[%s4268 + $0x384] sm:$0xf]
  %v4495 = vld [vmem:[%s4268 + $0x388] sm:$0xf]
  %v4496 = vld [vmem:[%s4268 + $0x38c] sm:$0xf]
  %v4497 = vld [vmem:[%s4268 + $0x390] sm:$0xf]
  %v4498 = vld [vmem:[%s4268 + $0x394] sm:$0xf]
  %v4499 = vld [vmem:[%s4268 + $0x398] sm:$0xf]
  %v4500 = vld [vmem:[%s4268 + $0x39c] sm:$0xf]
  %v4501 = vld [vmem:[%s4268 + $0x3a0] sm:$0xf]
  %v4502 = vld [vmem:[%s4268 + $0x3a4] sm:$0xf]
  %v4503 = vld [vmem:[%s4268 + $0x3a8] sm:$0xf]
  %v4504 = vld [vmem:[%s4268 + $0x3ac] sm:$0xf]
  %v4505 = vld [vmem:[%s4268 + $0x3b0] sm:$0xf]
  %v4506 = vld [vmem:[%s4268 + $0x3b4] sm:$0xf]
  %v4507 = vld [vmem:[%s4268 + $0x3b8] sm:$0xf]
  %v4508 = vld [vmem:[%s4268 + $0x3bc] sm:$0xf]
  %v4509 = vld [vmem:[%s4268 + $0x3c0] sm:$0xf]
  %v4510 = vld [vmem:[%s4268 + $0x3c4] sm:$0xf]
  %v4511 = vld [vmem:[%s4268 + $0x3c8] sm:$0xf]
  %v4512 = vld [vmem:[%s4268 + $0x3cc] sm:$0xf]
  %v4513 = vld [vmem:[%s4268 + $0x3d0] sm:$0xf]
  %v4514 = vld [vmem:[%s4268 + $0x3d4] sm:$0xf]
  %v4515 = vld [vmem:[%s4268 + $0x3d8] sm:$0xf]
  %v4516 = vld [vmem:[%s4268 + $0x3dc] sm:$0xf]
  %v4517 = vld [vmem:[%s4268 + $0x3e0] sm:$0xf]
  %v4518 = vld [vmem:[%s4268 + $0x3e4] sm:$0xf]
  %v4519 = vld [vmem:[%s4268 + $0x3e8] sm:$0xf]
  %v4520 = vld [vmem:[%s4268 + $0x3ec] sm:$0xf]
  %v4521 = vld [vmem:[%s4268 + $0x3f0] sm:$0xf]
  %v4522 = vld [vmem:[%s4268 + $0x3f4] sm:$0xf]
  %v4523 = vld [vmem:[%s4268 + $0x3f8] sm:$0xf]
  %v4524 = vld [vmem:[%s4268 + $0x3fc] sm:$0xf]
  %v4525 = vpack.c.bf16 %v4234, %v4234
  %v4526 = vperm.slane %v37, 1
  %v4527 = vperm.slane %v37, 3
  %v4528 = vperm.slane %v37, 5
  %v4529 = vperm.slane %v37, 7
  %v4530 = vperm.slane %v38, 1
  %v4531 = vperm.slane %v38, 3
  %v4532 = vperm.slane %v38, 5
  %v4533 = vperm.slane %v38, 7
  %v4534 = vperm.slane %v39, 1
  %v4535 = vperm.slane %v39, 3
  %v4536 = vperm.slane %v39, 5
  %v4537 = vperm.slane %v39, 7
  %v4538 = vperm.slane %v40, 1
  %v4539 = vperm.slane %v40, 3
  %v4540 = vperm.slane %v40, 5
  %v4541 = vperm.slane %v40, 7
  %v4558 = vperm.slane %v4526, 1
  %v4559 = vperm.slane %v4527, 1
  %v4560 = vperm.slane %v4528, 1
  %v4561 = vperm.slane %v4529, 1
  %v4562 = vperm.slane %v4530, 1
  %v4563 = vperm.slane %v4531, 1
  %v4564 = vperm.slane %v4532, 1
  %v4565 = vperm.slane %v4533, 1
  %v4566 = vperm.slane %v4534, 1
  %v4567 = vperm.slane %v4535, 1
  %v4568 = vperm.slane %v4536, 1
  %v4569 = vperm.slane %v4537, 1
  %v4570 = vperm.slane %v4538, 1
  %v4571 = vperm.slane %v4539, 1
  %v4572 = vperm.slane %v4540, 1
  %v4573 = vperm.slane %v4541, 1
  %v4606 = vunpack.c.l.b16 %v4236
  %v4607 = vunpack.c.h.b16 %v4236
  %v4608 = vunpack.c.l.b16 %v4237
  %v4609 = vunpack.c.h.b16 %v4237
  %v4610 = vunpack.c.l.b16 %v4238
  %v4611 = vunpack.c.h.b16 %v4238
  %v4612 = vunpack.c.l.b16 %v4239
  %v4613 = vunpack.c.h.b16 %v4239
  %v4614 = vunpack.c.l.b16 %v4240
  %v4615 = vunpack.c.h.b16 %v4240
  %v4616 = vunpack.c.l.b16 %v4241
  %v4617 = vunpack.c.h.b16 %v4241
  %v4618 = vunpack.c.l.b16 %v4242
  %v4619 = vunpack.c.h.b16 %v4242
  %v4620 = vunpack.c.l.b16 %v4243
  %v4621 = vunpack.c.h.b16 %v4243
  %v4622 = vunpack.c.l.b16 %v4244
  %v4623 = vunpack.c.h.b16 %v4244
  %v4624 = vunpack.c.l.b16 %v4245
  %v4625 = vunpack.c.h.b16 %v4245
  %v4626 = vunpack.c.l.b16 %v4246
  %v4627 = vunpack.c.h.b16 %v4246
  %v4628 = vunpack.c.l.b16 %v4247
  %v4629 = vunpack.c.h.b16 %v4247
  %v4630 = vunpack.c.l.b16 %v4248
  %v4631 = vunpack.c.h.b16 %v4248
  %v4632 = vunpack.c.l.b16 %v4249
  %v4633 = vunpack.c.h.b16 %v4249
  %v4634 = vunpack.c.l.b16 %v4250
  %v4635 = vunpack.c.h.b16 %v4250
  %v4636 = vunpack.c.l.b16 %v4251
  %v4637 = vunpack.c.h.b16 %v4251
  %v4638 = vunpack.c.l.b16 %v4252
  %v4639 = vunpack.c.h.b16 %v4252
  %v4640 = vunpack.c.l.b16 %v4253
  %v4641 = vunpack.c.h.b16 %v4253
  %v4642 = vunpack.c.l.b16 %v4254
  %v4643 = vunpack.c.h.b16 %v4254
  %v4644 = vunpack.c.l.b16 %v4255
  %v4645 = vunpack.c.h.b16 %v4255
  %v4646 = vunpack.c.l.b16 %v4256
  %v4647 = vunpack.c.h.b16 %v4256
  %v4648 = vunpack.c.l.b16 %v4257
  %v4649 = vunpack.c.h.b16 %v4257
  %v4650 = vunpack.c.l.b16 %v4258
  %v4651 = vunpack.c.h.b16 %v4258
  %v4652 = vunpack.c.l.b16 %v4259
  %v4653 = vunpack.c.h.b16 %v4259
  %v4654 = vunpack.c.l.b16 %v4260
  %v4655 = vunpack.c.h.b16 %v4260
  %v4656 = vunpack.c.l.b16 %v4261
  %v4657 = vunpack.c.h.b16 %v4261
  %v4658 = vunpack.c.l.b16 %v4262
  %v4659 = vunpack.c.h.b16 %v4262
  %v4660 = vunpack.c.l.b16 %v4263
  %v4661 = vunpack.c.h.b16 %v4263
  %v4662 = vunpack.c.l.b16 %v4264
  %v4663 = vunpack.c.h.b16 %v4264
  %v4664 = vunpack.c.l.b16 %v4265
  %v4665 = vunpack.c.h.b16 %v4265
  %v4666 = vunpack.c.l.b16 %v4266
  %v4667 = vunpack.c.h.b16 %v4266
  %v4668 = vunpack.c.l.b16 %v4267
  %v4669 = vunpack.c.h.b16 %v4267
  %v4670 = vpack.c.b16 %v4622, %v4606
  %v4671 = vpack.c.b16 %v4623, %v4607
  %v4672 = vpack.c.b16 %v4624, %v4608
  %v4673 = vpack.c.b16 %v4625, %v4609
  %v4674 = vpack.c.b16 %v4626, %v4610
  %v4675 = vpack.c.b16 %v4627, %v4611
  %v4676 = vpack.c.b16 %v4628, %v4612
  %v4677 = vpack.c.b16 %v4629, %v4613
  %v4678 = vpack.c.b16 %v4630, %v4614
  %v4679 = vpack.c.b16 %v4631, %v4615
  %v4680 = vpack.c.b16 %v4632, %v4616
  %v4681 = vpack.c.b16 %v4633, %v4617
  %v4682 = vpack.c.b16 %v4634, %v4618
  %v4683 = vpack.c.b16 %v4635, %v4619
  %v4684 = vpack.c.b16 %v4636, %v4620
  %v4685 = vpack.c.b16 %v4637, %v4621
  %v4686 = vpack.c.b16 %v4654, %v4638
  %v4687 = vpack.c.b16 %v4655, %v4639
  %v4688 = vpack.c.b16 %v4656, %v4640
  %v4689 = vpack.c.b16 %v4657, %v4641
  %v4690 = vpack.c.b16 %v4658, %v4642
  %v4691 = vpack.c.b16 %v4659, %v4643
  %v4692 = vpack.c.b16 %v4660, %v4644
  %v4693 = vpack.c.b16 %v4661, %v4645
  %v4694 = vpack.c.b16 %v4662, %v4646
  %v4695 = vpack.c.b16 %v4663, %v4647
  %v4696 = vpack.c.b16 %v4664, %v4648
  %v4697 = vpack.c.b16 %v4665, %v4649
  %v4698 = vpack.c.b16 %v4666, %v4650
  %v4699 = vpack.c.b16 %v4667, %v4651
  %v4700 = vpack.c.b16 %v4668, %v4652
  %v4701 = vpack.c.b16 %v4669, %v4653
  %v4735 = vsel %vm160, %v4525, 0
  %4737 = vmatpush.bf16.msra.mxu0 0
  %4738 = vmatpush.bf16.msra.mxu0 0
  %4739 = vmatpush.bf16.msra.mxu0 0
  %4740 = vmatpush.bf16.msra.mxu0 0
  %4741 = vmatpush.bf16.msra.mxu0 0
  %4742 = vmatpush.bf16.msra.mxu0 0
  %4743 = vmatpush.bf16.msra.mxu0 %v4686
  %4744 = vmatpush.bf16.msra.mxu0 %v4670
  %4745 = vmatmul.bf16.gmra.mxu0 %v4735
  %v4746 = vpop.f32.mrf.mxu0
  %v4747 = vadd.f32 %v4558, %v4746
  %v4748 = vpop.f32.mrf.mxu0
  %4749 = vdwg.mxu0
  %4750 = vmatpush.bf16.msra.mxu0 0
  %4751 = vmatpush.bf16.msra.mxu0 0
  %4752 = vmatpush.bf16.msra.mxu0 0
  %4753 = vmatpush.bf16.msra.mxu0 0
  %4754 = vmatpush.bf16.msra.mxu0 0
  %4755 = vmatpush.bf16.msra.mxu0 0
  %4756 = vmatpush.bf16.msra.mxu0 %v4687
  %4757 = vmatpush.bf16.msra.mxu0 %v4671
  %4758 = vmatmul.bf16.gmra.mxu0 %v4735
  %v4759 = vpop.f32.mrf.mxu0
  %v4760 = vadd.f32 %v4559, %v4759
  %v4761 = vpop.f32.mrf.mxu0
  %4762 = vdwg.mxu0
  %4763 = vmatpush.bf16.msra.mxu0 0
  %4764 = vmatpush.bf16.msra.mxu0 0
  %4765 = vmatpush.bf16.msra.mxu0 0
  %4766 = vmatpush.bf16.msra.mxu0 0
  %4767 = vmatpush.bf16.msra.mxu0 0
  %4768 = vmatpush.bf16.msra.mxu0 0
  %4769 = vmatpush.bf16.msra.mxu0 %v4688
  %4770 = vmatpush.bf16.msra.mxu0 %v4672
  %4771 = vmatmul.bf16.gmra.mxu0 %v4735
  %v4772 = vpop.f32.mrf.mxu0
  %v4773 = vadd.f32 %v4560, %v4772
  %v4774 = vpop.f32.mrf.mxu0
  %4775 = vdwg.mxu0
  %4776 = vmatpush.bf16.msra.mxu0 0
  %4777 = vmatpush.bf16.msra.mxu0 0
  %4778 = vmatpush.bf16.msra.mxu0 0
  %4779 = vmatpush.bf16.msra.mxu0 0
  %4780 = vmatpush.bf16.msra.mxu0 0
  %4781 = vmatpush.bf16.msra.mxu0 0
  %4782 = vmatpush.bf16.msra.mxu0 %v4689
  %4783 = vmatpush.bf16.msra.mxu0 %v4673
  %4784 = vmatmul.bf16.gmra.mxu0 %v4735
  %v4785 = vpop.f32.mrf.mxu0
  %v4786 = vadd.f32 %v4561, %v4785
  %v4787 = vpop.f32.mrf.mxu0
  %4788 = vdwg.mxu0
  %4789 = vmatpush.bf16.msra.mxu0 0
  %4790 = vmatpush.bf16.msra.mxu0 0
  %4791 = vmatpush.bf16.msra.mxu0 0
  %4792 = vmatpush.bf16.msra.mxu0 0
  %4793 = vmatpush.bf16.msra.mxu0 0
  %4794 = vmatpush.bf16.msra.mxu0 0
  %4795 = vmatpush.bf16.msra.mxu0 %v4690
  %4796 = vmatpush.bf16.msra.mxu0 %v4674
  %4797 = vmatmul.bf16.gmra.mxu0 %v4735
  %v4798 = vpop.f32.mrf.mxu0
  %v4799 = vadd.f32 %v4562, %v4798
  %v4800 = vpop.f32.mrf.mxu0
  %4801 = vdwg.mxu0
  %4802 = vmatpush.bf16.msra.mxu0 0
  %4803 = vmatpush.bf16.msra.mxu0 0
  %4804 = vmatpush.bf16.msra.mxu0 0
  %4805 = vmatpush.bf16.msra.mxu0 0
  %4806 = vmatpush.bf16.msra.mxu0 0
  %4807 = vmatpush.bf16.msra.mxu0 0
  %4808 = vmatpush.bf16.msra.mxu0 %v4691
  %4809 = vmatpush.bf16.msra.mxu0 %v4675
  %4810 = vmatmul.bf16.gmra.mxu0 %v4735
  %v4811 = vpop.f32.mrf.mxu0
  %v4812 = vadd.f32 %v4563, %v4811
  %v4813 = vpop.f32.mrf.mxu0
  %4814 = vdwg.mxu0
  %4815 = vmatpush.bf16.msra.mxu0 0
  %4816 = vmatpush.bf16.msra.mxu0 0
  %4817 = vmatpush.bf16.msra.mxu0 0
  %4818 = vmatpush.bf16.msra.mxu0 0
  %4819 = vmatpush.bf16.msra.mxu0 0
  %4820 = vmatpush.bf16.msra.mxu0 0
  %4821 = vmatpush.bf16.msra.mxu0 %v4692
  %4822 = vmatpush.bf16.msra.mxu0 %v4676
  %4823 = vmatmul.bf16.gmra.mxu0 %v4735
  %v4824 = vpop.f32.mrf.mxu0
  %v4825 = vadd.f32 %v4564, %v4824
  %v4826 = vpop.f32.mrf.mxu0
  %4827 = vdwg.mxu0
  %4828 = vmatpush.bf16.msra.mxu0 0
  %4829 = vmatpush.bf16.msra.mxu0 0
  %4830 = vmatpush.bf16.msra.mxu0 0
  %4831 = vmatpush.bf16.msra.mxu0 0
  %4832 = vmatpush.bf16.msra.mxu0 0
  %4833 = vmatpush.bf16.msra.mxu0 0
  %4834 = vmatpush.bf16.msra.mxu0 %v4693
  %4835 = vmatpush.bf16.msra.mxu0 %v4677
  %4836 = vmatmul.bf16.gmra.mxu0 %v4735
  %v4837 = vpop.f32.mrf.mxu0
  %v4838 = vadd.f32 %v4565, %v4837
  %v4839 = vpop.f32.mrf.mxu0
  %4840 = vdwg.mxu0
  %4841 = vmatpush.bf16.msra.mxu0 0
  %4842 = vmatpush.bf16.msra.mxu0 0
  %4843 = vmatpush.bf16.msra.mxu0 0
  %4844 = vmatpush.bf16.msra.mxu0 0
  %4845 = vmatpush.bf16.msra.mxu0 0
  %4846 = vmatpush.bf16.msra.mxu0 0
  %4847 = vmatpush.bf16.msra.mxu0 %v4694
  %4848 = vmatpush.bf16.msra.mxu0 %v4678
  %4849 = vmatmul.bf16.gmra.mxu0 %v4735
  %v4850 = vpop.f32.mrf.mxu0
  %v4851 = vadd.f32 %v4566, %v4850
  %v4852 = vpop.f32.mrf.mxu0
  %4853 = vdwg.mxu0
  %4854 = vmatpush.bf16.msra.mxu0 0
  %4855 = vmatpush.bf16.msra.mxu0 0
  %4856 = vmatpush.bf16.msra.mxu0 0
  %4857 = vmatpush.bf16.msra.mxu0 0
  %4858 = vmatpush.bf16.msra.mxu0 0
  %4859 = vmatpush.bf16.msra.mxu0 0
  %4860 = vmatpush.bf16.msra.mxu0 %v4695
  %4861 = vmatpush.bf16.msra.mxu0 %v4679
  %4862 = vmatmul.bf16.gmra.mxu0 %v4735
  %v4863 = vpop.f32.mrf.mxu0
  %v4864 = vadd.f32 %v4567, %v4863
  %v4865 = vpop.f32.mrf.mxu0
  %4866 = vdwg.mxu0
  %4867 = vmatpush.bf16.msra.mxu0 0
  %4868 = vmatpush.bf16.msra.mxu0 0
  %4869 = vmatpush.bf16.msra.mxu0 0
  %4870 = vmatpush.bf16.msra.mxu0 0
  %4871 = vmatpush.bf16.msra.mxu0 0
  %4872 = vmatpush.bf16.msra.mxu0 0
  %4873 = vmatpush.bf16.msra.mxu0 %v4696
  %4874 = vmatpush.bf16.msra.mxu0 %v4680
  %4875 = vmatmul.bf16.gmra.mxu0 %v4735
  %v4876 = vpop.f32.mrf.mxu0
  %v4877 = vadd.f32 %v4568, %v4876
  %v4878 = vpop.f32.mrf.mxu0
  %4879 = vdwg.mxu0
  %4880 = vmatpush.bf16.msra.mxu0 0
  %4881 = vmatpush.bf16.msra.mxu0 0
  %4882 = vmatpush.bf16.msra.mxu0 0
  %4883 = vmatpush.bf16.msra.mxu0 0
  %4884 = vmatpush.bf16.msra.mxu0 0
  %4885 = vmatpush.bf16.msra.mxu0 0
  %4886 = vmatpush.bf16.msra.mxu0 %v4697
  %4887 = vmatpush.bf16.msra.mxu0 %v4681
  %4888 = vmatmul.bf16.gmra.mxu0 %v4735
  %v4889 = vpop.f32.mrf.mxu0
  %v4890 = vadd.f32 %v4569, %v4889
  %v4891 = vpop.f32.mrf.mxu0
  %4892 = vdwg.mxu0
  %4893 = vmatpush.bf16.msra.mxu0 0
  %4894 = vmatpush.bf16.msra.mxu0 0
  %4895 = vmatpush.bf16.msra.mxu0 0
  %4896 = vmatpush.bf16.msra.mxu0 0
  %4897 = vmatpush.bf16.msra.mxu0 0
  %4898 = vmatpush.bf16.msra.mxu0 0
  %4899 = vmatpush.bf16.msra.mxu0 %v4698
  %4900 = vmatpush.bf16.msra.mxu0 %v4682
  %4901 = vmatmul.bf16.gmra.mxu0 %v4735
  %v4902 = vpop.f32.mrf.mxu0
  %v4903 = vadd.f32 %v4570, %v4902
  %v4904 = vpop.f32.mrf.mxu0
  %4905 = vdwg.mxu0
  %4906 = vmatpush.bf16.msra.mxu0 0
  %4907 = vmatpush.bf16.msra.mxu0 0
  %4908 = vmatpush.bf16.msra.mxu0 0
  %4909 = vmatpush.bf16.msra.mxu0 0
  %4910 = vmatpush.bf16.msra.mxu0 0
  %4911 = vmatpush.bf16.msra.mxu0 0
  %4912 = vmatpush.bf16.msra.mxu0 %v4699
  %4913 = vmatpush.bf16.msra.mxu0 %v4683
  %4914 = vmatmul.bf16.gmra.mxu0 %v4735
  %v4915 = vpop.f32.mrf.mxu0
  %v4916 = vadd.f32 %v4571, %v4915
  %v4917 = vpop.f32.mrf.mxu0
  %4918 = vdwg.mxu0
  %4919 = vmatpush.bf16.msra.mxu0 0
  %4920 = vmatpush.bf16.msra.mxu0 0
  %4921 = vmatpush.bf16.msra.mxu0 0
  %4922 = vmatpush.bf16.msra.mxu0 0
  %4923 = vmatpush.bf16.msra.mxu0 0
  %4924 = vmatpush.bf16.msra.mxu0 0
  %4925 = vmatpush.bf16.msra.mxu0 %v4700
  %4926 = vmatpush.bf16.msra.mxu0 %v4684
  %4927 = vmatmul.bf16.gmra.mxu0 %v4735
  %v4928 = vpop.f32.mrf.mxu0
  %v4929 = vadd.f32 %v4572, %v4928
  %v4930 = vpop.f32.mrf.mxu0
  %4931 = vdwg.mxu0
  %4932 = vmatpush.bf16.msra.mxu0 0
  %4933 = vmatpush.bf16.msra.mxu0 0
  %4934 = vmatpush.bf16.msra.mxu0 0
  %4935 = vmatpush.bf16.msra.mxu0 0
  %4936 = vmatpush.bf16.msra.mxu0 0
  %4937 = vmatpush.bf16.msra.mxu0 0
  %4938 = vmatpush.bf16.msra.mxu0 %v4701
  %4939 = vmatpush.bf16.msra.mxu0 %v4685
  %4940 = vmatmul.bf16.gmra.mxu0 %v4735
  %v4941 = vpop.f32.mrf.mxu0
  %v4942 = vadd.f32 %v4573, %v4941
  %v4943 = vpop.f32.mrf.mxu0
  %4944 = vdwg.mxu0
  %v4945 = vmax.f32 %v4747, 0.0
  %v4946 = vmax.f32 %v4760, 0.0
  %v4947 = vmax.f32 %v4773, 0.0
  %v4948 = vmax.f32 %v4786, 0.0
  %v4949 = vmax.f32 %v4799, 0.0
  %v4950 = vmax.f32 %v4812, 0.0
  %v4951 = vmax.f32 %v4825, 0.0
  %v4952 = vmax.f32 %v4838, 0.0
  %v4953 = vmax.f32 %v4851, 0.0
  %v4954 = vmax.f32 %v4864, 0.0
  %v4955 = vmax.f32 %v4877, 0.0
  %v4956 = vmax.f32 %v4890, 0.0
  %v4957 = vmax.f32 %v4903, 0.0
  %v4958 = vmax.f32 %v4916, 0.0
  %v4959 = vmax.f32 %v4929, 0.0
  %v4960 = vmax.f32 %v4942, 0.0
  %v4961 = vpack.c.bf16 %v4945, %v4945
  %v4962 = vpack.c.bf16 %v4946, %v4946
  %v4963 = vpack.c.bf16 %v4947, %v4947
  %v4964 = vpack.c.bf16 %v4948, %v4948
  %v4965 = vpack.c.bf16 %v4949, %v4949
  %v4966 = vpack.c.bf16 %v4950, %v4950
  %v4967 = vpack.c.bf16 %v4951, %v4951
  %v4968 = vpack.c.bf16 %v4952, %v4952
  %v4969 = vpack.c.bf16 %v4953, %v4953
  %v4970 = vpack.c.bf16 %v4954, %v4954
  %v4971 = vpack.c.bf16 %v4955, %v4955
  %v4972 = vpack.c.bf16 %v4956, %v4956
  %v4973 = vpack.c.bf16 %v4957, %v4957
  %v4974 = vpack.c.bf16 %v4958, %v4958
  %v4975 = vpack.c.bf16 %v4959, %v4959
  %v4976 = vpack.c.bf16 %v4960, %v4960
  %v4977 = vperm.slane %v35, 5
  %v5234 = vunpack.c.l.b16 %v4269
  %v5235 = vunpack.c.l.b16 %v4270
  %v5236 = vunpack.c.l.b16 %v4271
  %v5237 = vunpack.c.l.b16 %v4272
  %v5238 = vunpack.c.l.b16 %v4273
  %v5239 = vunpack.c.l.b16 %v4274
  %v5240 = vunpack.c.l.b16 %v4275
  %v5241 = vunpack.c.l.b16 %v4276
  %v5242 = vunpack.c.l.b16 %v4277
  %v5243 = vunpack.c.l.b16 %v4278
  %v5244 = vunpack.c.l.b16 %v4279
  %v5245 = vunpack.c.l.b16 %v4280
  %v5246 = vunpack.c.l.b16 %v4281
  %v5247 = vunpack.c.l.b16 %v4282
  %v5248 = vunpack.c.l.b16 %v4283
  %v5249 = vunpack.c.l.b16 %v4284
  %v5250 = vunpack.c.l.b16 %v4285
  %v5251 = vunpack.c.l.b16 %v4286
  %v5252 = vunpack.c.l.b16 %v4287
  %v5253 = vunpack.c.l.b16 %v4288
  %v5254 = vunpack.c.l.b16 %v4289
  %v5255 = vunpack.c.l.b16 %v4290
  %v5256 = vunpack.c.l.b16 %v4291
  %v5257 = vunpack.c.l.b16 %v4292
  %v5258 = vunpack.c.l.b16 %v4293
  %v5259 = vunpack.c.l.b16 %v4294
  %v5260 = vunpack.c.l.b16 %v4295
  %v5261 = vunpack.c.l.b16 %v4296
  %v5262 = vunpack.c.l.b16 %v4297
  %v5263 = vunpack.c.l.b16 %v4298
  %v5264 = vunpack.c.l.b16 %v4299
  %v5265 = vunpack.c.l.b16 %v4300
  %v5266 = vunpack.c.l.b16 %v4301
  %v5267 = vunpack.c.l.b16 %v4302
  %v5268 = vunpack.c.l.b16 %v4303
  %v5269 = vunpack.c.l.b16 %v4304
  %v5270 = vunpack.c.l.b16 %v4305
  %v5271 = vunpack.c.l.b16 %v4306
  %v5272 = vunpack.c.l.b16 %v4307
  %v5273 = vunpack.c.l.b16 %v4308
  %v5274 = vunpack.c.l.b16 %v4309
  %v5275 = vunpack.c.l.b16 %v4310
  %v5276 = vunpack.c.l.b16 %v4311
  %v5277 = vunpack.c.l.b16 %v4312
  %v5278 = vunpack.c.l.b16 %v4313
  %v5279 = vunpack.c.l.b16 %v4314
  %v5280 = vunpack.c.l.b16 %v4315
  %v5281 = vunpack.c.l.b16 %v4316
  %v5282 = vunpack.c.l.b16 %v4317
  %v5283 = vunpack.c.l.b16 %v4318
  %v5284 = vunpack.c.l.b16 %v4319
  %v5285 = vunpack.c.l.b16 %v4320
  %v5286 = vunpack.c.l.b16 %v4321
  %v5287 = vunpack.c.l.b16 %v4322
  %v5288 = vunpack.c.l.b16 %v4323
  %v5289 = vunpack.c.l.b16 %v4324
  %v5290 = vunpack.c.l.b16 %v4325
  %v5291 = vunpack.c.l.b16 %v4326
  %v5292 = vunpack.c.l.b16 %v4327
  %v5293 = vunpack.c.l.b16 %v4328
  %v5294 = vunpack.c.l.b16 %v4329
  %v5295 = vunpack.c.l.b16 %v4330
  %v5296 = vunpack.c.l.b16 %v4331
  %v5297 = vunpack.c.l.b16 %v4332
  %v5298 = vunpack.c.l.b16 %v4333
  %v5299 = vunpack.c.l.b16 %v4334
  %v5300 = vunpack.c.l.b16 %v4335
  %v5301 = vunpack.c.l.b16 %v4336
  %v5302 = vunpack.c.l.b16 %v4337
  %v5303 = vunpack.c.l.b16 %v4338
  %v5304 = vunpack.c.l.b16 %v4339
  %v5305 = vunpack.c.l.b16 %v4340
  %v5306 = vunpack.c.l.b16 %v4341
  %v5307 = vunpack.c.l.b16 %v4342
  %v5308 = vunpack.c.l.b16 %v4343
  %v5309 = vunpack.c.l.b16 %v4344
  %v5310 = vunpack.c.l.b16 %v4345
  %v5311 = vunpack.c.l.b16 %v4346
  %v5312 = vunpack.c.l.b16 %v4347
  %v5313 = vunpack.c.l.b16 %v4348
  %v5314 = vunpack.c.l.b16 %v4349
  %v5315 = vunpack.c.l.b16 %v4350
  %v5316 = vunpack.c.l.b16 %v4351
  %v5317 = vunpack.c.l.b16 %v4352
  %v5318 = vunpack.c.l.b16 %v4353
  %v5319 = vunpack.c.l.b16 %v4354
  %v5320 = vunpack.c.l.b16 %v4355
  %v5321 = vunpack.c.l.b16 %v4356
  %v5322 = vunpack.c.l.b16 %v4357
  %v5323 = vunpack.c.l.b16 %v4358
  %v5324 = vunpack.c.l.b16 %v4359
  %v5325 = vunpack.c.l.b16 %v4360
  %v5326 = vunpack.c.l.b16 %v4361
  %v5327 = vunpack.c.l.b16 %v4362
  %v5328 = vunpack.c.l.b16 %v4363
  %v5329 = vunpack.c.l.b16 %v4364
  %v5330 = vunpack.c.l.b16 %v4365
  %v5331 = vunpack.c.l.b16 %v4366
  %v5332 = vunpack.c.l.b16 %v4367
  %v5333 = vunpack.c.l.b16 %v4368
  %v5334 = vunpack.c.l.b16 %v4369
  %v5335 = vunpack.c.l.b16 %v4370
  %v5336 = vunpack.c.l.b16 %v4371
  %v5337 = vunpack.c.l.b16 %v4372
  %v5338 = vunpack.c.l.b16 %v4373
  %v5339 = vunpack.c.l.b16 %v4374
  %v5340 = vunpack.c.l.b16 %v4375
  %v5341 = vunpack.c.l.b16 %v4376
  %v5342 = vunpack.c.l.b16 %v4377
  %v5343 = vunpack.c.l.b16 %v4378
  %v5344 = vunpack.c.l.b16 %v4379
  %v5345 = vunpack.c.l.b16 %v4380
  %v5346 = vunpack.c.l.b16 %v4381
  %v5347 = vunpack.c.l.b16 %v4382
  %v5348 = vunpack.c.l.b16 %v4383
  %v5349 = vunpack.c.l.b16 %v4384
  %v5350 = vunpack.c.l.b16 %v4385
  %v5351 = vunpack.c.l.b16 %v4386
  %v5352 = vunpack.c.l.b16 %v4387
  %v5353 = vunpack.c.l.b16 %v4388
  %v5354 = vunpack.c.l.b16 %v4389
  %v5355 = vunpack.c.l.b16 %v4390
  %v5356 = vunpack.c.l.b16 %v4391
  %v5357 = vunpack.c.l.b16 %v4392
  %v5358 = vunpack.c.l.b16 %v4393
  %v5359 = vunpack.c.l.b16 %v4394
  %v5360 = vunpack.c.l.b16 %v4395
  %v5361 = vunpack.c.l.b16 %v4396
  %v5362 = vunpack.c.l.b16 %v4397
  %v5363 = vunpack.c.l.b16 %v4398
  %v5364 = vunpack.c.l.b16 %v4399
  %v5365 = vunpack.c.l.b16 %v4400
  %v5366 = vunpack.c.l.b16 %v4401
  %v5367 = vunpack.c.l.b16 %v4402
  %v5368 = vunpack.c.l.b16 %v4403
  %v5369 = vunpack.c.l.b16 %v4404
  %v5370 = vunpack.c.l.b16 %v4405
  %v5371 = vunpack.c.l.b16 %v4406
  %v5372 = vunpack.c.l.b16 %v4407
  %v5373 = vunpack.c.l.b16 %v4408
  %v5374 = vunpack.c.l.b16 %v4409
  %v5375 = vunpack.c.l.b16 %v4410
  %v5376 = vunpack.c.l.b16 %v4411
  %v5377 = vunpack.c.l.b16 %v4412
  %v5378 = vunpack.c.l.b16 %v4413
  %v5379 = vunpack.c.l.b16 %v4414
  %v5380 = vunpack.c.l.b16 %v4415
  %v5381 = vunpack.c.l.b16 %v4416
  %v5382 = vunpack.c.l.b16 %v4417
  %v5383 = vunpack.c.l.b16 %v4418
  %v5384 = vunpack.c.l.b16 %v4419
  %v5385 = vunpack.c.l.b16 %v4420
  %v5386 = vunpack.c.l.b16 %v4421
  %v5387 = vunpack.c.l.b16 %v4422
  %v5388 = vunpack.c.l.b16 %v4423
  %v5389 = vunpack.c.l.b16 %v4424
  %v5390 = vunpack.c.l.b16 %v4425
  %v5391 = vunpack.c.l.b16 %v4426
  %v5392 = vunpack.c.l.b16 %v4427
  %v5393 = vunpack.c.l.b16 %v4428
  %v5394 = vunpack.c.l.b16 %v4429
  %v5395 = vunpack.c.l.b16 %v4430
  %v5396 = vunpack.c.l.b16 %v4431
  %v5397 = vunpack.c.l.b16 %v4432
  %v5398 = vunpack.c.l.b16 %v4433
  %v5399 = vunpack.c.l.b16 %v4434
  %v5400 = vunpack.c.l.b16 %v4435
  %v5401 = vunpack.c.l.b16 %v4436
  %v5402 = vunpack.c.l.b16 %v4437
  %v5403 = vunpack.c.l.b16 %v4438
  %v5404 = vunpack.c.l.b16 %v4439
  %v5405 = vunpack.c.l.b16 %v4440
  %v5406 = vunpack.c.l.b16 %v4441
  %v5407 = vunpack.c.l.b16 %v4442
  %v5408 = vunpack.c.l.b16 %v4443
  %v5409 = vunpack.c.l.b16 %v4444
  %v5410 = vunpack.c.l.b16 %v4445
  %v5411 = vunpack.c.l.b16 %v4446
  %v5412 = vunpack.c.l.b16 %v4447
  %v5413 = vunpack.c.l.b16 %v4448
  %v5414 = vunpack.c.l.b16 %v4449
  %v5415 = vunpack.c.l.b16 %v4450
  %v5416 = vunpack.c.l.b16 %v4451
  %v5417 = vunpack.c.l.b16 %v4452
  %v5418 = vunpack.c.l.b16 %v4453
  %v5419 = vunpack.c.l.b16 %v4454
  %v5420 = vunpack.c.l.b16 %v4455
  %v5421 = vunpack.c.l.b16 %v4456
  %v5422 = vunpack.c.l.b16 %v4457
  %v5423 = vunpack.c.l.b16 %v4458
  %v5424 = vunpack.c.l.b16 %v4459
  %v5425 = vunpack.c.l.b16 %v4460
  %v5426 = vunpack.c.l.b16 %v4461
  %v5427 = vunpack.c.l.b16 %v4462
  %v5428 = vunpack.c.l.b16 %v4463
  %v5429 = vunpack.c.l.b16 %v4464
  %v5430 = vunpack.c.l.b16 %v4465
  %v5431 = vunpack.c.l.b16 %v4466
  %v5432 = vunpack.c.l.b16 %v4467
  %v5433 = vunpack.c.l.b16 %v4468
  %v5434 = vunpack.c.l.b16 %v4469
  %v5435 = vunpack.c.l.b16 %v4470
  %v5436 = vunpack.c.l.b16 %v4471
  %v5437 = vunpack.c.l.b16 %v4472
  %v5438 = vunpack.c.l.b16 %v4473
  %v5439 = vunpack.c.l.b16 %v4474
  %v5440 = vunpack.c.l.b16 %v4475
  %v5441 = vunpack.c.l.b16 %v4476
  %v5442 = vunpack.c.l.b16 %v4477
  %v5443 = vunpack.c.l.b16 %v4478
  %v5444 = vunpack.c.l.b16 %v4479
  %v5445 = vunpack.c.l.b16 %v4480
  %v5446 = vunpack.c.l.b16 %v4481
  %v5447 = vunpack.c.l.b16 %v4482
  %v5448 = vunpack.c.l.b16 %v4483
  %v5449 = vunpack.c.l.b16 %v4484
  %v5450 = vunpack.c.l.b16 %v4485
  %v5451 = vunpack.c.l.b16 %v4486
  %v5452 = vunpack.c.l.b16 %v4487
  %v5453 = vunpack.c.l.b16 %v4488
  %v5454 = vunpack.c.l.b16 %v4489
  %v5455 = vunpack.c.l.b16 %v4490
  %v5456 = vunpack.c.l.b16 %v4491
  %v5457 = vunpack.c.l.b16 %v4492
  %v5458 = vunpack.c.l.b16 %v4493
  %v5459 = vunpack.c.l.b16 %v4494
  %v5460 = vunpack.c.l.b16 %v4495
  %v5461 = vunpack.c.l.b16 %v4496
  %v5462 = vunpack.c.l.b16 %v4497
  %v5463 = vunpack.c.l.b16 %v4498
  %v5464 = vunpack.c.l.b16 %v4499
  %v5465 = vunpack.c.l.b16 %v4500
  %v5466 = vunpack.c.l.b16 %v4501
  %v5467 = vunpack.c.l.b16 %v4502
  %v5468 = vunpack.c.l.b16 %v4503
  %v5469 = vunpack.c.l.b16 %v4504
  %v5470 = vunpack.c.l.b16 %v4505
  %v5471 = vunpack.c.l.b16 %v4506
  %v5472 = vunpack.c.l.b16 %v4507
  %v5473 = vunpack.c.l.b16 %v4508
  %v5474 = vunpack.c.l.b16 %v4509
  %v5475 = vunpack.c.l.b16 %v4510
  %v5476 = vunpack.c.l.b16 %v4511
  %v5477 = vunpack.c.l.b16 %v4512
  %v5478 = vunpack.c.l.b16 %v4513
  %v5479 = vunpack.c.l.b16 %v4514
  %v5480 = vunpack.c.l.b16 %v4515
  %v5481 = vunpack.c.l.b16 %v4516
  %v5482 = vunpack.c.l.b16 %v4517
  %v5483 = vunpack.c.l.b16 %v4518
  %v5484 = vunpack.c.l.b16 %v4519
  %v5485 = vunpack.c.l.b16 %v4520
  %v5486 = vunpack.c.l.b16 %v4521
  %v5487 = vunpack.c.l.b16 %v4522
  %v5488 = vunpack.c.l.b16 %v4523
  %v5489 = vunpack.c.l.b16 %v4524
  %v5490 = vpack.c.b16 %v5235, %v5234
  %v5491 = vpack.c.b16 %v5237, %v5236
  %v5492 = vpack.c.b16 %v5239, %v5238
  %v5493 = vpack.c.b16 %v5241, %v5240
  %v5494 = vpack.c.b16 %v5243, %v5242
  %v5495 = vpack.c.b16 %v5245, %v5244
  %v5496 = vpack.c.b16 %v5247, %v5246
  %v5497 = vpack.c.b16 %v5249, %v5248
  %v5498 = vpack.c.b16 %v5251, %v5250
  %v5499 = vpack.c.b16 %v5253, %v5252
  %v5500 = vpack.c.b16 %v5255, %v5254
  %v5501 = vpack.c.b16 %v5257, %v5256
  %v5502 = vpack.c.b16 %v5259, %v5258
  %v5503 = vpack.c.b16 %v5261, %v5260
  %v5504 = vpack.c.b16 %v5263, %v5262
  %v5505 = vpack.c.b16 %v5265, %v5264
  %v5506 = vpack.c.b16 %v5267, %v5266
  %v5507 = vpack.c.b16 %v5269, %v5268
  %v5508 = vpack.c.b16 %v5271, %v5270
  %v5509 = vpack.c.b16 %v5273, %v5272
  %v5510 = vpack.c.b16 %v5275, %v5274
  %v5511 = vpack.c.b16 %v5277, %v5276
  %v5512 = vpack.c.b16 %v5279, %v5278
  %v5513 = vpack.c.b16 %v5281, %v5280
  %v5514 = vpack.c.b16 %v5283, %v5282
  %v5515 = vpack.c.b16 %v5285, %v5284
  %v5516 = vpack.c.b16 %v5287, %v5286
  %v5517 = vpack.c.b16 %v5289, %v5288
  %v5518 = vpack.c.b16 %v5291, %v5290
  %v5519 = vpack.c.b16 %v5293, %v5292
  %v5520 = vpack.c.b16 %v5295, %v5294
  %v5521 = vpack.c.b16 %v5297, %v5296
  %v5522 = vpack.c.b16 %v5299, %v5298
  %v5523 = vpack.c.b16 %v5301, %v5300
  %v5524 = vpack.c.b16 %v5303, %v5302
  %v5525 = vpack.c.b16 %v5305, %v5304
  %v5526 = vpack.c.b16 %v5307, %v5306
  %v5527 = vpack.c.b16 %v5309, %v5308
  %v5528 = vpack.c.b16 %v5311, %v5310
  %v5529 = vpack.c.b16 %v5313, %v5312
  %v5530 = vpack.c.b16 %v5315, %v5314
  %v5531 = vpack.c.b16 %v5317, %v5316
  %v5532 = vpack.c.b16 %v5319, %v5318
  %v5533 = vpack.c.b16 %v5321, %v5320
  %v5534 = vpack.c.b16 %v5323, %v5322
  %v5535 = vpack.c.b16 %v5325, %v5324
  %v5536 = vpack.c.b16 %v5327, %v5326
  %v5537 = vpack.c.b16 %v5329, %v5328
  %v5538 = vpack.c.b16 %v5331, %v5330
  %v5539 = vpack.c.b16 %v5333, %v5332
  %v5540 = vpack.c.b16 %v5335, %v5334
  %v5541 = vpack.c.b16 %v5337, %v5336
  %v5542 = vpack.c.b16 %v5339, %v5338
  %v5543 = vpack.c.b16 %v5341, %v5340
  %v5544 = vpack.c.b16 %v5343, %v5342
  %v5545 = vpack.c.b16 %v5345, %v5344
  %v5546 = vpack.c.b16 %v5347, %v5346
  %v5547 = vpack.c.b16 %v5349, %v5348
  %v5548 = vpack.c.b16 %v5351, %v5350
  %v5549 = vpack.c.b16 %v5353, %v5352
  %v5550 = vpack.c.b16 %v5355, %v5354
  %v5551 = vpack.c.b16 %v5357, %v5356
  %v5552 = vpack.c.b16 %v5359, %v5358
  %v5553 = vpack.c.b16 %v5361, %v5360
  %v5554 = vpack.c.b16 %v5363, %v5362
  %v5555 = vpack.c.b16 %v5365, %v5364
  %v5556 = vpack.c.b16 %v5367, %v5366
  %v5557 = vpack.c.b16 %v5369, %v5368
  %v5558 = vpack.c.b16 %v5371, %v5370
  %v5559 = vpack.c.b16 %v5373, %v5372
  %v5560 = vpack.c.b16 %v5375, %v5374
  %v5561 = vpack.c.b16 %v5377, %v5376
  %v5562 = vpack.c.b16 %v5379, %v5378
  %v5563 = vpack.c.b16 %v5381, %v5380
  %v5564 = vpack.c.b16 %v5383, %v5382
  %v5565 = vpack.c.b16 %v5385, %v5384
  %v5566 = vpack.c.b16 %v5387, %v5386
  %v5567 = vpack.c.b16 %v5389, %v5388
  %v5568 = vpack.c.b16 %v5391, %v5390
  %v5569 = vpack.c.b16 %v5393, %v5392
  %v5570 = vpack.c.b16 %v5395, %v5394
  %v5571 = vpack.c.b16 %v5397, %v5396
  %v5572 = vpack.c.b16 %v5399, %v5398
  %v5573 = vpack.c.b16 %v5401, %v5400
  %v5574 = vpack.c.b16 %v5403, %v5402
  %v5575 = vpack.c.b16 %v5405, %v5404
  %v5576 = vpack.c.b16 %v5407, %v5406
  %v5577 = vpack.c.b16 %v5409, %v5408
  %v5578 = vpack.c.b16 %v5411, %v5410
  %v5579 = vpack.c.b16 %v5413, %v5412
  %v5580 = vpack.c.b16 %v5415, %v5414
  %v5581 = vpack.c.b16 %v5417, %v5416
  %v5582 = vpack.c.b16 %v5419, %v5418
  %v5583 = vpack.c.b16 %v5421, %v5420
  %v5584 = vpack.c.b16 %v5423, %v5422
  %v5585 = vpack.c.b16 %v5425, %v5424
  %v5586 = vpack.c.b16 %v5427, %v5426
  %v5587 = vpack.c.b16 %v5429, %v5428
  %v5588 = vpack.c.b16 %v5431, %v5430
  %v5589 = vpack.c.b16 %v5433, %v5432
  %v5590 = vpack.c.b16 %v5435, %v5434
  %v5591 = vpack.c.b16 %v5437, %v5436
  %v5592 = vpack.c.b16 %v5439, %v5438
  %v5593 = vpack.c.b16 %v5441, %v5440
  %v5594 = vpack.c.b16 %v5443, %v5442
  %v5595 = vpack.c.b16 %v5445, %v5444
  %v5596 = vpack.c.b16 %v5447, %v5446
  %v5597 = vpack.c.b16 %v5449, %v5448
  %v5598 = vpack.c.b16 %v5451, %v5450
  %v5599 = vpack.c.b16 %v5453, %v5452
  %v5600 = vpack.c.b16 %v5455, %v5454
  %v5601 = vpack.c.b16 %v5457, %v5456
  %v5602 = vpack.c.b16 %v5459, %v5458
  %v5603 = vpack.c.b16 %v5461, %v5460
  %v5604 = vpack.c.b16 %v5463, %v5462
  %v5605 = vpack.c.b16 %v5465, %v5464
  %v5606 = vpack.c.b16 %v5467, %v5466
  %v5607 = vpack.c.b16 %v5469, %v5468
  %v5608 = vpack.c.b16 %v5471, %v5470
  %v5609 = vpack.c.b16 %v5473, %v5472
  %v5610 = vpack.c.b16 %v5475, %v5474
  %v5611 = vpack.c.b16 %v5477, %v5476
  %v5612 = vpack.c.b16 %v5479, %v5478
  %v5613 = vpack.c.b16 %v5481, %v5480
  %v5614 = vpack.c.b16 %v5483, %v5482
  %v5615 = vpack.c.b16 %v5485, %v5484
  %v5616 = vpack.c.b16 %v5487, %v5486
  %v5617 = vpack.c.b16 %v5489, %v5488
  %5746 = vmatpush.bf16.msra.mxu0 %v5497
  %5747 = vmatpush.bf16.msra.mxu0 %v5496
  %5748 = vmatpush.bf16.msra.mxu0 %v5495
  %5749 = vmatpush.bf16.msra.mxu0 %v5494
  %5750 = vmatpush.bf16.msra.mxu0 %v5493
  %5751 = vmatpush.bf16.msra.mxu0 %v5492
  %5752 = vmatpush.bf16.msra.mxu0 %v5491
  %5753 = vmatpush.bf16.msra.mxu0 %v5490
  %5754 = vmatmul.bf16.gmra.mxu0 %v4961
  %v5755 = vpop.f32.mrf.mxu0
  %v5756 = vadd.f32 %v4977, %v5755
  %v5757 = vpop.f32.mrf.mxu0
  %5758 = vdwg.mxu0
  %5759 = vmatpush.bf16.msra.mxu0 %v5505
  %5760 = vmatpush.bf16.msra.mxu0 %v5504
  %5761 = vmatpush.bf16.msra.mxu0 %v5503
  %5762 = vmatpush.bf16.msra.mxu0 %v5502
  %5763 = vmatpush.bf16.msra.mxu0 %v5501
  %5764 = vmatpush.bf16.msra.mxu0 %v5500
  %5765 = vmatpush.bf16.msra.mxu0 %v5499
  %5766 = vmatpush.bf16.msra.mxu0 %v5498
  %5767 = vmatmul.bf16.gmra.mxu0 %v4962
  %v5768 = vpop.f32.mrf.mxu0
  %v5769 = vadd.f32 %v5756, %v5768
  %v5770 = vpop.f32.mrf.mxu0
  %5771 = vdwg.mxu0
  %5772 = vmatpush.bf16.msra.mxu0 %v5513
  %5773 = vmatpush.bf16.msra.mxu0 %v5512
  %5774 = vmatpush.bf16.msra.mxu0 %v5511
  %5775 = vmatpush.bf16.msra.mxu0 %v5510
  %5776 = vmatpush.bf16.msra.mxu0 %v5509
  %5777 = vmatpush.bf16.msra.mxu0 %v5508
  %5778 = vmatpush.bf16.msra.mxu0 %v5507
  %5779 = vmatpush.bf16.msra.mxu0 %v5506
  %5780 = vmatmul.bf16.gmra.mxu0 %v4963
  %v5781 = vpop.f32.mrf.mxu0
  %v5782 = vadd.f32 %v5769, %v5781
  %v5783 = vpop.f32.mrf.mxu0
  %5784 = vdwg.mxu0
  %5785 = vmatpush.bf16.msra.mxu0 %v5521
  %5786 = vmatpush.bf16.msra.mxu0 %v5520
  %5787 = vmatpush.bf16.msra.mxu0 %v5519
  %5788 = vmatpush.bf16.msra.mxu0 %v5518
  %5789 = vmatpush.bf16.msra.mxu0 %v5517
  %5790 = vmatpush.bf16.msra.mxu0 %v5516
  %5791 = vmatpush.bf16.msra.mxu0 %v5515
  %5792 = vmatpush.bf16.msra.mxu0 %v5514
  %5793 = vmatmul.bf16.gmra.mxu0 %v4964
  %v5794 = vpop.f32.mrf.mxu0
  %v5795 = vadd.f32 %v5782, %v5794
  %v5796 = vpop.f32.mrf.mxu0
  %5797 = vdwg.mxu0
  %5798 = vmatpush.bf16.msra.mxu0 %v5529
  %5799 = vmatpush.bf16.msra.mxu0 %v5528
  %5800 = vmatpush.bf16.msra.mxu0 %v5527
  %5801 = vmatpush.bf16.msra.mxu0 %v5526
  %5802 = vmatpush.bf16.msra.mxu0 %v5525
  %5803 = vmatpush.bf16.msra.mxu0 %v5524
  %5804 = vmatpush.bf16.msra.mxu0 %v5523
  %5805 = vmatpush.bf16.msra.mxu0 %v5522
  %5806 = vmatmul.bf16.gmra.mxu0 %v4965
  %v5807 = vpop.f32.mrf.mxu0
  %v5808 = vadd.f32 %v5795, %v5807
  %v5809 = vpop.f32.mrf.mxu0
  %5810 = vdwg.mxu0
  %5811 = vmatpush.bf16.msra.mxu0 %v5537
  %5812 = vmatpush.bf16.msra.mxu0 %v5536
  %5813 = vmatpush.bf16.msra.mxu0 %v5535
  %5814 = vmatpush.bf16.msra.mxu0 %v5534
  %5815 = vmatpush.bf16.msra.mxu0 %v5533
  %5816 = vmatpush.bf16.msra.mxu0 %v5532
  %5817 = vmatpush.bf16.msra.mxu0 %v5531
  %5818 = vmatpush.bf16.msra.mxu0 %v5530
  %5819 = vmatmul.bf16.gmra.mxu0 %v4966
  %v5820 = vpop.f32.mrf.mxu0
  %v5821 = vadd.f32 %v5808, %v5820
  %v5822 = vpop.f32.mrf.mxu0
  %5823 = vdwg.mxu0
  %5824 = vmatpush.bf16.msra.mxu0 %v5545
  %5825 = vmatpush.bf16.msra.mxu0 %v5544
  %5826 = vmatpush.bf16.msra.mxu0 %v5543
  %5827 = vmatpush.bf16.msra.mxu0 %v5542
  %5828 = vmatpush.bf16.msra.mxu0 %v5541
  %5829 = vmatpush.bf16.msra.mxu0 %v5540
  %5830 = vmatpush.bf16.msra.mxu0 %v5539
  %5831 = vmatpush.bf16.msra.mxu0 %v5538
  %5832 = vmatmul.bf16.gmra.mxu0 %v4967
  %v5833 = vpop.f32.mrf.mxu0
  %v5834 = vadd.f32 %v5821, %v5833
  %v5835 = vpop.f32.mrf.mxu0
  %5836 = vdwg.mxu0
  %5837 = vmatpush.bf16.msra.mxu0 %v5553
  %5838 = vmatpush.bf16.msra.mxu0 %v5552
  %5839 = vmatpush.bf16.msra.mxu0 %v5551
  %5840 = vmatpush.bf16.msra.mxu0 %v5550
  %5841 = vmatpush.bf16.msra.mxu0 %v5549
  %5842 = vmatpush.bf16.msra.mxu0 %v5548
  %5843 = vmatpush.bf16.msra.mxu0 %v5547
  %5844 = vmatpush.bf16.msra.mxu0 %v5546
  %5845 = vmatmul.bf16.gmra.mxu0 %v4968
  %v5846 = vpop.f32.mrf.mxu0
  %v5847 = vadd.f32 %v5834, %v5846
  %v5848 = vpop.f32.mrf.mxu0
  %5849 = vdwg.mxu0
  %5850 = vmatpush.bf16.msra.mxu0 %v5561
  %5851 = vmatpush.bf16.msra.mxu0 %v5560
  %5852 = vmatpush.bf16.msra.mxu0 %v5559
  %5853 = vmatpush.bf16.msra.mxu0 %v5558
  %5854 = vmatpush.bf16.msra.mxu0 %v5557
  %5855 = vmatpush.bf16.msra.mxu0 %v5556
  %5856 = vmatpush.bf16.msra.mxu0 %v5555
  %5857 = vmatpush.bf16.msra.mxu0 %v5554
  %5858 = vmatmul.bf16.gmra.mxu0 %v4969
  %v5859 = vpop.f32.mrf.mxu0
  %v5860 = vadd.f32 %v5847, %v5859
  %v5861 = vpop.f32.mrf.mxu0
  %5862 = vdwg.mxu0
  %5863 = vmatpush.bf16.msra.mxu0 %v5569
  %5864 = vmatpush.bf16.msra.mxu0 %v5568
  %5865 = vmatpush.bf16.msra.mxu0 %v5567
  %5866 = vmatpush.bf16.msra.mxu0 %v5566
  %5867 = vmatpush.bf16.msra.mxu0 %v5565
  %5868 = vmatpush.bf16.msra.mxu0 %v5564
  %5869 = vmatpush.bf16.msra.mxu0 %v5563
  %5870 = vmatpush.bf16.msra.mxu0 %v5562
  %5871 = vmatmul.bf16.gmra.mxu0 %v4970
  %v5872 = vpop.f32.mrf.mxu0
  %v5873 = vadd.f32 %v5860, %v5872
  %v5874 = vpop.f32.mrf.mxu0
  %5875 = vdwg.mxu0
  %5876 = vmatpush.bf16.msra.mxu0 %v5577
  %5877 = vmatpush.bf16.msra.mxu0 %v5576
  %5878 = vmatpush.bf16.msra.mxu0 %v5575
  %5879 = vmatpush.bf16.msra.mxu0 %v5574
  %5880 = vmatpush.bf16.msra.mxu0 %v5573
  %5881 = vmatpush.bf16.msra.mxu0 %v5572
  %5882 = vmatpush.bf16.msra.mxu0 %v5571
  %5883 = vmatpush.bf16.msra.mxu0 %v5570
  %5884 = vmatmul.bf16.gmra.mxu0 %v4971
  %v5885 = vpop.f32.mrf.mxu0
  %v5886 = vadd.f32 %v5873, %v5885
  %v5887 = vpop.f32.mrf.mxu0
  %5888 = vdwg.mxu0
  %5889 = vmatpush.bf16.msra.mxu0 %v5585
  %5890 = vmatpush.bf16.msra.mxu0 %v5584
  %5891 = vmatpush.bf16.msra.mxu0 %v5583
  %5892 = vmatpush.bf16.msra.mxu0 %v5582
  %5893 = vmatpush.bf16.msra.mxu0 %v5581
  %5894 = vmatpush.bf16.msra.mxu0 %v5580
  %5895 = vmatpush.bf16.msra.mxu0 %v5579
  %5896 = vmatpush.bf16.msra.mxu0 %v5578
  %5897 = vmatmul.bf16.gmra.mxu0 %v4972
  %v5898 = vpop.f32.mrf.mxu0
  %v5899 = vadd.f32 %v5886, %v5898
  %v5900 = vpop.f32.mrf.mxu0
  %5901 = vdwg.mxu0
  %5902 = vmatpush.bf16.msra.mxu0 %v5593
  %5903 = vmatpush.bf16.msra.mxu0 %v5592
  %5904 = vmatpush.bf16.msra.mxu0 %v5591
  %5905 = vmatpush.bf16.msra.mxu0 %v5590
  %5906 = vmatpush.bf16.msra.mxu0 %v5589
  %5907 = vmatpush.bf16.msra.mxu0 %v5588
  %5908 = vmatpush.bf16.msra.mxu0 %v5587
  %5909 = vmatpush.bf16.msra.mxu0 %v5586
  %5910 = vmatmul.bf16.gmra.mxu0 %v4973
  %v5911 = vpop.f32.mrf.mxu0
  %v5912 = vadd.f32 %v5899, %v5911
  %v5913 = vpop.f32.mrf.mxu0
  %5914 = vdwg.mxu0
  %5915 = vmatpush.bf16.msra.mxu0 %v5601
  %5916 = vmatpush.bf16.msra.mxu0 %v5600
  %5917 = vmatpush.bf16.msra.mxu0 %v5599
  %5918 = vmatpush.bf16.msra.mxu0 %v5598
  %5919 = vmatpush.bf16.msra.mxu0 %v5597
  %5920 = vmatpush.bf16.msra.mxu0 %v5596
  %5921 = vmatpush.bf16.msra.mxu0 %v5595
  %5922 = vmatpush.bf16.msra.mxu0 %v5594
  %5923 = vmatmul.bf16.gmra.mxu0 %v4974
  %v5924 = vpop.f32.mrf.mxu0
  %v5925 = vadd.f32 %v5912, %v5924
  %v5926 = vpop.f32.mrf.mxu0
  %5927 = vdwg.mxu0
  %5928 = vmatpush.bf16.msra.mxu0 %v5609
  %5929 = vmatpush.bf16.msra.mxu0 %v5608
  %5930 = vmatpush.bf16.msra.mxu0 %v5607
  %5931 = vmatpush.bf16.msra.mxu0 %v5606
  %5932 = vmatpush.bf16.msra.mxu0 %v5605
  %5933 = vmatpush.bf16.msra.mxu0 %v5604
  %5934 = vmatpush.bf16.msra.mxu0 %v5603
  %5935 = vmatpush.bf16.msra.mxu0 %v5602
  %5936 = vmatmul.bf16.gmra.mxu0 %v4975
  %v5937 = vpop.f32.mrf.mxu0
  %v5938 = vadd.f32 %v5925, %v5937
  %v5939 = vpop.f32.mrf.mxu0
  %5940 = vdwg.mxu0
  %5941 = vmatpush.bf16.msra.mxu0 %v5617
  %5942 = vmatpush.bf16.msra.mxu0 %v5616
  %5943 = vmatpush.bf16.msra.mxu0 %v5615
  %5944 = vmatpush.bf16.msra.mxu0 %v5614
  %5945 = vmatpush.bf16.msra.mxu0 %v5613
  %5946 = vmatpush.bf16.msra.mxu0 %v5612
  %5947 = vmatpush.bf16.msra.mxu0 %v5611
  %5948 = vmatpush.bf16.msra.mxu0 %v5610
  %5949 = vmatmul.bf16.gmra.mxu0 %v4976
  %v5950 = vpop.f32.mrf.mxu0
  %v5951 = vadd.f32 %v5938, %v5950
  %v5952 = vpop.f32.mrf.mxu0
  %5953 = vdwg.mxu0
  %v5954 = vadd.f32 %v5951, %v4234
  %v5955 = vsel %vm3151, %v5954, 0.0
  %5956 = vadd.xlane.f32.xlu0 %v5955
  %v5957 = vpop.xlane.xlu0 %5956
  %v5958 = vmul.f32 %v5957, %v1164
  %v5959 = vsub.f32 %v5954, %v5958
  %v5960 = vmul.f32 %v5959, %v5959
  %v5961 = vsel %vm3151, %v5960, 0.0
  %5962 = vadd.xlane.f32.xlu0 %v5961
  %v5963 = vpop.xlane.xlu0 %5962
  %v5964 = vmul.f32 %v5963, %v1164
  %v5965 = vadd.f32 %v5964, 1e-05
  %v5966 = vrsqrt.pop %v5965
  %v5967 = vmul.f32 %v5966, %v5965
  %v5968 = vmul.f32 %v5967, %v5966
  %v5969 = vmul.f32 0.5, %v5968
  %v5970 = vsub.f32 1.5, %v5969
  %v5971 = vmul.f32 %v5966, %v5970
  %vm5972 = vweird.f32 %v5965
  %vm5973 = vweird.f32 %v5966
  %vm5974 = vmor %vm5972, %vm5973
  %v5975 = vsel %vm5974, %v5966, %v5971
  %v5976 = vmul.f32 %v5959, %v5975
  %v5977 = vperm.slane %v35, 6
  %v5978 = vmul.f32 %v5976, %v5977
  %v5979 = vperm.slane %v35, 7
  %v5980 = vadd.f32 %v5978, %v5979
  %v5981 = vperm.slane %v36, 0
  %v5982 = vmul.f32 %v5980, %v5981
  %v5983 = vsel %vm3151, %v5982, 0.0
  %5984 = vadd.xlane.f32.xlu0 %v5983
  %v5985 = vpop.xlane.xlu0 %5984
  %v5986 = vperm.slane %v36, 1
  %v5987 = vadd.f32 %v5985, %v5986
  %v5989 = vrot.slane %v5987, 1
  %5990 = vset.pattern.permute.xlu0 0
  %5991 = vperm.xlu0 %5990, %v5987
  %v5992 = vpop.permute.xlu0 %5991
  %v5994 = vperm.slane %v5992, 0
  %5995 = vset.pattern.permute.xlu0 0
  %5996 = vperm.xlu0 %5995, %v5989
  %v5997 = vpop.permute.xlu0 %5996
  %v5999 = vperm.slane %v5997, 0
  %6000 = vst [vmem:[%s9] sm:$0x1] %v5994
  %6001 = vst [vmem:[%s9 + $0x1] sm:$0x1] %v5999
  // Predicated region
  $region38: #{narx_forward.1} parent=0 // pred_check
    _
  $region39: #{narx_forward.1} parent=0 // pred_check_branch
    %6003 = sbr.rel (0) target = $region41
  $region40: #{narx_forward.1} parent=0 // pred_region
    _
  $region41: #{narx_forward.1} parent=0 // pred_fallthru
    _
  // Predicated region
  $region42: #{narx_forward.1} parent=0 // pred_check
    _
  $region43: #{narx_forward.1} parent=0 // pred_check_branch
    %6005 = sbr.rel (0) target = $region45
  $region44: #{narx_forward.1} parent=0 // pred_region
    _
  $region45: #{narx_forward.1} parent=0 // pred_fallthru
    _

</llo_original>
